<compile_context>
chip_gen: v7x
topology: tpu7x:2x2x1
jax: 0.10.0
libtpu: 0.0.40
codegen_flags: <defaults>
</compile_context>

<pallas_src>
import numpy as np
import jax
import jax.numpy as jnp
from jax import lax
from jax.experimental import pallas as pl
from jax.experimental.pallas import tpu as pltpu

# ---------------- model hyper-parameters (small, consistent with the module) ----
d_model = 32          # model width
d_ff = 64             # FFN hidden width
d_k = 8               # per-head key dim
d_v = 8               # per-head value dim
n_heads = 4           # number of heads (n_heads * d_k == d_model)
n_layers = 2          # decoder layers
tgt_vocab_size = 16   # target vocabulary
tgt_len = 8           # decoder sequence length
LN_EPS = 1e-5
QKV_PAD = 128         # fused QKV projection padded to a full 128-lane vreg


# =============================== Pallas kernel ================================

def _layer_norm(y, gamma, beta):
    """Single-pass LayerNorm: one reduction pass for sum and sum-of-squares."""
    n = y.shape[-1]
    inv_n = jnp.float32(1.0 / n)
    mean = jnp.sum(y, axis=-1, keepdims=True) * inv_n
    mean_sq = jnp.sum(y * y, axis=-1, keepdims=True) * inv_n
    var = mean_sq - mean * mean
    return (y - mean) * lax.rsqrt(var + LN_EPS) * gamma + beta


def decoder_kernel(x_ref, enc_ref, smask_ref, emask_ref,
                   sa_wqkv_ref, sa_bqkv_ref, sa_wo_ref, sa_bo_ref, sa_g_ref, sa_b_ref,
                   ea_wqkv_ref, ea_bqkv_ref, ea_wo_ref, ea_bo_ref, ea_g_ref, ea_b_ref,
                   ff_w1_ref, ff_b1_ref, ff_w2_ref, ff_b2_ref, ff_g_ref, ff_b_ref,
                   out_ref, attn_ref):
    """Whole decoder forward: all layers / batch / heads inside one kernel."""
    S = smask_ref.shape[1]
    B = smask_ref.shape[0] // n_heads
    BS = B * S
    D = x_ref.shape[1]
    HK = n_heads * d_k
    HV = n_heads * d_v

    x = x_ref[...]                          # (B*S, D) — B folded into matmul M dim
    enc = enc_ref[...]                      # (B*S, D)
    smask = smask_ref[...]                  # (H*B, S, S) additive, pre-tiled over heads
    emask = emask_ref[...]                  # (H*B, S, S) additive

    def sdpa(q, k, v, mask_n):
        """Head-batched scaled-dot-product attention.

        q, k: (B*S, HK); v: (B*S, HV); mask_n: (H*B, S, S) additive.
        Scale 1/sqrt(d_k) is already folded into the Q projection.
        """
        q3 = q.reshape(B, S, HK)
        k3 = k.reshape(B, S, HK)
        v3 = v.reshape(B, S, HV)
        # Fold heads into the einsum batch dim (ordering n = h*B + b): lane slices +
        # leading-axis concatenate only — no 4-D transposes, no multi-batch dot_general.
        qn = jnp.concatenate([q3[:, :, h * d_k:(h + 1) * d_k] for h in range(n_heads)], axis=0)
        kn = jnp.concatenate([k3[:, :, h * d_k:(h + 1) * d_k] for h in range(n_heads)], axis=0)
        vn = jnp.concatenate([v3[:, :, h * d_v:(h + 1) * d_v] for h in range(n_heads)], axis=0)

        scores = jnp.einsum('nqd,nkd->nqk', qn, kn,
                            preferred_element_type=jnp.float32) + mask_n   # one mask add
        m = jnp.max(scores, axis=-1, keepdims=True)
        e = jnp.exp(scores - m)
        # approx reciprocal -> EUP slot instead of VPU divide iterations
        attn = e * pl.reciprocal(jnp.sum(e, axis=-1, keepdims=True), approx=True)
        ctx_n = jnp.einsum('nqk,nkd->nqd', attn, vn,
                           preferred_element_type=jnp.float32)             # (H*B, S, dv)

        # fold heads back into lanes (column order h*dv + d, matching W_O layout)
        ctx = jnp.concatenate([ctx_n[h * B:(h + 1) * B] for h in range(n_heads)],
                              axis=-1).reshape(BS, HV)
        # lane-dense attention pack (B, S, H*S), column order h*S + k
        attn_pack = jnp.concatenate([attn[h * B:(h + 1) * B] for h in range(n_heads)],
                                    axis=-1)
        return ctx, attn_pack

    attn_packs = []
    h = x
    for l in range(n_layers):
        # -------- masked self-attention: one fused (D, 128) QKV matmul --------
        qkv = jnp.dot(h, sa_wqkv_ref[l],
                      preferred_element_type=jnp.float32) + sa_bqkv_ref[l]
        ctx, attn = sdpa(qkv[:, 0:HK], qkv[:, HK:2 * HK], qkv[:, 2 * HK:2 * HK + HV], smask)
        attn_packs.append(attn)
        o = jnp.dot(ctx, sa_wo_ref[l],
                    preferred_element_type=jnp.float32) + sa_bo_ref[l]
        h = _layer_norm(o + h, sa_g_ref[l], sa_b_ref[l])

        # -------- encoder-decoder attention: ONE fused projection over [h ; enc] ------
        he = jnp.concatenate([h, enc], axis=0)                        # (2*B*S, D)
        proj = jnp.dot(he, ea_wqkv_ref[l],
                       preferred_element_type=jnp.float32) + ea_bqkv_ref[l]
        q = proj[:BS, 0:HK]                 # Q from decoder rows
        k = proj[BS:, HK:2 * HK]            # K from encoder rows
        v = proj[BS:, 2 * HK:2 * HK + HV]   # V from encoder rows
        ctx, attn = sdpa(q, k, v, emask)
        attn_packs.append(attn)
        o = jnp.dot(ctx, ea_wo_ref[l],
                    preferred_element_type=jnp.float32) + ea_bo_ref[l]
        h = _layer_norm(o + h, ea_g_ref[l], ea_b_ref[l])

        # -------- position-wise FFN (two 1x1 convs == two matmuls) ------------
        z = jnp.maximum(jnp.dot(h, ff_w1_ref[l],
                                preferred_element_type=jnp.float32) + ff_b1_ref[l], 0.0)
        o = jnp.dot(z, ff_w2_ref[l],
                    preferred_element_type=jnp.float32) + ff_b2_ref[l]
        h = _layer_norm(o + h, ff_g_ref[l], ff_b_ref[l])

    out_ref[...] = h.reshape(B, S, D)
    # one unmasked, 128-lane store for all attention maps: (B, S, n_layers*2*H*S)
    attn_ref[...] = jnp.concatenate(attn_packs, axis=-1)


# =========================== parameter initialization =========================

def get_sinusoid_encoding_table(n_position, d):
    def cal_angle(position, hid_idx):
        return position / np.power(10000, 2 * (hid_idx // 2) / d)
    tbl = np.array([[cal_angle(p, j) for j in range(d)] for p in range(n_position)])
    tbl[:, 0::2] = np.sin(tbl[:, 0::2])
    tbl[:, 1::2] = np.cos(tbl[:, 1::2])
    return jnp.asarray(tbl, jnp.float32)


def init_params(key):
    """Per-layer weights are fused ([W_Q*scale | W_K | W_V | pad] for both attention
    blocks) and stacked along a leading layer axis so the whole decoder fits one kernel."""
    s = 0.05
    scale = jnp.float32(1.0 / np.sqrt(d_k))
    HK, HV = n_heads * d_k, n_heads * d_v
    pad_cols = QKV_PAD - (2 * HK + HV)
    k_emb, k_layers = jax.random.split(key)
    layer_keys = jax.random.split(k_layers, n_layers)

    sa_wqkv, sa_wo, ea_wqkv, ea_wo, ff_w1, ff_w2 = [], [], [], [], [], []
    for lk in layer_keys:
        ks = jax.random.split(lk, 10)
        wq_s = s * jax.random.normal(ks[0], (d_model, HK), jnp.float32)
        wk_s = s * jax.random.normal(ks[1], (d_model, HK), jnp.float32)
        wv_s = s * jax.random.normal(ks[2], (d_model, HV), jnp.float32)
        wo_s = s * jax.random.normal(ks[3], (HV, d_model), jnp.float32)
        wq_e = s * jax.random.normal(ks[4], (d_model, HK), jnp.float32)
        wk_e = s * jax.random.normal(ks[5], (d_model, HK), jnp.float32)
        wv_e = s * jax.random.normal(ks[6], (d_model, HV), jnp.float32)
        wo_e = s * jax.random.normal(ks[7], (HV, d_model), jnp.float32)
        w1 = s * jax.random.normal(ks[8], (d_model, d_ff), jnp.float32)
        w2 = s * jax.random.normal(ks[9], (d_ff, d_model), jnp.float32)

        pad = jnp.zeros((d_model, pad_cols), jnp.float32)
        sa_wqkv.append(jnp.concatenate([wq_s * scale, wk_s, wv_s, pad], axis=1))  # (D,128)
        ea_wqkv.append(jnp.concatenate([wq_e * scale, wk_e, wv_e, pad], axis=1))  # (D,128)
        sa_wo.append(wo_s)
        ea_wo.append(wo_e)
        ff_w1.append(w1)
        ff_w2.append(w2)

    L = n_layers
    zeros = lambda *shape: jnp.zeros(shape, jnp.float32)
    ones = lambda *shape: jnp.ones(shape, jnp.float32)
    # NOTE: nn.Linear biases are taken as zero here. If trained biases are ever loaded,
    # the Q slice of the fused QKV bias must ALSO be scaled by 1/sqrt(d_k), because the
    # softmax scale is folded into the Q projection.
    return {
        "tgt_emb": 0.1 * jax.random.normal(k_emb, (tgt_vocab_size, d_model), jnp.float32),
        "pos_emb": get_sinusoid_encoding_table(tgt_len + 1, d_model),
        # self-attention (stacked over layers); QKV fused, scale folded into Q
        "sa_wqkv": jnp.stack(sa_wqkv), "sa_bqkv": zeros(L, 1, QKV_PAD),
        "sa_wo": jnp.stack(sa_wo), "sa_bo": zeros(L, 1, d_model),
        "sa_g": ones(L, 1, d_model), "sa_b": zeros(L, 1, d_model),
        # encoder-decoder attention; QKV fused, scale folded into Q
        "ea_wqkv": jnp.stack(ea_wqkv), "ea_bqkv": zeros(L, 1, QKV_PAD),
        "ea_wo": jnp.stack(ea_wo), "ea_bo": zeros(L, 1, d_model),
        "ea_g": ones(L, 1, d_model), "ea_b": zeros(L, 1, d_model),
        # position-wise FFN
        "ff_w1": jnp.stack(ff_w1), "ff_b1": zeros(L, 1, d_ff),
        "ff_w2": jnp.stack(ff_w2), "ff_b2": zeros(L, 1, d_model),
        "ff_g": ones(L, 1, d_model), "ff_b": zeros(L, 1, d_model),
    }


# ================================ mask helpers ================================

def get_attn_pad_mask(seq_q, seq_k):
    B, Lq = seq_q.shape
    _, Lk = seq_k.shape
    pad = (seq_k == 0)[:, None, :]                       # (B, 1, Lk)
    return jnp.broadcast_to(pad, (B, Lq, Lk))


def get_attn_subsequent_mask(seq):
    B, L = seq.shape
    sub = jnp.triu(jnp.ones((L, L), jnp.float32), k=1)
    return jnp.broadcast_to(sub[None], (B, L, L)) > 0


# =============================== Decoder forward ==============================

@jax.jit
def decoder_forward(params, dec_inputs, enc_inputs, enc_outputs):
    B, S = dec_inputs.shape
    # NOTE: the original forward uses the literal token ids as positional indices
    # (torch.LongTensor([[5,1,2,3,4]]) == dec_inputs); mirrored here on purpose.
    x = (jnp.take(params["tgt_emb"], dec_inputs, axis=0)
         + jnp.take(params["pos_emb"], dec_inputs, axis=0))

    pad_mask = get_attn_pad_mask(dec_inputs, dec_inputs)
    sub_mask = get_attn_subsequent_mask(dec_inputs)
    smask = jnp.where(pad_mask | sub_mask, jnp.float32(-1e9), jnp.float32(0.0))
    emask = jnp.where(get_attn_pad_mask(dec_inputs, enc_inputs),
                      jnp.float32(-1e9), jnp.float32(0.0))
    # pre-tile additive masks over heads (index n = h*B + b) -> one add per attention
    smask_n = jnp.tile(smask, (n_heads, 1, 1))
    emask_n = jnp.tile(emask, (n_heads, 1, 1))

    HS = n_heads * S
    out_shapes = (
        jax.ShapeDtypeStruct((B, S, d_model), jnp.float32),              # dec_outputs
        jax.ShapeDtypeStruct((B, S, n_layers * 2 * HS), jnp.float32),    # attn maps, 128-lane slab
    )
    args = (x.reshape(B * S, d_model), enc_outputs.reshape(B * S, d_model),
            smask_n, emask_n,
            params["sa_wqkv"], params["sa_bqkv"], params["sa_wo"], params["sa_bo"],
            params["sa_g"], params["sa_b"],
            params["ea_wqkv"], params["ea_bqkv"], params["ea_wo"], params["ea_bo"],
            params["ea_g"], params["ea_b"],
            params["ff_w1"], params["ff_b1"], params["ff_w2"], params["ff_b2"],
            params["ff_g"], params["ff_b"])

    vmem = pl.BlockSpec(memory_space=pltpu.MemorySpace.VMEM)
    # Single fused pallas_call: no grid, everything VMEM-resident, B folded into M.
    dec_out, attn_slab = pl.pallas_call(
        decoder_kernel,
        out_shape=out_shapes,
        in_specs=[vmem] * len(args),
        out_specs=(vmem, vmem),
    )(*args)

    # unpack (B, S, L*2*H*S) -> per-layer lists of (B, H, S, S)
    a = attn_slab.reshape(B, S, n_layers, 2, n_heads, S).transpose(2, 3, 0, 4, 1, 5)
    self_attns = [a[l, 0] for l in range(n_layers)]
    enc_attns = [a[l, 1] for l in range(n_layers)]
    return dec_out, self_attns, enc_attns


# ===================================== main ===================================

if __name__ == "__main__":
    key = jax.random.PRNGKey(0)
    k_params, k_enc = jax.random.split(key)
    params = init_params(k_params)

    B, S = 2, tgt_len
    dec_inputs = jnp.array([[5, 1, 2, 3, 4, 6, 7, 8],
                            [2, 3, 4, 5, 6, 7, 8, 0]], dtype=jnp.int32)   # (B, S)
    enc_inputs = jnp.array([[1, 2, 3, 4, 5, 6, 7, 0],
                            [3, 4, 5, 6, 7, 8, 0, 0]], dtype=jnp.int32)   # (B, S)
    enc_outputs = jax.random.normal(k_enc, (B, S, d_model), jnp.float32)

    dec_out, self_attns, enc_attns = decoder_forward(params, dec_inputs, enc_inputs, enc_outputs)
    jax.block_until_ready(dec_out)
    jax.block_until_ready(self_attns)
    jax.block_until_ready(enc_attns)

    assert dec_out.shape == (B, S, d_model)
    assert len(self_attns) == n_layers and len(enc_attns) == n_layers
    assert self_attns[0].shape == (B, n_heads, S, S)
    assert enc_attns[0].shape == (B, n_heads, S, S)
    assert bool(jnp.all(jnp.isfinite(dec_out)))
    assert bool(jnp.all(jnp.isfinite(self_attns[0])))
    assert bool(jnp.all(jnp.isfinite(enc_attns[0])))
    print("KERNEL_OK")
</pallas_src>

<mosaic_0001>
module attributes {stable_mosaic.version = 11 : i64} {
  func.func @decoder_kernel(%arg0: memref<16x32xf32, #tpu.memory_space<vmem>>, %arg1: memref<16x32xf32, #tpu.memory_space<vmem>>, %arg2: memref<8x8x8xf32, #tpu.memory_space<vmem>>, %arg3: memref<8x8x8xf32, #tpu.memory_space<vmem>>, %arg4: memref<2x32x128xf32, #tpu.memory_space<vmem>>, %arg5: memref<2x1x128xf32, #tpu.memory_space<vmem>>, %arg6: memref<2x32x32xf32, #tpu.memory_space<vmem>>, %arg7: memref<2x1x32xf32, #tpu.memory_space<vmem>>, %arg8: memref<2x1x32xf32, #tpu.memory_space<vmem>>, %arg9: memref<2x1x32xf32, #tpu.memory_space<vmem>>, %arg10: memref<2x32x128xf32, #tpu.memory_space<vmem>>, %arg11: memref<2x1x128xf32, #tpu.memory_space<vmem>>, %arg12: memref<2x32x32xf32, #tpu.memory_space<vmem>>, %arg13: memref<2x1x32xf32, #tpu.memory_space<vmem>>, %arg14: memref<2x1x32xf32, #tpu.memory_space<vmem>>, %arg15: memref<2x1x32xf32, #tpu.memory_space<vmem>>, %arg16: memref<2x32x64xf32, #tpu.memory_space<vmem>>, %arg17: memref<2x1x64xf32, #tpu.memory_space<vmem>>, %arg18: memref<2x64x32xf32, #tpu.memory_space<vmem>>, %arg19: memref<2x1x32xf32, #tpu.memory_space<vmem>>, %arg20: memref<2x1x32xf32, #tpu.memory_space<vmem>>, %arg21: memref<2x1x32xf32, #tpu.memory_space<vmem>>, %arg22: memref<2x8x32xf32, #tpu.memory_space<vmem>>, %arg23: memref<2x8x128xf32, #tpu.memory_space<vmem>>) attributes {dimension_semantics = [], scalar_prefetch = 0 : i64, scratch_operands = 0 : i64, tpu.core_type = #tpu.core_type<tc>} {
    %c0 = arith.constant 0 : index
    %c0_0 = arith.constant 0 : index
    %0 = vector.load %arg0[%c0, %c0_0] : memref<16x32xf32, #tpu.memory_space<vmem>>, vector<16x32xf32>
    %c0_1 = arith.constant 0 : index
    %c0_2 = arith.constant 0 : index
    %1 = vector.load %arg1[%c0_1, %c0_2] : memref<16x32xf32, #tpu.memory_space<vmem>>, vector<16x32xf32>
    %c0_3 = arith.constant 0 : index
    %c0_4 = arith.constant 0 : index
    %c0_5 = arith.constant 0 : index
    %2 = vector.load %arg2[%c0_3, %c0_4, %c0_5] : memref<8x8x8xf32, #tpu.memory_space<vmem>>, vector<8x8x8xf32>
    %c0_6 = arith.constant 0 : index
    %c0_7 = arith.constant 0 : index
    %c0_8 = arith.constant 0 : index
    %3 = vector.load %arg3[%c0_6, %c0_7, %c0_8] : memref<8x8x8xf32, #tpu.memory_space<vmem>>, vector<8x8x8xf32>
    %c0_9 = arith.constant 0 : index
    %c0_10 = arith.constant 0 : index
    %c0_11 = arith.constant 0 : index
    %4 = vector.load %arg4[%c0_9, %c0_10, %c0_11] : memref<2x32x128xf32, #tpu.memory_space<vmem>>, vector<1x32x128xf32>
    %5 = vector.shape_cast %4 : vector<1x32x128xf32> to vector<32x128xf32>
    %cst = arith.constant dense<0.000000e+00> : vector<16x128xf32>
    %6 = tpu.matmul %0, %5, %cst {dimension_numbers = #tpu.dot_dimension_numbers<[1], [0], [0], [1], [0, 0, 1, 1], [], []>} : vector<16x32xf32>, vector<32x128xf32>, vector<16x128xf32> -> vector<16x128xf32>
    %c0_12 = arith.constant 0 : index
    %c0_13 = arith.constant 0 : index
    %c0_14 = arith.constant 0 : index
    %7 = vector.load %arg5[%c0_12, %c0_13, %c0_14] : memref<2x1x128xf32, #tpu.memory_space<vmem>>, vector<1x1x128xf32>
    %8 = vector.shape_cast %7 : vector<1x1x128xf32> to vector<1x128xf32>
    %9 = vector.broadcast %8 : vector<1x128xf32> to vector<16x128xf32>
    %10 = arith.addf %6, %9 : vector<16x128xf32>
    %11 = vector.extract_strided_slice %10 {offsets = [0, 0], sizes = [16, 32], strides = [1, 1]} : vector<16x128xf32> to vector<16x32xf32>
    %12 = vector.extract_strided_slice %10 {offsets = [0, 32], sizes = [16, 32], strides = [1, 1]} : vector<16x128xf32> to vector<16x32xf32>
    %13 = vector.extract_strided_slice %10 {offsets = [0, 64], sizes = [16, 32], strides = [1, 1]} : vector<16x128xf32> to vector<16x32xf32>
    %14 = vector.shape_cast %11 : vector<16x32xf32> to vector<2x8x32xf32>
    %15 = vector.shape_cast %12 : vector<16x32xf32> to vector<2x8x32xf32>
    %16 = vector.shape_cast %13 : vector<16x32xf32> to vector<2x8x32xf32>
    %17 = vector.extract_strided_slice %14 {offsets = [0, 0, 0], sizes = [2, 8, 8], strides = [1, 1, 1]} : vector<2x8x32xf32> to vector<2x8x8xf32>
    %18 = vector.extract_strided_slice %14 {offsets = [0, 0, 8], sizes = [2, 8, 8], strides = [1, 1, 1]} : vector<2x8x32xf32> to vector<2x8x8xf32>
    %19 = vector.extract_strided_slice %14 {offsets = [0, 0, 16], sizes = [2, 8, 8], strides = [1, 1, 1]} : vector<2x8x32xf32> to vector<2x8x8xf32>
    %20 = vector.extract_strided_slice %14 {offsets = [0, 0, 24], sizes = [2, 8, 8], strides = [1, 1, 1]} : vector<2x8x32xf32> to vector<2x8x8xf32>
    %21 = tpu.concatenate %17, %18, %19, %20 in 0 : vector<2x8x8xf32>, vector<2x8x8xf32>, vector<2x8x8xf32>, vector<2x8x8xf32> -> vector<8x8x8xf32>
    %22 = vector.extract_strided_slice %15 {offsets = [0, 0, 0], sizes = [2, 8, 8], strides = [1, 1, 1]} : vector<2x8x32xf32> to vector<2x8x8xf32>
    %23 = vector.extract_strided_slice %15 {offsets = [0, 0, 8], sizes = [2, 8, 8], strides = [1, 1, 1]} : vector<2x8x32xf32> to vector<2x8x8xf32>
    %24 = vector.extract_strided_slice %15 {offsets = [0, 0, 16], sizes = [2, 8, 8], strides = [1, 1, 1]} : vector<2x8x32xf32> to vector<2x8x8xf32>
    %25 = vector.extract_strided_slice %15 {offsets = [0, 0, 24], sizes = [2, 8, 8], strides = [1, 1, 1]} : vector<2x8x32xf32> to vector<2x8x8xf32>
    %26 = tpu.concatenate %22, %23, %24, %25 in 0 : vector<2x8x8xf32>, vector<2x8x8xf32>, vector<2x8x8xf32>, vector<2x8x8xf32> -> vector<8x8x8xf32>
    %27 = vector.extract_strided_slice %16 {offsets = [0, 0, 0], sizes = [2, 8, 8], strides = [1, 1, 1]} : vector<2x8x32xf32> to vector<2x8x8xf32>
    %28 = vector.extract_strided_slice %16 {offsets = [0, 0, 8], sizes = [2, 8, 8], strides = [1, 1, 1]} : vector<2x8x32xf32> to vector<2x8x8xf32>
    %29 = vector.extract_strided_slice %16 {offsets = [0, 0, 16], sizes = [2, 8, 8], strides = [1, 1, 1]} : vector<2x8x32xf32> to vector<2x8x8xf32>
    %30 = vector.extract_strided_slice %16 {offsets = [0, 0, 24], sizes = [2, 8, 8], strides = [1, 1, 1]} : vector<2x8x32xf32> to vector<2x8x8xf32>
    %31 = tpu.concatenate %27, %28, %29, %30 in 0 : vector<2x8x8xf32>, vector<2x8x8xf32>, vector<2x8x8xf32>, vector<2x8x8xf32> -> vector<8x8x8xf32>
    "tpu.trace_start"() <{level = 10 : i32, message = "nqd,nkd->nqk"}> : () -> ()
    %cst_15 = arith.constant dense<0.000000e+00> : vector<8x8x8xf32>
    %32 = tpu.matmul %21, %26, %cst_15 {dimension_numbers = #tpu.dot_dimension_numbers<[2], [2], [1], [1], [0, 0, 0, 1, 1, 1], [0], [0]>} : vector<8x8x8xf32>, vector<8x8x8xf32>, vector<8x8x8xf32> -> vector<8x8x8xf32>
    "tpu.trace_stop"() : () -> ()
    %33 = arith.addf %32, %2 : vector<8x8x8xf32>
    %cst_16 = arith.constant dense<0xFF800000> : vector<8x8xf32>
    %34 = vector.multi_reduction <maximumf>, %33, %cst_16 [2] : vector<8x8x8xf32> to vector<8x8xf32>
    %35 = vector.shape_cast %34 : vector<8x8xf32> to vector<8x8x1xf32>
    %36 = vector.broadcast %35 : vector<8x8x1xf32> to vector<8x8x8xf32>
    %37 = arith.subf %33, %36 : vector<8x8x8xf32>
    %38 = math.exp %37 : vector<8x8x8xf32>
    %cst_17 = arith.constant dense<0.000000e+00> : vector<8x8xf32>
    %39 = vector.multi_reduction <add>, %38, %cst_17 [2] : vector<8x8x8xf32> to vector<8x8xf32>
    %40 = vector.shape_cast %39 : vector<8x8xf32> to vector<8x8x1xf32>
    %41 = tpu.reciprocal %40 {approx = true} : vector<8x8x1xf32> -> vector<8x8x1xf32>
    %42 = vector.broadcast %41 : vector<8x8x1xf32> to vector<8x8x8xf32>
    %43 = arith.mulf %38, %42 : vector<8x8x8xf32>
    "tpu.trace_start"() <{level = 10 : i32, message = "nqk,nkd->nqd"}> : () -> ()
    %cst_18 = arith.constant dense<0.000000e+00> : vector<8x8x8xf32>
    %44 = tpu.matmul %43, %31, %cst_18 {dimension_numbers = #tpu.dot_dimension_numbers<[2], [1], [1], [2], [0, 0, 0, 1, 1, 2], [0], [0]>} : vector<8x8x8xf32>, vector<8x8x8xf32>, vector<8x8x8xf32> -> vector<8x8x8xf32>
    "tpu.trace_stop"() : () -> ()
    %45 = vector.extract_strided_slice %44 {offsets = [0, 0, 0], sizes = [2, 8, 8], strides = [1, 1, 1]} : vector<8x8x8xf32> to vector<2x8x8xf32>
    %46 = vector.extract_strided_slice %44 {offsets = [2, 0, 0], sizes = [2, 8, 8], strides = [1, 1, 1]} : vector<8x8x8xf32> to vector<2x8x8xf32>
    %47 = vector.extract_strided_slice %44 {offsets = [4, 0, 0], sizes = [2, 8, 8], strides = [1, 1, 1]} : vector<8x8x8xf32> to vector<2x8x8xf32>
    %48 = vector.extract_strided_slice %44 {offsets = [6, 0, 0], sizes = [2, 8, 8], strides = [1, 1, 1]} : vector<8x8x8xf32> to vector<2x8x8xf32>
    %49 = tpu.concatenate %45, %46, %47, %48 in 2 : vector<2x8x8xf32>, vector<2x8x8xf32>, vector<2x8x8xf32>, vector<2x8x8xf32> -> vector<2x8x32xf32>
    %50 = vector.shape_cast %49 : vector<2x8x32xf32> to vector<16x32xf32>
    %51 = vector.extract_strided_slice %43 {offsets = [0, 0, 0], sizes = [2, 8, 8], strides = [1, 1, 1]} : vector<8x8x8xf32> to vector<2x8x8xf32>
    %52 = vector.extract_strided_slice %43 {offsets = [2, 0, 0], sizes = [2, 8, 8], strides = [1, 1, 1]} : vector<8x8x8xf32> to vector<2x8x8xf32>
    %53 = vector.extract_strided_slice %43 {offsets = [4, 0, 0], sizes = [2, 8, 8], strides = [1, 1, 1]} : vector<8x8x8xf32> to vector<2x8x8xf32>
    %54 = vector.extract_strided_slice %43 {offsets = [6, 0, 0], sizes = [2, 8, 8], strides = [1, 1, 1]} : vector<8x8x8xf32> to vector<2x8x8xf32>
    %55 = tpu.concatenate %51, %52, %53, %54 in 2 : vector<2x8x8xf32>, vector<2x8x8xf32>, vector<2x8x8xf32>, vector<2x8x8xf32> -> vector<2x8x32xf32>
    %c0_19 = arith.constant 0 : index
    %c0_20 = arith.constant 0 : index
    %c0_21 = arith.constant 0 : index
    %56 = vector.load %arg6[%c0_19, %c0_20, %c0_21] : memref<2x32x32xf32, #tpu.memory_space<vmem>>, vector<1x32x32xf32>
    %57 = vector.shape_cast %56 : vector<1x32x32xf32> to vector<32x32xf32>
    %cst_22 = arith.constant dense<0.000000e+00> : vector<16x32xf32>
    %58 = tpu.matmul %50, %57, %cst_22 {dimension_numbers = #tpu.dot_dimension_numbers<[1], [0], [0], [1], [0, 0, 1, 1], [], []>} : vector<16x32xf32>, vector<32x32xf32>, vector<16x32xf32> -> vector<16x32xf32>
    %c0_23 = arith.constant 0 : index
    %c0_24 = arith.constant 0 : index
    %c0_25 = arith.constant 0 : index
    %59 = vector.load %arg7[%c0_23, %c0_24, %c0_25] : memref<2x1x32xf32, #tpu.memory_space<vmem>>, vector<1x1x32xf32>
    %60 = vector.shape_cast %59 : vector<1x1x32xf32> to vector<1x32xf32>
    %61 = vector.broadcast %60 : vector<1x32xf32> to vector<16x32xf32>
    %62 = arith.addf %58, %61 : vector<16x32xf32>
    %63 = arith.addf %62, %0 : vector<16x32xf32>
    %c0_26 = arith.constant 0 : index
    %c0_27 = arith.constant 0 : index
    %c0_28 = arith.constant 0 : index
    %64 = vector.load %arg8[%c0_26, %c0_27, %c0_28] : memref<2x1x32xf32, #tpu.memory_space<vmem>>, vector<1x1x32xf32>
    %65 = vector.shape_cast %64 : vector<1x1x32xf32> to vector<1x32xf32>
    %c0_29 = arith.constant 0 : index
    %c0_30 = arith.constant 0 : index
    %c0_31 = arith.constant 0 : index
    %66 = vector.load %arg9[%c0_29, %c0_30, %c0_31] : memref<2x1x32xf32, #tpu.memory_space<vmem>>, vector<1x1x32xf32>
    %67 = vector.shape_cast %66 : vector<1x1x32xf32> to vector<1x32xf32>
    %cst_32 = arith.constant dense<0.000000e+00> : vector<16xf32>
    %68 = vector.multi_reduction <add>, %63, %cst_32 [1] : vector<16x32xf32> to vector<16xf32>
    %69 = vector.shape_cast %68 : vector<16xf32> to vector<16x1xf32>
    %cst_33 = arith.constant 3.125000e-02 : f32
    %70 = vector.broadcast %cst_33 : f32 to vector<16x1xf32>
    %71 = arith.mulf %69, %70 : vector<16x1xf32>
    %72 = arith.mulf %63, %63 : vector<16x32xf32>
    %cst_34 = arith.constant dense<0.000000e+00> : vector<16xf32>
    %73 = vector.multi_reduction <add>, %72, %cst_34 [1] : vector<16x32xf32> to vector<16xf32>
    %74 = vector.shape_cast %73 : vector<16xf32> to vector<16x1xf32>
    %cst_35 = arith.constant 3.125000e-02 : f32
    %75 = vector.broadcast %cst_35 : f32 to vector<16x1xf32>
    %76 = arith.mulf %74, %75 : vector<16x1xf32>
    %77 = arith.mulf %71, %71 : vector<16x1xf32>
    %78 = arith.subf %76, %77 : vector<16x1xf32>
    %79 = vector.broadcast %71 : vector<16x1xf32> to vector<16x32xf32>
    %80 = arith.subf %63, %79 : vector<16x32xf32>
    %cst_36 = arith.constant 9.99999974E-6 : f32
    %81 = vector.broadcast %cst_36 : f32 to vector<16x1xf32>
    %82 = arith.addf %78, %81 : vector<16x1xf32>
    %83 = math.rsqrt %82 : vector<16x1xf32>
    %84 = vector.broadcast %83 : vector<16x1xf32> to vector<16x32xf32>
    %85 = arith.mulf %80, %84 : vector<16x32xf32>
    %86 = vector.broadcast %65 : vector<1x32xf32> to vector<16x32xf32>
    %87 = arith.mulf %85, %86 : vector<16x32xf32>
    %88 = vector.broadcast %67 : vector<1x32xf32> to vector<16x32xf32>
    %89 = arith.addf %87, %88 : vector<16x32xf32>
    %90 = tpu.concatenate %89, %1 in 0 : vector<16x32xf32>, vector<16x32xf32> -> vector<32x32xf32>
    %c0_37 = arith.constant 0 : index
    %c0_38 = arith.constant 0 : index
    %c0_39 = arith.constant 0 : index
    %91 = vector.load %arg10[%c0_37, %c0_38, %c0_39] : memref<2x32x128xf32, #tpu.memory_space<vmem>>, vector<1x32x128xf32>
    %92 = vector.shape_cast %91 : vector<1x32x128xf32> to vector<32x128xf32>
    %cst_40 = arith.constant dense<0.000000e+00> : vector<32x128xf32>
    %93 = tpu.matmul %90, %92, %cst_40 {dimension_numbers = #tpu.dot_dimension_numbers<[1], [0], [0], [1], [0, 0, 1, 1], [], []>} : vector<32x32xf32>, vector<32x128xf32>, vector<32x128xf32> -> vector<32x128xf32>
    %c0_41 = arith.constant 0 : index
    %c0_42 = arith.constant 0 : index
    %c0_43 = arith.constant 0 : index
    %94 = vector.load %arg11[%c0_41, %c0_42, %c0_43] : memref<2x1x128xf32, #tpu.memory_space<vmem>>, vector<1x1x128xf32>
    %95 = vector.shape_cast %94 : vector<1x1x128xf32> to vector<1x128xf32>
    %96 = vector.broadcast %95 : vector<1x128xf32> to vector<32x128xf32>
    %97 = arith.addf %93, %96 : vector<32x128xf32>
    %98 = vector.extract_strided_slice %97 {offsets = [0, 0], sizes = [16, 32], strides = [1, 1]} : vector<32x128xf32> to vector<16x32xf32>
    %99 = vector.extract_strided_slice %97 {offsets = [16, 32], sizes = [16, 32], strides = [1, 1]} : vector<32x128xf32> to vector<16x32xf32>
    %100 = vector.extract_strided_slice %97 {offsets = [16, 64], sizes = [16, 32], strides = [1, 1]} : vector<32x128xf32> to vector<16x32xf32>
    %101 = vector.shape_cast %98 : vector<16x32xf32> to vector<2x8x32xf32>
    %102 = vector.shape_cast %99 : vector<16x32xf32> to vector<2x8x32xf32>
    %103 = vector.shape_cast %100 : vector<16x32xf32> to vector<2x8x32xf32>
    %104 = vector.extract_strided_slice %101 {offsets = [0, 0, 0], sizes = [2, 8, 8], strides = [1, 1, 1]} : vector<2x8x32xf32> to vector<2x8x8xf32>
    %105 = vector.extract_strided_slice %101 {offsets = [0, 0, 8], sizes = [2, 8, 8], strides = [1, 1, 1]} : vector<2x8x32xf32> to vector<2x8x8xf32>
    %106 = vector.extract_strided_slice %101 {offsets = [0, 0, 16], sizes = [2, 8, 8], strides = [1, 1, 1]} : vector<2x8x32xf32> to vector<2x8x8xf32>
    %107 = vector.extract_strided_slice %101 {offsets = [0, 0, 24], sizes = [2, 8, 8], strides = [1, 1, 1]} : vector<2x8x32xf32> to vector<2x8x8xf32>
    %108 = tpu.concatenate %104, %105, %106, %107 in 0 : vector<2x8x8xf32>, vector<2x8x8xf32>, vector<2x8x8xf32>, vector<2x8x8xf32> -> vector<8x8x8xf32>
    %109 = vector.extract_strided_slice %102 {offsets = [0, 0, 0], sizes = [2, 8, 8], strides = [1, 1, 1]} : vector<2x8x32xf32> to vector<2x8x8xf32>
    %110 = vector.extract_strided_slice %102 {offsets = [0, 0, 8], sizes = [2, 8, 8], strides = [1, 1, 1]} : vector<2x8x32xf32> to vector<2x8x8xf32>
    %111 = vector.extract_strided_slice %102 {offsets = [0, 0, 16], sizes = [2, 8, 8], strides = [1, 1, 1]} : vector<2x8x32xf32> to vector<2x8x8xf32>
    %112 = vector.extract_strided_slice %102 {offsets = [0, 0, 24], sizes = [2, 8, 8], strides = [1, 1, 1]} : vector<2x8x32xf32> to vector<2x8x8xf32>
    %113 = tpu.concatenate %109, %110, %111, %112 in 0 : vector<2x8x8xf32>, vector<2x8x8xf32>, vector<2x8x8xf32>, vector<2x8x8xf32> -> vector<8x8x8xf32>
    %114 = vector.extract_strided_slice %103 {offsets = [0, 0, 0], sizes = [2, 8, 8], strides = [1, 1, 1]} : vector<2x8x32xf32> to vector<2x8x8xf32>
    %115 = vector.extract_strided_slice %103 {offsets = [0, 0, 8], sizes = [2, 8, 8], strides = [1, 1, 1]} : vector<2x8x32xf32> to vector<2x8x8xf32>
    %116 = vector.extract_strided_slice %103 {offsets = [0, 0, 16], sizes = [2, 8, 8], strides = [1, 1, 1]} : vector<2x8x32xf32> to vector<2x8x8xf32>
    %117 = vector.extract_strided_slice %103 {offsets = [0, 0, 24], sizes = [2, 8, 8], strides = [1, 1, 1]} : vector<2x8x32xf32> to vector<2x8x8xf32>
    %118 = tpu.concatenate %114, %115, %116, %117 in 0 : vector<2x8x8xf32>, vector<2x8x8xf32>, vector<2x8x8xf32>, vector<2x8x8xf32> -> vector<8x8x8xf32>
    "tpu.trace_start"() <{level = 10 : i32, message = "nqd,nkd->nqk"}> : () -> ()
    %cst_44 = arith.constant dense<0.000000e+00> : vector<8x8x8xf32>
    %119 = tpu.matmul %108, %113, %cst_44 {dimension_numbers = #tpu.dot_dimension_numbers<[2], [2], [1], [1], [0, 0, 0, 1, 1, 1], [0], [0]>} : vector<8x8x8xf32>, vector<8x8x8xf32>, vector<8x8x8xf32> -> vector<8x8x8xf32>
    "tpu.trace_stop"() : () -> ()
    %120 = arith.addf %119, %3 : vector<8x8x8xf32>
    %cst_45 = arith.constant dense<0xFF800000> : vector<8x8xf32>
    %121 = vector.multi_reduction <maximumf>, %120, %cst_45 [2] : vector<8x8x8xf32> to vector<8x8xf32>
    %122 = vector.shape_cast %121 : vector<8x8xf32> to vector<8x8x1xf32>
    %123 = vector.broadcast %122 : vector<8x8x1xf32> to vector<8x8x8xf32>
    %124 = arith.subf %120, %123 : vector<8x8x8xf32>
    %125 = math.exp %124 : vector<8x8x8xf32>
    %cst_46 = arith.constant dense<0.000000e+00> : vector<8x8xf32>
    %126 = vector.multi_reduction <add>, %125, %cst_46 [2] : vector<8x8x8xf32> to vector<8x8xf32>
    %127 = vector.shape_cast %126 : vector<8x8xf32> to vector<8x8x1xf32>
    %128 = tpu.reciprocal %127 {approx = true} : vector<8x8x1xf32> -> vector<8x8x1xf32>
    %129 = vector.broadcast %128 : vector<8x8x1xf32> to vector<8x8x8xf32>
    %130 = arith.mulf %125, %129 : vector<8x8x8xf32>
    "tpu.trace_start"() <{level = 10 : i32, message = "nqk,nkd->nqd"}> : () -> ()
    %cst_47 = arith.constant dense<0.000000e+00> : vector<8x8x8xf32>
    %131 = tpu.matmul %130, %118, %cst_47 {dimension_numbers = #tpu.dot_dimension_numbers<[2], [1], [1], [2], [0, 0, 0, 1, 1, 2], [0], [0]>} : vector<8x8x8xf32>, vector<8x8x8xf32>, vector<8x8x8xf32> -> vector<8x8x8xf32>
    "tpu.trace_stop"() : () -> ()
    %132 = vector.extract_strided_slice %131 {offsets = [0, 0, 0], sizes = [2, 8, 8], strides = [1, 1, 1]} : vector<8x8x8xf32> to vector<2x8x8xf32>
    %133 = vector.extract_strided_slice %131 {offsets = [2, 0, 0], sizes = [2, 8, 8], strides = [1, 1, 1]} : vector<8x8x8xf32> to vector<2x8x8xf32>
    %134 = vector.extract_strided_slice %131 {offsets = [4, 0, 0], sizes = [2, 8, 8], strides = [1, 1, 1]} : vector<8x8x8xf32> to vector<2x8x8xf32>
    %135 = vector.extract_strided_slice %131 {offsets = [6, 0, 0], sizes = [2, 8, 8], strides = [1, 1, 1]} : vector<8x8x8xf32> to vector<2x8x8xf32>
    %136 = tpu.concatenate %132, %133, %134, %135 in 2 : vector<2x8x8xf32>, vector<2x8x8xf32>, vector<2x8x8xf32>, vector<2x8x8xf32> -> vector<2x8x32xf32>
    %137 = vector.shape_cast %136 : vector<2x8x32xf32> to vector<16x32xf32>
    %138 = vector.extract_strided_slice %130 {offsets = [0, 0, 0], sizes = [2, 8, 8], strides = [1, 1, 1]} : vector<8x8x8xf32> to vector<2x8x8xf32>
    %139 = vector.extract_strided_slice %130 {offsets = [2, 0, 0], sizes = [2, 8, 8], strides = [1, 1, 1]} : vector<8x8x8xf32> to vector<2x8x8xf32>
    %140 = vector.extract_strided_slice %130 {offsets = [4, 0, 0], sizes = [2, 8, 8], strides = [1, 1, 1]} : vector<8x8x8xf32> to vector<2x8x8xf32>
    %141 = vector.extract_strided_slice %130 {offsets = [6, 0, 0], sizes = [2, 8, 8], strides = [1, 1, 1]} : vector<8x8x8xf32> to vector<2x8x8xf32>
    %142 = tpu.concatenate %138, %139, %140, %141 in 2 : vector<2x8x8xf32>, vector<2x8x8xf32>, vector<2x8x8xf32>, vector<2x8x8xf32> -> vector<2x8x32xf32>
    %c0_48 = arith.constant 0 : index
    %c0_49 = arith.constant 0 : index
    %c0_50 = arith.constant 0 : index
    %143 = vector.load %arg12[%c0_48, %c0_49, %c0_50] : memref<2x32x32xf32, #tpu.memory_space<vmem>>, vector<1x32x32xf32>
    %144 = vector.shape_cast %143 : vector<1x32x32xf32> to vector<32x32xf32>
    %cst_51 = arith.constant dense<0.000000e+00> : vector<16x32xf32>
    %145 = tpu.matmul %137, %144, %cst_51 {dimension_numbers = #tpu.dot_dimension_numbers<[1], [0], [0], [1], [0, 0, 1, 1], [], []>} : vector<16x32xf32>, vector<32x32xf32>, vector<16x32xf32> -> vector<16x32xf32>
    %c0_52 = arith.constant 0 : index
    %c0_53 = arith.constant 0 : index
    %c0_54 = arith.constant 0 : index
    %146 = vector.load %arg13[%c0_52, %c0_53, %c0_54] : memref<2x1x32xf32, #tpu.memory_space<vmem>>, vector<1x1x32xf32>
    %147 = vector.shape_cast %146 : vector<1x1x32xf32> to vector<1x32xf32>
    %148 = vector.broadcast %147 : vector<1x32xf32> to vector<16x32xf32>
    %149 = arith.addf %145, %148 : vector<16x32xf32>
    %150 = arith.addf %149, %89 : vector<16x32xf32>
    %c0_55 = arith.constant 0 : index
    %c0_56 = arith.constant 0 : index
    %c0_57 = arith.constant 0 : index
    %151 = vector.load %arg14[%c0_55, %c0_56, %c0_57] : memref<2x1x32xf32, #tpu.memory_space<vmem>>, vector<1x1x32xf32>
    %152 = vector.shape_cast %151 : vector<1x1x32xf32> to vector<1x32xf32>
    %c0_58 = arith.constant 0 : index
    %c0_59 = arith.constant 0 : index
    %c0_60 = arith.constant 0 : index
    %153 = vector.load %arg15[%c0_58, %c0_59, %c0_60] : memref<2x1x32xf32, #tpu.memory_space<vmem>>, vector<1x1x32xf32>
    %154 = vector.shape_cast %153 : vector<1x1x32xf32> to vector<1x32xf32>
    %cst_61 = arith.constant dense<0.000000e+00> : vector<16xf32>
    %155 = vector.multi_reduction <add>, %150, %cst_61 [1] : vector<16x32xf32> to vector<16xf32>
    %156 = vector.shape_cast %155 : vector<16xf32> to vector<16x1xf32>
    %cst_62 = arith.constant 3.125000e-02 : f32
    %157 = vector.broadcast %cst_62 : f32 to vector<16x1xf32>
    %158 = arith.mulf %156, %157 : vector<16x1xf32>
    %159 = arith.mulf %150, %150 : vector<16x32xf32>
    %cst_63 = arith.constant dense<0.000000e+00> : vector<16xf32>
    %160 = vector.multi_reduction <add>, %159, %cst_63 [1] : vector<16x32xf32> to vector<16xf32>
    %161 = vector.shape_cast %160 : vector<16xf32> to vector<16x1xf32>
    %cst_64 = arith.constant 3.125000e-02 : f32
    %162 = vector.broadcast %cst_64 : f32 to vector<16x1xf32>
    %163 = arith.mulf %161, %162 : vector<16x1xf32>
    %164 = arith.mulf %158, %158 : vector<16x1xf32>
    %165 = arith.subf %163, %164 : vector<16x1xf32>
    %166 = vector.broadcast %158 : vector<16x1xf32> to vector<16x32xf32>
    %167 = arith.subf %150, %166 : vector<16x32xf32>
    %cst_65 = arith.constant 9.99999974E-6 : f32
    %168 = vector.broadcast %cst_65 : f32 to vector<16x1xf32>
    %169 = arith.addf %165, %168 : vector<16x1xf32>
    %170 = math.rsqrt %169 : vector<16x1xf32>
    %171 = vector.broadcast %170 : vector<16x1xf32> to vector<16x32xf32>
    %172 = arith.mulf %167, %171 : vector<16x32xf32>
    %173 = vector.broadcast %152 : vector<1x32xf32> to vector<16x32xf32>
    %174 = arith.mulf %172, %173 : vector<16x32xf32>
    %175 = vector.broadcast %154 : vector<1x32xf32> to vector<16x32xf32>
    %176 = arith.addf %174, %175 : vector<16x32xf32>
    %c0_66 = arith.constant 0 : index
    %c0_67 = arith.constant 0 : index
    %c0_68 = arith.constant 0 : index
    %177 = vector.load %arg16[%c0_66, %c0_67, %c0_68] : memref<2x32x64xf32, #tpu.memory_space<vmem>>, vector<1x32x64xf32>
    %178 = vector.shape_cast %177 : vector<1x32x64xf32> to vector<32x64xf32>
    %cst_69 = arith.constant dense<0.000000e+00> : vector<16x64xf32>
    %179 = tpu.matmul %176, %178, %cst_69 {dimension_numbers = #tpu.dot_dimension_numbers<[1], [0], [0], [1], [0, 0, 1, 1], [], []>} : vector<16x32xf32>, vector<32x64xf32>, vector<16x64xf32> -> vector<16x64xf32>
    %c0_70 = arith.constant 0 : index
    %c0_71 = arith.constant 0 : index
    %c0_72 = arith.constant 0 : index
    %180 = vector.load %arg17[%c0_70, %c0_71, %c0_72] : memref<2x1x64xf32, #tpu.memory_space<vmem>>, vector<1x1x64xf32>
    %181 = vector.shape_cast %180 : vector<1x1x64xf32> to vector<1x64xf32>
    %182 = vector.broadcast %181 : vector<1x64xf32> to vector<16x64xf32>
    %183 = arith.addf %179, %182 : vector<16x64xf32>
    %cst_73 = arith.constant 0.000000e+00 : f32
    %184 = vector.broadcast %cst_73 : f32 to vector<16x64xf32>
    %185 = arith.maximumf %183, %184 : vector<16x64xf32>
    %c0_74 = arith.constant 0 : index
    %c0_75 = arith.constant 0 : index
    %c0_76 = arith.constant 0 : index
    %186 = vector.load %arg18[%c0_74, %c0_75, %c0_76] : memref<2x64x32xf32, #tpu.memory_space<vmem>>, vector<1x64x32xf32>
    %187 = vector.shape_cast %186 : vector<1x64x32xf32> to vector<64x32xf32>
    %cst_77 = arith.constant dense<0.000000e+00> : vector<16x32xf32>
    %188 = tpu.matmul %185, %187, %cst_77 {dimension_numbers = #tpu.dot_dimension_numbers<[1], [0], [0], [1], [0, 0, 1, 1], [], []>} : vector<16x64xf32>, vector<64x32xf32>, vector<16x32xf32> -> vector<16x32xf32>
    %c0_78 = arith.constant 0 : index
    %c0_79 = arith.constant 0 : index
    %c0_80 = arith.constant 0 : index
    %189 = vector.load %arg19[%c0_78, %c0_79, %c0_80] : memref<2x1x32xf32, #tpu.memory_space<vmem>>, vector<1x1x32xf32>
    %190 = vector.shape_cast %189 : vector<1x1x32xf32> to vector<1x32xf32>
    %191 = vector.broadcast %190 : vector<1x32xf32> to vector<16x32xf32>
    %192 = arith.addf %188, %191 : vector<16x32xf32>
    %193 = arith.addf %192, %176 : vector<16x32xf32>
    %c0_81 = arith.constant 0 : index
    %c0_82 = arith.constant 0 : index
    %c0_83 = arith.constant 0 : index
    %194 = vector.load %arg20[%c0_81, %c0_82, %c0_83] : memref<2x1x32xf32, #tpu.memory_space<vmem>>, vector<1x1x32xf32>
    %195 = vector.shape_cast %194 : vector<1x1x32xf32> to vector<1x32xf32>
    %c0_84 = arith.constant 0 : index
    %c0_85 = arith.constant 0 : index
    %c0_86 = arith.constant 0 : index
    %196 = vector.load %arg21[%c0_84, %c0_85, %c0_86] : memref<2x1x32xf32, #tpu.memory_space<vmem>>, vector<1x1x32xf32>
    %197 = vector.shape_cast %196 : vector<1x1x32xf32> to vector<1x32xf32>
    %cst_87 = arith.constant dense<0.000000e+00> : vector<16xf32>
    %198 = vector.multi_reduction <add>, %193, %cst_87 [1] : vector<16x32xf32> to vector<16xf32>
    %199 = vector.shape_cast %198 : vector<16xf32> to vector<16x1xf32>
    %cst_88 = arith.constant 3.125000e-02 : f32
    %200 = vector.broadcast %cst_88 : f32 to vector<16x1xf32>
    %201 = arith.mulf %199, %200 : vector<16x1xf32>
    %202 = arith.mulf %193, %193 : vector<16x32xf32>
    %cst_89 = arith.constant dense<0.000000e+00> : vector<16xf32>
    %203 = vector.multi_reduction <add>, %202, %cst_89 [1] : vector<16x32xf32> to vector<16xf32>
    %204 = vector.shape_cast %203 : vector<16xf32> to vector<16x1xf32>
    %cst_90 = arith.constant 3.125000e-02 : f32
    %205 = vector.broadcast %cst_90 : f32 to vector<16x1xf32>
    %206 = arith.mulf %204, %205 : vector<16x1xf32>
    %207 = arith.mulf %201, %201 : vector<16x1xf32>
    %208 = arith.subf %206, %207 : vector<16x1xf32>
    %209 = vector.broadcast %201 : vector<16x1xf32> to vector<16x32xf32>
    %210 = arith.subf %193, %209 : vector<16x32xf32>
    %cst_91 = arith.constant 9.99999974E-6 : f32
    %211 = vector.broadcast %cst_91 : f32 to vector<16x1xf32>
    %212 = arith.addf %208, %211 : vector<16x1xf32>
    %213 = math.rsqrt %212 : vector<16x1xf32>
    %214 = vector.broadcast %213 : vector<16x1xf32> to vector<16x32xf32>
    %215 = arith.mulf %210, %214 : vector<16x32xf32>
    %216 = vector.broadcast %195 : vector<1x32xf32> to vector<16x32xf32>
    %217 = arith.mulf %215, %216 : vector<16x32xf32>
    %218 = vector.broadcast %197 : vector<1x32xf32> to vector<16x32xf32>
    %219 = arith.addf %217, %218 : vector<16x32xf32>
    %c1 = arith.constant 1 : index
    %c0_92 = arith.constant 0 : index
    %c0_93 = arith.constant 0 : index
    %220 = vector.load %arg4[%c1, %c0_92, %c0_93] : memref<2x32x128xf32, #tpu.memory_space<vmem>>, vector<1x32x128xf32>
    %221 = vector.shape_cast %220 : vector<1x32x128xf32> to vector<32x128xf32>
    %cst_94 = arith.constant dense<0.000000e+00> : vector<16x128xf32>
    %222 = tpu.matmul %219, %221, %cst_94 {dimension_numbers = #tpu.dot_dimension_numbers<[1], [0], [0], [1], [0, 0, 1, 1], [], []>} : vector<16x32xf32>, vector<32x128xf32>, vector<16x128xf32> -> vector<16x128xf32>
    %c1_95 = arith.constant 1 : index
    %c0_96 = arith.constant 0 : index
    %c0_97 = arith.constant 0 : index
    %223 = vector.load %arg5[%c1_95, %c0_96, %c0_97] : memref<2x1x128xf32, #tpu.memory_space<vmem>>, vector<1x1x128xf32>
    %224 = vector.shape_cast %223 : vector<1x1x128xf32> to vector<1x128xf32>
    %225 = vector.broadcast %224 : vector<1x128xf32> to vector<16x128xf32>
    %226 = arith.addf %222, %225 : vector<16x128xf32>
    %227 = vector.extract_strided_slice %226 {offsets = [0, 0], sizes = [16, 32], strides = [1, 1]} : vector<16x128xf32> to vector<16x32xf32>
    %228 = vector.extract_strided_slice %226 {offsets = [0, 32], sizes = [16, 32], strides = [1, 1]} : vector<16x128xf32> to vector<16x32xf32>
    %229 = vector.extract_strided_slice %226 {offsets = [0, 64], sizes = [16, 32], strides = [1, 1]} : vector<16x128xf32> to vector<16x32xf32>
    %230 = vector.shape_cast %227 : vector<16x32xf32> to vector<2x8x32xf32>
    %231 = vector.shape_cast %228 : vector<16x32xf32> to vector<2x8x32xf32>
    %232 = vector.shape_cast %229 : vector<16x32xf32> to vector<2x8x32xf32>
    %233 = vector.extract_strided_slice %230 {offsets = [0, 0, 0], sizes = [2, 8, 8], strides = [1, 1, 1]} : vector<2x8x32xf32> to vector<2x8x8xf32>
    %234 = vector.extract_strided_slice %230 {offsets = [0, 0, 8], sizes = [2, 8, 8], strides = [1, 1, 1]} : vector<2x8x32xf32> to vector<2x8x8xf32>
    %235 = vector.extract_strided_slice %230 {offsets = [0, 0, 16], sizes = [2, 8, 8], strides = [1, 1, 1]} : vector<2x8x32xf32> to vector<2x8x8xf32>
    %236 = vector.extract_strided_slice %230 {offsets = [0, 0, 24], sizes = [2, 8, 8], strides = [1, 1, 1]} : vector<2x8x32xf32> to vector<2x8x8xf32>
    %237 = tpu.concatenate %233, %234, %235, %236 in 0 : vector<2x8x8xf32>, vector<2x8x8xf32>, vector<2x8x8xf32>, vector<2x8x8xf32> -> vector<8x8x8xf32>
    %238 = vector.extract_strided_slice %231 {offsets = [0, 0, 0], sizes = [2, 8, 8], strides = [1, 1, 1]} : vector<2x8x32xf32> to vector<2x8x8xf32>
    %239 = vector.extract_strided_slice %231 {offsets = [0, 0, 8], sizes = [2, 8, 8], strides = [1, 1, 1]} : vector<2x8x32xf32> to vector<2x8x8xf32>
    %240 = vector.extract_strided_slice %231 {offsets = [0, 0, 16], sizes = [2, 8, 8], strides = [1, 1, 1]} : vector<2x8x32xf32> to vector<2x8x8xf32>
    %241 = vector.extract_strided_slice %231 {offsets = [0, 0, 24], sizes = [2, 8, 8], strides = [1, 1, 1]} : vector<2x8x32xf32> to vector<2x8x8xf32>
    %242 = tpu.concatenate %238, %239, %240, %241 in 0 : vector<2x8x8xf32>, vector<2x8x8xf32>, vector<2x8x8xf32>, vector<2x8x8xf32> -> vector<8x8x8xf32>
    %243 = vector.extract_strided_slice %232 {offsets = [0, 0, 0], sizes = [2, 8, 8], strides = [1, 1, 1]} : vector<2x8x32xf32> to vector<2x8x8xf32>
    %244 = vector.extract_strided_slice %232 {offsets = [0, 0, 8], sizes = [2, 8, 8], strides = [1, 1, 1]} : vector<2x8x32xf32> to vector<2x8x8xf32>
    %245 = vector.extract_strided_slice %232 {offsets = [0, 0, 16], sizes = [2, 8, 8], strides = [1, 1, 1]} : vector<2x8x32xf32> to vector<2x8x8xf32>
    %246 = vector.extract_strided_slice %232 {offsets = [0, 0, 24], sizes = [2, 8, 8], strides = [1, 1, 1]} : vector<2x8x32xf32> to vector<2x8x8xf32>
    %247 = tpu.concatenate %243, %244, %245, %246 in 0 : vector<2x8x8xf32>, vector<2x8x8xf32>, vector<2x8x8xf32>, vector<2x8x8xf32> -> vector<8x8x8xf32>
    "tpu.trace_start"() <{level = 10 : i32, message = "nqd,nkd->nqk"}> : () -> ()
    %cst_98 = arith.constant dense<0.000000e+00> : vector<8x8x8xf32>
    %248 = tpu.matmul %237, %242, %cst_98 {dimension_numbers = #tpu.dot_dimension_numbers<[2], [2], [1], [1], [0, 0, 0, 1, 1, 1], [0], [0]>} : vector<8x8x8xf32>, vector<8x8x8xf32>, vector<8x8x8xf32> -> vector<8x8x8xf32>
    "tpu.trace_stop"() : () -> ()
    %249 = arith.addf %248, %2 : vector<8x8x8xf32>
    %cst_99 = arith.constant dense<0xFF800000> : vector<8x8xf32>
    %250 = vector.multi_reduction <maximumf>, %249, %cst_99 [2] : vector<8x8x8xf32> to vector<8x8xf32>
    %251 = vector.shape_cast %250 : vector<8x8xf32> to vector<8x8x1xf32>
    %252 = vector.broadcast %251 : vector<8x8x1xf32> to vector<8x8x8xf32>
    %253 = arith.subf %249, %252 : vector<8x8x8xf32>
    %254 = math.exp %253 : vector<8x8x8xf32>
    %cst_100 = arith.constant dense<0.000000e+00> : vector<8x8xf32>
    %255 = vector.multi_reduction <add>, %254, %cst_100 [2] : vector<8x8x8xf32> to vector<8x8xf32>
    %256 = vector.shape_cast %255 : vector<8x8xf32> to vector<8x8x1xf32>
    %257 = tpu.reciprocal %256 {approx = true} : vector<8x8x1xf32> -> vector<8x8x1xf32>
    %258 = vector.broadcast %257 : vector<8x8x1xf32> to vector<8x8x8xf32>
    %259 = arith.mulf %254, %258 : vector<8x8x8xf32>
    "tpu.trace_start"() <{level = 10 : i32, message = "nqk,nkd->nqd"}> : () -> ()
    %cst_101 = arith.constant dense<0.000000e+00> : vector<8x8x8xf32>
    %260 = tpu.matmul %259, %247, %cst_101 {dimension_numbers = #tpu.dot_dimension_numbers<[2], [1], [1], [2], [0, 0, 0, 1, 1, 2], [0], [0]>} : vector<8x8x8xf32>, vector<8x8x8xf32>, vector<8x8x8xf32> -> vector<8x8x8xf32>
    "tpu.trace_stop"() : () -> ()
    %261 = vector.extract_strided_slice %260 {offsets = [0, 0, 0], sizes = [2, 8, 8], strides = [1, 1, 1]} : vector<8x8x8xf32> to vector<2x8x8xf32>
    %262 = vector.extract_strided_slice %260 {offsets = [2, 0, 0], sizes = [2, 8, 8], strides = [1, 1, 1]} : vector<8x8x8xf32> to vector<2x8x8xf32>
    %263 = vector.extract_strided_slice %260 {offsets = [4, 0, 0], sizes = [2, 8, 8], strides = [1, 1, 1]} : vector<8x8x8xf32> to vector<2x8x8xf32>
    %264 = vector.extract_strided_slice %260 {offsets = [6, 0, 0], sizes = [2, 8, 8], strides = [1, 1, 1]} : vector<8x8x8xf32> to vector<2x8x8xf32>
    %265 = tpu.concatenate %261, %262, %263, %264 in 2 : vector<2x8x8xf32>, vector<2x8x8xf32>, vector<2x8x8xf32>, vector<2x8x8xf32> -> vector<2x8x32xf32>
    %266 = vector.shape_cast %265 : vector<2x8x32xf32> to vector<16x32xf32>
    %267 = vector.extract_strided_slice %259 {offsets = [0, 0, 0], sizes = [2, 8, 8], strides = [1, 1, 1]} : vector<8x8x8xf32> to vector<2x8x8xf32>
    %268 = vector.extract_strided_slice %259 {offsets = [2, 0, 0], sizes = [2, 8, 8], strides = [1, 1, 1]} : vector<8x8x8xf32> to vector<2x8x8xf32>
    %269 = vector.extract_strided_slice %259 {offsets = [4, 0, 0], sizes = [2, 8, 8], strides = [1, 1, 1]} : vector<8x8x8xf32> to vector<2x8x8xf32>
    %270 = vector.extract_strided_slice %259 {offsets = [6, 0, 0], sizes = [2, 8, 8], strides = [1, 1, 1]} : vector<8x8x8xf32> to vector<2x8x8xf32>
    %271 = tpu.concatenate %267, %268, %269, %270 in 2 : vector<2x8x8xf32>, vector<2x8x8xf32>, vector<2x8x8xf32>, vector<2x8x8xf32> -> vector<2x8x32xf32>
    %c1_102 = arith.constant 1 : index
    %c0_103 = arith.constant 0 : index
    %c0_104 = arith.constant 0 : index
    %272 = vector.load %arg6[%c1_102, %c0_103, %c0_104] : memref<2x32x32xf32, #tpu.memory_space<vmem>>, vector<1x32x32xf32>
    %273 = vector.shape_cast %272 : vector<1x32x32xf32> to vector<32x32xf32>
    %cst_105 = arith.constant dense<0.000000e+00> : vector<16x32xf32>
    %274 = tpu.matmul %266, %273, %cst_105 {dimension_numbers = #tpu.dot_dimension_numbers<[1], [0], [0], [1], [0, 0, 1, 1], [], []>} : vector<16x32xf32>, vector<32x32xf32>, vector<16x32xf32> -> vector<16x32xf32>
    %c1_106 = arith.constant 1 : index
    %c0_107 = arith.constant 0 : index
    %c0_108 = arith.constant 0 : index
    %275 = vector.load %arg7[%c1_106, %c0_107, %c0_108] : memref<2x1x32xf32, #tpu.memory_space<vmem>>, vector<1x1x32xf32>
    %276 = vector.shape_cast %275 : vector<1x1x32xf32> to vector<1x32xf32>
    %277 = vector.broadcast %276 : vector<1x32xf32> to vector<16x32xf32>
    %278 = arith.addf %274, %277 : vector<16x32xf32>
    %279 = arith.addf %278, %219 : vector<16x32xf32>
    %c1_109 = arith.constant 1 : index
    %c0_110 = arith.constant 0 : index
    %c0_111 = arith.constant 0 : index
    %280 = vector.load %arg8[%c1_109, %c0_110, %c0_111] : memref<2x1x32xf32, #tpu.memory_space<vmem>>, vector<1x1x32xf32>
    %281 = vector.shape_cast %280 : vector<1x1x32xf32> to vector<1x32xf32>
    %c1_112 = arith.constant 1 : index
    %c0_113 = arith.constant 0 : index
    %c0_114 = arith.constant 0 : index
    %282 = vector.load %arg9[%c1_112, %c0_113, %c0_114] : memref<2x1x32xf32, #tpu.memory_space<vmem>>, vector<1x1x32xf32>
    %283 = vector.shape_cast %282 : vector<1x1x32xf32> to vector<1x32xf32>
    %cst_115 = arith.constant dense<0.000000e+00> : vector<16xf32>
    %284 = vector.multi_reduction <add>, %279, %cst_115 [1] : vector<16x32xf32> to vector<16xf32>
    %285 = vector.shape_cast %284 : vector<16xf32> to vector<16x1xf32>
    %cst_116 = arith.constant 3.125000e-02 : f32
    %286 = vector.broadcast %cst_116 : f32 to vector<16x1xf32>
    %287 = arith.mulf %285, %286 : vector<16x1xf32>
    %288 = arith.mulf %279, %279 : vector<16x32xf32>
    %cst_117 = arith.constant dense<0.000000e+00> : vector<16xf32>
    %289 = vector.multi_reduction <add>, %288, %cst_117 [1] : vector<16x32xf32> to vector<16xf32>
    %290 = vector.shape_cast %289 : vector<16xf32> to vector<16x1xf32>
    %cst_118 = arith.constant 3.125000e-02 : f32
    %291 = vector.broadcast %cst_118 : f32 to vector<16x1xf32>
    %292 = arith.mulf %290, %291 : vector<16x1xf32>
    %293 = arith.mulf %287, %287 : vector<16x1xf32>
    %294 = arith.subf %292, %293 : vector<16x1xf32>
    %295 = vector.broadcast %287 : vector<16x1xf32> to vector<16x32xf32>
    %296 = arith.subf %279, %295 : vector<16x32xf32>
    %cst_119 = arith.constant 9.99999974E-6 : f32
    %297 = vector.broadcast %cst_119 : f32 to vector<16x1xf32>
    %298 = arith.addf %294, %297 : vector<16x1xf32>
    %299 = math.rsqrt %298 : vector<16x1xf32>
    %300 = vector.broadcast %299 : vector<16x1xf32> to vector<16x32xf32>
    %301 = arith.mulf %296, %300 : vector<16x32xf32>
    %302 = vector.broadcast %281 : vector<1x32xf32> to vector<16x32xf32>
    %303 = arith.mulf %301, %302 : vector<16x32xf32>
    %304 = vector.broadcast %283 : vector<1x32xf32> to vector<16x32xf32>
    %305 = arith.addf %303, %304 : vector<16x32xf32>
    %306 = tpu.concatenate %305, %1 in 0 : vector<16x32xf32>, vector<16x32xf32> -> vector<32x32xf32>
    %c1_120 = arith.constant 1 : index
    %c0_121 = arith.constant 0 : index
    %c0_122 = arith.constant 0 : index
    %307 = vector.load %arg10[%c1_120, %c0_121, %c0_122] : memref<2x32x128xf32, #tpu.memory_space<vmem>>, vector<1x32x128xf32>
    %308 = vector.shape_cast %307 : vector<1x32x128xf32> to vector<32x128xf32>
    %cst_123 = arith.constant dense<0.000000e+00> : vector<32x128xf32>
    %309 = tpu.matmul %306, %308, %cst_123 {dimension_numbers = #tpu.dot_dimension_numbers<[1], [0], [0], [1], [0, 0, 1, 1], [], []>} : vector<32x32xf32>, vector<32x128xf32>, vector<32x128xf32> -> vector<32x128xf32>
    %c1_124 = arith.constant 1 : index
    %c0_125 = arith.constant 0 : index
    %c0_126 = arith.constant 0 : index
    %310 = vector.load %arg11[%c1_124, %c0_125, %c0_126] : memref<2x1x128xf32, #tpu.memory_space<vmem>>, vector<1x1x128xf32>
    %311 = vector.shape_cast %310 : vector<1x1x128xf32> to vector<1x128xf32>
    %312 = vector.broadcast %311 : vector<1x128xf32> to vector<32x128xf32>
    %313 = arith.addf %309, %312 : vector<32x128xf32>
    %314 = vector.extract_strided_slice %313 {offsets = [0, 0], sizes = [16, 32], strides = [1, 1]} : vector<32x128xf32> to vector<16x32xf32>
    %315 = vector.extract_strided_slice %313 {offsets = [16, 32], sizes = [16, 32], strides = [1, 1]} : vector<32x128xf32> to vector<16x32xf32>
    %316 = vector.extract_strided_slice %313 {offsets = [16, 64], sizes = [16, 32], strides = [1, 1]} : vector<32x128xf32> to vector<16x32xf32>
    %317 = vector.shape_cast %314 : vector<16x32xf32> to vector<2x8x32xf32>
    %318 = vector.shape_cast %315 : vector<16x32xf32> to vector<2x8x32xf32>
    %319 = vector.shape_cast %316 : vector<16x32xf32> to vector<2x8x32xf32>
    %320 = vector.extract_strided_slice %317 {offsets = [0, 0, 0], sizes = [2, 8, 8], strides = [1, 1, 1]} : vector<2x8x32xf32> to vector<2x8x8xf32>
    %321 = vector.extract_strided_slice %317 {offsets = [0, 0, 8], sizes = [2, 8, 8], strides = [1, 1, 1]} : vector<2x8x32xf32> to vector<2x8x8xf32>
    %322 = vector.extract_strided_slice %317 {offsets = [0, 0, 16], sizes = [2, 8, 8], strides = [1, 1, 1]} : vector<2x8x32xf32> to vector<2x8x8xf32>
    %323 = vector.extract_strided_slice %317 {offsets = [0, 0, 24], sizes = [2, 8, 8], strides = [1, 1, 1]} : vector<2x8x32xf32> to vector<2x8x8xf32>
    %324 = tpu.concatenate %320, %321, %322, %323 in 0 : vector<2x8x8xf32>, vector<2x8x8xf32>, vector<2x8x8xf32>, vector<2x8x8xf32> -> vector<8x8x8xf32>
    %325 = vector.extract_strided_slice %318 {offsets = [0, 0, 0], sizes = [2, 8, 8], strides = [1, 1, 1]} : vector<2x8x32xf32> to vector<2x8x8xf32>
    %326 = vector.extract_strided_slice %318 {offsets = [0, 0, 8], sizes = [2, 8, 8], strides = [1, 1, 1]} : vector<2x8x32xf32> to vector<2x8x8xf32>
    %327 = vector.extract_strided_slice %318 {offsets = [0, 0, 16], sizes = [2, 8, 8], strides = [1, 1, 1]} : vector<2x8x32xf32> to vector<2x8x8xf32>
    %328 = vector.extract_strided_slice %318 {offsets = [0, 0, 24], sizes = [2, 8, 8], strides = [1, 1, 1]} : vector<2x8x32xf32> to vector<2x8x8xf32>
    %329 = tpu.concatenate %325, %326, %327, %328 in 0 : vector<2x8x8xf32>, vector<2x8x8xf32>, vector<2x8x8xf32>, vector<2x8x8xf32> -> vector<8x8x8xf32>
    %330 = vector.extract_strided_slice %319 {offsets = [0, 0, 0], sizes = [2, 8, 8], strides = [1, 1, 1]} : vector<2x8x32xf32> to vector<2x8x8xf32>
    %331 = vector.extract_strided_slice %319 {offsets = [0, 0, 8], sizes = [2, 8, 8], strides = [1, 1, 1]} : vector<2x8x32xf32> to vector<2x8x8xf32>
    %332 = vector.extract_strided_slice %319 {offsets = [0, 0, 16], sizes = [2, 8, 8], strides = [1, 1, 1]} : vector<2x8x32xf32> to vector<2x8x8xf32>
    %333 = vector.extract_strided_slice %319 {offsets = [0, 0, 24], sizes = [2, 8, 8], strides = [1, 1, 1]} : vector<2x8x32xf32> to vector<2x8x8xf32>
    %334 = tpu.concatenate %330, %331, %332, %333 in 0 : vector<2x8x8xf32>, vector<2x8x8xf32>, vector<2x8x8xf32>, vector<2x8x8xf32> -> vector<8x8x8xf32>
    "tpu.trace_start"() <{level = 10 : i32, message = "nqd,nkd->nqk"}> : () -> ()
    %cst_127 = arith.constant dense<0.000000e+00> : vector<8x8x8xf32>
    %335 = tpu.matmul %324, %329, %cst_127 {dimension_numbers = #tpu.dot_dimension_numbers<[2], [2], [1], [1], [0, 0, 0, 1, 1, 1], [0], [0]>} : vector<8x8x8xf32>, vector<8x8x8xf32>, vector<8x8x8xf32> -> vector<8x8x8xf32>
    "tpu.trace_stop"() : () -> ()
    %336 = arith.addf %335, %3 : vector<8x8x8xf32>
    %cst_128 = arith.constant dense<0xFF800000> : vector<8x8xf32>
    %337 = vector.multi_reduction <maximumf>, %336, %cst_128 [2] : vector<8x8x8xf32> to vector<8x8xf32>
    %338 = vector.shape_cast %337 : vector<8x8xf32> to vector<8x8x1xf32>
    %339 = vector.broadcast %338 : vector<8x8x1xf32> to vector<8x8x8xf32>
    %340 = arith.subf %336, %339 : vector<8x8x8xf32>
    %341 = math.exp %340 : vector<8x8x8xf32>
    %cst_129 = arith.constant dense<0.000000e+00> : vector<8x8xf32>
    %342 = vector.multi_reduction <add>, %341, %cst_129 [2] : vector<8x8x8xf32> to vector<8x8xf32>
    %343 = vector.shape_cast %342 : vector<8x8xf32> to vector<8x8x1xf32>
    %344 = tpu.reciprocal %343 {approx = true} : vector<8x8x1xf32> -> vector<8x8x1xf32>
    %345 = vector.broadcast %344 : vector<8x8x1xf32> to vector<8x8x8xf32>
    %346 = arith.mulf %341, %345 : vector<8x8x8xf32>
    "tpu.trace_start"() <{level = 10 : i32, message = "nqk,nkd->nqd"}> : () -> ()
    %cst_130 = arith.constant dense<0.000000e+00> : vector<8x8x8xf32>
    %347 = tpu.matmul %346, %334, %cst_130 {dimension_numbers = #tpu.dot_dimension_numbers<[2], [1], [1], [2], [0, 0, 0, 1, 1, 2], [0], [0]>} : vector<8x8x8xf32>, vector<8x8x8xf32>, vector<8x8x8xf32> -> vector<8x8x8xf32>
    "tpu.trace_stop"() : () -> ()
    %348 = vector.extract_strided_slice %347 {offsets = [0, 0, 0], sizes = [2, 8, 8], strides = [1, 1, 1]} : vector<8x8x8xf32> to vector<2x8x8xf32>
    %349 = vector.extract_strided_slice %347 {offsets = [2, 0, 0], sizes = [2, 8, 8], strides = [1, 1, 1]} : vector<8x8x8xf32> to vector<2x8x8xf32>
    %350 = vector.extract_strided_slice %347 {offsets = [4, 0, 0], sizes = [2, 8, 8], strides = [1, 1, 1]} : vector<8x8x8xf32> to vector<2x8x8xf32>
    %351 = vector.extract_strided_slice %347 {offsets = [6, 0, 0], sizes = [2, 8, 8], strides = [1, 1, 1]} : vector<8x8x8xf32> to vector<2x8x8xf32>
    %352 = tpu.concatenate %348, %349, %350, %351 in 2 : vector<2x8x8xf32>, vector<2x8x8xf32>, vector<2x8x8xf32>, vector<2x8x8xf32> -> vector<2x8x32xf32>
    %353 = vector.shape_cast %352 : vector<2x8x32xf32> to vector<16x32xf32>
    %354 = vector.extract_strided_slice %346 {offsets = [0, 0, 0], sizes = [2, 8, 8], strides = [1, 1, 1]} : vector<8x8x8xf32> to vector<2x8x8xf32>
    %355 = vector.extract_strided_slice %346 {offsets = [2, 0, 0], sizes = [2, 8, 8], strides = [1, 1, 1]} : vector<8x8x8xf32> to vector<2x8x8xf32>
    %356 = vector.extract_strided_slice %346 {offsets = [4, 0, 0], sizes = [2, 8, 8], strides = [1, 1, 1]} : vector<8x8x8xf32> to vector<2x8x8xf32>
    %357 = vector.extract_strided_slice %346 {offsets = [6, 0, 0], sizes = [2, 8, 8], strides = [1, 1, 1]} : vector<8x8x8xf32> to vector<2x8x8xf32>
    %358 = tpu.concatenate %354, %355, %356, %357 in 2 : vector<2x8x8xf32>, vector<2x8x8xf32>, vector<2x8x8xf32>, vector<2x8x8xf32> -> vector<2x8x32xf32>
    %c1_131 = arith.constant 1 : index
    %c0_132 = arith.constant 0 : index
    %c0_133 = arith.constant 0 : index
    %359 = vector.load %arg12[%c1_131, %c0_132, %c0_133] : memref<2x32x32xf32, #tpu.memory_space<vmem>>, vector<1x32x32xf32>
    %360 = vector.shape_cast %359 : vector<1x32x32xf32> to vector<32x32xf32>
    %cst_134 = arith.constant dense<0.000000e+00> : vector<16x32xf32>
    %361 = tpu.matmul %353, %360, %cst_134 {dimension_numbers = #tpu.dot_dimension_numbers<[1], [0], [0], [1], [0, 0, 1, 1], [], []>} : vector<16x32xf32>, vector<32x32xf32>, vector<16x32xf32> -> vector<16x32xf32>
    %c1_135 = arith.constant 1 : index
    %c0_136 = arith.constant 0 : index
    %c0_137 = arith.constant 0 : index
    %362 = vector.load %arg13[%c1_135, %c0_136, %c0_137] : memref<2x1x32xf32, #tpu.memory_space<vmem>>, vector<1x1x32xf32>
    %363 = vector.shape_cast %362 : vector<1x1x32xf32> to vector<1x32xf32>
    %364 = vector.broadcast %363 : vector<1x32xf32> to vector<16x32xf32>
    %365 = arith.addf %361, %364 : vector<16x32xf32>
    %366 = arith.addf %365, %305 : vector<16x32xf32>
    %c1_138 = arith.constant 1 : index
    %c0_139 = arith.constant 0 : index
    %c0_140 = arith.constant 0 : index
    %367 = vector.load %arg14[%c1_138, %c0_139, %c0_140] : memref<2x1x32xf32, #tpu.memory_space<vmem>>, vector<1x1x32xf32>
    %368 = vector.shape_cast %367 : vector<1x1x32xf32> to vector<1x32xf32>
    %c1_141 = arith.constant 1 : index
    %c0_142 = arith.constant 0 : index
    %c0_143 = arith.constant 0 : index
    %369 = vector.load %arg15[%c1_141, %c0_142, %c0_143] : memref<2x1x32xf32, #tpu.memory_space<vmem>>, vector<1x1x32xf32>
    %370 = vector.shape_cast %369 : vector<1x1x32xf32> to vector<1x32xf32>
    %cst_144 = arith.constant dense<0.000000e+00> : vector<16xf32>
    %371 = vector.multi_reduction <add>, %366, %cst_144 [1] : vector<16x32xf32> to vector<16xf32>
    %372 = vector.shape_cast %371 : vector<16xf32> to vector<16x1xf32>
    %cst_145 = arith.constant 3.125000e-02 : f32
    %373 = vector.broadcast %cst_145 : f32 to vector<16x1xf32>
    %374 = arith.mulf %372, %373 : vector<16x1xf32>
    %375 = arith.mulf %366, %366 : vector<16x32xf32>
    %cst_146 = arith.constant dense<0.000000e+00> : vector<16xf32>
    %376 = vector.multi_reduction <add>, %375, %cst_146 [1] : vector<16x32xf32> to vector<16xf32>
    %377 = vector.shape_cast %376 : vector<16xf32> to vector<16x1xf32>
    %cst_147 = arith.constant 3.125000e-02 : f32
    %378 = vector.broadcast %cst_147 : f32 to vector<16x1xf32>
    %379 = arith.mulf %377, %378 : vector<16x1xf32>
    %380 = arith.mulf %374, %374 : vector<16x1xf32>
    %381 = arith.subf %379, %380 : vector<16x1xf32>
    %382 = vector.broadcast %374 : vector<16x1xf32> to vector<16x32xf32>
    %383 = arith.subf %366, %382 : vector<16x32xf32>
    %cst_148 = arith.constant 9.99999974E-6 : f32
    %384 = vector.broadcast %cst_148 : f32 to vector<16x1xf32>
    %385 = arith.addf %381, %384 : vector<16x1xf32>
    %386 = math.rsqrt %385 : vector<16x1xf32>
    %387 = vector.broadcast %386 : vector<16x1xf32> to vector<16x32xf32>
    %388 = arith.mulf %383, %387 : vector<16x32xf32>
    %389 = vector.broadcast %368 : vector<1x32xf32> to vector<16x32xf32>
    %390 = arith.mulf %388, %389 : vector<16x32xf32>
    %391 = vector.broadcast %370 : vector<1x32xf32> to vector<16x32xf32>
    %392 = arith.addf %390, %391 : vector<16x32xf32>
    %c1_149 = arith.constant 1 : index
    %c0_150 = arith.constant 0 : index
    %c0_151 = arith.constant 0 : index
    %393 = vector.load %arg16[%c1_149, %c0_150, %c0_151] : memref<2x32x64xf32, #tpu.memory_space<vmem>>, vector<1x32x64xf32>
    %394 = vector.shape_cast %393 : vector<1x32x64xf32> to vector<32x64xf32>
    %cst_152 = arith.constant dense<0.000000e+00> : vector<16x64xf32>
    %395 = tpu.matmul %392, %394, %cst_152 {dimension_numbers = #tpu.dot_dimension_numbers<[1], [0], [0], [1], [0, 0, 1, 1], [], []>} : vector<16x32xf32>, vector<32x64xf32>, vector<16x64xf32> -> vector<16x64xf32>
    %c1_153 = arith.constant 1 : index
    %c0_154 = arith.constant 0 : index
    %c0_155 = arith.constant 0 : index
    %396 = vector.load %arg17[%c1_153, %c0_154, %c0_155] : memref<2x1x64xf32, #tpu.memory_space<vmem>>, vector<1x1x64xf32>
    %397 = vector.shape_cast %396 : vector<1x1x64xf32> to vector<1x64xf32>
    %398 = vector.broadcast %397 : vector<1x64xf32> to vector<16x64xf32>
    %399 = arith.addf %395, %398 : vector<16x64xf32>
    %cst_156 = arith.constant 0.000000e+00 : f32
    %400 = vector.broadcast %cst_156 : f32 to vector<16x64xf32>
    %401 = arith.maximumf %399, %400 : vector<16x64xf32>
    %c1_157 = arith.constant 1 : index
    %c0_158 = arith.constant 0 : index
    %c0_159 = arith.constant 0 : index
    %402 = vector.load %arg18[%c1_157, %c0_158, %c0_159] : memref<2x64x32xf32, #tpu.memory_space<vmem>>, vector<1x64x32xf32>
    %403 = vector.shape_cast %402 : vector<1x64x32xf32> to vector<64x32xf32>
    %cst_160 = arith.constant dense<0.000000e+00> : vector<16x32xf32>
    %404 = tpu.matmul %401, %403, %cst_160 {dimension_numbers = #tpu.dot_dimension_numbers<[1], [0], [0], [1], [0, 0, 1, 1], [], []>} : vector<16x64xf32>, vector<64x32xf32>, vector<16x32xf32> -> vector<16x32xf32>
    %c1_161 = arith.constant 1 : index
    %c0_162 = arith.constant 0 : index
    %c0_163 = arith.constant 0 : index
    %405 = vector.load %arg19[%c1_161, %c0_162, %c0_163] : memref<2x1x32xf32, #tpu.memory_space<vmem>>, vector<1x1x32xf32>
    %406 = vector.shape_cast %405 : vector<1x1x32xf32> to vector<1x32xf32>
    %407 = vector.broadcast %406 : vector<1x32xf32> to vector<16x32xf32>
    %408 = arith.addf %404, %407 : vector<16x32xf32>
    %409 = arith.addf %408, %392 : vector<16x32xf32>
    %c1_164 = arith.constant 1 : index
    %c0_165 = arith.constant 0 : index
    %c0_166 = arith.constant 0 : index
    %410 = vector.load %arg20[%c1_164, %c0_165, %c0_166] : memref<2x1x32xf32, #tpu.memory_space<vmem>>, vector<1x1x32xf32>
    %411 = vector.shape_cast %410 : vector<1x1x32xf32> to vector<1x32xf32>
    %c1_167 = arith.constant 1 : index
    %c0_168 = arith.constant 0 : index
    %c0_169 = arith.constant 0 : index
    %412 = vector.load %arg21[%c1_167, %c0_168, %c0_169] : memref<2x1x32xf32, #tpu.memory_space<vmem>>, vector<1x1x32xf32>
    %413 = vector.shape_cast %412 : vector<1x1x32xf32> to vector<1x32xf32>
    %cst_170 = arith.constant dense<0.000000e+00> : vector<16xf32>
    %414 = vector.multi_reduction <add>, %409, %cst_170 [1] : vector<16x32xf32> to vector<16xf32>
    %415 = vector.shape_cast %414 : vector<16xf32> to vector<16x1xf32>
    %cst_171 = arith.constant 3.125000e-02 : f32
    %416 = vector.broadcast %cst_171 : f32 to vector<16x1xf32>
    %417 = arith.mulf %415, %416 : vector<16x1xf32>
    %418 = arith.mulf %409, %409 : vector<16x32xf32>
    %cst_172 = arith.constant dense<0.000000e+00> : vector<16xf32>
    %419 = vector.multi_reduction <add>, %418, %cst_172 [1] : vector<16x32xf32> to vector<16xf32>
    %420 = vector.shape_cast %419 : vector<16xf32> to vector<16x1xf32>
    %cst_173 = arith.constant 3.125000e-02 : f32
    %421 = vector.broadcast %cst_173 : f32 to vector<16x1xf32>
    %422 = arith.mulf %420, %421 : vector<16x1xf32>
    %423 = arith.mulf %417, %417 : vector<16x1xf32>
    %424 = arith.subf %422, %423 : vector<16x1xf32>
    %425 = vector.broadcast %417 : vector<16x1xf32> to vector<16x32xf32>
    %426 = arith.subf %409, %425 : vector<16x32xf32>
    %cst_174 = arith.constant 9.99999974E-6 : f32
    %427 = vector.broadcast %cst_174 : f32 to vector<16x1xf32>
    %428 = arith.addf %424, %427 : vector<16x1xf32>
    %429 = math.rsqrt %428 : vector<16x1xf32>
    %430 = vector.broadcast %429 : vector<16x1xf32> to vector<16x32xf32>
    %431 = arith.mulf %426, %430 : vector<16x32xf32>
    %432 = vector.broadcast %411 : vector<1x32xf32> to vector<16x32xf32>
    %433 = arith.mulf %431, %432 : vector<16x32xf32>
    %434 = vector.broadcast %413 : vector<1x32xf32> to vector<16x32xf32>
    %435 = arith.addf %433, %434 : vector<16x32xf32>
    %436 = vector.shape_cast %435 : vector<16x32xf32> to vector<2x8x32xf32>
    %c0_175 = arith.constant 0 : index
    %c0_176 = arith.constant 0 : index
    %c0_177 = arith.constant 0 : index
    %437 = vector.load %arg22[%c0_175, %c0_176, %c0_177] : memref<2x8x32xf32, #tpu.memory_space<vmem>>, vector<2x8x32xf32>
    tpu.vector_store %arg22[%c0_175, %c0_176, %c0_177], %436 {strides = array<i32>} : memref<2x8x32xf32, #tpu.memory_space<vmem>>, vector<2x8x32xf32>,
    %438 = tpu.concatenate %55, %142, %271, %358 in 2 : vector<2x8x32xf32>, vector<2x8x32xf32>, vector<2x8x32xf32>, vector<2x8x32xf32> -> vector<2x8x128xf32>
    %c0_178 = arith.constant 0 : index
    %c0_179 = arith.constant 0 : index
    %c0_180 = arith.constant 0 : index
    %439 = vector.load %arg23[%c0_178, %c0_179, %c0_180] : memref<2x8x128xf32, #tpu.memory_space<vmem>>, vector<2x8x128xf32>
    tpu.vector_store %arg23[%c0_178, %c0_179, %c0_180], %438 {strides = array<i32>} : memref<2x8x128xf32, #tpu.memory_space<vmem>>, vector<2x8x128xf32>,
    return
  }
}

</mosaic_0001>

<llo_original>
// kernel: decoder_forward.1
$region0: #{decoder_forward.1}
  #allocation0 [shape = 'u32[]', space=smem, size = 0x4, offset = 0x4, fixed_abs, tag = 'smem constant byte address 0x4 - core index']
  #allocation1 [shape = 'u32[144,128]{1,0:T(1,128)}', space=vmem, size = 0x12000, scoped, tag = 'internal scratch']
  %s0 = inlined_call_operand.vmem [shape: f32[16,32], index: 0, kind: input, shape index: {}]
  %s1 = inlined_call_operand.vmem [shape: f32[16,32], index: 1, kind: input, shape index: {}]
  %s2 = inlined_call_operand.vmem [shape: f32[8,8,8], index: 2, kind: input, shape index: {}]
  %s3 = inlined_call_operand.vmem [shape: f32[8,8,8], index: 3, kind: input, shape index: {}]
  %s4 = inlined_call_operand.vmem [shape: f32[2,32,128], index: 4, kind: input, shape index: {}]
  %s5 = inlined_call_operand.vmem [shape: f32[2,1,128], index: 5, kind: input, shape index: {}]
  %s6 = inlined_call_operand.vmem [shape: f32[2,32,32], index: 6, kind: input, shape index: {}]
  %s7 = inlined_call_operand.vmem [shape: f32[2,1,32], index: 7, kind: input, shape index: {}]
  %s8 = inlined_call_operand.vmem [shape: f32[2,1,32], index: 8, kind: input, shape index: {}]
  %s9 = inlined_call_operand.vmem [shape: f32[2,1,32], index: 9, kind: input, shape index: {}]
  %s10 = inlined_call_operand.vmem [shape: f32[2,32,128], index: 10, kind: input, shape index: {}]
  %s11 = inlined_call_operand.vmem [shape: f32[2,1,128], index: 11, kind: input, shape index: {}]
  %s12 = inlined_call_operand.vmem [shape: f32[2,32,32], index: 12, kind: input, shape index: {}]
  %s13 = inlined_call_operand.vmem [shape: f32[2,1,32], index: 13, kind: input, shape index: {}]
  %s14 = inlined_call_operand.vmem [shape: f32[2,1,32], index: 14, kind: input, shape index: {}]
  %s15 = inlined_call_operand.vmem [shape: f32[2,1,32], index: 15, kind: input, shape index: {}]
  %s16 = inlined_call_operand.vmem [shape: f32[2,32,64], index: 16, kind: input, shape index: {}]
  %s17 = inlined_call_operand.vmem [shape: f32[2,1,64], index: 17, kind: input, shape index: {}]
  %s18 = inlined_call_operand.vmem [shape: f32[2,64,32], index: 18, kind: input, shape index: {}]
  %s19 = inlined_call_operand.vmem [shape: f32[2,1,32], index: 19, kind: input, shape index: {}]
  %s20 = inlined_call_operand.vmem [shape: f32[2,1,32], index: 20, kind: input, shape index: {}]
  %s21 = inlined_call_operand.vmem [shape: f32[2,1,32], index: 21, kind: input, shape index: {}]
  %s22 = inlined_call_operand.hbm [shape: f32[2,8,32], index: 22, kind: output, shape index: {0}]
  %s23 = inlined_call_operand.vmem [shape: f32[2,8,128], index: 23, kind: output, shape index: {1}]
  %24 = xla_tuple %s22, %s23
  %s25 = sld [smem:[#allocation0]]
  $region106: #{decoder_forward.1} parent=0
    _
  %s27 = ssub.s32 1, %s25
  %s28 = scalar_select 0, %s27, %s25
  $region1: #{decoder_forward.1} parent=0
    #allocation2 [shape = 'u8[8192]{0}', space=vmem, size = 0x2000, scoped, tag = 'output window, operand 0, single buffered']
    #allocation3 [shape = 's32[1]{0}', space=sflag, size = 0x4, scoped, tag = 'scoped memory for decoder_forward.1']
    %29 = vsyncpa [#allocation3], 0
    // Predicated region
    $region2: #{decoder_forward.1} parent=1 // pred_check
      _
    $region3: #{decoder_forward.1} parent=1 // pred_check_branch
      %31 = sbr.rel (0) target = $region5
    $region4: #{decoder_forward.1} parent=1 // pred_region
      _
    $region5: #{decoder_forward.1} parent=1 // pred_fallthru
      _
    // Predicated region
    $region6: #{decoder_forward.1} parent=1 // pred_check
      _
    $region7: #{decoder_forward.1} parent=1 // pred_check_branch
      %33 = sbr.rel (0) target = $region9
    $region8: #{decoder_forward.1} parent=1 // pred_region
      _
    $region9: #{decoder_forward.1} parent=1 // pred_fallthru
      _
    // Predicated region
    $region10: #{decoder_forward.1} parent=1 // pred_check
      _
    $region11: #{decoder_forward.1} parent=1 // pred_check_branch
      %35 = sbr.rel (0) target = $region13
    $region12: #{decoder_forward.1} parent=1 // pred_region
      _
    $region13: #{decoder_forward.1} parent=1 // pred_fallthru
      _
    // Predicated region
    $region14: #{decoder_forward.1} parent=1 // pred_check
      _
    $region15: #{decoder_forward.1} parent=1 // pred_check_branch
      %37 = sbr.rel (0) target = $region17
    $region16: #{decoder_forward.1} parent=1 // pred_region
      _
    $region17: #{decoder_forward.1} parent=1 // pred_fallthru
      _
    // Predicated region
    $region18: #{decoder_forward.1} parent=1 // pred_check
      _
    $region19: #{decoder_forward.1} parent=1 // pred_check_branch
      %39 = sbr.rel (0) target = $region21
    $region20: #{decoder_forward.1} parent=1 // pred_region
      _
    $region21: #{decoder_forward.1} parent=1 // pred_fallthru
      _
    // Predicated region
    $region22: #{decoder_forward.1} parent=1 // pred_check
      _
    $region23: #{decoder_forward.1} parent=1 // pred_check_branch
      %41 = sbr.rel (0) target = $region25
    $region24: #{decoder_forward.1} parent=1 // pred_region
      _
    $region25: #{decoder_forward.1} parent=1 // pred_fallthru
      _
    // Predicated region
    $region26: #{decoder_forward.1} parent=1 // pred_check
      _
    $region27: #{decoder_forward.1} parent=1 // pred_check_branch
      %43 = sbr.rel (0) target = $region29
    $region28: #{decoder_forward.1} parent=1 // pred_region
      _
    $region29: #{decoder_forward.1} parent=1 // pred_fallthru
      _
    // Predicated region
    $region30: #{decoder_forward.1} parent=1 // pred_check
      _
    $region31: #{decoder_forward.1} parent=1 // pred_check_branch
      %45 = sbr.rel (0) target = $region33
    $region32: #{decoder_forward.1} parent=1 // pred_region
      _
    $region33: #{decoder_forward.1} parent=1 // pred_fallthru
      _
    // Predicated region
    $region34: #{decoder_forward.1} parent=1 // pred_check
      _
    $region35: #{decoder_forward.1} parent=1 // pred_check_branch
      %47 = sbr.rel (0) target = $region37
    $region36: #{decoder_forward.1} parent=1 // pred_region
      _
    $region37: #{decoder_forward.1} parent=1 // pred_fallthru
      _
    // Predicated region
    $region38: #{decoder_forward.1} parent=1 // pred_check
      _
    $region39: #{decoder_forward.1} parent=1 // pred_check_branch
      %49 = sbr.rel (0) target = $region41
    $region40: #{decoder_forward.1} parent=1 // pred_region
      _
    $region41: #{decoder_forward.1} parent=1 // pred_fallthru
      _
    // Predicated region
    $region42: #{decoder_forward.1} parent=1 // pred_check
      _
    $region43: #{decoder_forward.1} parent=1 // pred_check_branch
      %51 = sbr.rel (0) target = $region45
    $region44: #{decoder_forward.1} parent=1 // pred_region
      _
    $region45: #{decoder_forward.1} parent=1 // pred_fallthru
      _
    // Predicated region
    $region46: #{decoder_forward.1} parent=1 // pred_check
      _
    $region47: #{decoder_forward.1} parent=1 // pred_check_branch
      %53 = sbr.rel (0) target = $region49
    $region48: #{decoder_forward.1} parent=1 // pred_region
      _
    $region49: #{decoder_forward.1} parent=1 // pred_fallthru
      _
    // Predicated region
    $region50: #{decoder_forward.1} parent=1 // pred_check
      _
    $region51: #{decoder_forward.1} parent=1 // pred_check_branch
      %55 = sbr.rel (0) target = $region53
    $region52: #{decoder_forward.1} parent=1 // pred_region
      _
    $region53: #{decoder_forward.1} parent=1 // pred_fallthru
      _
    // Predicated region
    $region54: #{decoder_forward.1} parent=1 // pred_check
      _
    $region55: #{decoder_forward.1} parent=1 // pred_check_branch
      %57 = sbr.rel (0) target = $region57
    $region56: #{decoder_forward.1} parent=1 // pred_region
      _
    $region57: #{decoder_forward.1} parent=1 // pred_fallthru
      _
    // Predicated region
    $region58: #{decoder_forward.1} parent=1 // pred_check
      _
    $region59: #{decoder_forward.1} parent=1 // pred_check_branch
      %59 = sbr.rel (0) target = $region61
    $region60: #{decoder_forward.1} parent=1 // pred_region
      _
    $region61: #{decoder_forward.1} parent=1 // pred_fallthru
      _
    // Predicated region
    $region62: #{decoder_forward.1} parent=1 // pred_check
      _
    $region63: #{decoder_forward.1} parent=1 // pred_check_branch
      %61 = sbr.rel (0) target = $region65
    $region64: #{decoder_forward.1} parent=1 // pred_region
      _
    $region65: #{decoder_forward.1} parent=1 // pred_fallthru
      _
    // Predicated region
    $region66: #{decoder_forward.1} parent=1 // pred_check
      _
    $region67: #{decoder_forward.1} parent=1 // pred_check_branch
      %63 = sbr.rel (0) target = $region69
    $region68: #{decoder_forward.1} parent=1 // pred_region
      _
    $region69: #{decoder_forward.1} parent=1 // pred_fallthru
      _
    // Predicated region
    $region70: #{decoder_forward.1} parent=1 // pred_check
      _
    $region71: #{decoder_forward.1} parent=1 // pred_check_branch
      %65 = sbr.rel (0) target = $region73
    $region72: #{decoder_forward.1} parent=1 // pred_region
      _
    $region73: #{decoder_forward.1} parent=1 // pred_fallthru
      _
    // Predicated region
    $region74: #{decoder_forward.1} parent=1 // pred_check
      _
    $region75: #{decoder_forward.1} parent=1 // pred_check_branch
      %67 = sbr.rel (0) target = $region77
    $region76: #{decoder_forward.1} parent=1 // pred_region
      _
    $region77: #{decoder_forward.1} parent=1 // pred_fallthru
      _
    // Predicated region
    $region78: #{decoder_forward.1} parent=1 // pred_check
      _
    $region79: #{decoder_forward.1} parent=1 // pred_check_branch
      %69 = sbr.rel (0) target = $region81
    $region80: #{decoder_forward.1} parent=1 // pred_region
      _
    $region81: #{decoder_forward.1} parent=1 // pred_fallthru
      _
    // Predicated region
    $region82: #{decoder_forward.1} parent=1 // pred_check
      _
    $region83: #{decoder_forward.1} parent=1 // pred_check_branch
      %71 = sbr.rel (0) target = $region85
    $region84: #{decoder_forward.1} parent=1 // pred_region
      _
    $region85: #{decoder_forward.1} parent=1 // pred_fallthru
      _
    // Predicated region
    $region86: #{decoder_forward.1} parent=1 // pred_check
      _
    $region87: #{decoder_forward.1} parent=1 // pred_check_branch
      %73 = sbr.rel (0) target = $region89
    $region88: #{decoder_forward.1} parent=1 // pred_region
      _
    $region89: #{decoder_forward.1} parent=1 // pred_fallthru
      _
    %v74 = vld [vmem:[%s0] sm:$0xff]
    %v75 = vld [vmem:[%s0 + $0x8] sm:$0xff]
    %v76 = vld [vmem:[%s1] sm:$0xff]
    %v77 = vld [vmem:[%s1 + $0x8] sm:$0xff]
    %v78 = vld [vmem:[%s2] sm:$0xff]
    %v79 = vld [vmem:[%s2 + $0x8] sm:$0xff]
    %v80 = vld [vmem:[%s2 + $0x10] sm:$0xff]
    %v81 = vld [vmem:[%s2 + $0x18] sm:$0xff]
    %v82 = vld [vmem:[%s2 + $0x20] sm:$0xff]
    %v83 = vld [vmem:[%s2 + $0x28] sm:$0xff]
    %v84 = vld [vmem:[%s2 + $0x30] sm:$0xff]
    %v85 = vld [vmem:[%s2 + $0x38] sm:$0xff]
    %v86 = vld [vmem:[%s3] sm:$0xff]
    %v87 = vld [vmem:[%s3 + $0x8] sm:$0xff]
    %v88 = vld [vmem:[%s3 + $0x10] sm:$0xff]
    %v89 = vld [vmem:[%s3 + $0x18] sm:$0xff]
    %v90 = vld [vmem:[%s3 + $0x20] sm:$0xff]
    %v91 = vld [vmem:[%s3 + $0x28] sm:$0xff]
    %v92 = vld [vmem:[%s3 + $0x30] sm:$0xff]
    %v93 = vld [vmem:[%s3 + $0x38] sm:$0xff]
    %v94 = vld [vmem:[%s4] sm:$0xff]
    %v95 = vld [vmem:[%s4 + $0x8] sm:$0xff]
    %v96 = vld [vmem:[%s4 + $0x10] sm:$0xff]
    %v97 = vld [vmem:[%s4 + $0x18] sm:$0xff]
    %v98 = vld [vmem:[%s5] sm:$0x1]
    %v100 = vlaneseq
    %v101 = vshrl.u32 %v100, 7
    %v102 = vsub.s32 0, %v101
    %v103 = vrot.slane %v98, %v102
    %vm105 = vcmask 261120
    %v107 = vsel %vm105, %v74, 0
    %v110 = vsel %vm105, %v75, 0
    %112 = vmatprep.subr.mxu0 0.0
    %113 = vmatpush1.msra.mxu0 %v94
    %114 = vmatprep.subr.mxu0 0.0
    %115 = vmatpush1.msra.mxu0 %v95
    %116 = vmatprep.subr.mxu0 0.0
    %117 = vmatpush1.msra.mxu0 %v96
    %118 = vmatprep.subr.mxu0 0.0
    %119 = vmatpush1.msra.mxu0 %v97
    %120 = vmatprep.subr.mxu0 0.0
    %121 = vmatpush1.msra.mxu0 0.0
    %122 = vmatprep.subr.mxu0 0.0
    %123 = vmatpush1.msra.mxu0 0.0
    %124 = vmatprep.subr.mxu0 0.0
    %125 = vmatpush1.msra.mxu0 0.0
    %126 = vmatprep.subr.mxu0 0.0
    %127 = vmatpush1.msra.mxu0 0.0
    %128 = vmatprep.subr.mxu0 0.0
    %129 = vmatpush1.msra.mxu0 0.0
    %130 = vmatprep.subr.mxu0 0.0
    %131 = vmatpush1.msra.mxu0 0.0
    %132 = vmatprep.subr.mxu0 0.0
    %133 = vmatpush1.msra.mxu0 0.0
    %134 = vmatprep.subr.mxu0 0.0
    %135 = vmatpush1.msra.mxu0 0.0
    %136 = vmatprep.subr.mxu0 0.0
    %137 = vmatpush1.msra.mxu0 0.0
    %138 = vmatprep.subr.mxu0 0.0
    %139 = vmatpush1.msra.mxu0 0.0
    %140 = vmatprep.subr.mxu0 0.0
    %141 = vmatpush1.msra.mxu0 0.0
    %142 = vmatprep.subr.mxu0 0.0
    %143 = vmatpush1.msra.mxu0 0.0
    %144 = vmatprep.subr.mxu0 0.0
    %145 = vmatpush1.msra.mxu0 0.0
    %146 = vmatprep.subr.mxu0 0.0
    %147 = vmatpush1.msra.mxu0 0.0
    %148 = vmatprep.subr.mxu0 0.0
    %149 = vmatpush1.msra.mxu0 0.0
    %150 = vmatprep.subr.mxu0 0.0
    %151 = vmatpush1.msra.mxu0 0.0
    %152 = vmatprep.subr.mxu0 0.0
    %153 = vmatpush1.msra.mxu0 0.0
    %154 = vmatprep.subr.mxu0 0.0
    %155 = vmatpush1.msra.mxu0 0.0
    %156 = vmatprep.subr.mxu0 0.0
    %157 = vmatpush1.msra.mxu0 0.0
    %158 = vmatprep.subr.mxu0 0.0
    %159 = vmatpush1.msra.mxu0 0.0
    %160 = vmatprep.subr.mxu0 0.0
    %161 = vmatpush1.msra.mxu0 0.0
    %162 = vmatprep.subr.mxu0 0.0
    %163 = vmatpush1.msra.mxu0 0.0
    %164 = vmatprep.subr.mxu0 0.0
    %165 = vmatpush1.msra.mxu0 0.0
    %166 = vmatprep.subr.mxu0 0.0
    %167 = vmatpush1.msra.mxu0 0.0
    %168 = vmatprep.subr.mxu0 0.0
    %169 = vmatpush1.msra.mxu0 0.0
    %170 = vmatprep.subr.mxu0 0.0
    %171 = vmatpush1.msra.mxu0 0.0
    %172 = vmatprep.subr.mxu0 0.0
    %173 = vmatpush1.msra.mxu0 0.0
    %174 = vmatprep.subr.mxu0 0.0
    %175 = vmatpush1.msra.mxu0 0.0
    %176 = vmatprep.mubr.f32.mxu0 0.0
    %177 = vmatmul.mubr.f32.gmra.mrb[0].mxu0 %v107
    %v178 = vpop.f32.mrb[0].mxu0
    %v179 = vadd.f32 %v103, %v178
    %v180 = vpop.f32.mrb[0].mxu0
    %181 = vmatprep.mubr.f32.mxu0 0.0
    %182 = vmatmul.mubr.f32.gmra.mrb[0].mxu0 %v110
    %v183 = vpop.f32.mrb[0].mxu0
    %v184 = vadd.f32 %v103, %v183
    %v185 = vpop.f32.mrb[0].mxu0
    %186 = vdwg.mxu0
    %189 = vrot.lane.b32.xlu0 %v179, 120
    %v190 = vpop.permute.xlu0 %189
    %191 = vrot.lane.b32.xlu0 %v184, 120
    %v192 = vpop.permute.xlu0 %191
    %193 = vrot.lane.b32.xlu0 %v179, 112
    %v194 = vpop.permute.xlu0 %193
    %195 = vrot.lane.b32.xlu0 %v184, 112
    %v196 = vpop.permute.xlu0 %195
    %197 = vrot.lane.b32.xlu0 %v179, 104
    %v198 = vpop.permute.xlu0 %197
    %199 = vrot.lane.b32.xlu0 %v184, 104
    %v200 = vpop.permute.xlu0 %199
    %201 = vrot.lane.b32.xlu0 %v179, 96
    %v202 = vpop.permute.xlu0 %201
    %vm203 = vcmask 64512
    %v204 = vsel %vm203, %v179, 0
    %v206 = vsel %vm203, %v202, 0
    %208 = vmatprep.subr.mxu0 0.0
    %209 = vmatpush1.xpose.msra.mxu0 %v206
    %210 = vmatprep.subr.mxu0 0.0
    %211 = vmatpush1.xpose.msra.mxu0 0.0
    %212 = vmatprep.subr.mxu0 0.0
    %213 = vmatpush1.xpose.msra.mxu0 0.0
    %214 = vmatprep.subr.mxu0 0.0
    %215 = vmatpush1.xpose.msra.mxu0 0.0
    %216 = vmatprep.subr.mxu0 0.0
    %217 = vmatpush1.xpose.msra.mxu0 0.0
    %218 = vmatprep.subr.mxu0 0.0
    %219 = vmatpush1.xpose.msra.mxu0 0.0
    %220 = vmatprep.subr.mxu0 0.0
    %221 = vmatpush1.xpose.msra.mxu0 0.0
    %222 = vmatprep.subr.mxu0 0.0
    %223 = vmatpush1.xpose.msra.mxu0 0.0
    %224 = vmatprep.subr.mxu0 0.0
    %225 = vmatpush1.xpose.msra.mxu0 0.0
    %226 = vmatprep.subr.mxu0 0.0
    %227 = vmatpush1.xpose.msra.mxu0 0.0
    %228 = vmatprep.subr.mxu0 0.0
    %229 = vmatpush1.xpose.msra.mxu0 0.0
    %230 = vmatprep.subr.mxu0 0.0
    %231 = vmatpush1.xpose.msra.mxu0 0.0
    %232 = vmatprep.subr.mxu0 0.0
    %233 = vmatpush1.xpose.msra.mxu0 0.0
    %234 = vmatprep.subr.mxu0 0.0
    %235 = vmatpush1.xpose.msra.mxu0 0.0
    %236 = vmatprep.subr.mxu0 0.0
    %237 = vmatpush1.xpose.msra.mxu0 0.0
    %238 = vmatprep.subr.mxu0 0.0
    %239 = vmatpush1.xpose.msra.mxu0 0.0
    %240 = vmatprep.subr.mxu0 0.0
    %241 = vmatpush1.xpose.msra.mxu0 0.0
    %242 = vmatprep.subr.mxu0 0.0
    %243 = vmatpush1.xpose.msra.mxu0 0.0
    %244 = vmatprep.subr.mxu0 0.0
    %245 = vmatpush1.xpose.msra.mxu0 0.0
    %246 = vmatprep.subr.mxu0 0.0
    %247 = vmatpush1.xpose.msra.mxu0 0.0
    %248 = vmatprep.subr.mxu0 0.0
    %249 = vmatpush1.xpose.msra.mxu0 0.0
    %250 = vmatprep.subr.mxu0 0.0
    %251 = vmatpush1.xpose.msra.mxu0 0.0
    %252 = vmatprep.subr.mxu0 0.0
    %253 = vmatpush1.xpose.msra.mxu0 0.0
    %254 = vmatprep.subr.mxu0 0.0
    %255 = vmatpush1.xpose.msra.mxu0 0.0
    %256 = vmatprep.subr.mxu0 0.0
    %257 = vmatpush1.xpose.msra.mxu0 0.0
    %258 = vmatprep.subr.mxu0 0.0
    %259 = vmatpush1.xpose.msra.mxu0 0.0
    %260 = vmatprep.subr.mxu0 0.0
    %261 = vmatpush1.xpose.msra.mxu0 0.0
    %262 = vmatprep.subr.mxu0 0.0
    %263 = vmatpush1.xpose.msra.mxu0 0.0
    %264 = vmatprep.subr.mxu0 0.0
    %265 = vmatpush1.xpose.msra.mxu0 0.0
    %266 = vmatprep.subr.mxu0 0.0
    %267 = vmatpush1.xpose.msra.mxu0 0.0
    %268 = vmatprep.subr.mxu0 0.0
    %269 = vmatpush1.xpose.msra.mxu0 0.0
    %270 = vmatprep.subr.mxu0 0.0
    %271 = vmatpush1.xpose.msra.mxu0 0.0
    %272 = vmatprep.mubr.f32.mxu0 0.0
    %273 = vmatmul.mubr.f32.gmra.mrb[0].mxu0 %v204
    %v274 = vpop.f32.mrb[0].mxu0
    %v275 = vadd.f32 %v78, %v274
    %v276 = vpop.f32.mrb[0].mxu0
    %277 = vdwg.mxu0
    %278 = vrot.lane.b32.xlu0 %v184, 96
    %v279 = vpop.permute.xlu0 %278
    %v280 = vsel %vm203, %v184, 0
    %v282 = vsel %vm203, %v279, 0
    %284 = vmatprep.subr.mxu0 0.0
    %285 = vmatpush1.xpose.msra.mxu0 %v282
    %286 = vmatprep.subr.mxu0 0.0
    %287 = vmatpush1.xpose.msra.mxu0 0.0
    %288 = vmatprep.subr.mxu0 0.0
    %289 = vmatpush1.xpose.msra.mxu0 0.0
    %290 = vmatprep.subr.mxu0 0.0
    %291 = vmatpush1.xpose.msra.mxu0 0.0
    %292 = vmatprep.subr.mxu0 0.0
    %293 = vmatpush1.xpose.msra.mxu0 0.0
    %294 = vmatprep.subr.mxu0 0.0
    %295 = vmatpush1.xpose.msra.mxu0 0.0
    %296 = vmatprep.subr.mxu0 0.0
    %297 = vmatpush1.xpose.msra.mxu0 0.0
    %298 = vmatprep.subr.mxu0 0.0
    %299 = vmatpush1.xpose.msra.mxu0 0.0
    %300 = vmatprep.subr.mxu0 0.0
    %301 = vmatpush1.xpose.msra.mxu0 0.0
    %302 = vmatprep.subr.mxu0 0.0
    %303 = vmatpush1.xpose.msra.mxu0 0.0
    %304 = vmatprep.subr.mxu0 0.0
    %305 = vmatpush1.xpose.msra.mxu0 0.0
    %306 = vmatprep.subr.mxu0 0.0
    %307 = vmatpush1.xpose.msra.mxu0 0.0
    %308 = vmatprep.subr.mxu0 0.0
    %309 = vmatpush1.xpose.msra.mxu0 0.0
    %310 = vmatprep.subr.mxu0 0.0
    %311 = vmatpush1.xpose.msra.mxu0 0.0
    %312 = vmatprep.subr.mxu0 0.0
    %313 = vmatpush1.xpose.msra.mxu0 0.0
    %314 = vmatprep.subr.mxu0 0.0
    %315 = vmatpush1.xpose.msra.mxu0 0.0
    %316 = vmatprep.subr.mxu0 0.0
    %317 = vmatpush1.xpose.msra.mxu0 0.0
    %318 = vmatprep.subr.mxu0 0.0
    %319 = vmatpush1.xpose.msra.mxu0 0.0
    %320 = vmatprep.subr.mxu0 0.0
    %321 = vmatpush1.xpose.msra.mxu0 0.0
    %322 = vmatprep.subr.mxu0 0.0
    %323 = vmatpush1.xpose.msra.mxu0 0.0
    %324 = vmatprep.subr.mxu0 0.0
    %325 = vmatpush1.xpose.msra.mxu0 0.0
    %326 = vmatprep.subr.mxu0 0.0
    %327 = vmatpush1.xpose.msra.mxu0 0.0
    %328 = vmatprep.subr.mxu0 0.0
    %329 = vmatpush1.xpose.msra.mxu0 0.0
    %330 = vmatprep.subr.mxu0 0.0
    %331 = vmatpush1.xpose.msra.mxu0 0.0
    %332 = vmatprep.subr.mxu0 0.0
    %333 = vmatpush1.xpose.msra.mxu0 0.0
    %334 = vmatprep.subr.mxu0 0.0
    %335 = vmatpush1.xpose.msra.mxu0 0.0
    %336 = vmatprep.subr.mxu0 0.0
    %337 = vmatpush1.xpose.msra.mxu0 0.0
    %338 = vmatprep.subr.mxu0 0.0
    %339 = vmatpush1.xpose.msra.mxu0 0.0
    %340 = vmatprep.subr.mxu0 0.0
    %341 = vmatpush1.xpose.msra.mxu0 0.0
    %342 = vmatprep.subr.mxu0 0.0
    %343 = vmatpush1.xpose.msra.mxu0 0.0
    %344 = vmatprep.subr.mxu0 0.0
    %345 = vmatpush1.xpose.msra.mxu0 0.0
    %346 = vmatprep.subr.mxu0 0.0
    %347 = vmatpush1.xpose.msra.mxu0 0.0
    %348 = vmatprep.mubr.f32.mxu0 0.0
    %349 = vmatmul.mubr.f32.gmra.mrb[0].mxu0 %v280
    %v350 = vpop.f32.mrb[0].mxu0
    %v351 = vadd.f32 %v79, %v350
    %v352 = vpop.f32.mrb[0].mxu0
    %353 = vdwg.mxu0
    %354 = vrot.lane.b32.xlu0 %v190, 96
    %v355 = vpop.permute.xlu0 %354
    %v356 = vsel %vm203, %v190, 0
    %v358 = vsel %vm203, %v355, 0
    %360 = vmatprep.subr.mxu0 0.0
    %361 = vmatpush1.xpose.msra.mxu0 %v358
    %362 = vmatprep.subr.mxu0 0.0
    %363 = vmatpush1.xpose.msra.mxu0 0.0
    %364 = vmatprep.subr.mxu0 0.0
    %365 = vmatpush1.xpose.msra.mxu0 0.0
    %366 = vmatprep.subr.mxu0 0.0
    %367 = vmatpush1.xpose.msra.mxu0 0.0
    %368 = vmatprep.subr.mxu0 0.0
    %369 = vmatpush1.xpose.msra.mxu0 0.0
    %370 = vmatprep.subr.mxu0 0.0
    %371 = vmatpush1.xpose.msra.mxu0 0.0
    %372 = vmatprep.subr.mxu0 0.0
    %373 = vmatpush1.xpose.msra.mxu0 0.0
    %374 = vmatprep.subr.mxu0 0.0
    %375 = vmatpush1.xpose.msra.mxu0 0.0
    %376 = vmatprep.subr.mxu0 0.0
    %377 = vmatpush1.xpose.msra.mxu0 0.0
    %378 = vmatprep.subr.mxu0 0.0
    %379 = vmatpush1.xpose.msra.mxu0 0.0
    %380 = vmatprep.subr.mxu0 0.0
    %381 = vmatpush1.xpose.msra.mxu0 0.0
    %382 = vmatprep.subr.mxu0 0.0
    %383 = vmatpush1.xpose.msra.mxu0 0.0
    %384 = vmatprep.subr.mxu0 0.0
    %385 = vmatpush1.xpose.msra.mxu0 0.0
    %386 = vmatprep.subr.mxu0 0.0
    %387 = vmatpush1.xpose.msra.mxu0 0.0
    %388 = vmatprep.subr.mxu0 0.0
    %389 = vmatpush1.xpose.msra.mxu0 0.0
    %390 = vmatprep.subr.mxu0 0.0
    %391 = vmatpush1.xpose.msra.mxu0 0.0
    %392 = vmatprep.subr.mxu0 0.0
    %393 = vmatpush1.xpose.msra.mxu0 0.0
    %394 = vmatprep.subr.mxu0 0.0
    %395 = vmatpush1.xpose.msra.mxu0 0.0
    %396 = vmatprep.subr.mxu0 0.0
    %397 = vmatpush1.xpose.msra.mxu0 0.0
    %398 = vmatprep.subr.mxu0 0.0
    %399 = vmatpush1.xpose.msra.mxu0 0.0
    %400 = vmatprep.subr.mxu0 0.0
    %401 = vmatpush1.xpose.msra.mxu0 0.0
    %402 = vmatprep.subr.mxu0 0.0
    %403 = vmatpush1.xpose.msra.mxu0 0.0
    %404 = vmatprep.subr.mxu0 0.0
    %405 = vmatpush1.xpose.msra.mxu0 0.0
    %406 = vmatprep.subr.mxu0 0.0
    %407 = vmatpush1.xpose.msra.mxu0 0.0
    %408 = vmatprep.subr.mxu0 0.0
    %409 = vmatpush1.xpose.msra.mxu0 0.0
    %410 = vmatprep.subr.mxu0 0.0
    %411 = vmatpush1.xpose.msra.mxu0 0.0
    %412 = vmatprep.subr.mxu0 0.0
    %413 = vmatpush1.xpose.msra.mxu0 0.0
    %414 = vmatprep.subr.mxu0 0.0
    %415 = vmatpush1.xpose.msra.mxu0 0.0
    %416 = vmatprep.subr.mxu0 0.0
    %417 = vmatpush1.xpose.msra.mxu0 0.0
    %418 = vmatprep.subr.mxu0 0.0
    %419 = vmatpush1.xpose.msra.mxu0 0.0
    %420 = vmatprep.subr.mxu0 0.0
    %421 = vmatpush1.xpose.msra.mxu0 0.0
    %422 = vmatprep.subr.mxu0 0.0
    %423 = vmatpush1.xpose.msra.mxu0 0.0
    %424 = vmatprep.mubr.f32.mxu0 0.0
    %425 = vmatmul.mubr.f32.gmra.mrb[0].mxu0 %v356
    %v426 = vpop.f32.mrb[0].mxu0
    %v427 = vadd.f32 %v80, %v426
    %v428 = vpop.f32.mrb[0].mxu0
    %429 = vdwg.mxu0
    %430 = vrot.lane.b32.xlu0 %v192, 96
    %v431 = vpop.permute.xlu0 %430
    %v432 = vsel %vm203, %v192, 0
    %v434 = vsel %vm203, %v431, 0
    %436 = vmatprep.subr.mxu0 0.0
    %437 = vmatpush1.xpose.msra.mxu0 %v434
    %438 = vmatprep.subr.mxu0 0.0
    %439 = vmatpush1.xpose.msra.mxu0 0.0
    %440 = vmatprep.subr.mxu0 0.0
    %441 = vmatpush1.xpose.msra.mxu0 0.0
    %442 = vmatprep.subr.mxu0 0.0
    %443 = vmatpush1.xpose.msra.mxu0 0.0
    %444 = vmatprep.subr.mxu0 0.0
    %445 = vmatpush1.xpose.msra.mxu0 0.0
    %446 = vmatprep.subr.mxu0 0.0
    %447 = vmatpush1.xpose.msra.mxu0 0.0
    %448 = vmatprep.subr.mxu0 0.0
    %449 = vmatpush1.xpose.msra.mxu0 0.0
    %450 = vmatprep.subr.mxu0 0.0
    %451 = vmatpush1.xpose.msra.mxu0 0.0
    %452 = vmatprep.subr.mxu0 0.0
    %453 = vmatpush1.xpose.msra.mxu0 0.0
    %454 = vmatprep.subr.mxu0 0.0
    %455 = vmatpush1.xpose.msra.mxu0 0.0
    %456 = vmatprep.subr.mxu0 0.0
    %457 = vmatpush1.xpose.msra.mxu0 0.0
    %458 = vmatprep.subr.mxu0 0.0
    %459 = vmatpush1.xpose.msra.mxu0 0.0
    %460 = vmatprep.subr.mxu0 0.0
    %461 = vmatpush1.xpose.msra.mxu0 0.0
    %462 = vmatprep.subr.mxu0 0.0
    %463 = vmatpush1.xpose.msra.mxu0 0.0
    %464 = vmatprep.subr.mxu0 0.0
    %465 = vmatpush1.xpose.msra.mxu0 0.0
    %466 = vmatprep.subr.mxu0 0.0
    %467 = vmatpush1.xpose.msra.mxu0 0.0
    %468 = vmatprep.subr.mxu0 0.0
    %469 = vmatpush1.xpose.msra.mxu0 0.0
    %470 = vmatprep.subr.mxu0 0.0
    %471 = vmatpush1.xpose.msra.mxu0 0.0
    %472 = vmatprep.subr.mxu0 0.0
    %473 = vmatpush1.xpose.msra.mxu0 0.0
    %474 = vmatprep.subr.mxu0 0.0
    %475 = vmatpush1.xpose.msra.mxu0 0.0
    %476 = vmatprep.subr.mxu0 0.0
    %477 = vmatpush1.xpose.msra.mxu0 0.0
    %478 = vmatprep.subr.mxu0 0.0
    %479 = vmatpush1.xpose.msra.mxu0 0.0
    %480 = vmatprep.subr.mxu0 0.0
    %481 = vmatpush1.xpose.msra.mxu0 0.0
    %482 = vmatprep.subr.mxu0 0.0
    %483 = vmatpush1.xpose.msra.mxu0 0.0
    %484 = vmatprep.subr.mxu0 0.0
    %485 = vmatpush1.xpose.msra.mxu0 0.0
    %486 = vmatprep.subr.mxu0 0.0
    %487 = vmatpush1.xpose.msra.mxu0 0.0
    %488 = vmatprep.subr.mxu0 0.0
    %489 = vmatpush1.xpose.msra.mxu0 0.0
    %490 = vmatprep.subr.mxu0 0.0
    %491 = vmatpush1.xpose.msra.mxu0 0.0
    %492 = vmatprep.subr.mxu0 0.0
    %493 = vmatpush1.xpose.msra.mxu0 0.0
    %494 = vmatprep.subr.mxu0 0.0
    %495 = vmatpush1.xpose.msra.mxu0 0.0
    %496 = vmatprep.subr.mxu0 0.0
    %497 = vmatpush1.xpose.msra.mxu0 0.0
    %498 = vmatprep.subr.mxu0 0.0
    %499 = vmatpush1.xpose.msra.mxu0 0.0
    %500 = vmatprep.mubr.f32.mxu0 0.0
    %501 = vmatmul.mubr.f32.gmra.mrb[0].mxu0 %v432
    %v502 = vpop.f32.mrb[0].mxu0
    %v503 = vadd.f32 %v81, %v502
    %v504 = vpop.f32.mrb[0].mxu0
    %505 = vdwg.mxu0
    %506 = vrot.lane.b32.xlu0 %v194, 96
    %v507 = vpop.permute.xlu0 %506
    %v508 = vsel %vm203, %v194, 0
    %v510 = vsel %vm203, %v507, 0
    %512 = vmatprep.subr.mxu0 0.0
    %513 = vmatpush1.xpose.msra.mxu0 %v510
    %514 = vmatprep.subr.mxu0 0.0
    %515 = vmatpush1.xpose.msra.mxu0 0.0
    %516 = vmatprep.subr.mxu0 0.0
    %517 = vmatpush1.xpose.msra.mxu0 0.0
    %518 = vmatprep.subr.mxu0 0.0
    %519 = vmatpush1.xpose.msra.mxu0 0.0
    %520 = vmatprep.subr.mxu0 0.0
    %521 = vmatpush1.xpose.msra.mxu0 0.0
    %522 = vmatprep.subr.mxu0 0.0
    %523 = vmatpush1.xpose.msra.mxu0 0.0
    %524 = vmatprep.subr.mxu0 0.0
    %525 = vmatpush1.xpose.msra.mxu0 0.0
    %526 = vmatprep.subr.mxu0 0.0
    %527 = vmatpush1.xpose.msra.mxu0 0.0
    %528 = vmatprep.subr.mxu0 0.0
    %529 = vmatpush1.xpose.msra.mxu0 0.0
    %530 = vmatprep.subr.mxu0 0.0
    %531 = vmatpush1.xpose.msra.mxu0 0.0
    %532 = vmatprep.subr.mxu0 0.0
    %533 = vmatpush1.xpose.msra.mxu0 0.0
    %534 = vmatprep.subr.mxu0 0.0
    %535 = vmatpush1.xpose.msra.mxu0 0.0
    %536 = vmatprep.subr.mxu0 0.0
    %537 = vmatpush1.xpose.msra.mxu0 0.0
    %538 = vmatprep.subr.mxu0 0.0
    %539 = vmatpush1.xpose.msra.mxu0 0.0
    %540 = vmatprep.subr.mxu0 0.0
    %541 = vmatpush1.xpose.msra.mxu0 0.0
    %542 = vmatprep.subr.mxu0 0.0
    %543 = vmatpush1.xpose.msra.mxu0 0.0
    %544 = vmatprep.subr.mxu0 0.0
    %545 = vmatpush1.xpose.msra.mxu0 0.0
    %546 = vmatprep.subr.mxu0 0.0
    %547 = vmatpush1.xpose.msra.mxu0 0.0
    %548 = vmatprep.subr.mxu0 0.0
    %549 = vmatpush1.xpose.msra.mxu0 0.0
    %550 = vmatprep.subr.mxu0 0.0
    %551 = vmatpush1.xpose.msra.mxu0 0.0
    %552 = vmatprep.subr.mxu0 0.0
    %553 = vmatpush1.xpose.msra.mxu0 0.0
    %554 = vmatprep.subr.mxu0 0.0
    %555 = vmatpush1.xpose.msra.mxu0 0.0
    %556 = vmatprep.subr.mxu0 0.0
    %557 = vmatpush1.xpose.msra.mxu0 0.0
    %558 = vmatprep.subr.mxu0 0.0
    %559 = vmatpush1.xpose.msra.mxu0 0.0
    %560 = vmatprep.subr.mxu0 0.0
    %561 = vmatpush1.xpose.msra.mxu0 0.0
    %562 = vmatprep.subr.mxu0 0.0
    %563 = vmatpush1.xpose.msra.mxu0 0.0
    %564 = vmatprep.subr.mxu0 0.0
    %565 = vmatpush1.xpose.msra.mxu0 0.0
    %566 = vmatprep.subr.mxu0 0.0
    %567 = vmatpush1.xpose.msra.mxu0 0.0
    %568 = vmatprep.subr.mxu0 0.0
    %569 = vmatpush1.xpose.msra.mxu0 0.0
    %570 = vmatprep.subr.mxu0 0.0
    %571 = vmatpush1.xpose.msra.mxu0 0.0
    %572 = vmatprep.subr.mxu0 0.0
    %573 = vmatpush1.xpose.msra.mxu0 0.0
    %574 = vmatprep.subr.mxu0 0.0
    %575 = vmatpush1.xpose.msra.mxu0 0.0
    %576 = vmatprep.mubr.f32.mxu0 0.0
    %577 = vmatmul.mubr.f32.gmra.mrb[0].mxu0 %v508
    %v578 = vpop.f32.mrb[0].mxu0
    %v579 = vadd.f32 %v82, %v578
    %v580 = vpop.f32.mrb[0].mxu0
    %581 = vdwg.mxu0
    %582 = vrot.lane.b32.xlu0 %v196, 96
    %v583 = vpop.permute.xlu0 %582
    %v584 = vsel %vm203, %v196, 0
    %v586 = vsel %vm203, %v583, 0
    %588 = vmatprep.subr.mxu0 0.0
    %589 = vmatpush1.xpose.msra.mxu0 %v586
    %590 = vmatprep.subr.mxu0 0.0
    %591 = vmatpush1.xpose.msra.mxu0 0.0
    %592 = vmatprep.subr.mxu0 0.0
    %593 = vmatpush1.xpose.msra.mxu0 0.0
    %594 = vmatprep.subr.mxu0 0.0
    %595 = vmatpush1.xpose.msra.mxu0 0.0
    %596 = vmatprep.subr.mxu0 0.0
    %597 = vmatpush1.xpose.msra.mxu0 0.0
    %598 = vmatprep.subr.mxu0 0.0
    %599 = vmatpush1.xpose.msra.mxu0 0.0
    %600 = vmatprep.subr.mxu0 0.0
    %601 = vmatpush1.xpose.msra.mxu0 0.0
    %602 = vmatprep.subr.mxu0 0.0
    %603 = vmatpush1.xpose.msra.mxu0 0.0
    %604 = vmatprep.subr.mxu0 0.0
    %605 = vmatpush1.xpose.msra.mxu0 0.0
    %606 = vmatprep.subr.mxu0 0.0
    %607 = vmatpush1.xpose.msra.mxu0 0.0
    %608 = vmatprep.subr.mxu0 0.0
    %609 = vmatpush1.xpose.msra.mxu0 0.0
    %610 = vmatprep.subr.mxu0 0.0
    %611 = vmatpush1.xpose.msra.mxu0 0.0
    %612 = vmatprep.subr.mxu0 0.0
    %613 = vmatpush1.xpose.msra.mxu0 0.0
    %614 = vmatprep.subr.mxu0 0.0
    %615 = vmatpush1.xpose.msra.mxu0 0.0
    %616 = vmatprep.subr.mxu0 0.0
    %617 = vmatpush1.xpose.msra.mxu0 0.0
    %618 = vmatprep.subr.mxu0 0.0
    %619 = vmatpush1.xpose.msra.mxu0 0.0
    %620 = vmatprep.subr.mxu0 0.0
    %621 = vmatpush1.xpose.msra.mxu0 0.0
    %622 = vmatprep.subr.mxu0 0.0
    %623 = vmatpush1.xpose.msra.mxu0 0.0
    %624 = vmatprep.subr.mxu0 0.0
    %625 = vmatpush1.xpose.msra.mxu0 0.0
    %626 = vmatprep.subr.mxu0 0.0
    %627 = vmatpush1.xpose.msra.mxu0 0.0
    %628 = vmatprep.subr.mxu0 0.0
    %629 = vmatpush1.xpose.msra.mxu0 0.0
    %630 = vmatprep.subr.mxu0 0.0
    %631 = vmatpush1.xpose.msra.mxu0 0.0
    %632 = vmatprep.subr.mxu0 0.0
    %633 = vmatpush1.xpose.msra.mxu0 0.0
    %634 = vmatprep.subr.mxu0 0.0
    %635 = vmatpush1.xpose.msra.mxu0 0.0
    %636 = vmatprep.subr.mxu0 0.0
    %637 = vmatpush1.xpose.msra.mxu0 0.0
    %638 = vmatprep.subr.mxu0 0.0
    %639 = vmatpush1.xpose.msra.mxu0 0.0
    %640 = vmatprep.subr.mxu0 0.0
    %641 = vmatpush1.xpose.msra.mxu0 0.0
    %642 = vmatprep.subr.mxu0 0.0
    %643 = vmatpush1.xpose.msra.mxu0 0.0
    %644 = vmatprep.subr.mxu0 0.0
    %645 = vmatpush1.xpose.msra.mxu0 0.0
    %646 = vmatprep.subr.mxu0 0.0
    %647 = vmatpush1.xpose.msra.mxu0 0.0
    %648 = vmatprep.subr.mxu0 0.0
    %649 = vmatpush1.xpose.msra.mxu0 0.0
    %650 = vmatprep.subr.mxu0 0.0
    %651 = vmatpush1.xpose.msra.mxu0 0.0
    %652 = vmatprep.mubr.f32.mxu0 0.0
    %653 = vmatmul.mubr.f32.gmra.mrb[0].mxu0 %v584
    %v654 = vpop.f32.mrb[0].mxu0
    %v655 = vadd.f32 %v83, %v654
    %v656 = vpop.f32.mrb[0].mxu0
    %657 = vdwg.mxu0
    %658 = vrot.lane.b32.xlu0 %v198, 96
    %v659 = vpop.permute.xlu0 %658
    %v660 = vsel %vm203, %v198, 0
    %v662 = vsel %vm203, %v659, 0
    %664 = vmatprep.subr.mxu0 0.0
    %665 = vmatpush1.xpose.msra.mxu0 %v662
    %666 = vmatprep.subr.mxu0 0.0
    %667 = vmatpush1.xpose.msra.mxu0 0.0
    %668 = vmatprep.subr.mxu0 0.0
    %669 = vmatpush1.xpose.msra.mxu0 0.0
    %670 = vmatprep.subr.mxu0 0.0
    %671 = vmatpush1.xpose.msra.mxu0 0.0
    %672 = vmatprep.subr.mxu0 0.0
    %673 = vmatpush1.xpose.msra.mxu0 0.0
    %674 = vmatprep.subr.mxu0 0.0
    %675 = vmatpush1.xpose.msra.mxu0 0.0
    %676 = vmatprep.subr.mxu0 0.0
    %677 = vmatpush1.xpose.msra.mxu0 0.0
    %678 = vmatprep.subr.mxu0 0.0
    %679 = vmatpush1.xpose.msra.mxu0 0.0
    %680 = vmatprep.subr.mxu0 0.0
    %681 = vmatpush1.xpose.msra.mxu0 0.0
    %682 = vmatprep.subr.mxu0 0.0
    %683 = vmatpush1.xpose.msra.mxu0 0.0
    %684 = vmatprep.subr.mxu0 0.0
    %685 = vmatpush1.xpose.msra.mxu0 0.0
    %686 = vmatprep.subr.mxu0 0.0
    %687 = vmatpush1.xpose.msra.mxu0 0.0
    %688 = vmatprep.subr.mxu0 0.0
    %689 = vmatpush1.xpose.msra.mxu0 0.0
    %690 = vmatprep.subr.mxu0 0.0
    %691 = vmatpush1.xpose.msra.mxu0 0.0
    %692 = vmatprep.subr.mxu0 0.0
    %693 = vmatpush1.xpose.msra.mxu0 0.0
    %694 = vmatprep.subr.mxu0 0.0
    %695 = vmatpush1.xpose.msra.mxu0 0.0
    %696 = vmatprep.subr.mxu0 0.0
    %697 = vmatpush1.xpose.msra.mxu0 0.0
    %698 = vmatprep.subr.mxu0 0.0
    %699 = vmatpush1.xpose.msra.mxu0 0.0
    %700 = vmatprep.subr.mxu0 0.0
    %701 = vmatpush1.xpose.msra.mxu0 0.0
    %702 = vmatprep.subr.mxu0 0.0
    %703 = vmatpush1.xpose.msra.mxu0 0.0
    %704 = vmatprep.subr.mxu0 0.0
    %705 = vmatpush1.xpose.msra.mxu0 0.0
    %706 = vmatprep.subr.mxu0 0.0
    %707 = vmatpush1.xpose.msra.mxu0 0.0
    %708 = vmatprep.subr.mxu0 0.0
    %709 = vmatpush1.xpose.msra.mxu0 0.0
    %710 = vmatprep.subr.mxu0 0.0
    %711 = vmatpush1.xpose.msra.mxu0 0.0
    %712 = vmatprep.subr.mxu0 0.0
    %713 = vmatpush1.xpose.msra.mxu0 0.0
    %714 = vmatprep.subr.mxu0 0.0
    %715 = vmatpush1.xpose.msra.mxu0 0.0
    %716 = vmatprep.subr.mxu0 0.0
    %717 = vmatpush1.xpose.msra.mxu0 0.0
    %718 = vmatprep.subr.mxu0 0.0
    %719 = vmatpush1.xpose.msra.mxu0 0.0
    %720 = vmatprep.subr.mxu0 0.0
    %721 = vmatpush1.xpose.msra.mxu0 0.0
    %722 = vmatprep.subr.mxu0 0.0
    %723 = vmatpush1.xpose.msra.mxu0 0.0
    %724 = vmatprep.subr.mxu0 0.0
    %725 = vmatpush1.xpose.msra.mxu0 0.0
    %726 = vmatprep.subr.mxu0 0.0
    %727 = vmatpush1.xpose.msra.mxu0 0.0
    %728 = vmatprep.mubr.f32.mxu0 0.0
    %729 = vmatmul.mubr.f32.gmra.mrb[0].mxu0 %v660
    %v730 = vpop.f32.mrb[0].mxu0
    %v731 = vadd.f32 %v84, %v730
    %v732 = vpop.f32.mrb[0].mxu0
    %733 = vdwg.mxu0
    %734 = vrot.lane.b32.xlu0 %v200, 96
    %v735 = vpop.permute.xlu0 %734
    %v736 = vsel %vm203, %v200, 0
    %v738 = vsel %vm203, %v735, 0
    %740 = vmatprep.subr.mxu0 0.0
    %741 = vmatpush1.xpose.msra.mxu0 %v738
    %742 = vmatprep.subr.mxu0 0.0
    %743 = vmatpush1.xpose.msra.mxu0 0.0
    %744 = vmatprep.subr.mxu0 0.0
    %745 = vmatpush1.xpose.msra.mxu0 0.0
    %746 = vmatprep.subr.mxu0 0.0
    %747 = vmatpush1.xpose.msra.mxu0 0.0
    %748 = vmatprep.subr.mxu0 0.0
    %749 = vmatpush1.xpose.msra.mxu0 0.0
    %750 = vmatprep.subr.mxu0 0.0
    %751 = vmatpush1.xpose.msra.mxu0 0.0
    %752 = vmatprep.subr.mxu0 0.0
    %753 = vmatpush1.xpose.msra.mxu0 0.0
    %754 = vmatprep.subr.mxu0 0.0
    %755 = vmatpush1.xpose.msra.mxu0 0.0
    %756 = vmatprep.subr.mxu0 0.0
    %757 = vmatpush1.xpose.msra.mxu0 0.0
    %758 = vmatprep.subr.mxu0 0.0
    %759 = vmatpush1.xpose.msra.mxu0 0.0
    %760 = vmatprep.subr.mxu0 0.0
    %761 = vmatpush1.xpose.msra.mxu0 0.0
    %762 = vmatprep.subr.mxu0 0.0
    %763 = vmatpush1.xpose.msra.mxu0 0.0
    %764 = vmatprep.subr.mxu0 0.0
    %765 = vmatpush1.xpose.msra.mxu0 0.0
    %766 = vmatprep.subr.mxu0 0.0
    %767 = vmatpush1.xpose.msra.mxu0 0.0
    %768 = vmatprep.subr.mxu0 0.0
    %769 = vmatpush1.xpose.msra.mxu0 0.0
    %770 = vmatprep.subr.mxu0 0.0
    %771 = vmatpush1.xpose.msra.mxu0 0.0
    %772 = vmatprep.subr.mxu0 0.0
    %773 = vmatpush1.xpose.msra.mxu0 0.0
    %774 = vmatprep.subr.mxu0 0.0
    %775 = vmatpush1.xpose.msra.mxu0 0.0
    %776 = vmatprep.subr.mxu0 0.0
    %777 = vmatpush1.xpose.msra.mxu0 0.0
    %778 = vmatprep.subr.mxu0 0.0
    %779 = vmatpush1.xpose.msra.mxu0 0.0
    %780 = vmatprep.subr.mxu0 0.0
    %781 = vmatpush1.xpose.msra.mxu0 0.0
    %782 = vmatprep.subr.mxu0 0.0
    %783 = vmatpush1.xpose.msra.mxu0 0.0
    %784 = vmatprep.subr.mxu0 0.0
    %785 = vmatpush1.xpose.msra.mxu0 0.0
    %786 = vmatprep.subr.mxu0 0.0
    %787 = vmatpush1.xpose.msra.mxu0 0.0
    %788 = vmatprep.subr.mxu0 0.0
    %789 = vmatpush1.xpose.msra.mxu0 0.0
    %790 = vmatprep.subr.mxu0 0.0
    %791 = vmatpush1.xpose.msra.mxu0 0.0
    %792 = vmatprep.subr.mxu0 0.0
    %793 = vmatpush1.xpose.msra.mxu0 0.0
    %794 = vmatprep.subr.mxu0 0.0
    %795 = vmatpush1.xpose.msra.mxu0 0.0
    %796 = vmatprep.subr.mxu0 0.0
    %797 = vmatpush1.xpose.msra.mxu0 0.0
    %798 = vmatprep.subr.mxu0 0.0
    %799 = vmatpush1.xpose.msra.mxu0 0.0
    %800 = vmatprep.subr.mxu0 0.0
    %801 = vmatpush1.xpose.msra.mxu0 0.0
    %802 = vmatprep.subr.mxu0 0.0
    %803 = vmatpush1.xpose.msra.mxu0 0.0
    %804 = vmatprep.mubr.f32.mxu0 0.0
    %805 = vmatmul.mubr.f32.gmra.mrb[0].mxu0 %v736
    %v806 = vpop.f32.mrb[0].mxu0
    %v807 = vadd.f32 %v85, %v806
    %v808 = vpop.f32.mrb[0].mxu0
    %809 = vdwg.mxu0
    %v810 = vsel %vm203, %v275, -inf
    %811 = vmax.xlane.f32.xlu0 %v810
    %v812 = vpop.xlane.xlu0 %811
    %v813 = vsel %vm203, %v351, -inf
    %814 = vmax.xlane.f32.xlu0 %v813
    %v815 = vpop.xlane.xlu0 %814
    %v816 = vsel %vm203, %v427, -inf
    %817 = vmax.xlane.f32.xlu0 %v816
    %v818 = vpop.xlane.xlu0 %817
    %v819 = vsel %vm203, %v503, -inf
    %820 = vmax.xlane.f32.xlu0 %v819
    %v821 = vpop.xlane.xlu0 %820
    %v822 = vsel %vm203, %v579, -inf
    %823 = vmax.xlane.f32.xlu0 %v822
    %v824 = vpop.xlane.xlu0 %823
    %v825 = vsel %vm203, %v655, -inf
    %826 = vmax.xlane.f32.xlu0 %v825
    %v827 = vpop.xlane.xlu0 %826
    %v828 = vsel %vm203, %v731, -inf
    %829 = vmax.xlane.f32.xlu0 %v828
    %v830 = vpop.xlane.xlu0 %829
    %v831 = vsel %vm203, %v807, -inf
    %832 = vmax.xlane.f32.xlu0 %v831
    %v833 = vpop.xlane.xlu0 %832
    %v834 = vsub.f32 %v275, %v812
    %v835 = vsub.f32 %v351, %v815
    %v836 = vsub.f32 %v427, %v818
    %v837 = vsub.f32 %v503, %v821
    %v838 = vsub.f32 %v579, %v824
    %v839 = vsub.f32 %v655, %v827
    %v840 = vsub.f32 %v731, %v830
    %v841 = vsub.f32 %v807, %v833
    %v842 = vmul.f32 %v834, 1.442695
    %v843 = vpow.pop %v842
    %v844 = vmul.f32 %v835, 1.442695
    %v845 = vpow.pop %v844
    %v846 = vmul.f32 %v836, 1.442695
    %v847 = vpow.pop %v846
    %v848 = vmul.f32 %v837, 1.442695
    %v849 = vpow.pop %v848
    %v850 = vmul.f32 %v838, 1.442695
    %v851 = vpow.pop %v850
    %v852 = vmul.f32 %v839, 1.442695
    %v853 = vpow.pop %v852
    %v854 = vmul.f32 %v840, 1.442695
    %v855 = vpow.pop %v854
    %v856 = vmul.f32 %v841, 1.442695
    %v857 = vpow.pop %v856
    %v858 = vsel %vm203, %v843, 0.0
    %859 = vadd.xlane.f32.xlu0 %v858
    %v860 = vpop.xlane.xlu0 %859
    %v861 = vsel %vm203, %v845, 0.0
    %862 = vadd.xlane.f32.xlu0 %v861
    %v863 = vpop.xlane.xlu0 %862
    %v864 = vsel %vm203, %v847, 0.0
    %865 = vadd.xlane.f32.xlu0 %v864
    %v866 = vpop.xlane.xlu0 %865
    %v867 = vsel %vm203, %v849, 0.0
    %868 = vadd.xlane.f32.xlu0 %v867
    %v869 = vpop.xlane.xlu0 %868
    %v870 = vsel %vm203, %v851, 0.0
    %871 = vadd.xlane.f32.xlu0 %v870
    %v872 = vpop.xlane.xlu0 %871
    %v873 = vsel %vm203, %v853, 0.0
    %874 = vadd.xlane.f32.xlu0 %v873
    %v875 = vpop.xlane.xlu0 %874
    %v876 = vsel %vm203, %v855, 0.0
    %877 = vadd.xlane.f32.xlu0 %v876
    %v878 = vpop.xlane.xlu0 %877
    %v879 = vsel %vm203, %v857, 0.0
    %880 = vadd.xlane.f32.xlu0 %v879
    %v881 = vpop.xlane.xlu0 %880
    %v882 = vrcp.pop %v860
    %v883 = vrcp.pop %v863
    %v884 = vrcp.pop %v866
    %v885 = vrcp.pop %v869
    %v886 = vrcp.pop %v872
    %v887 = vrcp.pop %v875
    %v888 = vrcp.pop %v878
    %v889 = vrcp.pop %v881
    %v890 = vmul.f32 %v843, %v882
    %v891 = vmul.f32 %v845, %v883
    %v892 = vmul.f32 %v847, %v884
    %v893 = vmul.f32 %v849, %v885
    %v894 = vmul.f32 %v851, %v886
    %v895 = vmul.f32 %v853, %v887
    %v896 = vmul.f32 %v855, %v888
    %v897 = vmul.f32 %v857, %v889
    %898 = vrot.lane.b32.xlu0 %v179, 64
    %v899 = vpop.permute.xlu0 %898
    %v902 = vsel %vm203, %v890, 0
    %904 = vmatprep.subr.mxu0 0.0
    %905 = vmatpush1.msra.mxu0 %v899
    %906 = vmatprep.subr.mxu0 0.0
    %907 = vmatpush1.msra.mxu0 0.0
    %908 = vmatprep.subr.mxu0 0.0
    %909 = vmatpush1.msra.mxu0 0.0
    %910 = vmatprep.subr.mxu0 0.0
    %911 = vmatpush1.msra.mxu0 0.0
    %912 = vmatprep.subr.mxu0 0.0
    %913 = vmatpush1.msra.mxu0 0.0
    %914 = vmatprep.subr.mxu0 0.0
    %915 = vmatpush1.msra.mxu0 0.0
    %916 = vmatprep.subr.mxu0 0.0
    %917 = vmatpush1.msra.mxu0 0.0
    %918 = vmatprep.subr.mxu0 0.0
    %919 = vmatpush1.msra.mxu0 0.0
    %920 = vmatprep.subr.mxu0 0.0
    %921 = vmatpush1.msra.mxu0 0.0
    %922 = vmatprep.subr.mxu0 0.0
    %923 = vmatpush1.msra.mxu0 0.0
    %924 = vmatprep.subr.mxu0 0.0
    %925 = vmatpush1.msra.mxu0 0.0
    %926 = vmatprep.subr.mxu0 0.0
    %927 = vmatpush1.msra.mxu0 0.0
    %928 = vmatprep.subr.mxu0 0.0
    %929 = vmatpush1.msra.mxu0 0.0
    %930 = vmatprep.subr.mxu0 0.0
    %931 = vmatpush1.msra.mxu0 0.0
    %932 = vmatprep.subr.mxu0 0.0
    %933 = vmatpush1.msra.mxu0 0.0
    %934 = vmatprep.subr.mxu0 0.0
    %935 = vmatpush1.msra.mxu0 0.0
    %936 = vmatprep.subr.mxu0 0.0
    %937 = vmatpush1.msra.mxu0 0.0
    %938 = vmatprep.subr.mxu0 0.0
    %939 = vmatpush1.msra.mxu0 0.0
    %940 = vmatprep.subr.mxu0 0.0
    %941 = vmatpush1.msra.mxu0 0.0
    %942 = vmatprep.subr.mxu0 0.0
    %943 = vmatpush1.msra.mxu0 0.0
    %944 = vmatprep.subr.mxu0 0.0
    %945 = vmatpush1.msra.mxu0 0.0
    %946 = vmatprep.subr.mxu0 0.0
    %947 = vmatpush1.msra.mxu0 0.0
    %948 = vmatprep.subr.mxu0 0.0
    %949 = vmatpush1.msra.mxu0 0.0
    %950 = vmatprep.subr.mxu0 0.0
    %951 = vmatpush1.msra.mxu0 0.0
    %952 = vmatprep.subr.mxu0 0.0
    %953 = vmatpush1.msra.mxu0 0.0
    %954 = vmatprep.subr.mxu0 0.0
    %955 = vmatpush1.msra.mxu0 0.0
    %956 = vmatprep.subr.mxu0 0.0
    %957 = vmatpush1.msra.mxu0 0.0
    %958 = vmatprep.subr.mxu0 0.0
    %959 = vmatpush1.msra.mxu0 0.0
    %960 = vmatprep.subr.mxu0 0.0
    %961 = vmatpush1.msra.mxu0 0.0
    %962 = vmatprep.subr.mxu0 0.0
    %963 = vmatpush1.msra.mxu0 0.0
    %964 = vmatprep.subr.mxu0 0.0
    %965 = vmatpush1.msra.mxu0 0.0
    %966 = vmatprep.subr.mxu0 0.0
    %967 = vmatpush1.msra.mxu0 0.0
    %968 = vmatprep.mubr.f32.mxu0 0.0
    %969 = vmatmul.mubr.f32.gmra.mrb[0].mxu0 %v902
    %v970 = vpop.f32.mrb[0].mxu0
    %v971 = vadd.f32 0.0, %v970
    %v972 = vpop.f32.mrb[0].mxu0
    %973 = vdwg.mxu0
    %974 = vrot.lane.b32.xlu0 %v184, 64
    %v975 = vpop.permute.xlu0 %974
    %v978 = vsel %vm203, %v891, 0
    %980 = vmatprep.subr.mxu0 0.0
    %981 = vmatpush1.msra.mxu0 %v975
    %982 = vmatprep.subr.mxu0 0.0
    %983 = vmatpush1.msra.mxu0 0.0
    %984 = vmatprep.subr.mxu0 0.0
    %985 = vmatpush1.msra.mxu0 0.0
    %986 = vmatprep.subr.mxu0 0.0
    %987 = vmatpush1.msra.mxu0 0.0
    %988 = vmatprep.subr.mxu0 0.0
    %989 = vmatpush1.msra.mxu0 0.0
    %990 = vmatprep.subr.mxu0 0.0
    %991 = vmatpush1.msra.mxu0 0.0
    %992 = vmatprep.subr.mxu0 0.0
    %993 = vmatpush1.msra.mxu0 0.0
    %994 = vmatprep.subr.mxu0 0.0
    %995 = vmatpush1.msra.mxu0 0.0
    %996 = vmatprep.subr.mxu0 0.0
    %997 = vmatpush1.msra.mxu0 0.0
    %998 = vmatprep.subr.mxu0 0.0
    %999 = vmatpush1.msra.mxu0 0.0
    %1000 = vmatprep.subr.mxu0 0.0
    %1001 = vmatpush1.msra.mxu0 0.0
    %1002 = vmatprep.subr.mxu0 0.0
    %1003 = vmatpush1.msra.mxu0 0.0
    %1004 = vmatprep.subr.mxu0 0.0
    %1005 = vmatpush1.msra.mxu0 0.0
    %1006 = vmatprep.subr.mxu0 0.0
    %1007 = vmatpush1.msra.mxu0 0.0
    %1008 = vmatprep.subr.mxu0 0.0
    %1009 = vmatpush1.msra.mxu0 0.0
    %1010 = vmatprep.subr.mxu0 0.0
    %1011 = vmatpush1.msra.mxu0 0.0
    %1012 = vmatprep.subr.mxu0 0.0
    %1013 = vmatpush1.msra.mxu0 0.0
    %1014 = vmatprep.subr.mxu0 0.0
    %1015 = vmatpush1.msra.mxu0 0.0
    %1016 = vmatprep.subr.mxu0 0.0
    %1017 = vmatpush1.msra.mxu0 0.0
    %1018 = vmatprep.subr.mxu0 0.0
    %1019 = vmatpush1.msra.mxu0 0.0
    %1020 = vmatprep.subr.mxu0 0.0
    %1021 = vmatpush1.msra.mxu0 0.0
    %1022 = vmatprep.subr.mxu0 0.0
    %1023 = vmatpush1.msra.mxu0 0.0
    %1024 = vmatprep.subr.mxu0 0.0
    %1025 = vmatpush1.msra.mxu0 0.0
    %1026 = vmatprep.subr.mxu0 0.0
    %1027 = vmatpush1.msra.mxu0 0.0
    %1028 = vmatprep.subr.mxu0 0.0
    %1029 = vmatpush1.msra.mxu0 0.0
    %1030 = vmatprep.subr.mxu0 0.0
    %1031 = vmatpush1.msra.mxu0 0.0
    %1032 = vmatprep.subr.mxu0 0.0
    %1033 = vmatpush1.msra.mxu0 0.0
    %1034 = vmatprep.subr.mxu0 0.0
    %1035 = vmatpush1.msra.mxu0 0.0
    %1036 = vmatprep.subr.mxu0 0.0
    %1037 = vmatpush1.msra.mxu0 0.0
    %1038 = vmatprep.subr.mxu0 0.0
    %1039 = vmatpush1.msra.mxu0 0.0
    %1040 = vmatprep.subr.mxu0 0.0
    %1041 = vmatpush1.msra.mxu0 0.0
    %1042 = vmatprep.subr.mxu0 0.0
    %1043 = vmatpush1.msra.mxu0 0.0
    %1044 = vmatprep.mubr.f32.mxu0 0.0
    %1045 = vmatmul.mubr.f32.gmra.mrb[0].mxu0 %v978
    %v1046 = vpop.f32.mrb[0].mxu0
    %v1047 = vadd.f32 0.0, %v1046
    %v1048 = vpop.f32.mrb[0].mxu0
    %1049 = vdwg.mxu0
    %1050 = vrot.lane.b32.xlu0 %v190, 64
    %v1051 = vpop.permute.xlu0 %1050
    %v1054 = vsel %vm203, %v892, 0
    %1056 = vmatprep.subr.mxu0 0.0
    %1057 = vmatpush1.msra.mxu0 %v1051
    %1058 = vmatprep.subr.mxu0 0.0
    %1059 = vmatpush1.msra.mxu0 0.0
    %1060 = vmatprep.subr.mxu0 0.0
    %1061 = vmatpush1.msra.mxu0 0.0
    %1062 = vmatprep.subr.mxu0 0.0
    %1063 = vmatpush1.msra.mxu0 0.0
    %1064 = vmatprep.subr.mxu0 0.0
    %1065 = vmatpush1.msra.mxu0 0.0
    %1066 = vmatprep.subr.mxu0 0.0
    %1067 = vmatpush1.msra.mxu0 0.0
    %1068 = vmatprep.subr.mxu0 0.0
    %1069 = vmatpush1.msra.mxu0 0.0
    %1070 = vmatprep.subr.mxu0 0.0
    %1071 = vmatpush1.msra.mxu0 0.0
    %1072 = vmatprep.subr.mxu0 0.0
    %1073 = vmatpush1.msra.mxu0 0.0
    %1074 = vmatprep.subr.mxu0 0.0
    %1075 = vmatpush1.msra.mxu0 0.0
    %1076 = vmatprep.subr.mxu0 0.0
    %1077 = vmatpush1.msra.mxu0 0.0
    %1078 = vmatprep.subr.mxu0 0.0
    %1079 = vmatpush1.msra.mxu0 0.0
    %1080 = vmatprep.subr.mxu0 0.0
    %1081 = vmatpush1.msra.mxu0 0.0
    %1082 = vmatprep.subr.mxu0 0.0
    %1083 = vmatpush1.msra.mxu0 0.0
    %1084 = vmatprep.subr.mxu0 0.0
    %1085 = vmatpush1.msra.mxu0 0.0
    %1086 = vmatprep.subr.mxu0 0.0
    %1087 = vmatpush1.msra.mxu0 0.0
    %1088 = vmatprep.subr.mxu0 0.0
    %1089 = vmatpush1.msra.mxu0 0.0
    %1090 = vmatprep.subr.mxu0 0.0
    %1091 = vmatpush1.msra.mxu0 0.0
    %1092 = vmatprep.subr.mxu0 0.0
    %1093 = vmatpush1.msra.mxu0 0.0
    %1094 = vmatprep.subr.mxu0 0.0
    %1095 = vmatpush1.msra.mxu0 0.0
    %1096 = vmatprep.subr.mxu0 0.0
    %1097 = vmatpush1.msra.mxu0 0.0
    %1098 = vmatprep.subr.mxu0 0.0
    %1099 = vmatpush1.msra.mxu0 0.0
    %1100 = vmatprep.subr.mxu0 0.0
    %1101 = vmatpush1.msra.mxu0 0.0
    %1102 = vmatprep.subr.mxu0 0.0
    %1103 = vmatpush1.msra.mxu0 0.0
    %1104 = vmatprep.subr.mxu0 0.0
    %1105 = vmatpush1.msra.mxu0 0.0
    %1106 = vmatprep.subr.mxu0 0.0
    %1107 = vmatpush1.msra.mxu0 0.0
    %1108 = vmatprep.subr.mxu0 0.0
    %1109 = vmatpush1.msra.mxu0 0.0
    %1110 = vmatprep.subr.mxu0 0.0
    %1111 = vmatpush1.msra.mxu0 0.0
    %1112 = vmatprep.subr.mxu0 0.0
    %1113 = vmatpush1.msra.mxu0 0.0
    %1114 = vmatprep.subr.mxu0 0.0
    %1115 = vmatpush1.msra.mxu0 0.0
    %1116 = vmatprep.subr.mxu0 0.0
    %1117 = vmatpush1.msra.mxu0 0.0
    %1118 = vmatprep.subr.mxu0 0.0
    %1119 = vmatpush1.msra.mxu0 0.0
    %1120 = vmatprep.mubr.f32.mxu0 0.0
    %1121 = vmatmul.mubr.f32.gmra.mrb[0].mxu0 %v1054
    %v1122 = vpop.f32.mrb[0].mxu0
    %v1123 = vadd.f32 0.0, %v1122
    %v1124 = vpop.f32.mrb[0].mxu0
    %1125 = vdwg.mxu0
    %1126 = vrot.lane.b32.xlu0 %v192, 64
    %v1127 = vpop.permute.xlu0 %1126
    %v1130 = vsel %vm203, %v893, 0
    %1132 = vmatprep.subr.mxu0 0.0
    %1133 = vmatpush1.msra.mxu0 %v1127
    %1134 = vmatprep.subr.mxu0 0.0
    %1135 = vmatpush1.msra.mxu0 0.0
    %1136 = vmatprep.subr.mxu0 0.0
    %1137 = vmatpush1.msra.mxu0 0.0
    %1138 = vmatprep.subr.mxu0 0.0
    %1139 = vmatpush1.msra.mxu0 0.0
    %1140 = vmatprep.subr.mxu0 0.0
    %1141 = vmatpush1.msra.mxu0 0.0
    %1142 = vmatprep.subr.mxu0 0.0
    %1143 = vmatpush1.msra.mxu0 0.0
    %1144 = vmatprep.subr.mxu0 0.0
    %1145 = vmatpush1.msra.mxu0 0.0
    %1146 = vmatprep.subr.mxu0 0.0
    %1147 = vmatpush1.msra.mxu0 0.0
    %1148 = vmatprep.subr.mxu0 0.0
    %1149 = vmatpush1.msra.mxu0 0.0
    %1150 = vmatprep.subr.mxu0 0.0
    %1151 = vmatpush1.msra.mxu0 0.0
    %1152 = vmatprep.subr.mxu0 0.0
    %1153 = vmatpush1.msra.mxu0 0.0
    %1154 = vmatprep.subr.mxu0 0.0
    %1155 = vmatpush1.msra.mxu0 0.0
    %1156 = vmatprep.subr.mxu0 0.0
    %1157 = vmatpush1.msra.mxu0 0.0
    %1158 = vmatprep.subr.mxu0 0.0
    %1159 = vmatpush1.msra.mxu0 0.0
    %1160 = vmatprep.subr.mxu0 0.0
    %1161 = vmatpush1.msra.mxu0 0.0
    %1162 = vmatprep.subr.mxu0 0.0
    %1163 = vmatpush1.msra.mxu0 0.0
    %1164 = vmatprep.subr.mxu0 0.0
    %1165 = vmatpush1.msra.mxu0 0.0
    %1166 = vmatprep.subr.mxu0 0.0
    %1167 = vmatpush1.msra.mxu0 0.0
    %1168 = vmatprep.subr.mxu0 0.0
    %1169 = vmatpush1.msra.mxu0 0.0
    %1170 = vmatprep.subr.mxu0 0.0
    %1171 = vmatpush1.msra.mxu0 0.0
    %1172 = vmatprep.subr.mxu0 0.0
    %1173 = vmatpush1.msra.mxu0 0.0
    %1174 = vmatprep.subr.mxu0 0.0
    %1175 = vmatpush1.msra.mxu0 0.0
    %1176 = vmatprep.subr.mxu0 0.0
    %1177 = vmatpush1.msra.mxu0 0.0
    %1178 = vmatprep.subr.mxu0 0.0
    %1179 = vmatpush1.msra.mxu0 0.0
    %1180 = vmatprep.subr.mxu0 0.0
    %1181 = vmatpush1.msra.mxu0 0.0
    %1182 = vmatprep.subr.mxu0 0.0
    %1183 = vmatpush1.msra.mxu0 0.0
    %1184 = vmatprep.subr.mxu0 0.0
    %1185 = vmatpush1.msra.mxu0 0.0
    %1186 = vmatprep.subr.mxu0 0.0
    %1187 = vmatpush1.msra.mxu0 0.0
    %1188 = vmatprep.subr.mxu0 0.0
    %1189 = vmatpush1.msra.mxu0 0.0
    %1190 = vmatprep.subr.mxu0 0.0
    %1191 = vmatpush1.msra.mxu0 0.0
    %1192 = vmatprep.subr.mxu0 0.0
    %1193 = vmatpush1.msra.mxu0 0.0
    %1194 = vmatprep.subr.mxu0 0.0
    %1195 = vmatpush1.msra.mxu0 0.0
    %1196 = vmatprep.mubr.f32.mxu0 0.0
    %1197 = vmatmul.mubr.f32.gmra.mrb[0].mxu0 %v1130
    %v1198 = vpop.f32.mrb[0].mxu0
    %v1199 = vadd.f32 0.0, %v1198
    %v1200 = vpop.f32.mrb[0].mxu0
    %1201 = vdwg.mxu0
    %1202 = vrot.lane.b32.xlu0 %v194, 64
    %v1203 = vpop.permute.xlu0 %1202
    %v1206 = vsel %vm203, %v894, 0
    %1208 = vmatprep.subr.mxu0 0.0
    %1209 = vmatpush1.msra.mxu0 %v1203
    %1210 = vmatprep.subr.mxu0 0.0
    %1211 = vmatpush1.msra.mxu0 0.0
    %1212 = vmatprep.subr.mxu0 0.0
    %1213 = vmatpush1.msra.mxu0 0.0
    %1214 = vmatprep.subr.mxu0 0.0
    %1215 = vmatpush1.msra.mxu0 0.0
    %1216 = vmatprep.subr.mxu0 0.0
    %1217 = vmatpush1.msra.mxu0 0.0
    %1218 = vmatprep.subr.mxu0 0.0
    %1219 = vmatpush1.msra.mxu0 0.0
    %1220 = vmatprep.subr.mxu0 0.0
    %1221 = vmatpush1.msra.mxu0 0.0
    %1222 = vmatprep.subr.mxu0 0.0
    %1223 = vmatpush1.msra.mxu0 0.0
    %1224 = vmatprep.subr.mxu0 0.0
    %1225 = vmatpush1.msra.mxu0 0.0
    %1226 = vmatprep.subr.mxu0 0.0
    %1227 = vmatpush1.msra.mxu0 0.0
    %1228 = vmatprep.subr.mxu0 0.0
    %1229 = vmatpush1.msra.mxu0 0.0
    %1230 = vmatprep.subr.mxu0 0.0
    %1231 = vmatpush1.msra.mxu0 0.0
    %1232 = vmatprep.subr.mxu0 0.0
    %1233 = vmatpush1.msra.mxu0 0.0
    %1234 = vmatprep.subr.mxu0 0.0
    %1235 = vmatpush1.msra.mxu0 0.0
    %1236 = vmatprep.subr.mxu0 0.0
    %1237 = vmatpush1.msra.mxu0 0.0
    %1238 = vmatprep.subr.mxu0 0.0
    %1239 = vmatpush1.msra.mxu0 0.0
    %1240 = vmatprep.subr.mxu0 0.0
    %1241 = vmatpush1.msra.mxu0 0.0
    %1242 = vmatprep.subr.mxu0 0.0
    %1243 = vmatpush1.msra.mxu0 0.0
    %1244 = vmatprep.subr.mxu0 0.0
    %1245 = vmatpush1.msra.mxu0 0.0
    %1246 = vmatprep.subr.mxu0 0.0
    %1247 = vmatpush1.msra.mxu0 0.0
    %1248 = vmatprep.subr.mxu0 0.0
    %1249 = vmatpush1.msra.mxu0 0.0
    %1250 = vmatprep.subr.mxu0 0.0
    %1251 = vmatpush1.msra.mxu0 0.0
    %1252 = vmatprep.subr.mxu0 0.0
    %1253 = vmatpush1.msra.mxu0 0.0
    %1254 = vmatprep.subr.mxu0 0.0
    %1255 = vmatpush1.msra.mxu0 0.0
    %1256 = vmatprep.subr.mxu0 0.0
    %1257 = vmatpush1.msra.mxu0 0.0
    %1258 = vmatprep.subr.mxu0 0.0
    %1259 = vmatpush1.msra.mxu0 0.0
    %1260 = vmatprep.subr.mxu0 0.0
    %1261 = vmatpush1.msra.mxu0 0.0
    %1262 = vmatprep.subr.mxu0 0.0
    %1263 = vmatpush1.msra.mxu0 0.0
    %1264 = vmatprep.subr.mxu0 0.0
    %1265 = vmatpush1.msra.mxu0 0.0
    %1266 = vmatprep.subr.mxu0 0.0
    %1267 = vmatpush1.msra.mxu0 0.0
    %1268 = vmatprep.subr.mxu0 0.0
    %1269 = vmatpush1.msra.mxu0 0.0
    %1270 = vmatprep.subr.mxu0 0.0
    %1271 = vmatpush1.msra.mxu0 0.0
    %1272 = vmatprep.mubr.f32.mxu0 0.0
    %1273 = vmatmul.mubr.f32.gmra.mrb[0].mxu0 %v1206
    %v1274 = vpop.f32.mrb[0].mxu0
    %v1275 = vadd.f32 0.0, %v1274
    %v1276 = vpop.f32.mrb[0].mxu0
    %1277 = vdwg.mxu0
    %1278 = vrot.lane.b32.xlu0 %v196, 64
    %v1279 = vpop.permute.xlu0 %1278
    %v1282 = vsel %vm203, %v895, 0
    %1284 = vmatprep.subr.mxu0 0.0
    %1285 = vmatpush1.msra.mxu0 %v1279
    %1286 = vmatprep.subr.mxu0 0.0
    %1287 = vmatpush1.msra.mxu0 0.0
    %1288 = vmatprep.subr.mxu0 0.0
    %1289 = vmatpush1.msra.mxu0 0.0
    %1290 = vmatprep.subr.mxu0 0.0
    %1291 = vmatpush1.msra.mxu0 0.0
    %1292 = vmatprep.subr.mxu0 0.0
    %1293 = vmatpush1.msra.mxu0 0.0
    %1294 = vmatprep.subr.mxu0 0.0
    %1295 = vmatpush1.msra.mxu0 0.0
    %1296 = vmatprep.subr.mxu0 0.0
    %1297 = vmatpush1.msra.mxu0 0.0
    %1298 = vmatprep.subr.mxu0 0.0
    %1299 = vmatpush1.msra.mxu0 0.0
    %1300 = vmatprep.subr.mxu0 0.0
    %1301 = vmatpush1.msra.mxu0 0.0
    %1302 = vmatprep.subr.mxu0 0.0
    %1303 = vmatpush1.msra.mxu0 0.0
    %1304 = vmatprep.subr.mxu0 0.0
    %1305 = vmatpush1.msra.mxu0 0.0
    %1306 = vmatprep.subr.mxu0 0.0
    %1307 = vmatpush1.msra.mxu0 0.0
    %1308 = vmatprep.subr.mxu0 0.0
    %1309 = vmatpush1.msra.mxu0 0.0
    %1310 = vmatprep.subr.mxu0 0.0
    %1311 = vmatpush1.msra.mxu0 0.0
    %1312 = vmatprep.subr.mxu0 0.0
    %1313 = vmatpush1.msra.mxu0 0.0
    %1314 = vmatprep.subr.mxu0 0.0
    %1315 = vmatpush1.msra.mxu0 0.0
    %1316 = vmatprep.subr.mxu0 0.0
    %1317 = vmatpush1.msra.mxu0 0.0
    %1318 = vmatprep.subr.mxu0 0.0
    %1319 = vmatpush1.msra.mxu0 0.0
    %1320 = vmatprep.subr.mxu0 0.0
    %1321 = vmatpush1.msra.mxu0 0.0
    %1322 = vmatprep.subr.mxu0 0.0
    %1323 = vmatpush1.msra.mxu0 0.0
    %1324 = vmatprep.subr.mxu0 0.0
    %1325 = vmatpush1.msra.mxu0 0.0
    %1326 = vmatprep.subr.mxu0 0.0
    %1327 = vmatpush1.msra.mxu0 0.0
    %1328 = vmatprep.subr.mxu0 0.0
    %1329 = vmatpush1.msra.mxu0 0.0
    %1330 = vmatprep.subr.mxu0 0.0
    %1331 = vmatpush1.msra.mxu0 0.0
    %1332 = vmatprep.subr.mxu0 0.0
    %1333 = vmatpush1.msra.mxu0 0.0
    %1334 = vmatprep.subr.mxu0 0.0
    %1335 = vmatpush1.msra.mxu0 0.0
    %1336 = vmatprep.subr.mxu0 0.0
    %1337 = vmatpush1.msra.mxu0 0.0
    %1338 = vmatprep.subr.mxu0 0.0
    %1339 = vmatpush1.msra.mxu0 0.0
    %1340 = vmatprep.subr.mxu0 0.0
    %1341 = vmatpush1.msra.mxu0 0.0
    %1342 = vmatprep.subr.mxu0 0.0
    %1343 = vmatpush1.msra.mxu0 0.0
    %1344 = vmatprep.subr.mxu0 0.0
    %1345 = vmatpush1.msra.mxu0 0.0
    %1346 = vmatprep.subr.mxu0 0.0
    %1347 = vmatpush1.msra.mxu0 0.0
    %1348 = vmatprep.mubr.f32.mxu0 0.0
    %1349 = vmatmul.mubr.f32.gmra.mrb[0].mxu0 %v1282
    %v1350 = vpop.f32.mrb[0].mxu0
    %v1351 = vadd.f32 0.0, %v1350
    %v1352 = vpop.f32.mrb[0].mxu0
    %1353 = vdwg.mxu0
    %1354 = vrot.lane.b32.xlu0 %v198, 64
    %v1355 = vpop.permute.xlu0 %1354
    %v1358 = vsel %vm203, %v896, 0
    %1360 = vmatprep.subr.mxu0 0.0
    %1361 = vmatpush1.msra.mxu0 %v1355
    %1362 = vmatprep.subr.mxu0 0.0
    %1363 = vmatpush1.msra.mxu0 0.0
    %1364 = vmatprep.subr.mxu0 0.0
    %1365 = vmatpush1.msra.mxu0 0.0
    %1366 = vmatprep.subr.mxu0 0.0
    %1367 = vmatpush1.msra.mxu0 0.0
    %1368 = vmatprep.subr.mxu0 0.0
    %1369 = vmatpush1.msra.mxu0 0.0
    %1370 = vmatprep.subr.mxu0 0.0
    %1371 = vmatpush1.msra.mxu0 0.0
    %1372 = vmatprep.subr.mxu0 0.0
    %1373 = vmatpush1.msra.mxu0 0.0
    %1374 = vmatprep.subr.mxu0 0.0
    %1375 = vmatpush1.msra.mxu0 0.0
    %1376 = vmatprep.subr.mxu0 0.0
    %1377 = vmatpush1.msra.mxu0 0.0
    %1378 = vmatprep.subr.mxu0 0.0
    %1379 = vmatpush1.msra.mxu0 0.0
    %1380 = vmatprep.subr.mxu0 0.0
    %1381 = vmatpush1.msra.mxu0 0.0
    %1382 = vmatprep.subr.mxu0 0.0
    %1383 = vmatpush1.msra.mxu0 0.0
    %1384 = vmatprep.subr.mxu0 0.0
    %1385 = vmatpush1.msra.mxu0 0.0
    %1386 = vmatprep.subr.mxu0 0.0
    %1387 = vmatpush1.msra.mxu0 0.0
    %1388 = vmatprep.subr.mxu0 0.0
    %1389 = vmatpush1.msra.mxu0 0.0
    %1390 = vmatprep.subr.mxu0 0.0
    %1391 = vmatpush1.msra.mxu0 0.0
    %1392 = vmatprep.subr.mxu0 0.0
    %1393 = vmatpush1.msra.mxu0 0.0
    %1394 = vmatprep.subr.mxu0 0.0
    %1395 = vmatpush1.msra.mxu0 0.0
    %1396 = vmatprep.subr.mxu0 0.0
    %1397 = vmatpush1.msra.mxu0 0.0
    %1398 = vmatprep.subr.mxu0 0.0
    %1399 = vmatpush1.msra.mxu0 0.0
    %1400 = vmatprep.subr.mxu0 0.0
    %1401 = vmatpush1.msra.mxu0 0.0
    %1402 = vmatprep.subr.mxu0 0.0
    %1403 = vmatpush1.msra.mxu0 0.0
    %1404 = vmatprep.subr.mxu0 0.0
    %1405 = vmatpush1.msra.mxu0 0.0
    %1406 = vmatprep.subr.mxu0 0.0
    %1407 = vmatpush1.msra.mxu0 0.0
    %1408 = vmatprep.subr.mxu0 0.0
    %1409 = vmatpush1.msra.mxu0 0.0
    %1410 = vmatprep.subr.mxu0 0.0
    %1411 = vmatpush1.msra.mxu0 0.0
    %1412 = vmatprep.subr.mxu0 0.0
    %1413 = vmatpush1.msra.mxu0 0.0
    %1414 = vmatprep.subr.mxu0 0.0
    %1415 = vmatpush1.msra.mxu0 0.0
    %1416 = vmatprep.subr.mxu0 0.0
    %1417 = vmatpush1.msra.mxu0 0.0
    %1418 = vmatprep.subr.mxu0 0.0
    %1419 = vmatpush1.msra.mxu0 0.0
    %1420 = vmatprep.subr.mxu0 0.0
    %1421 = vmatpush1.msra.mxu0 0.0
    %1422 = vmatprep.subr.mxu0 0.0
    %1423 = vmatpush1.msra.mxu0 0.0
    %1424 = vmatprep.mubr.f32.mxu0 0.0
    %1425 = vmatmul.mubr.f32.gmra.mrb[0].mxu0 %v1358
    %v1426 = vpop.f32.mrb[0].mxu0
    %v1427 = vadd.f32 0.0, %v1426
    %v1428 = vpop.f32.mrb[0].mxu0
    %1429 = vdwg.mxu0
    %1430 = vrot.lane.b32.xlu0 %v200, 64
    %v1431 = vpop.permute.xlu0 %1430
    %v1434 = vsel %vm203, %v897, 0
    %1436 = vmatprep.subr.mxu0 0.0
    %1437 = vmatpush1.msra.mxu0 %v1431
    %1438 = vmatprep.subr.mxu0 0.0
    %1439 = vmatpush1.msra.mxu0 0.0
    %1440 = vmatprep.subr.mxu0 0.0
    %1441 = vmatpush1.msra.mxu0 0.0
    %1442 = vmatprep.subr.mxu0 0.0
    %1443 = vmatpush1.msra.mxu0 0.0
    %1444 = vmatprep.subr.mxu0 0.0
    %1445 = vmatpush1.msra.mxu0 0.0
    %1446 = vmatprep.subr.mxu0 0.0
    %1447 = vmatpush1.msra.mxu0 0.0
    %1448 = vmatprep.subr.mxu0 0.0
    %1449 = vmatpush1.msra.mxu0 0.0
    %1450 = vmatprep.subr.mxu0 0.0
    %1451 = vmatpush1.msra.mxu0 0.0
    %1452 = vmatprep.subr.mxu0 0.0
    %1453 = vmatpush1.msra.mxu0 0.0
    %1454 = vmatprep.subr.mxu0 0.0
    %1455 = vmatpush1.msra.mxu0 0.0
    %1456 = vmatprep.subr.mxu0 0.0
    %1457 = vmatpush1.msra.mxu0 0.0
    %1458 = vmatprep.subr.mxu0 0.0
    %1459 = vmatpush1.msra.mxu0 0.0
    %1460 = vmatprep.subr.mxu0 0.0
    %1461 = vmatpush1.msra.mxu0 0.0
    %1462 = vmatprep.subr.mxu0 0.0
    %1463 = vmatpush1.msra.mxu0 0.0
    %1464 = vmatprep.subr.mxu0 0.0
    %1465 = vmatpush1.msra.mxu0 0.0
    %1466 = vmatprep.subr.mxu0 0.0
    %1467 = vmatpush1.msra.mxu0 0.0
    %1468 = vmatprep.subr.mxu0 0.0
    %1469 = vmatpush1.msra.mxu0 0.0
    %1470 = vmatprep.subr.mxu0 0.0
    %1471 = vmatpush1.msra.mxu0 0.0
    %1472 = vmatprep.subr.mxu0 0.0
    %1473 = vmatpush1.msra.mxu0 0.0
    %1474 = vmatprep.subr.mxu0 0.0
    %1475 = vmatpush1.msra.mxu0 0.0
    %1476 = vmatprep.subr.mxu0 0.0
    %1477 = vmatpush1.msra.mxu0 0.0
    %1478 = vmatprep.subr.mxu0 0.0
    %1479 = vmatpush1.msra.mxu0 0.0
    %1480 = vmatprep.subr.mxu0 0.0
    %1481 = vmatpush1.msra.mxu0 0.0
    %1482 = vmatprep.subr.mxu0 0.0
    %1483 = vmatpush1.msra.mxu0 0.0
    %1484 = vmatprep.subr.mxu0 0.0
    %1485 = vmatpush1.msra.mxu0 0.0
    %1486 = vmatprep.subr.mxu0 0.0
    %1487 = vmatpush1.msra.mxu0 0.0
    %1488 = vmatprep.subr.mxu0 0.0
    %1489 = vmatpush1.msra.mxu0 0.0
    %1490 = vmatprep.subr.mxu0 0.0
    %1491 = vmatpush1.msra.mxu0 0.0
    %1492 = vmatprep.subr.mxu0 0.0
    %1493 = vmatpush1.msra.mxu0 0.0
    %1494 = vmatprep.subr.mxu0 0.0
    %1495 = vmatpush1.msra.mxu0 0.0
    %1496 = vmatprep.subr.mxu0 0.0
    %1497 = vmatpush1.msra.mxu0 0.0
    %1498 = vmatprep.subr.mxu0 0.0
    %1499 = vmatpush1.msra.mxu0 0.0
    %1500 = vmatprep.mubr.f32.mxu0 0.0
    %1501 = vmatmul.mubr.f32.gmra.mrb[0].mxu0 %v1434
    %v1502 = vpop.f32.mrb[0].mxu0
    %v1503 = vadd.f32 0.0, %v1502
    %v1504 = vpop.f32.mrb[0].mxu0
    %1505 = vdwg.mxu0
    %1508 = vrot.lane.b32.xlu0 %v1123, 8
    %v1509 = vpop.permute.xlu0 %1508
    %1510 = vrot.lane.b32.xlu0 %v1199, 8
    %v1511 = vpop.permute.xlu0 %1510
    %1516 = vrot.lane.b32.xlu0 %v1275, 16
    %v1517 = vpop.permute.xlu0 %1516
    %1518 = vrot.lane.b32.xlu0 %v1351, 16
    %v1519 = vpop.permute.xlu0 %1518
    %1524 = vrot.lane.b32.xlu0 %v1427, 24
    %v1525 = vpop.permute.xlu0 %1524
    %1526 = vrot.lane.b32.xlu0 %v1503, 24
    %v1527 = vpop.permute.xlu0 %1526
    %v1530 = vsel %vm203, %v971, %v1509
    %v1531 = vsel %vm203, %v1047, %v1511
    %vm1532 = vcmask 130048
    %v1533 = vsel %vm1532, %v1530, %v1517
    %v1534 = vsel %vm1532, %v1531, %v1519
    %vm1535 = vcmask 195584
    %v1536 = vsel %vm1535, %v1533, %v1525
    %v1537 = vsel %vm1535, %v1534, %v1527
    %1538 = vrot.lane.b32.xlu0 %v892, 8
    %v1539 = vpop.permute.xlu0 %1538
    %1540 = vrot.lane.b32.xlu0 %v893, 8
    %v1541 = vpop.permute.xlu0 %1540
    %1544 = vrot.lane.b32.xlu0 %v894, 16
    %v1545 = vpop.permute.xlu0 %1544
    %1546 = vrot.lane.b32.xlu0 %v895, 16
    %v1547 = vpop.permute.xlu0 %1546
    %1550 = vrot.lane.b32.xlu0 %v896, 24
    %v1551 = vpop.permute.xlu0 %1550
    %1552 = vrot.lane.b32.xlu0 %v897, 24
    %v1553 = vpop.permute.xlu0 %1552
    %v1556 = vsel %vm203, %v890, %v1539
    %v1557 = vsel %vm203, %v891, %v1541
    %v1558 = vsel %vm1532, %v1556, %v1545
    %v1559 = vsel %vm1532, %v1557, %v1547
    %v1560 = vsel %vm1535, %v1558, %v1551
    %v1561 = vsel %vm1535, %v1559, %v1553
    %v1562 = vld [vmem:[%s6] sm:$0xff]
    %v1563 = vld [vmem:[%s6 + $0x8] sm:$0xff]
    %v1564 = vld [vmem:[%s6 + $0x10] sm:$0xff]
    %v1565 = vld [vmem:[%s6 + $0x18] sm:$0xff]
    %v1566 = vld [vmem:[%s7] sm:$0x1]
    %v1568 = vlaneseq
    %v1569 = vshrl.u32 %v1568, 7
    %v1570 = vsub.s32 0, %v1569
    %v1571 = vrot.slane %v1566, %v1570
    %v1574 = vsel %vm105, %v1536, 0
    %v1577 = vsel %vm105, %v1537, 0
    %1579 = vmatprep.subr.mxu0 0.0
    %1580 = vmatpush1.msra.mxu0 %v1562
    %1581 = vmatprep.subr.mxu0 0.0
    %1582 = vmatpush1.msra.mxu0 %v1563
    %1583 = vmatprep.subr.mxu0 0.0
    %1584 = vmatpush1.msra.mxu0 %v1564
    %1585 = vmatprep.subr.mxu0 0.0
    %1586 = vmatpush1.msra.mxu0 %v1565
    %1587 = vmatprep.subr.mxu0 0.0
    %1588 = vmatpush1.msra.mxu0 0.0
    %1589 = vmatprep.subr.mxu0 0.0
    %1590 = vmatpush1.msra.mxu0 0.0
    %1591 = vmatprep.subr.mxu0 0.0
    %1592 = vmatpush1.msra.mxu0 0.0
    %1593 = vmatprep.subr.mxu0 0.0
    %1594 = vmatpush1.msra.mxu0 0.0
    %1595 = vmatprep.subr.mxu0 0.0
    %1596 = vmatpush1.msra.mxu0 0.0
    %1597 = vmatprep.subr.mxu0 0.0
    %1598 = vmatpush1.msra.mxu0 0.0
    %1599 = vmatprep.subr.mxu0 0.0
    %1600 = vmatpush1.msra.mxu0 0.0
    %1601 = vmatprep.subr.mxu0 0.0
    %1602 = vmatpush1.msra.mxu0 0.0
    %1603 = vmatprep.subr.mxu0 0.0
    %1604 = vmatpush1.msra.mxu0 0.0
    %1605 = vmatprep.subr.mxu0 0.0
    %1606 = vmatpush1.msra.mxu0 0.0
    %1607 = vmatprep.subr.mxu0 0.0
    %1608 = vmatpush1.msra.mxu0 0.0
    %1609 = vmatprep.subr.mxu0 0.0
    %1610 = vmatpush1.msra.mxu0 0.0
    %1611 = vmatprep.subr.mxu0 0.0
    %1612 = vmatpush1.msra.mxu0 0.0
    %1613 = vmatprep.subr.mxu0 0.0
    %1614 = vmatpush1.msra.mxu0 0.0
    %1615 = vmatprep.subr.mxu0 0.0
    %1616 = vmatpush1.msra.mxu0 0.0
    %1617 = vmatprep.subr.mxu0 0.0
    %1618 = vmatpush1.msra.mxu0 0.0
    %1619 = vmatprep.subr.mxu0 0.0
    %1620 = vmatpush1.msra.mxu0 0.0
    %1621 = vmatprep.subr.mxu0 0.0
    %1622 = vmatpush1.msra.mxu0 0.0
    %1623 = vmatprep.subr.mxu0 0.0
    %1624 = vmatpush1.msra.mxu0 0.0
    %1625 = vmatprep.subr.mxu0 0.0
    %1626 = vmatpush1.msra.mxu0 0.0
    %1627 = vmatprep.subr.mxu0 0.0
    %1628 = vmatpush1.msra.mxu0 0.0
    %1629 = vmatprep.subr.mxu0 0.0
    %1630 = vmatpush1.msra.mxu0 0.0
    %1631 = vmatprep.subr.mxu0 0.0
    %1632 = vmatpush1.msra.mxu0 0.0
    %1633 = vmatprep.subr.mxu0 0.0
    %1634 = vmatpush1.msra.mxu0 0.0
    %1635 = vmatprep.subr.mxu0 0.0
    %1636 = vmatpush1.msra.mxu0 0.0
    %1637 = vmatprep.subr.mxu0 0.0
    %1638 = vmatpush1.msra.mxu0 0.0
    %1639 = vmatprep.subr.mxu0 0.0
    %1640 = vmatpush1.msra.mxu0 0.0
    %1641 = vmatprep.subr.mxu0 0.0
    %1642 = vmatpush1.msra.mxu0 0.0
    %1643 = vmatprep.mubr.f32.mxu0 0.0
    %1644 = vmatmul.mubr.f32.gmra.mrb[0].mxu0 %v1574
    %v1645 = vpop.f32.mrb[0].mxu0
    %v1646 = vadd.f32 %v1571, %v1645
    %v1647 = vpop.f32.mrb[0].mxu0
    %1648 = vmatprep.mubr.f32.mxu0 0.0
    %1649 = vmatmul.mubr.f32.gmra.mrb[0].mxu0 %v1577
    %v1650 = vpop.f32.mrb[0].mxu0
    %v1651 = vadd.f32 %v1571, %v1650
    %v1652 = vpop.f32.mrb[0].mxu0
    %1653 = vdwg.mxu0
    %v1654 = vadd.f32 %v1646, %v74
    %v1655 = vadd.f32 %v1651, %v75
    %v1656 = vld [vmem:[%s8] sm:$0x1]
    %v1657 = vld [vmem:[%s9] sm:$0x1]
    %v1658 = vsel %vm105, %v1654, 0.0
    %1659 = vadd.xlane.f32.xlu0 %v1658
    %v1660 = vpop.xlane.xlu0 %1659
    %v1661 = vsel %vm105, %v1655, 0.0
    %1662 = vadd.xlane.f32.xlu0 %v1661
    %v1663 = vpop.xlane.xlu0 %1662
    %v1664 = vmul.f32 %v1660, 0.03125
    %v1665 = vmul.f32 %v1663, 0.03125
    %v1666 = vmul.f32 %v1654, %v1654
    %v1667 = vmul.f32 %v1655, %v1655
    %v1668 = vsel %vm105, %v1666, 0.0
    %1669 = vadd.xlane.f32.xlu0 %v1668
    %v1670 = vpop.xlane.xlu0 %1669
    %v1671 = vsel %vm105, %v1667, 0.0
    %1672 = vadd.xlane.f32.xlu0 %v1671
    %v1673 = vpop.xlane.xlu0 %1672
    %v1674 = vmul.f32 %v1670, 0.03125
    %v1675 = vmul.f32 %v1673, 0.03125
    %v1676 = vmul.f32 %v1664, %v1664
    %v1677 = vmul.f32 %v1665, %v1665
    %v1678 = vsub.f32 %v1674, %v1676
    %v1679 = vsub.f32 %v1675, %v1677
    %v1680 = vsub.f32 %v1654, %v1664
    %v1681 = vsub.f32 %v1655, %v1665
    %v1682 = vadd.f32 %v1678, 1e-05
    %v1683 = vadd.f32 %v1679, 1e-05
    %v1684 = vrsqrt.pop %v1682
    %v1685 = vrsqrt.pop %v1683
    %v1686 = vmul.f32 %v1680, %v1684
    %v1687 = vmul.f32 %v1681, %v1685
    %v1689 = vlaneseq
    %v1690 = vshrl.u32 %v1689, 7
    %v1691 = vsub.s32 0, %v1690
    %v1692 = vrot.slane %v1656, %v1691
    %v1694 = vmul.f32 %v1686, %v1692
    %v1695 = vmul.f32 %v1687, %v1692
    %v1697 = vlaneseq
    %v1698 = vshrl.u32 %v1697, 7
    %v1699 = vsub.s32 0, %v1698
    %v1700 = vrot.slane %v1657, %v1699
    %v1702 = vadd.f32 %v1694, %v1700
    %v1703 = vadd.f32 %v1695, %v1700
    %v1704 = vld [vmem:[%s10] sm:$0xff]
    %v1705 = vld [vmem:[%s10 + $0x8] sm:$0xff]
    %v1706 = vld [vmem:[%s10 + $0x10] sm:$0xff]
    %v1707 = vld [vmem:[%s10 + $0x18] sm:$0xff]
    %v1708 = vld [vmem:[%s11] sm:$0x1]
    %v1710 = vlaneseq
    %v1711 = vshrl.u32 %v1710, 7
    %v1712 = vsub.s32 0, %v1711
    %v1713 = vrot.slane %v1708, %v1712
    %v1716 = vsel %vm105, %v1702, 0
    %v1719 = vsel %vm105, %v1703, 0
    %v1722 = vsel %vm105, %v76, 0
    %v1725 = vsel %vm105, %v77, 0
    %1727 = vmatprep.subr.mxu0 0.0
    %1728 = vmatpush1.msra.mxu0 %v1704
    %1729 = vmatprep.subr.mxu0 0.0
    %1730 = vmatpush1.msra.mxu0 %v1705
    %1731 = vmatprep.subr.mxu0 0.0
    %1732 = vmatpush1.msra.mxu0 %v1706
    %1733 = vmatprep.subr.mxu0 0.0
    %1734 = vmatpush1.msra.mxu0 %v1707
    %1735 = vmatprep.subr.mxu0 0.0
    %1736 = vmatpush1.msra.mxu0 0.0
    %1737 = vmatprep.subr.mxu0 0.0
    %1738 = vmatpush1.msra.mxu0 0.0
    %1739 = vmatprep.subr.mxu0 0.0
    %1740 = vmatpush1.msra.mxu0 0.0
    %1741 = vmatprep.subr.mxu0 0.0
    %1742 = vmatpush1.msra.mxu0 0.0
    %1743 = vmatprep.subr.mxu0 0.0
    %1744 = vmatpush1.msra.mxu0 0.0
    %1745 = vmatprep.subr.mxu0 0.0
    %1746 = vmatpush1.msra.mxu0 0.0
    %1747 = vmatprep.subr.mxu0 0.0
    %1748 = vmatpush1.msra.mxu0 0.0
    %1749 = vmatprep.subr.mxu0 0.0
    %1750 = vmatpush1.msra.mxu0 0.0
    %1751 = vmatprep.subr.mxu0 0.0
    %1752 = vmatpush1.msra.mxu0 0.0
    %1753 = vmatprep.subr.mxu0 0.0
    %1754 = vmatpush1.msra.mxu0 0.0
    %1755 = vmatprep.subr.mxu0 0.0
    %1756 = vmatpush1.msra.mxu0 0.0
    %1757 = vmatprep.subr.mxu0 0.0
    %1758 = vmatpush1.msra.mxu0 0.0
    %1759 = vmatprep.subr.mxu0 0.0
    %1760 = vmatpush1.msra.mxu0 0.0
    %1761 = vmatprep.subr.mxu0 0.0
    %1762 = vmatpush1.msra.mxu0 0.0
    %1763 = vmatprep.subr.mxu0 0.0
    %1764 = vmatpush1.msra.mxu0 0.0
    %1765 = vmatprep.subr.mxu0 0.0
    %1766 = vmatpush1.msra.mxu0 0.0
    %1767 = vmatprep.subr.mxu0 0.0
    %1768 = vmatpush1.msra.mxu0 0.0
    %1769 = vmatprep.subr.mxu0 0.0
    %1770 = vmatpush1.msra.mxu0 0.0
    %1771 = vmatprep.subr.mxu0 0.0
    %1772 = vmatpush1.msra.mxu0 0.0
    %1773 = vmatprep.subr.mxu0 0.0
    %1774 = vmatpush1.msra.mxu0 0.0
    %1775 = vmatprep.subr.mxu0 0.0
    %1776 = vmatpush1.msra.mxu0 0.0
    %1777 = vmatprep.subr.mxu0 0.0
    %1778 = vmatpush1.msra.mxu0 0.0
    %1779 = vmatprep.subr.mxu0 0.0
    %1780 = vmatpush1.msra.mxu0 0.0
    %1781 = vmatprep.subr.mxu0 0.0
    %1782 = vmatpush1.msra.mxu0 0.0
    %1783 = vmatprep.subr.mxu0 0.0
    %1784 = vmatpush1.msra.mxu0 0.0
    %1785 = vmatprep.subr.mxu0 0.0
    %1786 = vmatpush1.msra.mxu0 0.0
    %1787 = vmatprep.subr.mxu0 0.0
    %1788 = vmatpush1.msra.mxu0 0.0
    %1789 = vmatprep.subr.mxu0 0.0
    %1790 = vmatpush1.msra.mxu0 0.0
    %1791 = vmatprep.mubr.f32.mxu0 0.0
    %1792 = vmatmul.mubr.f32.gmra.mrb[0].mxu0 %v1716
    %v1793 = vpop.f32.mrb[0].mxu0
    %v1794 = vadd.f32 %v1713, %v1793
    %v1795 = vpop.f32.mrb[0].mxu0
    %1796 = vmatprep.mubr.f32.mxu0 0.0
    %1797 = vmatmul.mubr.f32.gmra.mrb[0].mxu0 %v1719
    %v1798 = vpop.f32.mrb[0].mxu0
    %v1799 = vadd.f32 %v1713, %v1798
    %v1800 = vpop.f32.mrb[0].mxu0
    %1801 = vmatprep.mubr.f32.mxu0 0.0
    %1802 = vmatmul.mubr.f32.gmra.mrb[0].mxu0 %v1722
    %v1803 = vpop.f32.mrb[0].mxu0
    %v1804 = vadd.f32 %v1713, %v1803
    %v1805 = vpop.f32.mrb[0].mxu0
    %1806 = vmatprep.mubr.f32.mxu0 0.0
    %1807 = vmatmul.mubr.f32.gmra.mrb[0].mxu0 %v1725
    %v1808 = vpop.f32.mrb[0].mxu0
    %v1809 = vadd.f32 %v1713, %v1808
    %v1810 = vpop.f32.mrb[0].mxu0
    %1811 = vdwg.mxu0
    %1814 = vrot.lane.b32.xlu0 %v1794, 120
    %v1815 = vpop.permute.xlu0 %1814
    %1816 = vrot.lane.b32.xlu0 %v1799, 120
    %v1817 = vpop.permute.xlu0 %1816
    %1818 = vrot.lane.b32.xlu0 %v1794, 112
    %v1819 = vpop.permute.xlu0 %1818
    %1820 = vrot.lane.b32.xlu0 %v1799, 112
    %v1821 = vpop.permute.xlu0 %1820
    %1822 = vrot.lane.b32.xlu0 %v1794, 104
    %v1823 = vpop.permute.xlu0 %1822
    %1824 = vrot.lane.b32.xlu0 %v1799, 104
    %v1825 = vpop.permute.xlu0 %1824
    %1828 = vrot.lane.b32.xlu0 %v1804, 120
    %v1829 = vpop.permute.xlu0 %1828
    %1830 = vrot.lane.b32.xlu0 %v1809, 120
    %v1831 = vpop.permute.xlu0 %1830
    %1832 = vrot.lane.b32.xlu0 %v1804, 112
    %v1833 = vpop.permute.xlu0 %1832
    %1834 = vrot.lane.b32.xlu0 %v1809, 112
    %v1835 = vpop.permute.xlu0 %1834
    %1836 = vrot.lane.b32.xlu0 %v1804, 104
    %v1837 = vpop.permute.xlu0 %1836
    %1838 = vrot.lane.b32.xlu0 %v1809, 104
    %v1839 = vpop.permute.xlu0 %1838
    %1840 = vrot.lane.b32.xlu0 %v1804, 96
    %v1841 = vpop.permute.xlu0 %1840
    %v1842 = vsel %vm203, %v1794, 0
    %v1844 = vsel %vm203, %v1841, 0
    %1846 = vmatprep.subr.mxu0 0.0
    %1847 = vmatpush1.xpose.msra.mxu0 %v1844
    %1848 = vmatprep.subr.mxu0 0.0
    %1849 = vmatpush1.xpose.msra.mxu0 0.0
    %1850 = vmatprep.subr.mxu0 0.0
    %1851 = vmatpush1.xpose.msra.mxu0 0.0
    %1852 = vmatprep.subr.mxu0 0.0
    %1853 = vmatpush1.xpose.msra.mxu0 0.0
    %1854 = vmatprep.subr.mxu0 0.0
    %1855 = vmatpush1.xpose.msra.mxu0 0.0
    %1856 = vmatprep.subr.mxu0 0.0
    %1857 = vmatpush1.xpose.msra.mxu0 0.0
    %1858 = vmatprep.subr.mxu0 0.0
    %1859 = vmatpush1.xpose.msra.mxu0 0.0
    %1860 = vmatprep.subr.mxu0 0.0
    %1861 = vmatpush1.xpose.msra.mxu0 0.0
    %1862 = vmatprep.subr.mxu0 0.0
    %1863 = vmatpush1.xpose.msra.mxu0 0.0
    %1864 = vmatprep.subr.mxu0 0.0
    %1865 = vmatpush1.xpose.msra.mxu0 0.0
    %1866 = vmatprep.subr.mxu0 0.0
    %1867 = vmatpush1.xpose.msra.mxu0 0.0
    %1868 = vmatprep.subr.mxu0 0.0
    %1869 = vmatpush1.xpose.msra.mxu0 0.0
    %1870 = vmatprep.subr.mxu0 0.0
    %1871 = vmatpush1.xpose.msra.mxu0 0.0
    %1872 = vmatprep.subr.mxu0 0.0
    %1873 = vmatpush1.xpose.msra.mxu0 0.0
    %1874 = vmatprep.subr.mxu0 0.0
    %1875 = vmatpush1.xpose.msra.mxu0 0.0
    %1876 = vmatprep.subr.mxu0 0.0
    %1877 = vmatpush1.xpose.msra.mxu0 0.0
    %1878 = vmatprep.subr.mxu0 0.0
    %1879 = vmatpush1.xpose.msra.mxu0 0.0
    %1880 = vmatprep.subr.mxu0 0.0
    %1881 = vmatpush1.xpose.msra.mxu0 0.0
    %1882 = vmatprep.subr.mxu0 0.0
    %1883 = vmatpush1.xpose.msra.mxu0 0.0
    %1884 = vmatprep.subr.mxu0 0.0
    %1885 = vmatpush1.xpose.msra.mxu0 0.0
    %1886 = vmatprep.subr.mxu0 0.0
    %1887 = vmatpush1.xpose.msra.mxu0 0.0
    %1888 = vmatprep.subr.mxu0 0.0
    %1889 = vmatpush1.xpose.msra.mxu0 0.0
    %1890 = vmatprep.subr.mxu0 0.0
    %1891 = vmatpush1.xpose.msra.mxu0 0.0
    %1892 = vmatprep.subr.mxu0 0.0
    %1893 = vmatpush1.xpose.msra.mxu0 0.0
    %1894 = vmatprep.subr.mxu0 0.0
    %1895 = vmatpush1.xpose.msra.mxu0 0.0
    %1896 = vmatprep.subr.mxu0 0.0
    %1897 = vmatpush1.xpose.msra.mxu0 0.0
    %1898 = vmatprep.subr.mxu0 0.0
    %1899 = vmatpush1.xpose.msra.mxu0 0.0
    %1900 = vmatprep.subr.mxu0 0.0
    %1901 = vmatpush1.xpose.msra.mxu0 0.0
    %1902 = vmatprep.subr.mxu0 0.0
    %1903 = vmatpush1.xpose.msra.mxu0 0.0
    %1904 = vmatprep.subr.mxu0 0.0
    %1905 = vmatpush1.xpose.msra.mxu0 0.0
    %1906 = vmatprep.subr.mxu0 0.0
    %1907 = vmatpush1.xpose.msra.mxu0 0.0
    %1908 = vmatprep.subr.mxu0 0.0
    %1909 = vmatpush1.xpose.msra.mxu0 0.0
    %1910 = vmatprep.mubr.f32.mxu0 0.0
    %1911 = vmatmul.mubr.f32.gmra.mrb[0].mxu0 %v1842
    %v1912 = vpop.f32.mrb[0].mxu0
    %v1913 = vadd.f32 %v86, %v1912
    %v1914 = vpop.f32.mrb[0].mxu0
    %1915 = vdwg.mxu0
    %1916 = vrot.lane.b32.xlu0 %v1809, 96
    %v1917 = vpop.permute.xlu0 %1916
    %v1918 = vsel %vm203, %v1799, 0
    %v1920 = vsel %vm203, %v1917, 0
    %1922 = vmatprep.subr.mxu0 0.0
    %1923 = vmatpush1.xpose.msra.mxu0 %v1920
    %1924 = vmatprep.subr.mxu0 0.0
    %1925 = vmatpush1.xpose.msra.mxu0 0.0
    %1926 = vmatprep.subr.mxu0 0.0
    %1927 = vmatpush1.xpose.msra.mxu0 0.0
    %1928 = vmatprep.subr.mxu0 0.0
    %1929 = vmatpush1.xpose.msra.mxu0 0.0
    %1930 = vmatprep.subr.mxu0 0.0
    %1931 = vmatpush1.xpose.msra.mxu0 0.0
    %1932 = vmatprep.subr.mxu0 0.0
    %1933 = vmatpush1.xpose.msra.mxu0 0.0
    %1934 = vmatprep.subr.mxu0 0.0
    %1935 = vmatpush1.xpose.msra.mxu0 0.0
    %1936 = vmatprep.subr.mxu0 0.0
    %1937 = vmatpush1.xpose.msra.mxu0 0.0
    %1938 = vmatprep.subr.mxu0 0.0
    %1939 = vmatpush1.xpose.msra.mxu0 0.0
    %1940 = vmatprep.subr.mxu0 0.0
    %1941 = vmatpush1.xpose.msra.mxu0 0.0
    %1942 = vmatprep.subr.mxu0 0.0
    %1943 = vmatpush1.xpose.msra.mxu0 0.0
    %1944 = vmatprep.subr.mxu0 0.0
    %1945 = vmatpush1.xpose.msra.mxu0 0.0
    %1946 = vmatprep.subr.mxu0 0.0
    %1947 = vmatpush1.xpose.msra.mxu0 0.0
    %1948 = vmatprep.subr.mxu0 0.0
    %1949 = vmatpush1.xpose.msra.mxu0 0.0
    %1950 = vmatprep.subr.mxu0 0.0
    %1951 = vmatpush1.xpose.msra.mxu0 0.0
    %1952 = vmatprep.subr.mxu0 0.0
    %1953 = vmatpush1.xpose.msra.mxu0 0.0
    %1954 = vmatprep.subr.mxu0 0.0
    %1955 = vmatpush1.xpose.msra.mxu0 0.0
    %1956 = vmatprep.subr.mxu0 0.0
    %1957 = vmatpush1.xpose.msra.mxu0 0.0
    %1958 = vmatprep.subr.mxu0 0.0
    %1959 = vmatpush1.xpose.msra.mxu0 0.0
    %1960 = vmatprep.subr.mxu0 0.0
    %1961 = vmatpush1.xpose.msra.mxu0 0.0
    %1962 = vmatprep.subr.mxu0 0.0
    %1963 = vmatpush1.xpose.msra.mxu0 0.0
    %1964 = vmatprep.subr.mxu0 0.0
    %1965 = vmatpush1.xpose.msra.mxu0 0.0
    %1966 = vmatprep.subr.mxu0 0.0
    %1967 = vmatpush1.xpose.msra.mxu0 0.0
    %1968 = vmatprep.subr.mxu0 0.0
    %1969 = vmatpush1.xpose.msra.mxu0 0.0
    %1970 = vmatprep.subr.mxu0 0.0
    %1971 = vmatpush1.xpose.msra.mxu0 0.0
    %1972 = vmatprep.subr.mxu0 0.0
    %1973 = vmatpush1.xpose.msra.mxu0 0.0
    %1974 = vmatprep.subr.mxu0 0.0
    %1975 = vmatpush1.xpose.msra.mxu0 0.0
    %1976 = vmatprep.subr.mxu0 0.0
    %1977 = vmatpush1.xpose.msra.mxu0 0.0
    %1978 = vmatprep.subr.mxu0 0.0
    %1979 = vmatpush1.xpose.msra.mxu0 0.0
    %1980 = vmatprep.subr.mxu0 0.0
    %1981 = vmatpush1.xpose.msra.mxu0 0.0
    %1982 = vmatprep.subr.mxu0 0.0
    %1983 = vmatpush1.xpose.msra.mxu0 0.0
    %1984 = vmatprep.subr.mxu0 0.0
    %1985 = vmatpush1.xpose.msra.mxu0 0.0
    %1986 = vmatprep.mubr.f32.mxu0 0.0
    %1987 = vmatmul.mubr.f32.gmra.mrb[0].mxu0 %v1918
    %v1988 = vpop.f32.mrb[0].mxu0
    %v1989 = vadd.f32 %v87, %v1988
    %v1990 = vpop.f32.mrb[0].mxu0
    %1991 = vdwg.mxu0
    %1992 = vrot.lane.b32.xlu0 %v1829, 96
    %v1993 = vpop.permute.xlu0 %1992
    %v1994 = vsel %vm203, %v1815, 0
    %v1996 = vsel %vm203, %v1993, 0
    %1998 = vmatprep.subr.mxu0 0.0
    %1999 = vmatpush1.xpose.msra.mxu0 %v1996
    %2000 = vmatprep.subr.mxu0 0.0
    %2001 = vmatpush1.xpose.msra.mxu0 0.0
    %2002 = vmatprep.subr.mxu0 0.0
    %2003 = vmatpush1.xpose.msra.mxu0 0.0
    %2004 = vmatprep.subr.mxu0 0.0
    %2005 = vmatpush1.xpose.msra.mxu0 0.0
    %2006 = vmatprep.subr.mxu0 0.0
    %2007 = vmatpush1.xpose.msra.mxu0 0.0
    %2008 = vmatprep.subr.mxu0 0.0
    %2009 = vmatpush1.xpose.msra.mxu0 0.0
    %2010 = vmatprep.subr.mxu0 0.0
    %2011 = vmatpush1.xpose.msra.mxu0 0.0
    %2012 = vmatprep.subr.mxu0 0.0
    %2013 = vmatpush1.xpose.msra.mxu0 0.0
    %2014 = vmatprep.subr.mxu0 0.0
    %2015 = vmatpush1.xpose.msra.mxu0 0.0
    %2016 = vmatprep.subr.mxu0 0.0
    %2017 = vmatpush1.xpose.msra.mxu0 0.0
    %2018 = vmatprep.subr.mxu0 0.0
    %2019 = vmatpush1.xpose.msra.mxu0 0.0
    %2020 = vmatprep.subr.mxu0 0.0
    %2021 = vmatpush1.xpose.msra.mxu0 0.0
    %2022 = vmatprep.subr.mxu0 0.0
    %2023 = vmatpush1.xpose.msra.mxu0 0.0
    %2024 = vmatprep.subr.mxu0 0.0
    %2025 = vmatpush1.xpose.msra.mxu0 0.0
    %2026 = vmatprep.subr.mxu0 0.0
    %2027 = vmatpush1.xpose.msra.mxu0 0.0
    %2028 = vmatprep.subr.mxu0 0.0
    %2029 = vmatpush1.xpose.msra.mxu0 0.0
    %2030 = vmatprep.subr.mxu0 0.0
    %2031 = vmatpush1.xpose.msra.mxu0 0.0
    %2032 = vmatprep.subr.mxu0 0.0
    %2033 = vmatpush1.xpose.msra.mxu0 0.0
    %2034 = vmatprep.subr.mxu0 0.0
    %2035 = vmatpush1.xpose.msra.mxu0 0.0
    %2036 = vmatprep.subr.mxu0 0.0
    %2037 = vmatpush1.xpose.msra.mxu0 0.0
    %2038 = vmatprep.subr.mxu0 0.0
    %2039 = vmatpush1.xpose.msra.mxu0 0.0
    %2040 = vmatprep.subr.mxu0 0.0
    %2041 = vmatpush1.xpose.msra.mxu0 0.0
    %2042 = vmatprep.subr.mxu0 0.0
    %2043 = vmatpush1.xpose.msra.mxu0 0.0
    %2044 = vmatprep.subr.mxu0 0.0
    %2045 = vmatpush1.xpose.msra.mxu0 0.0
    %2046 = vmatprep.subr.mxu0 0.0
    %2047 = vmatpush1.xpose.msra.mxu0 0.0
    %2048 = vmatprep.subr.mxu0 0.0
    %2049 = vmatpush1.xpose.msra.mxu0 0.0
    %2050 = vmatprep.subr.mxu0 0.0
    %2051 = vmatpush1.xpose.msra.mxu0 0.0
    %2052 = vmatprep.subr.mxu0 0.0
    %2053 = vmatpush1.xpose.msra.mxu0 0.0
    %2054 = vmatprep.subr.mxu0 0.0
    %2055 = vmatpush1.xpose.msra.mxu0 0.0
    %2056 = vmatprep.subr.mxu0 0.0
    %2057 = vmatpush1.xpose.msra.mxu0 0.0
    %2058 = vmatprep.subr.mxu0 0.0
    %2059 = vmatpush1.xpose.msra.mxu0 0.0
    %2060 = vmatprep.subr.mxu0 0.0
    %2061 = vmatpush1.xpose.msra.mxu0 0.0
    %2062 = vmatprep.mubr.f32.mxu0 0.0
    %2063 = vmatmul.mubr.f32.gmra.mrb[0].mxu0 %v1994
    %v2064 = vpop.f32.mrb[0].mxu0
    %v2065 = vadd.f32 %v88, %v2064
    %v2066 = vpop.f32.mrb[0].mxu0
    %2067 = vdwg.mxu0
    %2068 = vrot.lane.b32.xlu0 %v1831, 96
    %v2069 = vpop.permute.xlu0 %2068
    %v2070 = vsel %vm203, %v1817, 0
    %v2072 = vsel %vm203, %v2069, 0
    %2074 = vmatprep.subr.mxu0 0.0
    %2075 = vmatpush1.xpose.msra.mxu0 %v2072
    %2076 = vmatprep.subr.mxu0 0.0
    %2077 = vmatpush1.xpose.msra.mxu0 0.0
    %2078 = vmatprep.subr.mxu0 0.0
    %2079 = vmatpush1.xpose.msra.mxu0 0.0
    %2080 = vmatprep.subr.mxu0 0.0
    %2081 = vmatpush1.xpose.msra.mxu0 0.0
    %2082 = vmatprep.subr.mxu0 0.0
    %2083 = vmatpush1.xpose.msra.mxu0 0.0
    %2084 = vmatprep.subr.mxu0 0.0
    %2085 = vmatpush1.xpose.msra.mxu0 0.0
    %2086 = vmatprep.subr.mxu0 0.0
    %2087 = vmatpush1.xpose.msra.mxu0 0.0
    %2088 = vmatprep.subr.mxu0 0.0
    %2089 = vmatpush1.xpose.msra.mxu0 0.0
    %2090 = vmatprep.subr.mxu0 0.0
    %2091 = vmatpush1.xpose.msra.mxu0 0.0
    %2092 = vmatprep.subr.mxu0 0.0
    %2093 = vmatpush1.xpose.msra.mxu0 0.0
    %2094 = vmatprep.subr.mxu0 0.0
    %2095 = vmatpush1.xpose.msra.mxu0 0.0
    %2096 = vmatprep.subr.mxu0 0.0
    %2097 = vmatpush1.xpose.msra.mxu0 0.0
    %2098 = vmatprep.subr.mxu0 0.0
    %2099 = vmatpush1.xpose.msra.mxu0 0.0
    %2100 = vmatprep.subr.mxu0 0.0
    %2101 = vmatpush1.xpose.msra.mxu0 0.0
    %2102 = vmatprep.subr.mxu0 0.0
    %2103 = vmatpush1.xpose.msra.mxu0 0.0
    %2104 = vmatprep.subr.mxu0 0.0
    %2105 = vmatpush1.xpose.msra.mxu0 0.0
    %2106 = vmatprep.subr.mxu0 0.0
    %2107 = vmatpush1.xpose.msra.mxu0 0.0
    %2108 = vmatprep.subr.mxu0 0.0
    %2109 = vmatpush1.xpose.msra.mxu0 0.0
    %2110 = vmatprep.subr.mxu0 0.0
    %2111 = vmatpush1.xpose.msra.mxu0 0.0
    %2112 = vmatprep.subr.mxu0 0.0
    %2113 = vmatpush1.xpose.msra.mxu0 0.0
    %2114 = vmatprep.subr.mxu0 0.0
    %2115 = vmatpush1.xpose.msra.mxu0 0.0
    %2116 = vmatprep.subr.mxu0 0.0
    %2117 = vmatpush1.xpose.msra.mxu0 0.0
    %2118 = vmatprep.subr.mxu0 0.0
    %2119 = vmatpush1.xpose.msra.mxu0 0.0
    %2120 = vmatprep.subr.mxu0 0.0
    %2121 = vmatpush1.xpose.msra.mxu0 0.0
    %2122 = vmatprep.subr.mxu0 0.0
    %2123 = vmatpush1.xpose.msra.mxu0 0.0
    %2124 = vmatprep.subr.mxu0 0.0
    %2125 = vmatpush1.xpose.msra.mxu0 0.0
    %2126 = vmatprep.subr.mxu0 0.0
    %2127 = vmatpush1.xpose.msra.mxu0 0.0
    %2128 = vmatprep.subr.mxu0 0.0
    %2129 = vmatpush1.xpose.msra.mxu0 0.0
    %2130 = vmatprep.subr.mxu0 0.0
    %2131 = vmatpush1.xpose.msra.mxu0 0.0
    %2132 = vmatprep.subr.mxu0 0.0
    %2133 = vmatpush1.xpose.msra.mxu0 0.0
    %2134 = vmatprep.subr.mxu0 0.0
    %2135 = vmatpush1.xpose.msra.mxu0 0.0
    %2136 = vmatprep.subr.mxu0 0.0
    %2137 = vmatpush1.xpose.msra.mxu0 0.0
    %2138 = vmatprep.mubr.f32.mxu0 0.0
    %2139 = vmatmul.mubr.f32.gmra.mrb[0].mxu0 %v2070
    %v2140 = vpop.f32.mrb[0].mxu0
    %v2141 = vadd.f32 %v89, %v2140
    %v2142 = vpop.f32.mrb[0].mxu0
    %2143 = vdwg.mxu0
    %2144 = vrot.lane.b32.xlu0 %v1833, 96
    %v2145 = vpop.permute.xlu0 %2144
    %v2146 = vsel %vm203, %v1819, 0
    %v2148 = vsel %vm203, %v2145, 0
    %2150 = vmatprep.subr.mxu0 0.0
    %2151 = vmatpush1.xpose.msra.mxu0 %v2148
    %2152 = vmatprep.subr.mxu0 0.0
    %2153 = vmatpush1.xpose.msra.mxu0 0.0
    %2154 = vmatprep.subr.mxu0 0.0
    %2155 = vmatpush1.xpose.msra.mxu0 0.0
    %2156 = vmatprep.subr.mxu0 0.0
    %2157 = vmatpush1.xpose.msra.mxu0 0.0
    %2158 = vmatprep.subr.mxu0 0.0
    %2159 = vmatpush1.xpose.msra.mxu0 0.0
    %2160 = vmatprep.subr.mxu0 0.0
    %2161 = vmatpush1.xpose.msra.mxu0 0.0
    %2162 = vmatprep.subr.mxu0 0.0
    %2163 = vmatpush1.xpose.msra.mxu0 0.0
    %2164 = vmatprep.subr.mxu0 0.0
    %2165 = vmatpush1.xpose.msra.mxu0 0.0
    %2166 = vmatprep.subr.mxu0 0.0
    %2167 = vmatpush1.xpose.msra.mxu0 0.0
    %2168 = vmatprep.subr.mxu0 0.0
    %2169 = vmatpush1.xpose.msra.mxu0 0.0
    %2170 = vmatprep.subr.mxu0 0.0
    %2171 = vmatpush1.xpose.msra.mxu0 0.0
    %2172 = vmatprep.subr.mxu0 0.0
    %2173 = vmatpush1.xpose.msra.mxu0 0.0
    %2174 = vmatprep.subr.mxu0 0.0
    %2175 = vmatpush1.xpose.msra.mxu0 0.0
    %2176 = vmatprep.subr.mxu0 0.0
    %2177 = vmatpush1.xpose.msra.mxu0 0.0
    %2178 = vmatprep.subr.mxu0 0.0
    %2179 = vmatpush1.xpose.msra.mxu0 0.0
    %2180 = vmatprep.subr.mxu0 0.0
    %2181 = vmatpush1.xpose.msra.mxu0 0.0
    %2182 = vmatprep.subr.mxu0 0.0
    %2183 = vmatpush1.xpose.msra.mxu0 0.0
    %2184 = vmatprep.subr.mxu0 0.0
    %2185 = vmatpush1.xpose.msra.mxu0 0.0
    %2186 = vmatprep.subr.mxu0 0.0
    %2187 = vmatpush1.xpose.msra.mxu0 0.0
    %2188 = vmatprep.subr.mxu0 0.0
    %2189 = vmatpush1.xpose.msra.mxu0 0.0
    %2190 = vmatprep.subr.mxu0 0.0
    %2191 = vmatpush1.xpose.msra.mxu0 0.0
    %2192 = vmatprep.subr.mxu0 0.0
    %2193 = vmatpush1.xpose.msra.mxu0 0.0
    %2194 = vmatprep.subr.mxu0 0.0
    %2195 = vmatpush1.xpose.msra.mxu0 0.0
    %2196 = vmatprep.subr.mxu0 0.0
    %2197 = vmatpush1.xpose.msra.mxu0 0.0
    %2198 = vmatprep.subr.mxu0 0.0
    %2199 = vmatpush1.xpose.msra.mxu0 0.0
    %2200 = vmatprep.subr.mxu0 0.0
    %2201 = vmatpush1.xpose.msra.mxu0 0.0
    %2202 = vmatprep.subr.mxu0 0.0
    %2203 = vmatpush1.xpose.msra.mxu0 0.0
    %2204 = vmatprep.subr.mxu0 0.0
    %2205 = vmatpush1.xpose.msra.mxu0 0.0
    %2206 = vmatprep.subr.mxu0 0.0
    %2207 = vmatpush1.xpose.msra.mxu0 0.0
    %2208 = vmatprep.subr.mxu0 0.0
    %2209 = vmatpush1.xpose.msra.mxu0 0.0
    %2210 = vmatprep.subr.mxu0 0.0
    %2211 = vmatpush1.xpose.msra.mxu0 0.0
    %2212 = vmatprep.subr.mxu0 0.0
    %2213 = vmatpush1.xpose.msra.mxu0 0.0
    %2214 = vmatprep.mubr.f32.mxu0 0.0
    %2215 = vmatmul.mubr.f32.gmra.mrb[0].mxu0 %v2146
    %v2216 = vpop.f32.mrb[0].mxu0
    %v2217 = vadd.f32 %v90, %v2216
    %v2218 = vpop.f32.mrb[0].mxu0
    %2219 = vdwg.mxu0
    %2220 = vrot.lane.b32.xlu0 %v1835, 96
    %v2221 = vpop.permute.xlu0 %2220
    %v2222 = vsel %vm203, %v1821, 0
    %v2224 = vsel %vm203, %v2221, 0
    %2226 = vmatprep.subr.mxu0 0.0
    %2227 = vmatpush1.xpose.msra.mxu0 %v2224
    %2228 = vmatprep.subr.mxu0 0.0
    %2229 = vmatpush1.xpose.msra.mxu0 0.0
    %2230 = vmatprep.subr.mxu0 0.0
    %2231 = vmatpush1.xpose.msra.mxu0 0.0
    %2232 = vmatprep.subr.mxu0 0.0
    %2233 = vmatpush1.xpose.msra.mxu0 0.0
    %2234 = vmatprep.subr.mxu0 0.0
    %2235 = vmatpush1.xpose.msra.mxu0 0.0
    %2236 = vmatprep.subr.mxu0 0.0
    %2237 = vmatpush1.xpose.msra.mxu0 0.0
    %2238 = vmatprep.subr.mxu0 0.0
    %2239 = vmatpush1.xpose.msra.mxu0 0.0
    %2240 = vmatprep.subr.mxu0 0.0
    %2241 = vmatpush1.xpose.msra.mxu0 0.0
    %2242 = vmatprep.subr.mxu0 0.0
    %2243 = vmatpush1.xpose.msra.mxu0 0.0
    %2244 = vmatprep.subr.mxu0 0.0
    %2245 = vmatpush1.xpose.msra.mxu0 0.0
    %2246 = vmatprep.subr.mxu0 0.0
    %2247 = vmatpush1.xpose.msra.mxu0 0.0
    %2248 = vmatprep.subr.mxu0 0.0
    %2249 = vmatpush1.xpose.msra.mxu0 0.0
    %2250 = vmatprep.subr.mxu0 0.0
    %2251 = vmatpush1.xpose.msra.mxu0 0.0
    %2252 = vmatprep.subr.mxu0 0.0
    %2253 = vmatpush1.xpose.msra.mxu0 0.0
    %2254 = vmatprep.subr.mxu0 0.0
    %2255 = vmatpush1.xpose.msra.mxu0 0.0
    %2256 = vmatprep.subr.mxu0 0.0
    %2257 = vmatpush1.xpose.msra.mxu0 0.0
    %2258 = vmatprep.subr.mxu0 0.0
    %2259 = vmatpush1.xpose.msra.mxu0 0.0
    %2260 = vmatprep.subr.mxu0 0.0
    %2261 = vmatpush1.xpose.msra.mxu0 0.0
    %2262 = vmatprep.subr.mxu0 0.0
    %2263 = vmatpush1.xpose.msra.mxu0 0.0
    %2264 = vmatprep.subr.mxu0 0.0
    %2265 = vmatpush1.xpose.msra.mxu0 0.0
    %2266 = vmatprep.subr.mxu0 0.0
    %2267 = vmatpush1.xpose.msra.mxu0 0.0
    %2268 = vmatprep.subr.mxu0 0.0
    %2269 = vmatpush1.xpose.msra.mxu0 0.0
    %2270 = vmatprep.subr.mxu0 0.0
    %2271 = vmatpush1.xpose.msra.mxu0 0.0
    %2272 = vmatprep.subr.mxu0 0.0
    %2273 = vmatpush1.xpose.msra.mxu0 0.0
    %2274 = vmatprep.subr.mxu0 0.0
    %2275 = vmatpush1.xpose.msra.mxu0 0.0
    %2276 = vmatprep.subr.mxu0 0.0
    %2277 = vmatpush1.xpose.msra.mxu0 0.0
    %2278 = vmatprep.subr.mxu0 0.0
    %2279 = vmatpush1.xpose.msra.mxu0 0.0
    %2280 = vmatprep.subr.mxu0 0.0
    %2281 = vmatpush1.xpose.msra.mxu0 0.0
    %2282 = vmatprep.subr.mxu0 0.0
    %2283 = vmatpush1.xpose.msra.mxu0 0.0
    %2284 = vmatprep.subr.mxu0 0.0
    %2285 = vmatpush1.xpose.msra.mxu0 0.0
    %2286 = vmatprep.subr.mxu0 0.0
    %2287 = vmatpush1.xpose.msra.mxu0 0.0
    %2288 = vmatprep.subr.mxu0 0.0
    %2289 = vmatpush1.xpose.msra.mxu0 0.0
    %2290 = vmatprep.mubr.f32.mxu0 0.0
    %2291 = vmatmul.mubr.f32.gmra.mrb[0].mxu0 %v2222
    %v2292 = vpop.f32.mrb[0].mxu0
    %v2293 = vadd.f32 %v91, %v2292
    %v2294 = vpop.f32.mrb[0].mxu0
    %2295 = vdwg.mxu0
    %2296 = vrot.lane.b32.xlu0 %v1837, 96
    %v2297 = vpop.permute.xlu0 %2296
    %v2298 = vsel %vm203, %v1823, 0
    %v2300 = vsel %vm203, %v2297, 0
    %2302 = vmatprep.subr.mxu0 0.0
    %2303 = vmatpush1.xpose.msra.mxu0 %v2300
    %2304 = vmatprep.subr.mxu0 0.0
    %2305 = vmatpush1.xpose.msra.mxu0 0.0
    %2306 = vmatprep.subr.mxu0 0.0
    %2307 = vmatpush1.xpose.msra.mxu0 0.0
    %2308 = vmatprep.subr.mxu0 0.0
    %2309 = vmatpush1.xpose.msra.mxu0 0.0
    %2310 = vmatprep.subr.mxu0 0.0
    %2311 = vmatpush1.xpose.msra.mxu0 0.0
    %2312 = vmatprep.subr.mxu0 0.0
    %2313 = vmatpush1.xpose.msra.mxu0 0.0
    %2314 = vmatprep.subr.mxu0 0.0
    %2315 = vmatpush1.xpose.msra.mxu0 0.0
    %2316 = vmatprep.subr.mxu0 0.0
    %2317 = vmatpush1.xpose.msra.mxu0 0.0
    %2318 = vmatprep.subr.mxu0 0.0
    %2319 = vmatpush1.xpose.msra.mxu0 0.0
    %2320 = vmatprep.subr.mxu0 0.0
    %2321 = vmatpush1.xpose.msra.mxu0 0.0
    %2322 = vmatprep.subr.mxu0 0.0
    %2323 = vmatpush1.xpose.msra.mxu0 0.0
    %2324 = vmatprep.subr.mxu0 0.0
    %2325 = vmatpush1.xpose.msra.mxu0 0.0
    %2326 = vmatprep.subr.mxu0 0.0
    %2327 = vmatpush1.xpose.msra.mxu0 0.0
    %2328 = vmatprep.subr.mxu0 0.0
    %2329 = vmatpush1.xpose.msra.mxu0 0.0
    %2330 = vmatprep.subr.mxu0 0.0
    %2331 = vmatpush1.xpose.msra.mxu0 0.0
    %2332 = vmatprep.subr.mxu0 0.0
    %2333 = vmatpush1.xpose.msra.mxu0 0.0
    %2334 = vmatprep.subr.mxu0 0.0
    %2335 = vmatpush1.xpose.msra.mxu0 0.0
    %2336 = vmatprep.subr.mxu0 0.0
    %2337 = vmatpush1.xpose.msra.mxu0 0.0
    %2338 = vmatprep.subr.mxu0 0.0
    %2339 = vmatpush1.xpose.msra.mxu0 0.0
    %2340 = vmatprep.subr.mxu0 0.0
    %2341 = vmatpush1.xpose.msra.mxu0 0.0
    %2342 = vmatprep.subr.mxu0 0.0
    %2343 = vmatpush1.xpose.msra.mxu0 0.0
    %2344 = vmatprep.subr.mxu0 0.0
    %2345 = vmatpush1.xpose.msra.mxu0 0.0
    %2346 = vmatprep.subr.mxu0 0.0
    %2347 = vmatpush1.xpose.msra.mxu0 0.0
    %2348 = vmatprep.subr.mxu0 0.0
    %2349 = vmatpush1.xpose.msra.mxu0 0.0
    %2350 = vmatprep.subr.mxu0 0.0
    %2351 = vmatpush1.xpose.msra.mxu0 0.0
    %2352 = vmatprep.subr.mxu0 0.0
    %2353 = vmatpush1.xpose.msra.mxu0 0.0
    %2354 = vmatprep.subr.mxu0 0.0
    %2355 = vmatpush1.xpose.msra.mxu0 0.0
    %2356 = vmatprep.subr.mxu0 0.0
    %2357 = vmatpush1.xpose.msra.mxu0 0.0
    %2358 = vmatprep.subr.mxu0 0.0
    %2359 = vmatpush1.xpose.msra.mxu0 0.0
    %2360 = vmatprep.subr.mxu0 0.0
    %2361 = vmatpush1.xpose.msra.mxu0 0.0
    %2362 = vmatprep.subr.mxu0 0.0
    %2363 = vmatpush1.xpose.msra.mxu0 0.0
    %2364 = vmatprep.subr.mxu0 0.0
    %2365 = vmatpush1.xpose.msra.mxu0 0.0
    %2366 = vmatprep.mubr.f32.mxu0 0.0
    %2367 = vmatmul.mubr.f32.gmra.mrb[0].mxu0 %v2298
    %v2368 = vpop.f32.mrb[0].mxu0
    %v2369 = vadd.f32 %v92, %v2368
    %v2370 = vpop.f32.mrb[0].mxu0
    %2371 = vdwg.mxu0
    %2372 = vrot.lane.b32.xlu0 %v1839, 96
    %v2373 = vpop.permute.xlu0 %2372
    %v2374 = vsel %vm203, %v1825, 0
    %v2376 = vsel %vm203, %v2373, 0
    %2378 = vmatprep.subr.mxu0 0.0
    %2379 = vmatpush1.xpose.msra.mxu0 %v2376
    %2380 = vmatprep.subr.mxu0 0.0
    %2381 = vmatpush1.xpose.msra.mxu0 0.0
    %2382 = vmatprep.subr.mxu0 0.0
    %2383 = vmatpush1.xpose.msra.mxu0 0.0
    %2384 = vmatprep.subr.mxu0 0.0
    %2385 = vmatpush1.xpose.msra.mxu0 0.0
    %2386 = vmatprep.subr.mxu0 0.0
    %2387 = vmatpush1.xpose.msra.mxu0 0.0
    %2388 = vmatprep.subr.mxu0 0.0
    %2389 = vmatpush1.xpose.msra.mxu0 0.0
    %2390 = vmatprep.subr.mxu0 0.0
    %2391 = vmatpush1.xpose.msra.mxu0 0.0
    %2392 = vmatprep.subr.mxu0 0.0
    %2393 = vmatpush1.xpose.msra.mxu0 0.0
    %2394 = vmatprep.subr.mxu0 0.0
    %2395 = vmatpush1.xpose.msra.mxu0 0.0
    %2396 = vmatprep.subr.mxu0 0.0
    %2397 = vmatpush1.xpose.msra.mxu0 0.0
    %2398 = vmatprep.subr.mxu0 0.0
    %2399 = vmatpush1.xpose.msra.mxu0 0.0
    %2400 = vmatprep.subr.mxu0 0.0
    %2401 = vmatpush1.xpose.msra.mxu0 0.0
    %2402 = vmatprep.subr.mxu0 0.0
    %2403 = vmatpush1.xpose.msra.mxu0 0.0
    %2404 = vmatprep.subr.mxu0 0.0
    %2405 = vmatpush1.xpose.msra.mxu0 0.0
    %2406 = vmatprep.subr.mxu0 0.0
    %2407 = vmatpush1.xpose.msra.mxu0 0.0
    %2408 = vmatprep.subr.mxu0 0.0
    %2409 = vmatpush1.xpose.msra.mxu0 0.0
    %2410 = vmatprep.subr.mxu0 0.0
    %2411 = vmatpush1.xpose.msra.mxu0 0.0
    %2412 = vmatprep.subr.mxu0 0.0
    %2413 = vmatpush1.xpose.msra.mxu0 0.0
    %2414 = vmatprep.subr.mxu0 0.0
    %2415 = vmatpush1.xpose.msra.mxu0 0.0
    %2416 = vmatprep.subr.mxu0 0.0
    %2417 = vmatpush1.xpose.msra.mxu0 0.0
    %2418 = vmatprep.subr.mxu0 0.0
    %2419 = vmatpush1.xpose.msra.mxu0 0.0
    %2420 = vmatprep.subr.mxu0 0.0
    %2421 = vmatpush1.xpose.msra.mxu0 0.0
    %2422 = vmatprep.subr.mxu0 0.0
    %2423 = vmatpush1.xpose.msra.mxu0 0.0
    %2424 = vmatprep.subr.mxu0 0.0
    %2425 = vmatpush1.xpose.msra.mxu0 0.0
    %2426 = vmatprep.subr.mxu0 0.0
    %2427 = vmatpush1.xpose.msra.mxu0 0.0
    %2428 = vmatprep.subr.mxu0 0.0
    %2429 = vmatpush1.xpose.msra.mxu0 0.0
    %2430 = vmatprep.subr.mxu0 0.0
    %2431 = vmatpush1.xpose.msra.mxu0 0.0
    %2432 = vmatprep.subr.mxu0 0.0
    %2433 = vmatpush1.xpose.msra.mxu0 0.0
    %2434 = vmatprep.subr.mxu0 0.0
    %2435 = vmatpush1.xpose.msra.mxu0 0.0
    %2436 = vmatprep.subr.mxu0 0.0
    %2437 = vmatpush1.xpose.msra.mxu0 0.0
    %2438 = vmatprep.subr.mxu0 0.0
    %2439 = vmatpush1.xpose.msra.mxu0 0.0
    %2440 = vmatprep.subr.mxu0 0.0
    %2441 = vmatpush1.xpose.msra.mxu0 0.0
    %2442 = vmatprep.mubr.f32.mxu0 0.0
    %2443 = vmatmul.mubr.f32.gmra.mrb[0].mxu0 %v2374
    %v2444 = vpop.f32.mrb[0].mxu0
    %v2445 = vadd.f32 %v93, %v2444
    %v2446 = vpop.f32.mrb[0].mxu0
    %2447 = vdwg.mxu0
    %v2448 = vsel %vm203, %v1913, -inf
    %2449 = vmax.xlane.f32.xlu0 %v2448
    %v2450 = vpop.xlane.xlu0 %2449
    %v2451 = vsel %vm203, %v1989, -inf
    %2452 = vmax.xlane.f32.xlu0 %v2451
    %v2453 = vpop.xlane.xlu0 %2452
    %v2454 = vsel %vm203, %v2065, -inf
    %2455 = vmax.xlane.f32.xlu0 %v2454
    %v2456 = vpop.xlane.xlu0 %2455
    %v2457 = vsel %vm203, %v2141, -inf
    %2458 = vmax.xlane.f32.xlu0 %v2457
    %v2459 = vpop.xlane.xlu0 %2458
    %v2460 = vsel %vm203, %v2217, -inf
    %2461 = vmax.xlane.f32.xlu0 %v2460
    %v2462 = vpop.xlane.xlu0 %2461
    %v2463 = vsel %vm203, %v2293, -inf
    %2464 = vmax.xlane.f32.xlu0 %v2463
    %v2465 = vpop.xlane.xlu0 %2464
    %v2466 = vsel %vm203, %v2369, -inf
    %2467 = vmax.xlane.f32.xlu0 %v2466
    %v2468 = vpop.xlane.xlu0 %2467
    %v2469 = vsel %vm203, %v2445, -inf
    %2470 = vmax.xlane.f32.xlu0 %v2469
    %v2471 = vpop.xlane.xlu0 %2470
    %v2472 = vsub.f32 %v1913, %v2450
    %v2473 = vsub.f32 %v1989, %v2453
    %v2474 = vsub.f32 %v2065, %v2456
    %v2475 = vsub.f32 %v2141, %v2459
    %v2476 = vsub.f32 %v2217, %v2462
    %v2477 = vsub.f32 %v2293, %v2465
    %v2478 = vsub.f32 %v2369, %v2468
    %v2479 = vsub.f32 %v2445, %v2471
    %v2480 = vmul.f32 %v2472, 1.442695
    %v2481 = vpow.pop %v2480
    %v2482 = vmul.f32 %v2473, 1.442695
    %v2483 = vpow.pop %v2482
    %v2484 = vmul.f32 %v2474, 1.442695
    %v2485 = vpow.pop %v2484
    %v2486 = vmul.f32 %v2475, 1.442695
    %v2487 = vpow.pop %v2486
    %v2488 = vmul.f32 %v2476, 1.442695
    %v2489 = vpow.pop %v2488
    %v2490 = vmul.f32 %v2477, 1.442695
    %v2491 = vpow.pop %v2490
    %v2492 = vmul.f32 %v2478, 1.442695
    %v2493 = vpow.pop %v2492
    %v2494 = vmul.f32 %v2479, 1.442695
    %v2495 = vpow.pop %v2494
    %v2496 = vsel %vm203, %v2481, 0.0
    %2497 = vadd.xlane.f32.xlu0 %v2496
    %v2498 = vpop.xlane.xlu0 %2497
    %v2499 = vsel %vm203, %v2483, 0.0
    %2500 = vadd.xlane.f32.xlu0 %v2499
    %v2501 = vpop.xlane.xlu0 %2500
    %v2502 = vsel %vm203, %v2485, 0.0
    %2503 = vadd.xlane.f32.xlu0 %v2502
    %v2504 = vpop.xlane.xlu0 %2503
    %v2505 = vsel %vm203, %v2487, 0.0
    %2506 = vadd.xlane.f32.xlu0 %v2505
    %v2507 = vpop.xlane.xlu0 %2506
    %v2508 = vsel %vm203, %v2489, 0.0
    %2509 = vadd.xlane.f32.xlu0 %v2508
    %v2510 = vpop.xlane.xlu0 %2509
    %v2511 = vsel %vm203, %v2491, 0.0
    %2512 = vadd.xlane.f32.xlu0 %v2511
    %v2513 = vpop.xlane.xlu0 %2512
    %v2514 = vsel %vm203, %v2493, 0.0
    %2515 = vadd.xlane.f32.xlu0 %v2514
    %v2516 = vpop.xlane.xlu0 %2515
    %v2517 = vsel %vm203, %v2495, 0.0
    %2518 = vadd.xlane.f32.xlu0 %v2517
    %v2519 = vpop.xlane.xlu0 %2518
    %v2520 = vrcp.pop %v2498
    %v2521 = vrcp.pop %v2501
    %v2522 = vrcp.pop %v2504
    %v2523 = vrcp.pop %v2507
    %v2524 = vrcp.pop %v2510
    %v2525 = vrcp.pop %v2513
    %v2526 = vrcp.pop %v2516
    %v2527 = vrcp.pop %v2519
    %v2528 = vmul.f32 %v2481, %v2520
    %v2529 = vmul.f32 %v2483, %v2521
    %v2530 = vmul.f32 %v2485, %v2522
    %v2531 = vmul.f32 %v2487, %v2523
    %v2532 = vmul.f32 %v2489, %v2524
    %v2533 = vmul.f32 %v2491, %v2525
    %v2534 = vmul.f32 %v2493, %v2526
    %v2535 = vmul.f32 %v2495, %v2527
    %2536 = vrot.lane.b32.xlu0 %v1804, 64
    %v2537 = vpop.permute.xlu0 %2536
    %v2540 = vsel %vm203, %v2528, 0
    %2542 = vmatprep.subr.mxu0 0.0
    %2543 = vmatpush1.msra.mxu0 %v2537
    %2544 = vmatprep.subr.mxu0 0.0
    %2545 = vmatpush1.msra.mxu0 0.0
    %2546 = vmatprep.subr.mxu0 0.0
    %2547 = vmatpush1.msra.mxu0 0.0
    %2548 = vmatprep.subr.mxu0 0.0
    %2549 = vmatpush1.msra.mxu0 0.0
    %2550 = vmatprep.subr.mxu0 0.0
    %2551 = vmatpush1.msra.mxu0 0.0
    %2552 = vmatprep.subr.mxu0 0.0
    %2553 = vmatpush1.msra.mxu0 0.0
    %2554 = vmatprep.subr.mxu0 0.0
    %2555 = vmatpush1.msra.mxu0 0.0
    %2556 = vmatprep.subr.mxu0 0.0
    %2557 = vmatpush1.msra.mxu0 0.0
    %2558 = vmatprep.subr.mxu0 0.0
    %2559 = vmatpush1.msra.mxu0 0.0
    %2560 = vmatprep.subr.mxu0 0.0
    %2561 = vmatpush1.msra.mxu0 0.0
    %2562 = vmatprep.subr.mxu0 0.0
    %2563 = vmatpush1.msra.mxu0 0.0
    %2564 = vmatprep.subr.mxu0 0.0
    %2565 = vmatpush1.msra.mxu0 0.0
    %2566 = vmatprep.subr.mxu0 0.0
    %2567 = vmatpush1.msra.mxu0 0.0
    %2568 = vmatprep.subr.mxu0 0.0
    %2569 = vmatpush1.msra.mxu0 0.0
    %2570 = vmatprep.subr.mxu0 0.0
    %2571 = vmatpush1.msra.mxu0 0.0
    %2572 = vmatprep.subr.mxu0 0.0
    %2573 = vmatpush1.msra.mxu0 0.0
    %2574 = vmatprep.subr.mxu0 0.0
    %2575 = vmatpush1.msra.mxu0 0.0
    %2576 = vmatprep.subr.mxu0 0.0
    %2577 = vmatpush1.msra.mxu0 0.0
    %2578 = vmatprep.subr.mxu0 0.0
    %2579 = vmatpush1.msra.mxu0 0.0
    %2580 = vmatprep.subr.mxu0 0.0
    %2581 = vmatpush1.msra.mxu0 0.0
    %2582 = vmatprep.subr.mxu0 0.0
    %2583 = vmatpush1.msra.mxu0 0.0
    %2584 = vmatprep.subr.mxu0 0.0
    %2585 = vmatpush1.msra.mxu0 0.0
    %2586 = vmatprep.subr.mxu0 0.0
    %2587 = vmatpush1.msra.mxu0 0.0
    %2588 = vmatprep.subr.mxu0 0.0
    %2589 = vmatpush1.msra.mxu0 0.0
    %2590 = vmatprep.subr.mxu0 0.0
    %2591 = vmatpush1.msra.mxu0 0.0
    %2592 = vmatprep.subr.mxu0 0.0
    %2593 = vmatpush1.msra.mxu0 0.0
    %2594 = vmatprep.subr.mxu0 0.0
    %2595 = vmatpush1.msra.mxu0 0.0
    %2596 = vmatprep.subr.mxu0 0.0
    %2597 = vmatpush1.msra.mxu0 0.0
    %2598 = vmatprep.subr.mxu0 0.0
    %2599 = vmatpush1.msra.mxu0 0.0
    %2600 = vmatprep.subr.mxu0 0.0
    %2601 = vmatpush1.msra.mxu0 0.0
    %2602 = vmatprep.subr.mxu0 0.0
    %2603 = vmatpush1.msra.mxu0 0.0
    %2604 = vmatprep.subr.mxu0 0.0
    %2605 = vmatpush1.msra.mxu0 0.0
    %2606 = vmatprep.mubr.f32.mxu0 0.0
    %2607 = vmatmul.mubr.f32.gmra.mrb[0].mxu0 %v2540
    %v2608 = vpop.f32.mrb[0].mxu0
    %v2609 = vadd.f32 0.0, %v2608
    %v2610 = vpop.f32.mrb[0].mxu0
    %2611 = vdwg.mxu0
    %2612 = vrot.lane.b32.xlu0 %v1809, 64
    %v2613 = vpop.permute.xlu0 %2612
    %v2616 = vsel %vm203, %v2529, 0
    %2618 = vmatprep.subr.mxu0 0.0
    %2619 = vmatpush1.msra.mxu0 %v2613
    %2620 = vmatprep.subr.mxu0 0.0
    %2621 = vmatpush1.msra.mxu0 0.0
    %2622 = vmatprep.subr.mxu0 0.0
    %2623 = vmatpush1.msra.mxu0 0.0
    %2624 = vmatprep.subr.mxu0 0.0
    %2625 = vmatpush1.msra.mxu0 0.0
    %2626 = vmatprep.subr.mxu0 0.0
    %2627 = vmatpush1.msra.mxu0 0.0
    %2628 = vmatprep.subr.mxu0 0.0
    %2629 = vmatpush1.msra.mxu0 0.0
    %2630 = vmatprep.subr.mxu0 0.0
    %2631 = vmatpush1.msra.mxu0 0.0
    %2632 = vmatprep.subr.mxu0 0.0
    %2633 = vmatpush1.msra.mxu0 0.0
    %2634 = vmatprep.subr.mxu0 0.0
    %2635 = vmatpush1.msra.mxu0 0.0
    %2636 = vmatprep.subr.mxu0 0.0
    %2637 = vmatpush1.msra.mxu0 0.0
    %2638 = vmatprep.subr.mxu0 0.0
    %2639 = vmatpush1.msra.mxu0 0.0
    %2640 = vmatprep.subr.mxu0 0.0
    %2641 = vmatpush1.msra.mxu0 0.0
    %2642 = vmatprep.subr.mxu0 0.0
    %2643 = vmatpush1.msra.mxu0 0.0
    %2644 = vmatprep.subr.mxu0 0.0
    %2645 = vmatpush1.msra.mxu0 0.0
    %2646 = vmatprep.subr.mxu0 0.0
    %2647 = vmatpush1.msra.mxu0 0.0
    %2648 = vmatprep.subr.mxu0 0.0
    %2649 = vmatpush1.msra.mxu0 0.0
    %2650 = vmatprep.subr.mxu0 0.0
    %2651 = vmatpush1.msra.mxu0 0.0
    %2652 = vmatprep.subr.mxu0 0.0
    %2653 = vmatpush1.msra.mxu0 0.0
    %2654 = vmatprep.subr.mxu0 0.0
    %2655 = vmatpush1.msra.mxu0 0.0
    %2656 = vmatprep.subr.mxu0 0.0
    %2657 = vmatpush1.msra.mxu0 0.0
    %2658 = vmatprep.subr.mxu0 0.0
    %2659 = vmatpush1.msra.mxu0 0.0
    %2660 = vmatprep.subr.mxu0 0.0
    %2661 = vmatpush1.msra.mxu0 0.0
    %2662 = vmatprep.subr.mxu0 0.0
    %2663 = vmatpush1.msra.mxu0 0.0
    %2664 = vmatprep.subr.mxu0 0.0
    %2665 = vmatpush1.msra.mxu0 0.0
    %2666 = vmatprep.subr.mxu0 0.0
    %2667 = vmatpush1.msra.mxu0 0.0
    %2668 = vmatprep.subr.mxu0 0.0
    %2669 = vmatpush1.msra.mxu0 0.0
    %2670 = vmatprep.subr.mxu0 0.0
    %2671 = vmatpush1.msra.mxu0 0.0
    %2672 = vmatprep.subr.mxu0 0.0
    %2673 = vmatpush1.msra.mxu0 0.0
    %2674 = vmatprep.subr.mxu0 0.0
    %2675 = vmatpush1.msra.mxu0 0.0
    %2676 = vmatprep.subr.mxu0 0.0
    %2677 = vmatpush1.msra.mxu0 0.0
    %2678 = vmatprep.subr.mxu0 0.0
    %2679 = vmatpush1.msra.mxu0 0.0
    %2680 = vmatprep.subr.mxu0 0.0
    %2681 = vmatpush1.msra.mxu0 0.0
    %2682 = vmatprep.mubr.f32.mxu0 0.0
    %2683 = vmatmul.mubr.f32.gmra.mrb[0].mxu0 %v2616
    %v2684 = vpop.f32.mrb[0].mxu0
    %v2685 = vadd.f32 0.0, %v2684
    %v2686 = vpop.f32.mrb[0].mxu0
    %2687 = vdwg.mxu0
    %2688 = vrot.lane.b32.xlu0 %v1829, 64
    %v2689 = vpop.permute.xlu0 %2688
    %v2692 = vsel %vm203, %v2530, 0
    %2694 = vmatprep.subr.mxu0 0.0
    %2695 = vmatpush1.msra.mxu0 %v2689
    %2696 = vmatprep.subr.mxu0 0.0
    %2697 = vmatpush1.msra.mxu0 0.0
    %2698 = vmatprep.subr.mxu0 0.0
    %2699 = vmatpush1.msra.mxu0 0.0
    %2700 = vmatprep.subr.mxu0 0.0
    %2701 = vmatpush1.msra.mxu0 0.0
    %2702 = vmatprep.subr.mxu0 0.0
    %2703 = vmatpush1.msra.mxu0 0.0
    %2704 = vmatprep.subr.mxu0 0.0
    %2705 = vmatpush1.msra.mxu0 0.0
    %2706 = vmatprep.subr.mxu0 0.0
    %2707 = vmatpush1.msra.mxu0 0.0
    %2708 = vmatprep.subr.mxu0 0.0
    %2709 = vmatpush1.msra.mxu0 0.0
    %2710 = vmatprep.subr.mxu0 0.0
    %2711 = vmatpush1.msra.mxu0 0.0
    %2712 = vmatprep.subr.mxu0 0.0
    %2713 = vmatpush1.msra.mxu0 0.0
    %2714 = vmatprep.subr.mxu0 0.0
    %2715 = vmatpush1.msra.mxu0 0.0
    %2716 = vmatprep.subr.mxu0 0.0
    %2717 = vmatpush1.msra.mxu0 0.0
    %2718 = vmatprep.subr.mxu0 0.0
    %2719 = vmatpush1.msra.mxu0 0.0
    %2720 = vmatprep.subr.mxu0 0.0
    %2721 = vmatpush1.msra.mxu0 0.0
    %2722 = vmatprep.subr.mxu0 0.0
    %2723 = vmatpush1.msra.mxu0 0.0
    %2724 = vmatprep.subr.mxu0 0.0
    %2725 = vmatpush1.msra.mxu0 0.0
    %2726 = vmatprep.subr.mxu0 0.0
    %2727 = vmatpush1.msra.mxu0 0.0
    %2728 = vmatprep.subr.mxu0 0.0
    %2729 = vmatpush1.msra.mxu0 0.0
    %2730 = vmatprep.subr.mxu0 0.0
    %2731 = vmatpush1.msra.mxu0 0.0
    %2732 = vmatprep.subr.mxu0 0.0
    %2733 = vmatpush1.msra.mxu0 0.0
    %2734 = vmatprep.subr.mxu0 0.0
    %2735 = vmatpush1.msra.mxu0 0.0
    %2736 = vmatprep.subr.mxu0 0.0
    %2737 = vmatpush1.msra.mxu0 0.0
    %2738 = vmatprep.subr.mxu0 0.0
    %2739 = vmatpush1.msra.mxu0 0.0
    %2740 = vmatprep.subr.mxu0 0.0
    %2741 = vmatpush1.msra.mxu0 0.0
    %2742 = vmatprep.subr.mxu0 0.0
    %2743 = vmatpush1.msra.mxu0 0.0
    %2744 = vmatprep.subr.mxu0 0.0
    %2745 = vmatpush1.msra.mxu0 0.0
    %2746 = vmatprep.subr.mxu0 0.0
    %2747 = vmatpush1.msra.mxu0 0.0
    %2748 = vmatprep.subr.mxu0 0.0
    %2749 = vmatpush1.msra.mxu0 0.0
    %2750 = vmatprep.subr.mxu0 0.0
    %2751 = vmatpush1.msra.mxu0 0.0
    %2752 = vmatprep.subr.mxu0 0.0
    %2753 = vmatpush1.msra.mxu0 0.0
    %2754 = vmatprep.subr.mxu0 0.0
    %2755 = vmatpush1.msra.mxu0 0.0
    %2756 = vmatprep.subr.mxu0 0.0
    %2757 = vmatpush1.msra.mxu0 0.0
    %2758 = vmatprep.mubr.f32.mxu0 0.0
    %2759 = vmatmul.mubr.f32.gmra.mrb[0].mxu0 %v2692
    %v2760 = vpop.f32.mrb[0].mxu0
    %v2761 = vadd.f32 0.0, %v2760
    %v2762 = vpop.f32.mrb[0].mxu0
    %2763 = vdwg.mxu0
    %2764 = vrot.lane.b32.xlu0 %v1831, 64
    %v2765 = vpop.permute.xlu0 %2764
    %v2768 = vsel %vm203, %v2531, 0
    %2770 = vmatprep.subr.mxu0 0.0
    %2771 = vmatpush1.msra.mxu0 %v2765
    %2772 = vmatprep.subr.mxu0 0.0
    %2773 = vmatpush1.msra.mxu0 0.0
    %2774 = vmatprep.subr.mxu0 0.0
    %2775 = vmatpush1.msra.mxu0 0.0
    %2776 = vmatprep.subr.mxu0 0.0
    %2777 = vmatpush1.msra.mxu0 0.0
    %2778 = vmatprep.subr.mxu0 0.0
    %2779 = vmatpush1.msra.mxu0 0.0
    %2780 = vmatprep.subr.mxu0 0.0
    %2781 = vmatpush1.msra.mxu0 0.0
    %2782 = vmatprep.subr.mxu0 0.0
    %2783 = vmatpush1.msra.mxu0 0.0
    %2784 = vmatprep.subr.mxu0 0.0
    %2785 = vmatpush1.msra.mxu0 0.0
    %2786 = vmatprep.subr.mxu0 0.0
    %2787 = vmatpush1.msra.mxu0 0.0
    %2788 = vmatprep.subr.mxu0 0.0
    %2789 = vmatpush1.msra.mxu0 0.0
    %2790 = vmatprep.subr.mxu0 0.0
    %2791 = vmatpush1.msra.mxu0 0.0
    %2792 = vmatprep.subr.mxu0 0.0
    %2793 = vmatpush1.msra.mxu0 0.0
    %2794 = vmatprep.subr.mxu0 0.0
    %2795 = vmatpush1.msra.mxu0 0.0
    %2796 = vmatprep.subr.mxu0 0.0
    %2797 = vmatpush1.msra.mxu0 0.0
    %2798 = vmatprep.subr.mxu0 0.0
    %2799 = vmatpush1.msra.mxu0 0.0
    %2800 = vmatprep.subr.mxu0 0.0
    %2801 = vmatpush1.msra.mxu0 0.0
    %2802 = vmatprep.subr.mxu0 0.0
    %2803 = vmatpush1.msra.mxu0 0.0
    %2804 = vmatprep.subr.mxu0 0.0
    %2805 = vmatpush1.msra.mxu0 0.0
    %2806 = vmatprep.subr.mxu0 0.0
    %2807 = vmatpush1.msra.mxu0 0.0
    %2808 = vmatprep.subr.mxu0 0.0
    %2809 = vmatpush1.msra.mxu0 0.0
    %2810 = vmatprep.subr.mxu0 0.0
    %2811 = vmatpush1.msra.mxu0 0.0
    %2812 = vmatprep.subr.mxu0 0.0
    %2813 = vmatpush1.msra.mxu0 0.0
    %2814 = vmatprep.subr.mxu0 0.0
    %2815 = vmatpush1.msra.mxu0 0.0
    %2816 = vmatprep.subr.mxu0 0.0
    %2817 = vmatpush1.msra.mxu0 0.0
    %2818 = vmatprep.subr.mxu0 0.0
    %2819 = vmatpush1.msra.mxu0 0.0
    %2820 = vmatprep.subr.mxu0 0.0
    %2821 = vmatpush1.msra.mxu0 0.0
    %2822 = vmatprep.subr.mxu0 0.0
    %2823 = vmatpush1.msra.mxu0 0.0
    %2824 = vmatprep.subr.mxu0 0.0
    %2825 = vmatpush1.msra.mxu0 0.0
    %2826 = vmatprep.subr.mxu0 0.0
    %2827 = vmatpush1.msra.mxu0 0.0
    %2828 = vmatprep.subr.mxu0 0.0
    %2829 = vmatpush1.msra.mxu0 0.0
    %2830 = vmatprep.subr.mxu0 0.0
    %2831 = vmatpush1.msra.mxu0 0.0
    %2832 = vmatprep.subr.mxu0 0.0
    %2833 = vmatpush1.msra.mxu0 0.0
    %2834 = vmatprep.mubr.f32.mxu0 0.0
    %2835 = vmatmul.mubr.f32.gmra.mrb[0].mxu0 %v2768
    %v2836 = vpop.f32.mrb[0].mxu0
    %v2837 = vadd.f32 0.0, %v2836
    %v2838 = vpop.f32.mrb[0].mxu0
    %2839 = vdwg.mxu0
    %2840 = vrot.lane.b32.xlu0 %v1833, 64
    %v2841 = vpop.permute.xlu0 %2840
    %v2844 = vsel %vm203, %v2532, 0
    %2846 = vmatprep.subr.mxu0 0.0
    %2847 = vmatpush1.msra.mxu0 %v2841
    %2848 = vmatprep.subr.mxu0 0.0
    %2849 = vmatpush1.msra.mxu0 0.0
    %2850 = vmatprep.subr.mxu0 0.0
    %2851 = vmatpush1.msra.mxu0 0.0
    %2852 = vmatprep.subr.mxu0 0.0
    %2853 = vmatpush1.msra.mxu0 0.0
    %2854 = vmatprep.subr.mxu0 0.0
    %2855 = vmatpush1.msra.mxu0 0.0
    %2856 = vmatprep.subr.mxu0 0.0
    %2857 = vmatpush1.msra.mxu0 0.0
    %2858 = vmatprep.subr.mxu0 0.0
    %2859 = vmatpush1.msra.mxu0 0.0
    %2860 = vmatprep.subr.mxu0 0.0
    %2861 = vmatpush1.msra.mxu0 0.0
    %2862 = vmatprep.subr.mxu0 0.0
    %2863 = vmatpush1.msra.mxu0 0.0
    %2864 = vmatprep.subr.mxu0 0.0
    %2865 = vmatpush1.msra.mxu0 0.0
    %2866 = vmatprep.subr.mxu0 0.0
    %2867 = vmatpush1.msra.mxu0 0.0
    %2868 = vmatprep.subr.mxu0 0.0
    %2869 = vmatpush1.msra.mxu0 0.0
    %2870 = vmatprep.subr.mxu0 0.0
    %2871 = vmatpush1.msra.mxu0 0.0
    %2872 = vmatprep.subr.mxu0 0.0
    %2873 = vmatpush1.msra.mxu0 0.0
    %2874 = vmatprep.subr.mxu0 0.0
    %2875 = vmatpush1.msra.mxu0 0.0
    %2876 = vmatprep.subr.mxu0 0.0
    %2877 = vmatpush1.msra.mxu0 0.0
    %2878 = vmatprep.subr.mxu0 0.0
    %2879 = vmatpush1.msra.mxu0 0.0
    %2880 = vmatprep.subr.mxu0 0.0
    %2881 = vmatpush1.msra.mxu0 0.0
    %2882 = vmatprep.subr.mxu0 0.0
    %2883 = vmatpush1.msra.mxu0 0.0
    %2884 = vmatprep.subr.mxu0 0.0
    %2885 = vmatpush1.msra.mxu0 0.0
    %2886 = vmatprep.subr.mxu0 0.0
    %2887 = vmatpush1.msra.mxu0 0.0
    %2888 = vmatprep.subr.mxu0 0.0
    %2889 = vmatpush1.msra.mxu0 0.0
    %2890 = vmatprep.subr.mxu0 0.0
    %2891 = vmatpush1.msra.mxu0 0.0
    %2892 = vmatprep.subr.mxu0 0.0
    %2893 = vmatpush1.msra.mxu0 0.0
    %2894 = vmatprep.subr.mxu0 0.0
    %2895 = vmatpush1.msra.mxu0 0.0
    %2896 = vmatprep.subr.mxu0 0.0
    %2897 = vmatpush1.msra.mxu0 0.0
    %2898 = vmatprep.subr.mxu0 0.0
    %2899 = vmatpush1.msra.mxu0 0.0
    %2900 = vmatprep.subr.mxu0 0.0
    %2901 = vmatpush1.msra.mxu0 0.0
    %2902 = vmatprep.subr.mxu0 0.0
    %2903 = vmatpush1.msra.mxu0 0.0
    %2904 = vmatprep.subr.mxu0 0.0
    %2905 = vmatpush1.msra.mxu0 0.0
    %2906 = vmatprep.subr.mxu0 0.0
    %2907 = vmatpush1.msra.mxu0 0.0
    %2908 = vmatprep.subr.mxu0 0.0
    %2909 = vmatpush1.msra.mxu0 0.0
    %2910 = vmatprep.mubr.f32.mxu0 0.0
    %2911 = vmatmul.mubr.f32.gmra.mrb[0].mxu0 %v2844
    %v2912 = vpop.f32.mrb[0].mxu0
    %v2913 = vadd.f32 0.0, %v2912
    %v2914 = vpop.f32.mrb[0].mxu0
    %2915 = vdwg.mxu0
    %2916 = vrot.lane.b32.xlu0 %v1835, 64
    %v2917 = vpop.permute.xlu0 %2916
    %v2920 = vsel %vm203, %v2533, 0
    %2922 = vmatprep.subr.mxu0 0.0
    %2923 = vmatpush1.msra.mxu0 %v2917
    %2924 = vmatprep.subr.mxu0 0.0
    %2925 = vmatpush1.msra.mxu0 0.0
    %2926 = vmatprep.subr.mxu0 0.0
    %2927 = vmatpush1.msra.mxu0 0.0
    %2928 = vmatprep.subr.mxu0 0.0
    %2929 = vmatpush1.msra.mxu0 0.0
    %2930 = vmatprep.subr.mxu0 0.0
    %2931 = vmatpush1.msra.mxu0 0.0
    %2932 = vmatprep.subr.mxu0 0.0
    %2933 = vmatpush1.msra.mxu0 0.0
    %2934 = vmatprep.subr.mxu0 0.0
    %2935 = vmatpush1.msra.mxu0 0.0
    %2936 = vmatprep.subr.mxu0 0.0
    %2937 = vmatpush1.msra.mxu0 0.0
    %2938 = vmatprep.subr.mxu0 0.0
    %2939 = vmatpush1.msra.mxu0 0.0
    %2940 = vmatprep.subr.mxu0 0.0
    %2941 = vmatpush1.msra.mxu0 0.0
    %2942 = vmatprep.subr.mxu0 0.0
    %2943 = vmatpush1.msra.mxu0 0.0
    %2944 = vmatprep.subr.mxu0 0.0
    %2945 = vmatpush1.msra.mxu0 0.0
    %2946 = vmatprep.subr.mxu0 0.0
    %2947 = vmatpush1.msra.mxu0 0.0
    %2948 = vmatprep.subr.mxu0 0.0
    %2949 = vmatpush1.msra.mxu0 0.0
    %2950 = vmatprep.subr.mxu0 0.0
    %2951 = vmatpush1.msra.mxu0 0.0
    %2952 = vmatprep.subr.mxu0 0.0
    %2953 = vmatpush1.msra.mxu0 0.0
    %2954 = vmatprep.subr.mxu0 0.0
    %2955 = vmatpush1.msra.mxu0 0.0
    %2956 = vmatprep.subr.mxu0 0.0
    %2957 = vmatpush1.msra.mxu0 0.0
    %2958 = vmatprep.subr.mxu0 0.0
    %2959 = vmatpush1.msra.mxu0 0.0
    %2960 = vmatprep.subr.mxu0 0.0
    %2961 = vmatpush1.msra.mxu0 0.0
    %2962 = vmatprep.subr.mxu0 0.0
    %2963 = vmatpush1.msra.mxu0 0.0
    %2964 = vmatprep.subr.mxu0 0.0
    %2965 = vmatpush1.msra.mxu0 0.0
    %2966 = vmatprep.subr.mxu0 0.0
    %2967 = vmatpush1.msra.mxu0 0.0
    %2968 = vmatprep.subr.mxu0 0.0
    %2969 = vmatpush1.msra.mxu0 0.0
    %2970 = vmatprep.subr.mxu0 0.0
    %2971 = vmatpush1.msra.mxu0 0.0
    %2972 = vmatprep.subr.mxu0 0.0
    %2973 = vmatpush1.msra.mxu0 0.0
    %2974 = vmatprep.subr.mxu0 0.0
    %2975 = vmatpush1.msra.mxu0 0.0
    %2976 = vmatprep.subr.mxu0 0.0
    %2977 = vmatpush1.msra.mxu0 0.0
    %2978 = vmatprep.subr.mxu0 0.0
    %2979 = vmatpush1.msra.mxu0 0.0
    %2980 = vmatprep.subr.mxu0 0.0
    %2981 = vmatpush1.msra.mxu0 0.0
    %2982 = vmatprep.subr.mxu0 0.0
    %2983 = vmatpush1.msra.mxu0 0.0
    %2984 = vmatprep.subr.mxu0 0.0
    %2985 = vmatpush1.msra.mxu0 0.0
    %2986 = vmatprep.mubr.f32.mxu0 0.0
    %2987 = vmatmul.mubr.f32.gmra.mrb[0].mxu0 %v2920
    %v2988 = vpop.f32.mrb[0].mxu0
    %v2989 = vadd.f32 0.0, %v2988
    %v2990 = vpop.f32.mrb[0].mxu0
    %2991 = vdwg.mxu0
    %2992 = vrot.lane.b32.xlu0 %v1837, 64
    %v2993 = vpop.permute.xlu0 %2992
    %v2996 = vsel %vm203, %v2534, 0
    %2998 = vmatprep.subr.mxu0 0.0
    %2999 = vmatpush1.msra.mxu0 %v2993
    %3000 = vmatprep.subr.mxu0 0.0
    %3001 = vmatpush1.msra.mxu0 0.0
    %3002 = vmatprep.subr.mxu0 0.0
    %3003 = vmatpush1.msra.mxu0 0.0
    %3004 = vmatprep.subr.mxu0 0.0
    %3005 = vmatpush1.msra.mxu0 0.0
    %3006 = vmatprep.subr.mxu0 0.0
    %3007 = vmatpush1.msra.mxu0 0.0
    %3008 = vmatprep.subr.mxu0 0.0
    %3009 = vmatpush1.msra.mxu0 0.0
    %3010 = vmatprep.subr.mxu0 0.0
    %3011 = vmatpush1.msra.mxu0 0.0
    %3012 = vmatprep.subr.mxu0 0.0
    %3013 = vmatpush1.msra.mxu0 0.0
    %3014 = vmatprep.subr.mxu0 0.0
    %3015 = vmatpush1.msra.mxu0 0.0
    %3016 = vmatprep.subr.mxu0 0.0
    %3017 = vmatpush1.msra.mxu0 0.0
    %3018 = vmatprep.subr.mxu0 0.0
    %3019 = vmatpush1.msra.mxu0 0.0
    %3020 = vmatprep.subr.mxu0 0.0
    %3021 = vmatpush1.msra.mxu0 0.0
    %3022 = vmatprep.subr.mxu0 0.0
    %3023 = vmatpush1.msra.mxu0 0.0
    %3024 = vmatprep.subr.mxu0 0.0
    %3025 = vmatpush1.msra.mxu0 0.0
    %3026 = vmatprep.subr.mxu0 0.0
    %3027 = vmatpush1.msra.mxu0 0.0
    %3028 = vmatprep.subr.mxu0 0.0
    %3029 = vmatpush1.msra.mxu0 0.0
    %3030 = vmatprep.subr.mxu0 0.0
    %3031 = vmatpush1.msra.mxu0 0.0
    %3032 = vmatprep.subr.mxu0 0.0
    %3033 = vmatpush1.msra.mxu0 0.0
    %3034 = vmatprep.subr.mxu0 0.0
    %3035 = vmatpush1.msra.mxu0 0.0
    %3036 = vmatprep.subr.mxu0 0.0
    %3037 = vmatpush1.msra.mxu0 0.0
    %3038 = vmatprep.subr.mxu0 0.0
    %3039 = vmatpush1.msra.mxu0 0.0
    %3040 = vmatprep.subr.mxu0 0.0
    %3041 = vmatpush1.msra.mxu0 0.0
    %3042 = vmatprep.subr.mxu0 0.0
    %3043 = vmatpush1.msra.mxu0 0.0
    %3044 = vmatprep.subr.mxu0 0.0
    %3045 = vmatpush1.msra.mxu0 0.0
    %3046 = vmatprep.subr.mxu0 0.0
    %3047 = vmatpush1.msra.mxu0 0.0
    %3048 = vmatprep.subr.mxu0 0.0
    %3049 = vmatpush1.msra.mxu0 0.0
    %3050 = vmatprep.subr.mxu0 0.0
    %3051 = vmatpush1.msra.mxu0 0.0
    %3052 = vmatprep.subr.mxu0 0.0
    %3053 = vmatpush1.msra.mxu0 0.0
    %3054 = vmatprep.subr.mxu0 0.0
    %3055 = vmatpush1.msra.mxu0 0.0
    %3056 = vmatprep.subr.mxu0 0.0
    %3057 = vmatpush1.msra.mxu0 0.0
    %3058 = vmatprep.subr.mxu0 0.0
    %3059 = vmatpush1.msra.mxu0 0.0
    %3060 = vmatprep.subr.mxu0 0.0
    %3061 = vmatpush1.msra.mxu0 0.0
    %3062 = vmatprep.mubr.f32.mxu0 0.0
    %3063 = vmatmul.mubr.f32.gmra.mrb[0].mxu0 %v2996
    %v3064 = vpop.f32.mrb[0].mxu0
    %v3065 = vadd.f32 0.0, %v3064
    %v3066 = vpop.f32.mrb[0].mxu0
    %3067 = vdwg.mxu0
    %3068 = vrot.lane.b32.xlu0 %v1839, 64
    %v3069 = vpop.permute.xlu0 %3068
    %v3072 = vsel %vm203, %v2535, 0
    %3074 = vmatprep.subr.mxu0 0.0
    %3075 = vmatpush1.msra.mxu0 %v3069
    %3076 = vmatprep.subr.mxu0 0.0
    %3077 = vmatpush1.msra.mxu0 0.0
    %3078 = vmatprep.subr.mxu0 0.0
    %3079 = vmatpush1.msra.mxu0 0.0
    %3080 = vmatprep.subr.mxu0 0.0
    %3081 = vmatpush1.msra.mxu0 0.0
    %3082 = vmatprep.subr.mxu0 0.0
    %3083 = vmatpush1.msra.mxu0 0.0
    %3084 = vmatprep.subr.mxu0 0.0
    %3085 = vmatpush1.msra.mxu0 0.0
    %3086 = vmatprep.subr.mxu0 0.0
    %3087 = vmatpush1.msra.mxu0 0.0
    %3088 = vmatprep.subr.mxu0 0.0
    %3089 = vmatpush1.msra.mxu0 0.0
    %3090 = vmatprep.subr.mxu0 0.0
    %3091 = vmatpush1.msra.mxu0 0.0
    %3092 = vmatprep.subr.mxu0 0.0
    %3093 = vmatpush1.msra.mxu0 0.0
    %3094 = vmatprep.subr.mxu0 0.0
    %3095 = vmatpush1.msra.mxu0 0.0
    %3096 = vmatprep.subr.mxu0 0.0
    %3097 = vmatpush1.msra.mxu0 0.0
    %3098 = vmatprep.subr.mxu0 0.0
    %3099 = vmatpush1.msra.mxu0 0.0
    %3100 = vmatprep.subr.mxu0 0.0
    %3101 = vmatpush1.msra.mxu0 0.0
    %3102 = vmatprep.subr.mxu0 0.0
    %3103 = vmatpush1.msra.mxu0 0.0
    %3104 = vmatprep.subr.mxu0 0.0
    %3105 = vmatpush1.msra.mxu0 0.0
    %3106 = vmatprep.subr.mxu0 0.0
    %3107 = vmatpush1.msra.mxu0 0.0
    %3108 = vmatprep.subr.mxu0 0.0
    %3109 = vmatpush1.msra.mxu0 0.0
    %3110 = vmatprep.subr.mxu0 0.0
    %3111 = vmatpush1.msra.mxu0 0.0
    %3112 = vmatprep.subr.mxu0 0.0
    %3113 = vmatpush1.msra.mxu0 0.0
    %3114 = vmatprep.subr.mxu0 0.0
    %3115 = vmatpush1.msra.mxu0 0.0
    %3116 = vmatprep.subr.mxu0 0.0
    %3117 = vmatpush1.msra.mxu0 0.0
    %3118 = vmatprep.subr.mxu0 0.0
    %3119 = vmatpush1.msra.mxu0 0.0
    %3120 = vmatprep.subr.mxu0 0.0
    %3121 = vmatpush1.msra.mxu0 0.0
    %3122 = vmatprep.subr.mxu0 0.0
    %3123 = vmatpush1.msra.mxu0 0.0
    %3124 = vmatprep.subr.mxu0 0.0
    %3125 = vmatpush1.msra.mxu0 0.0
    %3126 = vmatprep.subr.mxu0 0.0
    %3127 = vmatpush1.msra.mxu0 0.0
    %3128 = vmatprep.subr.mxu0 0.0
    %3129 = vmatpush1.msra.mxu0 0.0
    %3130 = vmatprep.subr.mxu0 0.0
    %3131 = vmatpush1.msra.mxu0 0.0
    %3132 = vmatprep.subr.mxu0 0.0
    %3133 = vmatpush1.msra.mxu0 0.0
    %3134 = vmatprep.subr.mxu0 0.0
    %3135 = vmatpush1.msra.mxu0 0.0
    %3136 = vmatprep.subr.mxu0 0.0
    %3137 = vmatpush1.msra.mxu0 0.0
    %3138 = vmatprep.mubr.f32.mxu0 0.0
    %3139 = vmatmul.mubr.f32.gmra.mrb[0].mxu0 %v3072
    %v3140 = vpop.f32.mrb[0].mxu0
    %v3141 = vadd.f32 0.0, %v3140
    %v3142 = vpop.f32.mrb[0].mxu0
    %3143 = vdwg.mxu0
    %3146 = vrot.lane.b32.xlu0 %v2761, 8
    %v3147 = vpop.permute.xlu0 %3146
    %3148 = vrot.lane.b32.xlu0 %v2837, 8
    %v3149 = vpop.permute.xlu0 %3148
    %3154 = vrot.lane.b32.xlu0 %v2913, 16
    %v3155 = vpop.permute.xlu0 %3154
    %3156 = vrot.lane.b32.xlu0 %v2989, 16
    %v3157 = vpop.permute.xlu0 %3156
    %3162 = vrot.lane.b32.xlu0 %v3065, 24
    %v3163 = vpop.permute.xlu0 %3162
    %3164 = vrot.lane.b32.xlu0 %v3141, 24
    %v3165 = vpop.permute.xlu0 %3164
    %v3168 = vsel %vm203, %v2609, %v3147
    %v3169 = vsel %vm203, %v2685, %v3149
    %v3170 = vsel %vm1532, %v3168, %v3155
    %v3171 = vsel %vm1532, %v3169, %v3157
    %v3172 = vsel %vm1535, %v3170, %v3163
    %v3173 = vsel %vm1535, %v3171, %v3165
    %3174 = vrot.lane.b32.xlu0 %v2530, 8
    %v3175 = vpop.permute.xlu0 %3174
    %3176 = vrot.lane.b32.xlu0 %v2531, 8
    %v3177 = vpop.permute.xlu0 %3176
    %3180 = vrot.lane.b32.xlu0 %v2532, 16
    %v3181 = vpop.permute.xlu0 %3180
    %3182 = vrot.lane.b32.xlu0 %v2533, 16
    %v3183 = vpop.permute.xlu0 %3182
    %3186 = vrot.lane.b32.xlu0 %v2534, 24
    %v3187 = vpop.permute.xlu0 %3186
    %3188 = vrot.lane.b32.xlu0 %v2535, 24
    %v3189 = vpop.permute.xlu0 %3188
    %v3192 = vsel %vm203, %v2528, %v3175
    %v3193 = vsel %vm203, %v2529, %v3177
    %v3194 = vsel %vm1532, %v3192, %v3181
    %v3195 = vsel %vm1532, %v3193, %v3183
    %v3196 = vsel %vm1535, %v3194, %v3187
    %v3197 = vsel %vm1535, %v3195, %v3189
    %v3198 = vld [vmem:[%s12] sm:$0xff]
    %v3199 = vld [vmem:[%s12 + $0x8] sm:$0xff]
    %v3200 = vld [vmem:[%s12 + $0x10] sm:$0xff]
    %v3201 = vld [vmem:[%s12 + $0x18] sm:$0xff]
    %v3202 = vld [vmem:[%s13] sm:$0x1]
    %v3204 = vlaneseq
    %v3205 = vshrl.u32 %v3204, 7
    %v3206 = vsub.s32 0, %v3205
    %v3207 = vrot.slane %v3202, %v3206
    %v3210 = vsel %vm105, %v3172, 0
    %v3213 = vsel %vm105, %v3173, 0
    %3215 = vmatprep.subr.mxu0 0.0
    %3216 = vmatpush1.msra.mxu0 %v3198
    %3217 = vmatprep.subr.mxu0 0.0
    %3218 = vmatpush1.msra.mxu0 %v3199
    %3219 = vmatprep.subr.mxu0 0.0
    %3220 = vmatpush1.msra.mxu0 %v3200
    %3221 = vmatprep.subr.mxu0 0.0
    %3222 = vmatpush1.msra.mxu0 %v3201
    %3223 = vmatprep.subr.mxu0 0.0
    %3224 = vmatpush1.msra.mxu0 0.0
    %3225 = vmatprep.subr.mxu0 0.0
    %3226 = vmatpush1.msra.mxu0 0.0
    %3227 = vmatprep.subr.mxu0 0.0
    %3228 = vmatpush1.msra.mxu0 0.0
    %3229 = vmatprep.subr.mxu0 0.0
    %3230 = vmatpush1.msra.mxu0 0.0
    %3231 = vmatprep.subr.mxu0 0.0
    %3232 = vmatpush1.msra.mxu0 0.0
    %3233 = vmatprep.subr.mxu0 0.0
    %3234 = vmatpush1.msra.mxu0 0.0
    %3235 = vmatprep.subr.mxu0 0.0
    %3236 = vmatpush1.msra.mxu0 0.0
    %3237 = vmatprep.subr.mxu0 0.0
    %3238 = vmatpush1.msra.mxu0 0.0
    %3239 = vmatprep.subr.mxu0 0.0
    %3240 = vmatpush1.msra.mxu0 0.0
    %3241 = vmatprep.subr.mxu0 0.0
    %3242 = vmatpush1.msra.mxu0 0.0
    %3243 = vmatprep.subr.mxu0 0.0
    %3244 = vmatpush1.msra.mxu0 0.0
    %3245 = vmatprep.subr.mxu0 0.0
    %3246 = vmatpush1.msra.mxu0 0.0
    %3247 = vmatprep.subr.mxu0 0.0
    %3248 = vmatpush1.msra.mxu0 0.0
    %3249 = vmatprep.subr.mxu0 0.0
    %3250 = vmatpush1.msra.mxu0 0.0
    %3251 = vmatprep.subr.mxu0 0.0
    %3252 = vmatpush1.msra.mxu0 0.0
    %3253 = vmatprep.subr.mxu0 0.0
    %3254 = vmatpush1.msra.mxu0 0.0
    %3255 = vmatprep.subr.mxu0 0.0
    %3256 = vmatpush1.msra.mxu0 0.0
    %3257 = vmatprep.subr.mxu0 0.0
    %3258 = vmatpush1.msra.mxu0 0.0
    %3259 = vmatprep.subr.mxu0 0.0
    %3260 = vmatpush1.msra.mxu0 0.0
    %3261 = vmatprep.subr.mxu0 0.0
    %3262 = vmatpush1.msra.mxu0 0.0
    %3263 = vmatprep.subr.mxu0 0.0
    %3264 = vmatpush1.msra.mxu0 0.0
    %3265 = vmatprep.subr.mxu0 0.0
    %3266 = vmatpush1.msra.mxu0 0.0
    %3267 = vmatprep.subr.mxu0 0.0
    %3268 = vmatpush1.msra.mxu0 0.0
    %3269 = vmatprep.subr.mxu0 0.0
    %3270 = vmatpush1.msra.mxu0 0.0
    %3271 = vmatprep.subr.mxu0 0.0
    %3272 = vmatpush1.msra.mxu0 0.0
    %3273 = vmatprep.subr.mxu0 0.0
    %3274 = vmatpush1.msra.mxu0 0.0
    %3275 = vmatprep.subr.mxu0 0.0
    %3276 = vmatpush1.msra.mxu0 0.0
    %3277 = vmatprep.subr.mxu0 0.0
    %3278 = vmatpush1.msra.mxu0 0.0
    %3279 = vmatprep.mubr.f32.mxu0 0.0
    %3280 = vmatmul.mubr.f32.gmra.mrb[0].mxu0 %v3210
    %v3281 = vpop.f32.mrb[0].mxu0
    %v3282 = vadd.f32 %v3207, %v3281
    %v3283 = vpop.f32.mrb[0].mxu0
    %3284 = vmatprep.mubr.f32.mxu0 0.0
    %3285 = vmatmul.mubr.f32.gmra.mrb[0].mxu0 %v3213
    %v3286 = vpop.f32.mrb[0].mxu0
    %v3287 = vadd.f32 %v3207, %v3286
    %v3288 = vpop.f32.mrb[0].mxu0
    %3289 = vdwg.mxu0
    %v3290 = vadd.f32 %v3282, %v1702
    %v3291 = vadd.f32 %v3287, %v1703
    %v3292 = vld [vmem:[%s14] sm:$0x1]
    %v3293 = vld [vmem:[%s15] sm:$0x1]
    %v3294 = vsel %vm105, %v3290, 0.0
    %3295 = vadd.xlane.f32.xlu0 %v3294
    %v3296 = vpop.xlane.xlu0 %3295
    %v3297 = vsel %vm105, %v3291, 0.0
    %3298 = vadd.xlane.f32.xlu0 %v3297
    %v3299 = vpop.xlane.xlu0 %3298
    %v3300 = vmul.f32 %v3296, 0.03125
    %v3301 = vmul.f32 %v3299, 0.03125
    %v3302 = vmul.f32 %v3290, %v3290
    %v3303 = vmul.f32 %v3291, %v3291
    %v3304 = vsel %vm105, %v3302, 0.0
    %3305 = vadd.xlane.f32.xlu0 %v3304
    %v3306 = vpop.xlane.xlu0 %3305
    %v3307 = vsel %vm105, %v3303, 0.0
    %3308 = vadd.xlane.f32.xlu0 %v3307
    %v3309 = vpop.xlane.xlu0 %3308
    %v3310 = vmul.f32 %v3306, 0.03125
    %v3311 = vmul.f32 %v3309, 0.03125
    %v3312 = vmul.f32 %v3300, %v3300
    %v3313 = vmul.f32 %v3301, %v3301
    %v3314 = vsub.f32 %v3310, %v3312
    %v3315 = vsub.f32 %v3311, %v3313
    %v3316 = vsub.f32 %v3290, %v3300
    %v3317 = vsub.f32 %v3291, %v3301
    %v3318 = vadd.f32 %v3314, 1e-05
    %v3319 = vadd.f32 %v3315, 1e-05
    %v3320 = vrsqrt.pop %v3318
    %v3321 = vrsqrt.pop %v3319
    %v3322 = vmul.f32 %v3316, %v3320
    %v3323 = vmul.f32 %v3317, %v3321
    %v3325 = vlaneseq
    %v3326 = vshrl.u32 %v3325, 7
    %v3327 = vsub.s32 0, %v3326
    %v3328 = vrot.slane %v3292, %v3327
    %v3330 = vmul.f32 %v3322, %v3328
    %v3331 = vmul.f32 %v3323, %v3328
    %v3333 = vlaneseq
    %v3334 = vshrl.u32 %v3333, 7
    %v3335 = vsub.s32 0, %v3334
    %v3336 = vrot.slane %v3293, %v3335
    %v3338 = vadd.f32 %v3330, %v3336
    %v3339 = vadd.f32 %v3331, %v3336
    %v3340 = vld [vmem:[%s16] sm:$0xff]
    %v3341 = vld [vmem:[%s16 + $0x8] sm:$0xff]
    %v3342 = vld [vmem:[%s16 + $0x10] sm:$0xff]
    %v3343 = vld [vmem:[%s16 + $0x18] sm:$0xff]
    %v3344 = vld [vmem:[%s17] sm:$0x1]
    %v3346 = vlaneseq
    %v3347 = vshrl.u32 %v3346, 7
    %v3348 = vsub.s32 0, %v3347
    %v3349 = vrot.slane %v3344, %v3348
    %v3352 = vsel %vm105, %v3338, 0
    %v3355 = vsel %vm105, %v3339, 0
    %3357 = vmatprep.subr.mxu0 0.0
    %3358 = vmatpush1.msra.mxu0 %v3340
    %3359 = vmatprep.subr.mxu0 0.0
    %3360 = vmatpush1.msra.mxu0 %v3341
    %3361 = vmatprep.subr.mxu0 0.0
    %3362 = vmatpush1.msra.mxu0 %v3342
    %3363 = vmatprep.subr.mxu0 0.0
    %3364 = vmatpush1.msra.mxu0 %v3343
    %3365 = vmatprep.subr.mxu0 0.0
    %3366 = vmatpush1.msra.mxu0 0.0
    %3367 = vmatprep.subr.mxu0 0.0
    %3368 = vmatpush1.msra.mxu0 0.0
    %3369 = vmatprep.subr.mxu0 0.0
    %3370 = vmatpush1.msra.mxu0 0.0
    %3371 = vmatprep.subr.mxu0 0.0
    %3372 = vmatpush1.msra.mxu0 0.0
    %3373 = vmatprep.subr.mxu0 0.0
    %3374 = vmatpush1.msra.mxu0 0.0
    %3375 = vmatprep.subr.mxu0 0.0
    %3376 = vmatpush1.msra.mxu0 0.0
    %3377 = vmatprep.subr.mxu0 0.0
    %3378 = vmatpush1.msra.mxu0 0.0
    %3379 = vmatprep.subr.mxu0 0.0
    %3380 = vmatpush1.msra.mxu0 0.0
    %3381 = vmatprep.subr.mxu0 0.0
    %3382 = vmatpush1.msra.mxu0 0.0
    %3383 = vmatprep.subr.mxu0 0.0
    %3384 = vmatpush1.msra.mxu0 0.0
    %3385 = vmatprep.subr.mxu0 0.0
    %3386 = vmatpush1.msra.mxu0 0.0
    %3387 = vmatprep.subr.mxu0 0.0
    %3388 = vmatpush1.msra.mxu0 0.0
    %3389 = vmatprep.subr.mxu0 0.0
    %3390 = vmatpush1.msra.mxu0 0.0
    %3391 = vmatprep.subr.mxu0 0.0
    %3392 = vmatpush1.msra.mxu0 0.0
    %3393 = vmatprep.subr.mxu0 0.0
    %3394 = vmatpush1.msra.mxu0 0.0
    %3395 = vmatprep.subr.mxu0 0.0
    %3396 = vmatpush1.msra.mxu0 0.0
    %3397 = vmatprep.subr.mxu0 0.0
    %3398 = vmatpush1.msra.mxu0 0.0
    %3399 = vmatprep.subr.mxu0 0.0
    %3400 = vmatpush1.msra.mxu0 0.0
    %3401 = vmatprep.subr.mxu0 0.0
    %3402 = vmatpush1.msra.mxu0 0.0
    %3403 = vmatprep.subr.mxu0 0.0
    %3404 = vmatpush1.msra.mxu0 0.0
    %3405 = vmatprep.subr.mxu0 0.0
    %3406 = vmatpush1.msra.mxu0 0.0
    %3407 = vmatprep.subr.mxu0 0.0
    %3408 = vmatpush1.msra.mxu0 0.0
    %3409 = vmatprep.subr.mxu0 0.0
    %3410 = vmatpush1.msra.mxu0 0.0
    %3411 = vmatprep.subr.mxu0 0.0
    %3412 = vmatpush1.msra.mxu0 0.0
    %3413 = vmatprep.subr.mxu0 0.0
    %3414 = vmatpush1.msra.mxu0 0.0
    %3415 = vmatprep.subr.mxu0 0.0
    %3416 = vmatpush1.msra.mxu0 0.0
    %3417 = vmatprep.subr.mxu0 0.0
    %3418 = vmatpush1.msra.mxu0 0.0
    %3419 = vmatprep.subr.mxu0 0.0
    %3420 = vmatpush1.msra.mxu0 0.0
    %3421 = vmatprep.mubr.f32.mxu0 0.0
    %3422 = vmatmul.mubr.f32.gmra.mrb[0].mxu0 %v3352
    %v3423 = vpop.f32.mrb[0].mxu0
    %v3424 = vadd.f32 %v3349, %v3423
    %v3425 = vpop.f32.mrb[0].mxu0
    %3426 = vmatprep.mubr.f32.mxu0 0.0
    %3427 = vmatmul.mubr.f32.gmra.mrb[0].mxu0 %v3355
    %v3428 = vpop.f32.mrb[0].mxu0
    %v3429 = vadd.f32 %v3349, %v3428
    %v3430 = vpop.f32.mrb[0].mxu0
    %3431 = vdwg.mxu0
    %v3432 = vmax.f32 %v3424, 0.0
    %v3433 = vmax.f32 %v3429, 0.0
    %v3434 = vld [vmem:[%s18] sm:$0xff]
    %v3435 = vld [vmem:[%s18 + $0x8] sm:$0xff]
    %v3436 = vld [vmem:[%s18 + $0x10] sm:$0xff]
    %v3437 = vld [vmem:[%s18 + $0x18] sm:$0xff]
    %v3438 = vld [vmem:[%s18 + $0x20] sm:$0xff]
    %v3439 = vld [vmem:[%s18 + $0x28] sm:$0xff]
    %v3440 = vld [vmem:[%s18 + $0x30] sm:$0xff]
    %v3441 = vld [vmem:[%s18 + $0x38] sm:$0xff]
    %v3442 = vld [vmem:[%s19] sm:$0x1]
    %v3444 = vlaneseq
    %v3445 = vshrl.u32 %v3444, 7
    %v3446 = vsub.s32 0, %v3445
    %v3447 = vrot.slane %v3442, %v3446
    %vm3449 = vcmask 523264
    %v3451 = vsel %vm3449, %v3432, 0
    %v3454 = vsel %vm3449, %v3433, 0
    %3456 = vmatprep.subr.mxu0 0.0
    %3457 = vmatpush1.msra.mxu0 %v3434
    %3458 = vmatprep.subr.mxu0 0.0
    %3459 = vmatpush1.msra.mxu0 %v3435
    %3460 = vmatprep.subr.mxu0 0.0
    %3461 = vmatpush1.msra.mxu0 %v3436
    %3462 = vmatprep.subr.mxu0 0.0
    %3463 = vmatpush1.msra.mxu0 %v3437
    %3464 = vmatprep.subr.mxu0 0.0
    %3465 = vmatpush1.msra.mxu0 %v3438
    %3466 = vmatprep.subr.mxu0 0.0
    %3467 = vmatpush1.msra.mxu0 %v3439
    %3468 = vmatprep.subr.mxu0 0.0
    %3469 = vmatpush1.msra.mxu0 %v3440
    %3470 = vmatprep.subr.mxu0 0.0
    %3471 = vmatpush1.msra.mxu0 %v3441
    %3472 = vmatprep.subr.mxu0 0.0
    %3473 = vmatpush1.msra.mxu0 0.0
    %3474 = vmatprep.subr.mxu0 0.0
    %3475 = vmatpush1.msra.mxu0 0.0
    %3476 = vmatprep.subr.mxu0 0.0
    %3477 = vmatpush1.msra.mxu0 0.0
    %3478 = vmatprep.subr.mxu0 0.0
    %3479 = vmatpush1.msra.mxu0 0.0
    %3480 = vmatprep.subr.mxu0 0.0
    %3481 = vmatpush1.msra.mxu0 0.0
    %3482 = vmatprep.subr.mxu0 0.0
    %3483 = vmatpush1.msra.mxu0 0.0
    %3484 = vmatprep.subr.mxu0 0.0
    %3485 = vmatpush1.msra.mxu0 0.0
    %3486 = vmatprep.subr.mxu0 0.0
    %3487 = vmatpush1.msra.mxu0 0.0
    %3488 = vmatprep.subr.mxu0 0.0
    %3489 = vmatpush1.msra.mxu0 0.0
    %3490 = vmatprep.subr.mxu0 0.0
    %3491 = vmatpush1.msra.mxu0 0.0
    %3492 = vmatprep.subr.mxu0 0.0
    %3493 = vmatpush1.msra.mxu0 0.0
    %3494 = vmatprep.subr.mxu0 0.0
    %3495 = vmatpush1.msra.mxu0 0.0
    %3496 = vmatprep.subr.mxu0 0.0
    %3497 = vmatpush1.msra.mxu0 0.0
    %3498 = vmatprep.subr.mxu0 0.0
    %3499 = vmatpush1.msra.mxu0 0.0
    %3500 = vmatprep.subr.mxu0 0.0
    %3501 = vmatpush1.msra.mxu0 0.0
    %3502 = vmatprep.subr.mxu0 0.0
    %3503 = vmatpush1.msra.mxu0 0.0
    %3504 = vmatprep.subr.mxu0 0.0
    %3505 = vmatpush1.msra.mxu0 0.0
    %3506 = vmatprep.subr.mxu0 0.0
    %3507 = vmatpush1.msra.mxu0 0.0
    %3508 = vmatprep.subr.mxu0 0.0
    %3509 = vmatpush1.msra.mxu0 0.0
    %3510 = vmatprep.subr.mxu0 0.0
    %3511 = vmatpush1.msra.mxu0 0.0
    %3512 = vmatprep.subr.mxu0 0.0
    %3513 = vmatpush1.msra.mxu0 0.0
    %3514 = vmatprep.subr.mxu0 0.0
    %3515 = vmatpush1.msra.mxu0 0.0
    %3516 = vmatprep.subr.mxu0 0.0
    %3517 = vmatpush1.msra.mxu0 0.0
    %3518 = vmatprep.subr.mxu0 0.0
    %3519 = vmatpush1.msra.mxu0 0.0
    %3520 = vmatprep.mubr.f32.mxu0 0.0
    %3521 = vmatmul.mubr.f32.gmra.mrb[0].mxu0 %v3451
    %v3522 = vpop.f32.mrb[0].mxu0
    %v3523 = vadd.f32 %v3447, %v3522
    %v3524 = vpop.f32.mrb[0].mxu0
    %3525 = vmatprep.mubr.f32.mxu0 0.0
    %3526 = vmatmul.mubr.f32.gmra.mrb[0].mxu0 %v3454
    %v3527 = vpop.f32.mrb[0].mxu0
    %v3528 = vadd.f32 %v3447, %v3527
    %v3529 = vpop.f32.mrb[0].mxu0
    %3530 = vdwg.mxu0
    %v3531 = vadd.f32 %v3523, %v3338
    %v3532 = vadd.f32 %v3528, %v3339
    %v3533 = vld [vmem:[%s20] sm:$0x1]
    %v3534 = vld [vmem:[%s21] sm:$0x1]
    %v3535 = vsel %vm105, %v3531, 0.0
    %3536 = vadd.xlane.f32.xlu0 %v3535
    %v3537 = vpop.xlane.xlu0 %3536
    %v3538 = vsel %vm105, %v3532, 0.0
    %3539 = vadd.xlane.f32.xlu0 %v3538
    %v3540 = vpop.xlane.xlu0 %3539
    %v3541 = vmul.f32 %v3537, 0.03125
    %v3542 = vmul.f32 %v3540, 0.03125
    %v3543 = vmul.f32 %v3531, %v3531
    %v3544 = vmul.f32 %v3532, %v3532
    %v3545 = vsel %vm105, %v3543, 0.0
    %3546 = vadd.xlane.f32.xlu0 %v3545
    %v3547 = vpop.xlane.xlu0 %3546
    %v3548 = vsel %vm105, %v3544, 0.0
    %3549 = vadd.xlane.f32.xlu0 %v3548
    %v3550 = vpop.xlane.xlu0 %3549
    %v3551 = vmul.f32 %v3547, 0.03125
    %v3552 = vmul.f32 %v3550, 0.03125
    %v3553 = vmul.f32 %v3541, %v3541
    %v3554 = vmul.f32 %v3542, %v3542
    %v3555 = vsub.f32 %v3551, %v3553
    %v3556 = vsub.f32 %v3552, %v3554
    %v3557 = vsub.f32 %v3531, %v3541
    %v3558 = vsub.f32 %v3532, %v3542
    %v3559 = vadd.f32 %v3555, 1e-05
    %v3560 = vadd.f32 %v3556, 1e-05
    %v3561 = vrsqrt.pop %v3559
    %v3562 = vrsqrt.pop %v3560
    %v3563 = vmul.f32 %v3557, %v3561
    %v3564 = vmul.f32 %v3558, %v3562
    %v3566 = vlaneseq
    %v3567 = vshrl.u32 %v3566, 7
    %v3568 = vsub.s32 0, %v3567
    %v3569 = vrot.slane %v3533, %v3568
    %v3571 = vmul.f32 %v3563, %v3569
    %v3572 = vmul.f32 %v3564, %v3569
    %v3574 = vlaneseq
    %v3575 = vshrl.u32 %v3574, 7
    %v3576 = vsub.s32 0, %v3575
    %v3577 = vrot.slane %v3534, %v3576
    %v3579 = vadd.f32 %v3571, %v3577
    %v3580 = vadd.f32 %v3572, %v3577
    %s3581 = scalar_lea.vmem %s4, 32
    %v3582 = vld [vmem:[%s3581] sm:$0xff]
    %v3583 = vld [vmem:[%s3581 + $0x8] sm:$0xff]
    %v3584 = vld [vmem:[%s3581 + $0x10] sm:$0xff]
    %v3585 = vld [vmem:[%s3581 + $0x18] sm:$0xff]
    %s3586 = scalar_lea.vmem %s5, 1
    %v3587 = vld [vmem:[%s3586] sm:$0x1]
    %v3589 = vlaneseq
    %v3590 = vshrl.u32 %v3589, 7
    %v3591 = vsub.s32 0, %v3590
    %v3592 = vrot.slane %v3587, %v3591
    %v3595 = vsel %vm105, %v3579, 0
    %v3598 = vsel %vm105, %v3580, 0
    %3600 = vmatprep.subr.mxu0 0.0
    %3601 = vmatpush1.msra.mxu0 %v3582
    %3602 = vmatprep.subr.mxu0 0.0
    %3603 = vmatpush1.msra.mxu0 %v3583
    %3604 = vmatprep.subr.mxu0 0.0
    %3605 = vmatpush1.msra.mxu0 %v3584
    %3606 = vmatprep.subr.mxu0 0.0
    %3607 = vmatpush1.msra.mxu0 %v3585
    %3608 = vmatprep.subr.mxu0 0.0
    %3609 = vmatpush1.msra.mxu0 0.0
    %3610 = vmatprep.subr.mxu0 0.0
    %3611 = vmatpush1.msra.mxu0 0.0
    %3612 = vmatprep.subr.mxu0 0.0
    %3613 = vmatpush1.msra.mxu0 0.0
    %3614 = vmatprep.subr.mxu0 0.0
    %3615 = vmatpush1.msra.mxu0 0.0
    %3616 = vmatprep.subr.mxu0 0.0
    %3617 = vmatpush1.msra.mxu0 0.0
    %3618 = vmatprep.subr.mxu0 0.0
    %3619 = vmatpush1.msra.mxu0 0.0
    %3620 = vmatprep.subr.mxu0 0.0
    %3621 = vmatpush1.msra.mxu0 0.0
    %3622 = vmatprep.subr.mxu0 0.0
    %3623 = vmatpush1.msra.mxu0 0.0
    %3624 = vmatprep.subr.mxu0 0.0
    %3625 = vmatpush1.msra.mxu0 0.0
    %3626 = vmatprep.subr.mxu0 0.0
    %3627 = vmatpush1.msra.mxu0 0.0
    %3628 = vmatprep.subr.mxu0 0.0
    %3629 = vmatpush1.msra.mxu0 0.0
    %3630 = vmatprep.subr.mxu0 0.0
    %3631 = vmatpush1.msra.mxu0 0.0
    %3632 = vmatprep.subr.mxu0 0.0
    %3633 = vmatpush1.msra.mxu0 0.0
    %3634 = vmatprep.subr.mxu0 0.0
    %3635 = vmatpush1.msra.mxu0 0.0
    %3636 = vmatprep.subr.mxu0 0.0
    %3637 = vmatpush1.msra.mxu0 0.0
    %3638 = vmatprep.subr.mxu0 0.0
    %3639 = vmatpush1.msra.mxu0 0.0
    %3640 = vmatprep.subr.mxu0 0.0
    %3641 = vmatpush1.msra.mxu0 0.0
    %3642 = vmatprep.subr.mxu0 0.0
    %3643 = vmatpush1.msra.mxu0 0.0
    %3644 = vmatprep.subr.mxu0 0.0
    %3645 = vmatpush1.msra.mxu0 0.0
    %3646 = vmatprep.subr.mxu0 0.0
    %3647 = vmatpush1.msra.mxu0 0.0
    %3648 = vmatprep.subr.mxu0 0.0
    %3649 = vmatpush1.msra.mxu0 0.0
    %3650 = vmatprep.subr.mxu0 0.0
    %3651 = vmatpush1.msra.mxu0 0.0
    %3652 = vmatprep.subr.mxu0 0.0
    %3653 = vmatpush1.msra.mxu0 0.0
    %3654 = vmatprep.subr.mxu0 0.0
    %3655 = vmatpush1.msra.mxu0 0.0
    %3656 = vmatprep.subr.mxu0 0.0
    %3657 = vmatpush1.msra.mxu0 0.0
    %3658 = vmatprep.subr.mxu0 0.0
    %3659 = vmatpush1.msra.mxu0 0.0
    %3660 = vmatprep.subr.mxu0 0.0
    %3661 = vmatpush1.msra.mxu0 0.0
    %3662 = vmatprep.subr.mxu0 0.0
    %3663 = vmatpush1.msra.mxu0 0.0
    %3664 = vmatprep.mubr.f32.mxu0 0.0
    %3665 = vmatmul.mubr.f32.gmra.mrb[0].mxu0 %v3595
    %v3666 = vpop.f32.mrb[0].mxu0
    %v3667 = vadd.f32 %v3592, %v3666
    %v3668 = vpop.f32.mrb[0].mxu0
    %3669 = vmatprep.mubr.f32.mxu0 0.0
    %3670 = vmatmul.mubr.f32.gmra.mrb[0].mxu0 %v3598
    %v3671 = vpop.f32.mrb[0].mxu0
    %v3672 = vadd.f32 %v3592, %v3671
    %v3673 = vpop.f32.mrb[0].mxu0
    %3674 = vdwg.mxu0
    %3677 = vrot.lane.b32.xlu0 %v3667, 120
    %v3678 = vpop.permute.xlu0 %3677
    %3679 = vrot.lane.b32.xlu0 %v3672, 120
    %v3680 = vpop.permute.xlu0 %3679
    %3681 = vrot.lane.b32.xlu0 %v3667, 112
    %v3682 = vpop.permute.xlu0 %3681
    %3683 = vrot.lane.b32.xlu0 %v3672, 112
    %v3684 = vpop.permute.xlu0 %3683
    %3685 = vrot.lane.b32.xlu0 %v3667, 104
    %v3686 = vpop.permute.xlu0 %3685
    %3687 = vrot.lane.b32.xlu0 %v3672, 104
    %v3688 = vpop.permute.xlu0 %3687
    %3689 = vrot.lane.b32.xlu0 %v3667, 96
    %v3690 = vpop.permute.xlu0 %3689
    %v3691 = vsel %vm203, %v3667, 0
    %v3693 = vsel %vm203, %v3690, 0
    %3695 = vmatprep.subr.mxu0 0.0
    %3696 = vmatpush1.xpose.msra.mxu0 %v3693
    %3697 = vmatprep.subr.mxu0 0.0
    %3698 = vmatpush1.xpose.msra.mxu0 0.0
    %3699 = vmatprep.subr.mxu0 0.0
    %3700 = vmatpush1.xpose.msra.mxu0 0.0
    %3701 = vmatprep.subr.mxu0 0.0
    %3702 = vmatpush1.xpose.msra.mxu0 0.0
    %3703 = vmatprep.subr.mxu0 0.0
    %3704 = vmatpush1.xpose.msra.mxu0 0.0
    %3705 = vmatprep.subr.mxu0 0.0
    %3706 = vmatpush1.xpose.msra.mxu0 0.0
    %3707 = vmatprep.subr.mxu0 0.0
    %3708 = vmatpush1.xpose.msra.mxu0 0.0
    %3709 = vmatprep.subr.mxu0 0.0
    %3710 = vmatpush1.xpose.msra.mxu0 0.0
    %3711 = vmatprep.subr.mxu0 0.0
    %3712 = vmatpush1.xpose.msra.mxu0 0.0
    %3713 = vmatprep.subr.mxu0 0.0
    %3714 = vmatpush1.xpose.msra.mxu0 0.0
    %3715 = vmatprep.subr.mxu0 0.0
    %3716 = vmatpush1.xpose.msra.mxu0 0.0
    %3717 = vmatprep.subr.mxu0 0.0
    %3718 = vmatpush1.xpose.msra.mxu0 0.0
    %3719 = vmatprep.subr.mxu0 0.0
    %3720 = vmatpush1.xpose.msra.mxu0 0.0
    %3721 = vmatprep.subr.mxu0 0.0
    %3722 = vmatpush1.xpose.msra.mxu0 0.0
    %3723 = vmatprep.subr.mxu0 0.0
    %3724 = vmatpush1.xpose.msra.mxu0 0.0
    %3725 = vmatprep.subr.mxu0 0.0
    %3726 = vmatpush1.xpose.msra.mxu0 0.0
    %3727 = vmatprep.subr.mxu0 0.0
    %3728 = vmatpush1.xpose.msra.mxu0 0.0
    %3729 = vmatprep.subr.mxu0 0.0
    %3730 = vmatpush1.xpose.msra.mxu0 0.0
    %3731 = vmatprep.subr.mxu0 0.0
    %3732 = vmatpush1.xpose.msra.mxu0 0.0
    %3733 = vmatprep.subr.mxu0 0.0
    %3734 = vmatpush1.xpose.msra.mxu0 0.0
    %3735 = vmatprep.subr.mxu0 0.0
    %3736 = vmatpush1.xpose.msra.mxu0 0.0
    %3737 = vmatprep.subr.mxu0 0.0
    %3738 = vmatpush1.xpose.msra.mxu0 0.0
    %3739 = vmatprep.subr.mxu0 0.0
    %3740 = vmatpush1.xpose.msra.mxu0 0.0
    %3741 = vmatprep.subr.mxu0 0.0
    %3742 = vmatpush1.xpose.msra.mxu0 0.0
    %3743 = vmatprep.subr.mxu0 0.0
    %3744 = vmatpush1.xpose.msra.mxu0 0.0
    %3745 = vmatprep.subr.mxu0 0.0
    %3746 = vmatpush1.xpose.msra.mxu0 0.0
    %3747 = vmatprep.subr.mxu0 0.0
    %3748 = vmatpush1.xpose.msra.mxu0 0.0
    %3749 = vmatprep.subr.mxu0 0.0
    %3750 = vmatpush1.xpose.msra.mxu0 0.0
    %3751 = vmatprep.subr.mxu0 0.0
    %3752 = vmatpush1.xpose.msra.mxu0 0.0
    %3753 = vmatprep.subr.mxu0 0.0
    %3754 = vmatpush1.xpose.msra.mxu0 0.0
    %3755 = vmatprep.subr.mxu0 0.0
    %3756 = vmatpush1.xpose.msra.mxu0 0.0
    %3757 = vmatprep.subr.mxu0 0.0
    %3758 = vmatpush1.xpose.msra.mxu0 0.0
    %3759 = vmatprep.mubr.f32.mxu0 0.0
    %3760 = vmatmul.mubr.f32.gmra.mrb[0].mxu0 %v3691
    %v3761 = vpop.f32.mrb[0].mxu0
    %v3762 = vadd.f32 %v78, %v3761
    %v3763 = vpop.f32.mrb[0].mxu0
    %3764 = vdwg.mxu0
    %3765 = vrot.lane.b32.xlu0 %v3672, 96
    %v3766 = vpop.permute.xlu0 %3765
    %v3767 = vsel %vm203, %v3672, 0
    %v3769 = vsel %vm203, %v3766, 0
    %3771 = vmatprep.subr.mxu0 0.0
    %3772 = vmatpush1.xpose.msra.mxu0 %v3769
    %3773 = vmatprep.subr.mxu0 0.0
    %3774 = vmatpush1.xpose.msra.mxu0 0.0
    %3775 = vmatprep.subr.mxu0 0.0
    %3776 = vmatpush1.xpose.msra.mxu0 0.0
    %3777 = vmatprep.subr.mxu0 0.0
    %3778 = vmatpush1.xpose.msra.mxu0 0.0
    %3779 = vmatprep.subr.mxu0 0.0
    %3780 = vmatpush1.xpose.msra.mxu0 0.0
    %3781 = vmatprep.subr.mxu0 0.0
    %3782 = vmatpush1.xpose.msra.mxu0 0.0
    %3783 = vmatprep.subr.mxu0 0.0
    %3784 = vmatpush1.xpose.msra.mxu0 0.0
    %3785 = vmatprep.subr.mxu0 0.0
    %3786 = vmatpush1.xpose.msra.mxu0 0.0
    %3787 = vmatprep.subr.mxu0 0.0
    %3788 = vmatpush1.xpose.msra.mxu0 0.0
    %3789 = vmatprep.subr.mxu0 0.0
    %3790 = vmatpush1.xpose.msra.mxu0 0.0
    %3791 = vmatprep.subr.mxu0 0.0
    %3792 = vmatpush1.xpose.msra.mxu0 0.0
    %3793 = vmatprep.subr.mxu0 0.0
    %3794 = vmatpush1.xpose.msra.mxu0 0.0
    %3795 = vmatprep.subr.mxu0 0.0
    %3796 = vmatpush1.xpose.msra.mxu0 0.0
    %3797 = vmatprep.subr.mxu0 0.0
    %3798 = vmatpush1.xpose.msra.mxu0 0.0
    %3799 = vmatprep.subr.mxu0 0.0
    %3800 = vmatpush1.xpose.msra.mxu0 0.0
    %3801 = vmatprep.subr.mxu0 0.0
    %3802 = vmatpush1.xpose.msra.mxu0 0.0
    %3803 = vmatprep.subr.mxu0 0.0
    %3804 = vmatpush1.xpose.msra.mxu0 0.0
    %3805 = vmatprep.subr.mxu0 0.0
    %3806 = vmatpush1.xpose.msra.mxu0 0.0
    %3807 = vmatprep.subr.mxu0 0.0
    %3808 = vmatpush1.xpose.msra.mxu0 0.0
    %3809 = vmatprep.subr.mxu0 0.0
    %3810 = vmatpush1.xpose.msra.mxu0 0.0
    %3811 = vmatprep.subr.mxu0 0.0
    %3812 = vmatpush1.xpose.msra.mxu0 0.0
    %3813 = vmatprep.subr.mxu0 0.0
    %3814 = vmatpush1.xpose.msra.mxu0 0.0
    %3815 = vmatprep.subr.mxu0 0.0
    %3816 = vmatpush1.xpose.msra.mxu0 0.0
    %3817 = vmatprep.subr.mxu0 0.0
    %3818 = vmatpush1.xpose.msra.mxu0 0.0
    %3819 = vmatprep.subr.mxu0 0.0
    %3820 = vmatpush1.xpose.msra.mxu0 0.0
    %3821 = vmatprep.subr.mxu0 0.0
    %3822 = vmatpush1.xpose.msra.mxu0 0.0
    %3823 = vmatprep.subr.mxu0 0.0
    %3824 = vmatpush1.xpose.msra.mxu0 0.0
    %3825 = vmatprep.subr.mxu0 0.0
    %3826 = vmatpush1.xpose.msra.mxu0 0.0
    %3827 = vmatprep.subr.mxu0 0.0
    %3828 = vmatpush1.xpose.msra.mxu0 0.0
    %3829 = vmatprep.subr.mxu0 0.0
    %3830 = vmatpush1.xpose.msra.mxu0 0.0
    %3831 = vmatprep.subr.mxu0 0.0
    %3832 = vmatpush1.xpose.msra.mxu0 0.0
    %3833 = vmatprep.subr.mxu0 0.0
    %3834 = vmatpush1.xpose.msra.mxu0 0.0
    %3835 = vmatprep.mubr.f32.mxu0 0.0
    %3836 = vmatmul.mubr.f32.gmra.mrb[0].mxu0 %v3767
    %v3837 = vpop.f32.mrb[0].mxu0
    %v3838 = vadd.f32 %v79, %v3837
    %v3839 = vpop.f32.mrb[0].mxu0
    %3840 = vdwg.mxu0
    %3841 = vrot.lane.b32.xlu0 %v3678, 96
    %v3842 = vpop.permute.xlu0 %3841
    %v3843 = vsel %vm203, %v3678, 0
    %v3845 = vsel %vm203, %v3842, 0
    %3847 = vmatprep.subr.mxu0 0.0
    %3848 = vmatpush1.xpose.msra.mxu0 %v3845
    %3849 = vmatprep.subr.mxu0 0.0
    %3850 = vmatpush1.xpose.msra.mxu0 0.0
    %3851 = vmatprep.subr.mxu0 0.0
    %3852 = vmatpush1.xpose.msra.mxu0 0.0
    %3853 = vmatprep.subr.mxu0 0.0
    %3854 = vmatpush1.xpose.msra.mxu0 0.0
    %3855 = vmatprep.subr.mxu0 0.0
    %3856 = vmatpush1.xpose.msra.mxu0 0.0
    %3857 = vmatprep.subr.mxu0 0.0
    %3858 = vmatpush1.xpose.msra.mxu0 0.0
    %3859 = vmatprep.subr.mxu0 0.0
    %3860 = vmatpush1.xpose.msra.mxu0 0.0
    %3861 = vmatprep.subr.mxu0 0.0
    %3862 = vmatpush1.xpose.msra.mxu0 0.0
    %3863 = vmatprep.subr.mxu0 0.0
    %3864 = vmatpush1.xpose.msra.mxu0 0.0
    %3865 = vmatprep.subr.mxu0 0.0
    %3866 = vmatpush1.xpose.msra.mxu0 0.0
    %3867 = vmatprep.subr.mxu0 0.0
    %3868 = vmatpush1.xpose.msra.mxu0 0.0
    %3869 = vmatprep.subr.mxu0 0.0
    %3870 = vmatpush1.xpose.msra.mxu0 0.0
    %3871 = vmatprep.subr.mxu0 0.0
    %3872 = vmatpush1.xpose.msra.mxu0 0.0
    %3873 = vmatprep.subr.mxu0 0.0
    %3874 = vmatpush1.xpose.msra.mxu0 0.0
    %3875 = vmatprep.subr.mxu0 0.0
    %3876 = vmatpush1.xpose.msra.mxu0 0.0
    %3877 = vmatprep.subr.mxu0 0.0
    %3878 = vmatpush1.xpose.msra.mxu0 0.0
    %3879 = vmatprep.subr.mxu0 0.0
    %3880 = vmatpush1.xpose.msra.mxu0 0.0
    %3881 = vmatprep.subr.mxu0 0.0
    %3882 = vmatpush1.xpose.msra.mxu0 0.0
    %3883 = vmatprep.subr.mxu0 0.0
    %3884 = vmatpush1.xpose.msra.mxu0 0.0
    %3885 = vmatprep.subr.mxu0 0.0
    %3886 = vmatpush1.xpose.msra.mxu0 0.0
    %3887 = vmatprep.subr.mxu0 0.0
    %3888 = vmatpush1.xpose.msra.mxu0 0.0
    %3889 = vmatprep.subr.mxu0 0.0
    %3890 = vmatpush1.xpose.msra.mxu0 0.0
    %3891 = vmatprep.subr.mxu0 0.0
    %3892 = vmatpush1.xpose.msra.mxu0 0.0
    %3893 = vmatprep.subr.mxu0 0.0
    %3894 = vmatpush1.xpose.msra.mxu0 0.0
    %3895 = vmatprep.subr.mxu0 0.0
    %3896 = vmatpush1.xpose.msra.mxu0 0.0
    %3897 = vmatprep.subr.mxu0 0.0
    %3898 = vmatpush1.xpose.msra.mxu0 0.0
    %3899 = vmatprep.subr.mxu0 0.0
    %3900 = vmatpush1.xpose.msra.mxu0 0.0
    %3901 = vmatprep.subr.mxu0 0.0
    %3902 = vmatpush1.xpose.msra.mxu0 0.0
    %3903 = vmatprep.subr.mxu0 0.0
    %3904 = vmatpush1.xpose.msra.mxu0 0.0
    %3905 = vmatprep.subr.mxu0 0.0
    %3906 = vmatpush1.xpose.msra.mxu0 0.0
    %3907 = vmatprep.subr.mxu0 0.0
    %3908 = vmatpush1.xpose.msra.mxu0 0.0
    %3909 = vmatprep.subr.mxu0 0.0
    %3910 = vmatpush1.xpose.msra.mxu0 0.0
    %3911 = vmatprep.mubr.f32.mxu0 0.0
    %3912 = vmatmul.mubr.f32.gmra.mrb[0].mxu0 %v3843
    %v3913 = vpop.f32.mrb[0].mxu0
    %v3914 = vadd.f32 %v80, %v3913
    %v3915 = vpop.f32.mrb[0].mxu0
    %3916 = vdwg.mxu0
    %3917 = vrot.lane.b32.xlu0 %v3680, 96
    %v3918 = vpop.permute.xlu0 %3917
    %v3919 = vsel %vm203, %v3680, 0
    %v3921 = vsel %vm203, %v3918, 0
    %3923 = vmatprep.subr.mxu0 0.0
    %3924 = vmatpush1.xpose.msra.mxu0 %v3921
    %3925 = vmatprep.subr.mxu0 0.0
    %3926 = vmatpush1.xpose.msra.mxu0 0.0
    %3927 = vmatprep.subr.mxu0 0.0
    %3928 = vmatpush1.xpose.msra.mxu0 0.0
    %3929 = vmatprep.subr.mxu0 0.0
    %3930 = vmatpush1.xpose.msra.mxu0 0.0
    %3931 = vmatprep.subr.mxu0 0.0
    %3932 = vmatpush1.xpose.msra.mxu0 0.0
    %3933 = vmatprep.subr.mxu0 0.0
    %3934 = vmatpush1.xpose.msra.mxu0 0.0
    %3935 = vmatprep.subr.mxu0 0.0
    %3936 = vmatpush1.xpose.msra.mxu0 0.0
    %3937 = vmatprep.subr.mxu0 0.0
    %3938 = vmatpush1.xpose.msra.mxu0 0.0
    %3939 = vmatprep.subr.mxu0 0.0
    %3940 = vmatpush1.xpose.msra.mxu0 0.0
    %3941 = vmatprep.subr.mxu0 0.0
    %3942 = vmatpush1.xpose.msra.mxu0 0.0
    %3943 = vmatprep.subr.mxu0 0.0
    %3944 = vmatpush1.xpose.msra.mxu0 0.0
    %3945 = vmatprep.subr.mxu0 0.0
    %3946 = vmatpush1.xpose.msra.mxu0 0.0
    %3947 = vmatprep.subr.mxu0 0.0
    %3948 = vmatpush1.xpose.msra.mxu0 0.0
    %3949 = vmatprep.subr.mxu0 0.0
    %3950 = vmatpush1.xpose.msra.mxu0 0.0
    %3951 = vmatprep.subr.mxu0 0.0
    %3952 = vmatpush1.xpose.msra.mxu0 0.0
    %3953 = vmatprep.subr.mxu0 0.0
    %3954 = vmatpush1.xpose.msra.mxu0 0.0
    %3955 = vmatprep.subr.mxu0 0.0
    %3956 = vmatpush1.xpose.msra.mxu0 0.0
    %3957 = vmatprep.subr.mxu0 0.0
    %3958 = vmatpush1.xpose.msra.mxu0 0.0
    %3959 = vmatprep.subr.mxu0 0.0
    %3960 = vmatpush1.xpose.msra.mxu0 0.0
    %3961 = vmatprep.subr.mxu0 0.0
    %3962 = vmatpush1.xpose.msra.mxu0 0.0
    %3963 = vmatprep.subr.mxu0 0.0
    %3964 = vmatpush1.xpose.msra.mxu0 0.0
    %3965 = vmatprep.subr.mxu0 0.0
    %3966 = vmatpush1.xpose.msra.mxu0 0.0
    %3967 = vmatprep.subr.mxu0 0.0
    %3968 = vmatpush1.xpose.msra.mxu0 0.0
    %3969 = vmatprep.subr.mxu0 0.0
    %3970 = vmatpush1.xpose.msra.mxu0 0.0
    %3971 = vmatprep.subr.mxu0 0.0
    %3972 = vmatpush1.xpose.msra.mxu0 0.0
    %3973 = vmatprep.subr.mxu0 0.0
    %3974 = vmatpush1.xpose.msra.mxu0 0.0
    %3975 = vmatprep.subr.mxu0 0.0
    %3976 = vmatpush1.xpose.msra.mxu0 0.0
    %3977 = vmatprep.subr.mxu0 0.0
    %3978 = vmatpush1.xpose.msra.mxu0 0.0
    %3979 = vmatprep.subr.mxu0 0.0
    %3980 = vmatpush1.xpose.msra.mxu0 0.0
    %3981 = vmatprep.subr.mxu0 0.0
    %3982 = vmatpush1.xpose.msra.mxu0 0.0
    %3983 = vmatprep.subr.mxu0 0.0
    %3984 = vmatpush1.xpose.msra.mxu0 0.0
    %3985 = vmatprep.subr.mxu0 0.0
    %3986 = vmatpush1.xpose.msra.mxu0 0.0
    %3987 = vmatprep.mubr.f32.mxu0 0.0
    %3988 = vmatmul.mubr.f32.gmra.mrb[0].mxu0 %v3919
    %v3989 = vpop.f32.mrb[0].mxu0
    %v3990 = vadd.f32 %v81, %v3989
    %v3991 = vpop.f32.mrb[0].mxu0
    %3992 = vdwg.mxu0
    %3993 = vrot.lane.b32.xlu0 %v3682, 96
    %v3994 = vpop.permute.xlu0 %3993
    %v3995 = vsel %vm203, %v3682, 0
    %v3997 = vsel %vm203, %v3994, 0
    %3999 = vmatprep.subr.mxu0 0.0
    %4000 = vmatpush1.xpose.msra.mxu0 %v3997
    %4001 = vmatprep.subr.mxu0 0.0
    %4002 = vmatpush1.xpose.msra.mxu0 0.0
    %4003 = vmatprep.subr.mxu0 0.0
    %4004 = vmatpush1.xpose.msra.mxu0 0.0
    %4005 = vmatprep.subr.mxu0 0.0
    %4006 = vmatpush1.xpose.msra.mxu0 0.0
    %4007 = vmatprep.subr.mxu0 0.0
    %4008 = vmatpush1.xpose.msra.mxu0 0.0
    %4009 = vmatprep.subr.mxu0 0.0
    %4010 = vmatpush1.xpose.msra.mxu0 0.0
    %4011 = vmatprep.subr.mxu0 0.0
    %4012 = vmatpush1.xpose.msra.mxu0 0.0
    %4013 = vmatprep.subr.mxu0 0.0
    %4014 = vmatpush1.xpose.msra.mxu0 0.0
    %4015 = vmatprep.subr.mxu0 0.0
    %4016 = vmatpush1.xpose.msra.mxu0 0.0
    %4017 = vmatprep.subr.mxu0 0.0
    %4018 = vmatpush1.xpose.msra.mxu0 0.0
    %4019 = vmatprep.subr.mxu0 0.0
    %4020 = vmatpush1.xpose.msra.mxu0 0.0
    %4021 = vmatprep.subr.mxu0 0.0
    %4022 = vmatpush1.xpose.msra.mxu0 0.0
    %4023 = vmatprep.subr.mxu0 0.0
    %4024 = vmatpush1.xpose.msra.mxu0 0.0
    %4025 = vmatprep.subr.mxu0 0.0
    %4026 = vmatpush1.xpose.msra.mxu0 0.0
    %4027 = vmatprep.subr.mxu0 0.0
    %4028 = vmatpush1.xpose.msra.mxu0 0.0
    %4029 = vmatprep.subr.mxu0 0.0
    %4030 = vmatpush1.xpose.msra.mxu0 0.0
    %4031 = vmatprep.subr.mxu0 0.0
    %4032 = vmatpush1.xpose.msra.mxu0 0.0
    %4033 = vmatprep.subr.mxu0 0.0
    %4034 = vmatpush1.xpose.msra.mxu0 0.0
    %4035 = vmatprep.subr.mxu0 0.0
    %4036 = vmatpush1.xpose.msra.mxu0 0.0
    %4037 = vmatprep.subr.mxu0 0.0
    %4038 = vmatpush1.xpose.msra.mxu0 0.0
    %4039 = vmatprep.subr.mxu0 0.0
    %4040 = vmatpush1.xpose.msra.mxu0 0.0
    %4041 = vmatprep.subr.mxu0 0.0
    %4042 = vmatpush1.xpose.msra.mxu0 0.0
    %4043 = vmatprep.subr.mxu0 0.0
    %4044 = vmatpush1.xpose.msra.mxu0 0.0
    %4045 = vmatprep.subr.mxu0 0.0
    %4046 = vmatpush1.xpose.msra.mxu0 0.0
    %4047 = vmatprep.subr.mxu0 0.0
    %4048 = vmatpush1.xpose.msra.mxu0 0.0
    %4049 = vmatprep.subr.mxu0 0.0
    %4050 = vmatpush1.xpose.msra.mxu0 0.0
    %4051 = vmatprep.subr.mxu0 0.0
    %4052 = vmatpush1.xpose.msra.mxu0 0.0
    %4053 = vmatprep.subr.mxu0 0.0
    %4054 = vmatpush1.xpose.msra.mxu0 0.0
    %4055 = vmatprep.subr.mxu0 0.0
    %4056 = vmatpush1.xpose.msra.mxu0 0.0
    %4057 = vmatprep.subr.mxu0 0.0
    %4058 = vmatpush1.xpose.msra.mxu0 0.0
    %4059 = vmatprep.subr.mxu0 0.0
    %4060 = vmatpush1.xpose.msra.mxu0 0.0
    %4061 = vmatprep.subr.mxu0 0.0
    %4062 = vmatpush1.xpose.msra.mxu0 0.0
    %4063 = vmatprep.mubr.f32.mxu0 0.0
    %4064 = vmatmul.mubr.f32.gmra.mrb[0].mxu0 %v3995
    %v4065 = vpop.f32.mrb[0].mxu0
    %v4066 = vadd.f32 %v82, %v4065
    %v4067 = vpop.f32.mrb[0].mxu0
    %4068 = vdwg.mxu0
    %4069 = vrot.lane.b32.xlu0 %v3684, 96
    %v4070 = vpop.permute.xlu0 %4069
    %v4071 = vsel %vm203, %v3684, 0
    %v4073 = vsel %vm203, %v4070, 0
    %4075 = vmatprep.subr.mxu0 0.0
    %4076 = vmatpush1.xpose.msra.mxu0 %v4073
    %4077 = vmatprep.subr.mxu0 0.0
    %4078 = vmatpush1.xpose.msra.mxu0 0.0
    %4079 = vmatprep.subr.mxu0 0.0
    %4080 = vmatpush1.xpose.msra.mxu0 0.0
    %4081 = vmatprep.subr.mxu0 0.0
    %4082 = vmatpush1.xpose.msra.mxu0 0.0
    %4083 = vmatprep.subr.mxu0 0.0
    %4084 = vmatpush1.xpose.msra.mxu0 0.0
    %4085 = vmatprep.subr.mxu0 0.0
    %4086 = vmatpush1.xpose.msra.mxu0 0.0
    %4087 = vmatprep.subr.mxu0 0.0
    %4088 = vmatpush1.xpose.msra.mxu0 0.0
    %4089 = vmatprep.subr.mxu0 0.0
    %4090 = vmatpush1.xpose.msra.mxu0 0.0
    %4091 = vmatprep.subr.mxu0 0.0
    %4092 = vmatpush1.xpose.msra.mxu0 0.0
    %4093 = vmatprep.subr.mxu0 0.0
    %4094 = vmatpush1.xpose.msra.mxu0 0.0
    %4095 = vmatprep.subr.mxu0 0.0
    %4096 = vmatpush1.xpose.msra.mxu0 0.0
    %4097 = vmatprep.subr.mxu0 0.0
    %4098 = vmatpush1.xpose.msra.mxu0 0.0
    %4099 = vmatprep.subr.mxu0 0.0
    %4100 = vmatpush1.xpose.msra.mxu0 0.0
    %4101 = vmatprep.subr.mxu0 0.0
    %4102 = vmatpush1.xpose.msra.mxu0 0.0
    %4103 = vmatprep.subr.mxu0 0.0
    %4104 = vmatpush1.xpose.msra.mxu0 0.0
    %4105 = vmatprep.subr.mxu0 0.0
    %4106 = vmatpush1.xpose.msra.mxu0 0.0
    %4107 = vmatprep.subr.mxu0 0.0
    %4108 = vmatpush1.xpose.msra.mxu0 0.0
    %4109 = vmatprep.subr.mxu0 0.0
    %4110 = vmatpush1.xpose.msra.mxu0 0.0
    %4111 = vmatprep.subr.mxu0 0.0
    %4112 = vmatpush1.xpose.msra.mxu0 0.0
    %4113 = vmatprep.subr.mxu0 0.0
    %4114 = vmatpush1.xpose.msra.mxu0 0.0
    %4115 = vmatprep.subr.mxu0 0.0
    %4116 = vmatpush1.xpose.msra.mxu0 0.0
    %4117 = vmatprep.subr.mxu0 0.0
    %4118 = vmatpush1.xpose.msra.mxu0 0.0
    %4119 = vmatprep.subr.mxu0 0.0
    %4120 = vmatpush1.xpose.msra.mxu0 0.0
    %4121 = vmatprep.subr.mxu0 0.0
    %4122 = vmatpush1.xpose.msra.mxu0 0.0
    %4123 = vmatprep.subr.mxu0 0.0
    %4124 = vmatpush1.xpose.msra.mxu0 0.0
    %4125 = vmatprep.subr.mxu0 0.0
    %4126 = vmatpush1.xpose.msra.mxu0 0.0
    %4127 = vmatprep.subr.mxu0 0.0
    %4128 = vmatpush1.xpose.msra.mxu0 0.0
    %4129 = vmatprep.subr.mxu0 0.0
    %4130 = vmatpush1.xpose.msra.mxu0 0.0
    %4131 = vmatprep.subr.mxu0 0.0
    %4132 = vmatpush1.xpose.msra.mxu0 0.0
    %4133 = vmatprep.subr.mxu0 0.0
    %4134 = vmatpush1.xpose.msra.mxu0 0.0
    %4135 = vmatprep.subr.mxu0 0.0
    %4136 = vmatpush1.xpose.msra.mxu0 0.0
    %4137 = vmatprep.subr.mxu0 0.0
    %4138 = vmatpush1.xpose.msra.mxu0 0.0
    %4139 = vmatprep.mubr.f32.mxu0 0.0
    %4140 = vmatmul.mubr.f32.gmra.mrb[0].mxu0 %v4071
    %v4141 = vpop.f32.mrb[0].mxu0
    %v4142 = vadd.f32 %v83, %v4141
    %v4143 = vpop.f32.mrb[0].mxu0
    %4144 = vdwg.mxu0
    %4145 = vrot.lane.b32.xlu0 %v3686, 96
    %v4146 = vpop.permute.xlu0 %4145
    %v4147 = vsel %vm203, %v3686, 0
    %v4149 = vsel %vm203, %v4146, 0
    %4151 = vmatprep.subr.mxu0 0.0
    %4152 = vmatpush1.xpose.msra.mxu0 %v4149
    %4153 = vmatprep.subr.mxu0 0.0
    %4154 = vmatpush1.xpose.msra.mxu0 0.0
    %4155 = vmatprep.subr.mxu0 0.0
    %4156 = vmatpush1.xpose.msra.mxu0 0.0
    %4157 = vmatprep.subr.mxu0 0.0
    %4158 = vmatpush1.xpose.msra.mxu0 0.0
    %4159 = vmatprep.subr.mxu0 0.0
    %4160 = vmatpush1.xpose.msra.mxu0 0.0
    %4161 = vmatprep.subr.mxu0 0.0
    %4162 = vmatpush1.xpose.msra.mxu0 0.0
    %4163 = vmatprep.subr.mxu0 0.0
    %4164 = vmatpush1.xpose.msra.mxu0 0.0
    %4165 = vmatprep.subr.mxu0 0.0
    %4166 = vmatpush1.xpose.msra.mxu0 0.0
    %4167 = vmatprep.subr.mxu0 0.0
    %4168 = vmatpush1.xpose.msra.mxu0 0.0
    %4169 = vmatprep.subr.mxu0 0.0
    %4170 = vmatpush1.xpose.msra.mxu0 0.0
    %4171 = vmatprep.subr.mxu0 0.0
    %4172 = vmatpush1.xpose.msra.mxu0 0.0
    %4173 = vmatprep.subr.mxu0 0.0
    %4174 = vmatpush1.xpose.msra.mxu0 0.0
    %4175 = vmatprep.subr.mxu0 0.0
    %4176 = vmatpush1.xpose.msra.mxu0 0.0
    %4177 = vmatprep.subr.mxu0 0.0
    %4178 = vmatpush1.xpose.msra.mxu0 0.0
    %4179 = vmatprep.subr.mxu0 0.0
    %4180 = vmatpush1.xpose.msra.mxu0 0.0
    %4181 = vmatprep.subr.mxu0 0.0
    %4182 = vmatpush1.xpose.msra.mxu0 0.0
    %4183 = vmatprep.subr.mxu0 0.0
    %4184 = vmatpush1.xpose.msra.mxu0 0.0
    %4185 = vmatprep.subr.mxu0 0.0
    %4186 = vmatpush1.xpose.msra.mxu0 0.0
    %4187 = vmatprep.subr.mxu0 0.0
    %4188 = vmatpush1.xpose.msra.mxu0 0.0
    %4189 = vmatprep.subr.mxu0 0.0
    %4190 = vmatpush1.xpose.msra.mxu0 0.0
    %4191 = vmatprep.subr.mxu0 0.0
    %4192 = vmatpush1.xpose.msra.mxu0 0.0
    %4193 = vmatprep.subr.mxu0 0.0
    %4194 = vmatpush1.xpose.msra.mxu0 0.0
    %4195 = vmatprep.subr.mxu0 0.0
    %4196 = vmatpush1.xpose.msra.mxu0 0.0
    %4197 = vmatprep.subr.mxu0 0.0
    %4198 = vmatpush1.xpose.msra.mxu0 0.0
    %4199 = vmatprep.subr.mxu0 0.0
    %4200 = vmatpush1.xpose.msra.mxu0 0.0
    %4201 = vmatprep.subr.mxu0 0.0
    %4202 = vmatpush1.xpose.msra.mxu0 0.0
    %4203 = vmatprep.subr.mxu0 0.0
    %4204 = vmatpush1.xpose.msra.mxu0 0.0
    %4205 = vmatprep.subr.mxu0 0.0
    %4206 = vmatpush1.xpose.msra.mxu0 0.0
    %4207 = vmatprep.subr.mxu0 0.0
    %4208 = vmatpush1.xpose.msra.mxu0 0.0
    %4209 = vmatprep.subr.mxu0 0.0
    %4210 = vmatpush1.xpose.msra.mxu0 0.0
    %4211 = vmatprep.subr.mxu0 0.0
    %4212 = vmatpush1.xpose.msra.mxu0 0.0
    %4213 = vmatprep.subr.mxu0 0.0
    %4214 = vmatpush1.xpose.msra.mxu0 0.0
    %4215 = vmatprep.mubr.f32.mxu0 0.0
    %4216 = vmatmul.mubr.f32.gmra.mrb[0].mxu0 %v4147
    %v4217 = vpop.f32.mrb[0].mxu0
    %v4218 = vadd.f32 %v84, %v4217
    %v4219 = vpop.f32.mrb[0].mxu0
    %4220 = vdwg.mxu0
    %4221 = vrot.lane.b32.xlu0 %v3688, 96
    %v4222 = vpop.permute.xlu0 %4221
    %v4223 = vsel %vm203, %v3688, 0
    %v4225 = vsel %vm203, %v4222, 0
    %4227 = vmatprep.subr.mxu0 0.0
    %4228 = vmatpush1.xpose.msra.mxu0 %v4225
    %4229 = vmatprep.subr.mxu0 0.0
    %4230 = vmatpush1.xpose.msra.mxu0 0.0
    %4231 = vmatprep.subr.mxu0 0.0
    %4232 = vmatpush1.xpose.msra.mxu0 0.0
    %4233 = vmatprep.subr.mxu0 0.0
    %4234 = vmatpush1.xpose.msra.mxu0 0.0
    %4235 = vmatprep.subr.mxu0 0.0
    %4236 = vmatpush1.xpose.msra.mxu0 0.0
    %4237 = vmatprep.subr.mxu0 0.0
    %4238 = vmatpush1.xpose.msra.mxu0 0.0
    %4239 = vmatprep.subr.mxu0 0.0
    %4240 = vmatpush1.xpose.msra.mxu0 0.0
    %4241 = vmatprep.subr.mxu0 0.0
    %4242 = vmatpush1.xpose.msra.mxu0 0.0
    %4243 = vmatprep.subr.mxu0 0.0
    %4244 = vmatpush1.xpose.msra.mxu0 0.0
    %4245 = vmatprep.subr.mxu0 0.0
    %4246 = vmatpush1.xpose.msra.mxu0 0.0
    %4247 = vmatprep.subr.mxu0 0.0
    %4248 = vmatpush1.xpose.msra.mxu0 0.0
    %4249 = vmatprep.subr.mxu0 0.0
    %4250 = vmatpush1.xpose.msra.mxu0 0.0
    %4251 = vmatprep.subr.mxu0 0.0
    %4252 = vmatpush1.xpose.msra.mxu0 0.0
    %4253 = vmatprep.subr.mxu0 0.0
    %4254 = vmatpush1.xpose.msra.mxu0 0.0
    %4255 = vmatprep.subr.mxu0 0.0
    %4256 = vmatpush1.xpose.msra.mxu0 0.0
    %4257 = vmatprep.subr.mxu0 0.0
    %4258 = vmatpush1.xpose.msra.mxu0 0.0
    %4259 = vmatprep.subr.mxu0 0.0
    %4260 = vmatpush1.xpose.msra.mxu0 0.0
    %4261 = vmatprep.subr.mxu0 0.0
    %4262 = vmatpush1.xpose.msra.mxu0 0.0
    %4263 = vmatprep.subr.mxu0 0.0
    %4264 = vmatpush1.xpose.msra.mxu0 0.0
    %4265 = vmatprep.subr.mxu0 0.0
    %4266 = vmatpush1.xpose.msra.mxu0 0.0
    %4267 = vmatprep.subr.mxu0 0.0
    %4268 = vmatpush1.xpose.msra.mxu0 0.0
    %4269 = vmatprep.subr.mxu0 0.0
    %4270 = vmatpush1.xpose.msra.mxu0 0.0
    %4271 = vmatprep.subr.mxu0 0.0
    %4272 = vmatpush1.xpose.msra.mxu0 0.0
    %4273 = vmatprep.subr.mxu0 0.0
    %4274 = vmatpush1.xpose.msra.mxu0 0.0
    %4275 = vmatprep.subr.mxu0 0.0
    %4276 = vmatpush1.xpose.msra.mxu0 0.0
    %4277 = vmatprep.subr.mxu0 0.0
    %4278 = vmatpush1.xpose.msra.mxu0 0.0
    %4279 = vmatprep.subr.mxu0 0.0
    %4280 = vmatpush1.xpose.msra.mxu0 0.0
    %4281 = vmatprep.subr.mxu0 0.0
    %4282 = vmatpush1.xpose.msra.mxu0 0.0
    %4283 = vmatprep.subr.mxu0 0.0
    %4284 = vmatpush1.xpose.msra.mxu0 0.0
    %4285 = vmatprep.subr.mxu0 0.0
    %4286 = vmatpush1.xpose.msra.mxu0 0.0
    %4287 = vmatprep.subr.mxu0 0.0
    %4288 = vmatpush1.xpose.msra.mxu0 0.0
    %4289 = vmatprep.subr.mxu0 0.0
    %4290 = vmatpush1.xpose.msra.mxu0 0.0
    %4291 = vmatprep.mubr.f32.mxu0 0.0
    %4292 = vmatmul.mubr.f32.gmra.mrb[0].mxu0 %v4223
    %v4293 = vpop.f32.mrb[0].mxu0
    %v4294 = vadd.f32 %v85, %v4293
    %v4295 = vpop.f32.mrb[0].mxu0
    %4296 = vdwg.mxu0
    %v4297 = vsel %vm203, %v3762, -inf
    %4298 = vmax.xlane.f32.xlu0 %v4297
    %v4299 = vpop.xlane.xlu0 %4298
    %v4300 = vsel %vm203, %v3838, -inf
    %4301 = vmax.xlane.f32.xlu0 %v4300
    %v4302 = vpop.xlane.xlu0 %4301
    %v4303 = vsel %vm203, %v3914, -inf
    %4304 = vmax.xlane.f32.xlu0 %v4303
    %v4305 = vpop.xlane.xlu0 %4304
    %v4306 = vsel %vm203, %v3990, -inf
    %4307 = vmax.xlane.f32.xlu0 %v4306
    %v4308 = vpop.xlane.xlu0 %4307
    %v4309 = vsel %vm203, %v4066, -inf
    %4310 = vmax.xlane.f32.xlu0 %v4309
    %v4311 = vpop.xlane.xlu0 %4310
    %v4312 = vsel %vm203, %v4142, -inf
    %4313 = vmax.xlane.f32.xlu0 %v4312
    %v4314 = vpop.xlane.xlu0 %4313
    %v4315 = vsel %vm203, %v4218, -inf
    %4316 = vmax.xlane.f32.xlu0 %v4315
    %v4317 = vpop.xlane.xlu0 %4316
    %v4318 = vsel %vm203, %v4294, -inf
    %4319 = vmax.xlane.f32.xlu0 %v4318
    %v4320 = vpop.xlane.xlu0 %4319
    %v4321 = vsub.f32 %v3762, %v4299
    %v4322 = vsub.f32 %v3838, %v4302
    %v4323 = vsub.f32 %v3914, %v4305
    %v4324 = vsub.f32 %v3990, %v4308
    %v4325 = vsub.f32 %v4066, %v4311
    %v4326 = vsub.f32 %v4142, %v4314
    %v4327 = vsub.f32 %v4218, %v4317
    %v4328 = vsub.f32 %v4294, %v4320
    %v4329 = vmul.f32 %v4321, 1.442695
    %v4330 = vpow.pop %v4329
    %v4331 = vmul.f32 %v4322, 1.442695
    %v4332 = vpow.pop %v4331
    %v4333 = vmul.f32 %v4323, 1.442695
    %v4334 = vpow.pop %v4333
    %v4335 = vmul.f32 %v4324, 1.442695
    %v4336 = vpow.pop %v4335
    %v4337 = vmul.f32 %v4325, 1.442695
    %v4338 = vpow.pop %v4337
    %v4339 = vmul.f32 %v4326, 1.442695
    %v4340 = vpow.pop %v4339
    %v4341 = vmul.f32 %v4327, 1.442695
    %v4342 = vpow.pop %v4341
    %v4343 = vmul.f32 %v4328, 1.442695
    %v4344 = vpow.pop %v4343
    %v4345 = vsel %vm203, %v4330, 0.0
    %4346 = vadd.xlane.f32.xlu0 %v4345
    %v4347 = vpop.xlane.xlu0 %4346
    %v4348 = vsel %vm203, %v4332, 0.0
    %4349 = vadd.xlane.f32.xlu0 %v4348
    %v4350 = vpop.xlane.xlu0 %4349
    %v4351 = vsel %vm203, %v4334, 0.0
    %4352 = vadd.xlane.f32.xlu0 %v4351
    %v4353 = vpop.xlane.xlu0 %4352
    %v4354 = vsel %vm203, %v4336, 0.0
    %4355 = vadd.xlane.f32.xlu0 %v4354
    %v4356 = vpop.xlane.xlu0 %4355
    %v4357 = vsel %vm203, %v4338, 0.0
    %4358 = vadd.xlane.f32.xlu0 %v4357
    %v4359 = vpop.xlane.xlu0 %4358
    %v4360 = vsel %vm203, %v4340, 0.0
    %4361 = vadd.xlane.f32.xlu0 %v4360
    %v4362 = vpop.xlane.xlu0 %4361
    %v4363 = vsel %vm203, %v4342, 0.0
    %4364 = vadd.xlane.f32.xlu0 %v4363
    %v4365 = vpop.xlane.xlu0 %4364
    %v4366 = vsel %vm203, %v4344, 0.0
    %4367 = vadd.xlane.f32.xlu0 %v4366
    %v4368 = vpop.xlane.xlu0 %4367
    %v4369 = vrcp.pop %v4347
    %v4370 = vrcp.pop %v4350
    %v4371 = vrcp.pop %v4353
    %v4372 = vrcp.pop %v4356
    %v4373 = vrcp.pop %v4359
    %v4374 = vrcp.pop %v4362
    %v4375 = vrcp.pop %v4365
    %v4376 = vrcp.pop %v4368
    %v4377 = vmul.f32 %v4330, %v4369
    %v4378 = vmul.f32 %v4332, %v4370
    %v4379 = vmul.f32 %v4334, %v4371
    %v4380 = vmul.f32 %v4336, %v4372
    %v4381 = vmul.f32 %v4338, %v4373
    %v4382 = vmul.f32 %v4340, %v4374
    %v4383 = vmul.f32 %v4342, %v4375
    %v4384 = vmul.f32 %v4344, %v4376
    %4385 = vrot.lane.b32.xlu0 %v3667, 64
    %v4386 = vpop.permute.xlu0 %4385
    %v4389 = vsel %vm203, %v4377, 0
    %4391 = vmatprep.subr.mxu0 0.0
    %4392 = vmatpush1.msra.mxu0 %v4386
    %4393 = vmatprep.subr.mxu0 0.0
    %4394 = vmatpush1.msra.mxu0 0.0
    %4395 = vmatprep.subr.mxu0 0.0
    %4396 = vmatpush1.msra.mxu0 0.0
    %4397 = vmatprep.subr.mxu0 0.0
    %4398 = vmatpush1.msra.mxu0 0.0
    %4399 = vmatprep.subr.mxu0 0.0
    %4400 = vmatpush1.msra.mxu0 0.0
    %4401 = vmatprep.subr.mxu0 0.0
    %4402 = vmatpush1.msra.mxu0 0.0
    %4403 = vmatprep.subr.mxu0 0.0
    %4404 = vmatpush1.msra.mxu0 0.0
    %4405 = vmatprep.subr.mxu0 0.0
    %4406 = vmatpush1.msra.mxu0 0.0
    %4407 = vmatprep.subr.mxu0 0.0
    %4408 = vmatpush1.msra.mxu0 0.0
    %4409 = vmatprep.subr.mxu0 0.0
    %4410 = vmatpush1.msra.mxu0 0.0
    %4411 = vmatprep.subr.mxu0 0.0
    %4412 = vmatpush1.msra.mxu0 0.0
    %4413 = vmatprep.subr.mxu0 0.0
    %4414 = vmatpush1.msra.mxu0 0.0
    %4415 = vmatprep.subr.mxu0 0.0
    %4416 = vmatpush1.msra.mxu0 0.0
    %4417 = vmatprep.subr.mxu0 0.0
    %4418 = vmatpush1.msra.mxu0 0.0
    %4419 = vmatprep.subr.mxu0 0.0
    %4420 = vmatpush1.msra.mxu0 0.0
    %4421 = vmatprep.subr.mxu0 0.0
    %4422 = vmatpush1.msra.mxu0 0.0
    %4423 = vmatprep.subr.mxu0 0.0
    %4424 = vmatpush1.msra.mxu0 0.0
    %4425 = vmatprep.subr.mxu0 0.0
    %4426 = vmatpush1.msra.mxu0 0.0
    %4427 = vmatprep.subr.mxu0 0.0
    %4428 = vmatpush1.msra.mxu0 0.0
    %4429 = vmatprep.subr.mxu0 0.0
    %4430 = vmatpush1.msra.mxu0 0.0
    %4431 = vmatprep.subr.mxu0 0.0
    %4432 = vmatpush1.msra.mxu0 0.0
    %4433 = vmatprep.subr.mxu0 0.0
    %4434 = vmatpush1.msra.mxu0 0.0
    %4435 = vmatprep.subr.mxu0 0.0
    %4436 = vmatpush1.msra.mxu0 0.0
    %4437 = vmatprep.subr.mxu0 0.0
    %4438 = vmatpush1.msra.mxu0 0.0
    %4439 = vmatprep.subr.mxu0 0.0
    %4440 = vmatpush1.msra.mxu0 0.0
    %4441 = vmatprep.subr.mxu0 0.0
    %4442 = vmatpush1.msra.mxu0 0.0
    %4443 = vmatprep.subr.mxu0 0.0
    %4444 = vmatpush1.msra.mxu0 0.0
    %4445 = vmatprep.subr.mxu0 0.0
    %4446 = vmatpush1.msra.mxu0 0.0
    %4447 = vmatprep.subr.mxu0 0.0
    %4448 = vmatpush1.msra.mxu0 0.0
    %4449 = vmatprep.subr.mxu0 0.0
    %4450 = vmatpush1.msra.mxu0 0.0
    %4451 = vmatprep.subr.mxu0 0.0
    %4452 = vmatpush1.msra.mxu0 0.0
    %4453 = vmatprep.subr.mxu0 0.0
    %4454 = vmatpush1.msra.mxu0 0.0
    %4455 = vmatprep.mubr.f32.mxu0 0.0
    %4456 = vmatmul.mubr.f32.gmra.mrb[0].mxu0 %v4389
    %v4457 = vpop.f32.mrb[0].mxu0
    %v4458 = vadd.f32 0.0, %v4457
    %v4459 = vpop.f32.mrb[0].mxu0
    %4460 = vdwg.mxu0
    %4461 = vrot.lane.b32.xlu0 %v3672, 64
    %v4462 = vpop.permute.xlu0 %4461
    %v4465 = vsel %vm203, %v4378, 0
    %4467 = vmatprep.subr.mxu0 0.0
    %4468 = vmatpush1.msra.mxu0 %v4462
    %4469 = vmatprep.subr.mxu0 0.0
    %4470 = vmatpush1.msra.mxu0 0.0
    %4471 = vmatprep.subr.mxu0 0.0
    %4472 = vmatpush1.msra.mxu0 0.0
    %4473 = vmatprep.subr.mxu0 0.0
    %4474 = vmatpush1.msra.mxu0 0.0
    %4475 = vmatprep.subr.mxu0 0.0
    %4476 = vmatpush1.msra.mxu0 0.0
    %4477 = vmatprep.subr.mxu0 0.0
    %4478 = vmatpush1.msra.mxu0 0.0
    %4479 = vmatprep.subr.mxu0 0.0
    %4480 = vmatpush1.msra.mxu0 0.0
    %4481 = vmatprep.subr.mxu0 0.0
    %4482 = vmatpush1.msra.mxu0 0.0
    %4483 = vmatprep.subr.mxu0 0.0
    %4484 = vmatpush1.msra.mxu0 0.0
    %4485 = vmatprep.subr.mxu0 0.0
    %4486 = vmatpush1.msra.mxu0 0.0
    %4487 = vmatprep.subr.mxu0 0.0
    %4488 = vmatpush1.msra.mxu0 0.0
    %4489 = vmatprep.subr.mxu0 0.0
    %4490 = vmatpush1.msra.mxu0 0.0
    %4491 = vmatprep.subr.mxu0 0.0
    %4492 = vmatpush1.msra.mxu0 0.0
    %4493 = vmatprep.subr.mxu0 0.0
    %4494 = vmatpush1.msra.mxu0 0.0
    %4495 = vmatprep.subr.mxu0 0.0
    %4496 = vmatpush1.msra.mxu0 0.0
    %4497 = vmatprep.subr.mxu0 0.0
    %4498 = vmatpush1.msra.mxu0 0.0
    %4499 = vmatprep.subr.mxu0 0.0
    %4500 = vmatpush1.msra.mxu0 0.0
    %4501 = vmatprep.subr.mxu0 0.0
    %4502 = vmatpush1.msra.mxu0 0.0
    %4503 = vmatprep.subr.mxu0 0.0
    %4504 = vmatpush1.msra.mxu0 0.0
    %4505 = vmatprep.subr.mxu0 0.0
    %4506 = vmatpush1.msra.mxu0 0.0
    %4507 = vmatprep.subr.mxu0 0.0
    %4508 = vmatpush1.msra.mxu0 0.0
    %4509 = vmatprep.subr.mxu0 0.0
    %4510 = vmatpush1.msra.mxu0 0.0
    %4511 = vmatprep.subr.mxu0 0.0
    %4512 = vmatpush1.msra.mxu0 0.0
    %4513 = vmatprep.subr.mxu0 0.0
    %4514 = vmatpush1.msra.mxu0 0.0
    %4515 = vmatprep.subr.mxu0 0.0
    %4516 = vmatpush1.msra.mxu0 0.0
    %4517 = vmatprep.subr.mxu0 0.0
    %4518 = vmatpush1.msra.mxu0 0.0
    %4519 = vmatprep.subr.mxu0 0.0
    %4520 = vmatpush1.msra.mxu0 0.0
    %4521 = vmatprep.subr.mxu0 0.0
    %4522 = vmatpush1.msra.mxu0 0.0
    %4523 = vmatprep.subr.mxu0 0.0
    %4524 = vmatpush1.msra.mxu0 0.0
    %4525 = vmatprep.subr.mxu0 0.0
    %4526 = vmatpush1.msra.mxu0 0.0
    %4527 = vmatprep.subr.mxu0 0.0
    %4528 = vmatpush1.msra.mxu0 0.0
    %4529 = vmatprep.subr.mxu0 0.0
    %4530 = vmatpush1.msra.mxu0 0.0
    %4531 = vmatprep.mubr.f32.mxu0 0.0
    %4532 = vmatmul.mubr.f32.gmra.mrb[0].mxu0 %v4465
    %v4533 = vpop.f32.mrb[0].mxu0
    %v4534 = vadd.f32 0.0, %v4533
    %v4535 = vpop.f32.mrb[0].mxu0
    %4536 = vdwg.mxu0
    %4537 = vrot.lane.b32.xlu0 %v3678, 64
    %v4538 = vpop.permute.xlu0 %4537
    %v4541 = vsel %vm203, %v4379, 0
    %4543 = vmatprep.subr.mxu0 0.0
    %4544 = vmatpush1.msra.mxu0 %v4538
    %4545 = vmatprep.subr.mxu0 0.0
    %4546 = vmatpush1.msra.mxu0 0.0
    %4547 = vmatprep.subr.mxu0 0.0
    %4548 = vmatpush1.msra.mxu0 0.0
    %4549 = vmatprep.subr.mxu0 0.0
    %4550 = vmatpush1.msra.mxu0 0.0
    %4551 = vmatprep.subr.mxu0 0.0
    %4552 = vmatpush1.msra.mxu0 0.0
    %4553 = vmatprep.subr.mxu0 0.0
    %4554 = vmatpush1.msra.mxu0 0.0
    %4555 = vmatprep.subr.mxu0 0.0
    %4556 = vmatpush1.msra.mxu0 0.0
    %4557 = vmatprep.subr.mxu0 0.0
    %4558 = vmatpush1.msra.mxu0 0.0
    %4559 = vmatprep.subr.mxu0 0.0
    %4560 = vmatpush1.msra.mxu0 0.0
    %4561 = vmatprep.subr.mxu0 0.0
    %4562 = vmatpush1.msra.mxu0 0.0
    %4563 = vmatprep.subr.mxu0 0.0
    %4564 = vmatpush1.msra.mxu0 0.0
    %4565 = vmatprep.subr.mxu0 0.0
    %4566 = vmatpush1.msra.mxu0 0.0
    %4567 = vmatprep.subr.mxu0 0.0
    %4568 = vmatpush1.msra.mxu0 0.0
    %4569 = vmatprep.subr.mxu0 0.0
    %4570 = vmatpush1.msra.mxu0 0.0
    %4571 = vmatprep.subr.mxu0 0.0
    %4572 = vmatpush1.msra.mxu0 0.0
    %4573 = vmatprep.subr.mxu0 0.0
    %4574 = vmatpush1.msra.mxu0 0.0
    %4575 = vmatprep.subr.mxu0 0.0
    %4576 = vmatpush1.msra.mxu0 0.0
    %4577 = vmatprep.subr.mxu0 0.0
    %4578 = vmatpush1.msra.mxu0 0.0
    %4579 = vmatprep.subr.mxu0 0.0
    %4580 = vmatpush1.msra.mxu0 0.0
    %4581 = vmatprep.subr.mxu0 0.0
    %4582 = vmatpush1.msra.mxu0 0.0
    %4583 = vmatprep.subr.mxu0 0.0
    %4584 = vmatpush1.msra.mxu0 0.0
    %4585 = vmatprep.subr.mxu0 0.0
    %4586 = vmatpush1.msra.mxu0 0.0
    %4587 = vmatprep.subr.mxu0 0.0
    %4588 = vmatpush1.msra.mxu0 0.0
    %4589 = vmatprep.subr.mxu0 0.0
    %4590 = vmatpush1.msra.mxu0 0.0
    %4591 = vmatprep.subr.mxu0 0.0
    %4592 = vmatpush1.msra.mxu0 0.0
    %4593 = vmatprep.subr.mxu0 0.0
    %4594 = vmatpush1.msra.mxu0 0.0
    %4595 = vmatprep.subr.mxu0 0.0
    %4596 = vmatpush1.msra.mxu0 0.0
    %4597 = vmatprep.subr.mxu0 0.0
    %4598 = vmatpush1.msra.mxu0 0.0
    %4599 = vmatprep.subr.mxu0 0.0
    %4600 = vmatpush1.msra.mxu0 0.0
    %4601 = vmatprep.subr.mxu0 0.0
    %4602 = vmatpush1.msra.mxu0 0.0
    %4603 = vmatprep.subr.mxu0 0.0
    %4604 = vmatpush1.msra.mxu0 0.0
    %4605 = vmatprep.subr.mxu0 0.0
    %4606 = vmatpush1.msra.mxu0 0.0
    %4607 = vmatprep.mubr.f32.mxu0 0.0
    %4608 = vmatmul.mubr.f32.gmra.mrb[0].mxu0 %v4541
    %v4609 = vpop.f32.mrb[0].mxu0
    %v4610 = vadd.f32 0.0, %v4609
    %v4611 = vpop.f32.mrb[0].mxu0
    %4612 = vdwg.mxu0
    %4613 = vrot.lane.b32.xlu0 %v3680, 64
    %v4614 = vpop.permute.xlu0 %4613
    %v4617 = vsel %vm203, %v4380, 0
    %4619 = vmatprep.subr.mxu0 0.0
    %4620 = vmatpush1.msra.mxu0 %v4614
    %4621 = vmatprep.subr.mxu0 0.0
    %4622 = vmatpush1.msra.mxu0 0.0
    %4623 = vmatprep.subr.mxu0 0.0
    %4624 = vmatpush1.msra.mxu0 0.0
    %4625 = vmatprep.subr.mxu0 0.0
    %4626 = vmatpush1.msra.mxu0 0.0
    %4627 = vmatprep.subr.mxu0 0.0
    %4628 = vmatpush1.msra.mxu0 0.0
    %4629 = vmatprep.subr.mxu0 0.0
    %4630 = vmatpush1.msra.mxu0 0.0
    %4631 = vmatprep.subr.mxu0 0.0
    %4632 = vmatpush1.msra.mxu0 0.0
    %4633 = vmatprep.subr.mxu0 0.0
    %4634 = vmatpush1.msra.mxu0 0.0
    %4635 = vmatprep.subr.mxu0 0.0
    %4636 = vmatpush1.msra.mxu0 0.0
    %4637 = vmatprep.subr.mxu0 0.0
    %4638 = vmatpush1.msra.mxu0 0.0
    %4639 = vmatprep.subr.mxu0 0.0
    %4640 = vmatpush1.msra.mxu0 0.0
    %4641 = vmatprep.subr.mxu0 0.0
    %4642 = vmatpush1.msra.mxu0 0.0
    %4643 = vmatprep.subr.mxu0 0.0
    %4644 = vmatpush1.msra.mxu0 0.0
    %4645 = vmatprep.subr.mxu0 0.0
    %4646 = vmatpush1.msra.mxu0 0.0
    %4647 = vmatprep.subr.mxu0 0.0
    %4648 = vmatpush1.msra.mxu0 0.0
    %4649 = vmatprep.subr.mxu0 0.0
    %4650 = vmatpush1.msra.mxu0 0.0
    %4651 = vmatprep.subr.mxu0 0.0
    %4652 = vmatpush1.msra.mxu0 0.0
    %4653 = vmatprep.subr.mxu0 0.0
    %4654 = vmatpush1.msra.mxu0 0.0
    %4655 = vmatprep.subr.mxu0 0.0
    %4656 = vmatpush1.msra.mxu0 0.0
    %4657 = vmatprep.subr.mxu0 0.0
    %4658 = vmatpush1.msra.mxu0 0.0
    %4659 = vmatprep.subr.mxu0 0.0
    %4660 = vmatpush1.msra.mxu0 0.0
    %4661 = vmatprep.subr.mxu0 0.0
    %4662 = vmatpush1.msra.mxu0 0.0
    %4663 = vmatprep.subr.mxu0 0.0
    %4664 = vmatpush1.msra.mxu0 0.0
    %4665 = vmatprep.subr.mxu0 0.0
    %4666 = vmatpush1.msra.mxu0 0.0
    %4667 = vmatprep.subr.mxu0 0.0
    %4668 = vmatpush1.msra.mxu0 0.0
    %4669 = vmatprep.subr.mxu0 0.0
    %4670 = vmatpush1.msra.mxu0 0.0
    %4671 = vmatprep.subr.mxu0 0.0
    %4672 = vmatpush1.msra.mxu0 0.0
    %4673 = vmatprep.subr.mxu0 0.0
    %4674 = vmatpush1.msra.mxu0 0.0
    %4675 = vmatprep.subr.mxu0 0.0
    %4676 = vmatpush1.msra.mxu0 0.0
    %4677 = vmatprep.subr.mxu0 0.0
    %4678 = vmatpush1.msra.mxu0 0.0
    %4679 = vmatprep.subr.mxu0 0.0
    %4680 = vmatpush1.msra.mxu0 0.0
    %4681 = vmatprep.subr.mxu0 0.0
    %4682 = vmatpush1.msra.mxu0 0.0
    %4683 = vmatprep.mubr.f32.mxu0 0.0
    %4684 = vmatmul.mubr.f32.gmra.mrb[0].mxu0 %v4617
    %v4685 = vpop.f32.mrb[0].mxu0
    %v4686 = vadd.f32 0.0, %v4685
    %v4687 = vpop.f32.mrb[0].mxu0
    %4688 = vdwg.mxu0
    %4689 = vrot.lane.b32.xlu0 %v3682, 64
    %v4690 = vpop.permute.xlu0 %4689
    %v4693 = vsel %vm203, %v4381, 0
    %4695 = vmatprep.subr.mxu0 0.0
    %4696 = vmatpush1.msra.mxu0 %v4690
    %4697 = vmatprep.subr.mxu0 0.0
    %4698 = vmatpush1.msra.mxu0 0.0
    %4699 = vmatprep.subr.mxu0 0.0
    %4700 = vmatpush1.msra.mxu0 0.0
    %4701 = vmatprep.subr.mxu0 0.0
    %4702 = vmatpush1.msra.mxu0 0.0
    %4703 = vmatprep.subr.mxu0 0.0
    %4704 = vmatpush1.msra.mxu0 0.0
    %4705 = vmatprep.subr.mxu0 0.0
    %4706 = vmatpush1.msra.mxu0 0.0
    %4707 = vmatprep.subr.mxu0 0.0
    %4708 = vmatpush1.msra.mxu0 0.0
    %4709 = vmatprep.subr.mxu0 0.0
    %4710 = vmatpush1.msra.mxu0 0.0
    %4711 = vmatprep.subr.mxu0 0.0
    %4712 = vmatpush1.msra.mxu0 0.0
    %4713 = vmatprep.subr.mxu0 0.0
    %4714 = vmatpush1.msra.mxu0 0.0
    %4715 = vmatprep.subr.mxu0 0.0
    %4716 = vmatpush1.msra.mxu0 0.0
    %4717 = vmatprep.subr.mxu0 0.0
    %4718 = vmatpush1.msra.mxu0 0.0
    %4719 = vmatprep.subr.mxu0 0.0
    %4720 = vmatpush1.msra.mxu0 0.0
    %4721 = vmatprep.subr.mxu0 0.0
    %4722 = vmatpush1.msra.mxu0 0.0
    %4723 = vmatprep.subr.mxu0 0.0
    %4724 = vmatpush1.msra.mxu0 0.0
    %4725 = vmatprep.subr.mxu0 0.0
    %4726 = vmatpush1.msra.mxu0 0.0
    %4727 = vmatprep.subr.mxu0 0.0
    %4728 = vmatpush1.msra.mxu0 0.0
    %4729 = vmatprep.subr.mxu0 0.0
    %4730 = vmatpush1.msra.mxu0 0.0
    %4731 = vmatprep.subr.mxu0 0.0
    %4732 = vmatpush1.msra.mxu0 0.0
    %4733 = vmatprep.subr.mxu0 0.0
    %4734 = vmatpush1.msra.mxu0 0.0
    %4735 = vmatprep.subr.mxu0 0.0
    %4736 = vmatpush1.msra.mxu0 0.0
    %4737 = vmatprep.subr.mxu0 0.0
    %4738 = vmatpush1.msra.mxu0 0.0
    %4739 = vmatprep.subr.mxu0 0.0
    %4740 = vmatpush1.msra.mxu0 0.0
    %4741 = vmatprep.subr.mxu0 0.0
    %4742 = vmatpush1.msra.mxu0 0.0
    %4743 = vmatprep.subr.mxu0 0.0
    %4744 = vmatpush1.msra.mxu0 0.0
    %4745 = vmatprep.subr.mxu0 0.0
    %4746 = vmatpush1.msra.mxu0 0.0
    %4747 = vmatprep.subr.mxu0 0.0
    %4748 = vmatpush1.msra.mxu0 0.0
    %4749 = vmatprep.subr.mxu0 0.0
    %4750 = vmatpush1.msra.mxu0 0.0
    %4751 = vmatprep.subr.mxu0 0.0
    %4752 = vmatpush1.msra.mxu0 0.0
    %4753 = vmatprep.subr.mxu0 0.0
    %4754 = vmatpush1.msra.mxu0 0.0
    %4755 = vmatprep.subr.mxu0 0.0
    %4756 = vmatpush1.msra.mxu0 0.0
    %4757 = vmatprep.subr.mxu0 0.0
    %4758 = vmatpush1.msra.mxu0 0.0
    %4759 = vmatprep.mubr.f32.mxu0 0.0
    %4760 = vmatmul.mubr.f32.gmra.mrb[0].mxu0 %v4693
    %v4761 = vpop.f32.mrb[0].mxu0
    %v4762 = vadd.f32 0.0, %v4761
    %v4763 = vpop.f32.mrb[0].mxu0
    %4764 = vdwg.mxu0
    %4765 = vrot.lane.b32.xlu0 %v3684, 64
    %v4766 = vpop.permute.xlu0 %4765
    %v4769 = vsel %vm203, %v4382, 0
    %4771 = vmatprep.subr.mxu0 0.0
    %4772 = vmatpush1.msra.mxu0 %v4766
    %4773 = vmatprep.subr.mxu0 0.0
    %4774 = vmatpush1.msra.mxu0 0.0
    %4775 = vmatprep.subr.mxu0 0.0
    %4776 = vmatpush1.msra.mxu0 0.0
    %4777 = vmatprep.subr.mxu0 0.0
    %4778 = vmatpush1.msra.mxu0 0.0
    %4779 = vmatprep.subr.mxu0 0.0
    %4780 = vmatpush1.msra.mxu0 0.0
    %4781 = vmatprep.subr.mxu0 0.0
    %4782 = vmatpush1.msra.mxu0 0.0
    %4783 = vmatprep.subr.mxu0 0.0
    %4784 = vmatpush1.msra.mxu0 0.0
    %4785 = vmatprep.subr.mxu0 0.0
    %4786 = vmatpush1.msra.mxu0 0.0
    %4787 = vmatprep.subr.mxu0 0.0
    %4788 = vmatpush1.msra.mxu0 0.0
    %4789 = vmatprep.subr.mxu0 0.0
    %4790 = vmatpush1.msra.mxu0 0.0
    %4791 = vmatprep.subr.mxu0 0.0
    %4792 = vmatpush1.msra.mxu0 0.0
    %4793 = vmatprep.subr.mxu0 0.0
    %4794 = vmatpush1.msra.mxu0 0.0
    %4795 = vmatprep.subr.mxu0 0.0
    %4796 = vmatpush1.msra.mxu0 0.0
    %4797 = vmatprep.subr.mxu0 0.0
    %4798 = vmatpush1.msra.mxu0 0.0
    %4799 = vmatprep.subr.mxu0 0.0
    %4800 = vmatpush1.msra.mxu0 0.0
    %4801 = vmatprep.subr.mxu0 0.0
    %4802 = vmatpush1.msra.mxu0 0.0
    %4803 = vmatprep.subr.mxu0 0.0
    %4804 = vmatpush1.msra.mxu0 0.0
    %4805 = vmatprep.subr.mxu0 0.0
    %4806 = vmatpush1.msra.mxu0 0.0
    %4807 = vmatprep.subr.mxu0 0.0
    %4808 = vmatpush1.msra.mxu0 0.0
    %4809 = vmatprep.subr.mxu0 0.0
    %4810 = vmatpush1.msra.mxu0 0.0
    %4811 = vmatprep.subr.mxu0 0.0
    %4812 = vmatpush1.msra.mxu0 0.0
    %4813 = vmatprep.subr.mxu0 0.0
    %4814 = vmatpush1.msra.mxu0 0.0
    %4815 = vmatprep.subr.mxu0 0.0
    %4816 = vmatpush1.msra.mxu0 0.0
    %4817 = vmatprep.subr.mxu0 0.0
    %4818 = vmatpush1.msra.mxu0 0.0
    %4819 = vmatprep.subr.mxu0 0.0
    %4820 = vmatpush1.msra.mxu0 0.0
    %4821 = vmatprep.subr.mxu0 0.0
    %4822 = vmatpush1.msra.mxu0 0.0
    %4823 = vmatprep.subr.mxu0 0.0
    %4824 = vmatpush1.msra.mxu0 0.0
    %4825 = vmatprep.subr.mxu0 0.0
    %4826 = vmatpush1.msra.mxu0 0.0
    %4827 = vmatprep.subr.mxu0 0.0
    %4828 = vmatpush1.msra.mxu0 0.0
    %4829 = vmatprep.subr.mxu0 0.0
    %4830 = vmatpush1.msra.mxu0 0.0
    %4831 = vmatprep.subr.mxu0 0.0
    %4832 = vmatpush1.msra.mxu0 0.0
    %4833 = vmatprep.subr.mxu0 0.0
    %4834 = vmatpush1.msra.mxu0 0.0
    %4835 = vmatprep.mubr.f32.mxu0 0.0
    %4836 = vmatmul.mubr.f32.gmra.mrb[0].mxu0 %v4769
    %v4837 = vpop.f32.mrb[0].mxu0
    %v4838 = vadd.f32 0.0, %v4837
    %v4839 = vpop.f32.mrb[0].mxu0
    %4840 = vdwg.mxu0
    %4841 = vrot.lane.b32.xlu0 %v3686, 64
    %v4842 = vpop.permute.xlu0 %4841
    %v4845 = vsel %vm203, %v4383, 0
    %4847 = vmatprep.subr.mxu0 0.0
    %4848 = vmatpush1.msra.mxu0 %v4842
    %4849 = vmatprep.subr.mxu0 0.0
    %4850 = vmatpush1.msra.mxu0 0.0
    %4851 = vmatprep.subr.mxu0 0.0
    %4852 = vmatpush1.msra.mxu0 0.0
    %4853 = vmatprep.subr.mxu0 0.0
    %4854 = vmatpush1.msra.mxu0 0.0
    %4855 = vmatprep.subr.mxu0 0.0
    %4856 = vmatpush1.msra.mxu0 0.0
    %4857 = vmatprep.subr.mxu0 0.0
    %4858 = vmatpush1.msra.mxu0 0.0
    %4859 = vmatprep.subr.mxu0 0.0
    %4860 = vmatpush1.msra.mxu0 0.0
    %4861 = vmatprep.subr.mxu0 0.0
    %4862 = vmatpush1.msra.mxu0 0.0
    %4863 = vmatprep.subr.mxu0 0.0
    %4864 = vmatpush1.msra.mxu0 0.0
    %4865 = vmatprep.subr.mxu0 0.0
    %4866 = vmatpush1.msra.mxu0 0.0
    %4867 = vmatprep.subr.mxu0 0.0
    %4868 = vmatpush1.msra.mxu0 0.0
    %4869 = vmatprep.subr.mxu0 0.0
    %4870 = vmatpush1.msra.mxu0 0.0
    %4871 = vmatprep.subr.mxu0 0.0
    %4872 = vmatpush1.msra.mxu0 0.0
    %4873 = vmatprep.subr.mxu0 0.0
    %4874 = vmatpush1.msra.mxu0 0.0
    %4875 = vmatprep.subr.mxu0 0.0
    %4876 = vmatpush1.msra.mxu0 0.0
    %4877 = vmatprep.subr.mxu0 0.0
    %4878 = vmatpush1.msra.mxu0 0.0
    %4879 = vmatprep.subr.mxu0 0.0
    %4880 = vmatpush1.msra.mxu0 0.0
    %4881 = vmatprep.subr.mxu0 0.0
    %4882 = vmatpush1.msra.mxu0 0.0
    %4883 = vmatprep.subr.mxu0 0.0
    %4884 = vmatpush1.msra.mxu0 0.0
    %4885 = vmatprep.subr.mxu0 0.0
    %4886 = vmatpush1.msra.mxu0 0.0
    %4887 = vmatprep.subr.mxu0 0.0
    %4888 = vmatpush1.msra.mxu0 0.0
    %4889 = vmatprep.subr.mxu0 0.0
    %4890 = vmatpush1.msra.mxu0 0.0
    %4891 = vmatprep.subr.mxu0 0.0
    %4892 = vmatpush1.msra.mxu0 0.0
    %4893 = vmatprep.subr.mxu0 0.0
    %4894 = vmatpush1.msra.mxu0 0.0
    %4895 = vmatprep.subr.mxu0 0.0
    %4896 = vmatpush1.msra.mxu0 0.0
    %4897 = vmatprep.subr.mxu0 0.0
    %4898 = vmatpush1.msra.mxu0 0.0
    %4899 = vmatprep.subr.mxu0 0.0
    %4900 = vmatpush1.msra.mxu0 0.0
    %4901 = vmatprep.subr.mxu0 0.0
    %4902 = vmatpush1.msra.mxu0 0.0
    %4903 = vmatprep.subr.mxu0 0.0
    %4904 = vmatpush1.msra.mxu0 0.0
    %4905 = vmatprep.subr.mxu0 0.0
    %4906 = vmatpush1.msra.mxu0 0.0
    %4907 = vmatprep.subr.mxu0 0.0
    %4908 = vmatpush1.msra.mxu0 0.0
    %4909 = vmatprep.subr.mxu0 0.0
    %4910 = vmatpush1.msra.mxu0 0.0
    %4911 = vmatprep.mubr.f32.mxu0 0.0
    %4912 = vmatmul.mubr.f32.gmra.mrb[0].mxu0 %v4845
    %v4913 = vpop.f32.mrb[0].mxu0
    %v4914 = vadd.f32 0.0, %v4913
    %v4915 = vpop.f32.mrb[0].mxu0
    %4916 = vdwg.mxu0
    %4917 = vrot.lane.b32.xlu0 %v3688, 64
    %v4918 = vpop.permute.xlu0 %4917
    %v4921 = vsel %vm203, %v4384, 0
    %4923 = vmatprep.subr.mxu0 0.0
    %4924 = vmatpush1.msra.mxu0 %v4918
    %4925 = vmatprep.subr.mxu0 0.0
    %4926 = vmatpush1.msra.mxu0 0.0
    %4927 = vmatprep.subr.mxu0 0.0
    %4928 = vmatpush1.msra.mxu0 0.0
    %4929 = vmatprep.subr.mxu0 0.0
    %4930 = vmatpush1.msra.mxu0 0.0
    %4931 = vmatprep.subr.mxu0 0.0
    %4932 = vmatpush1.msra.mxu0 0.0
    %4933 = vmatprep.subr.mxu0 0.0
    %4934 = vmatpush1.msra.mxu0 0.0
    %4935 = vmatprep.subr.mxu0 0.0
    %4936 = vmatpush1.msra.mxu0 0.0
    %4937 = vmatprep.subr.mxu0 0.0
    %4938 = vmatpush1.msra.mxu0 0.0
    %4939 = vmatprep.subr.mxu0 0.0
    %4940 = vmatpush1.msra.mxu0 0.0
    %4941 = vmatprep.subr.mxu0 0.0
    %4942 = vmatpush1.msra.mxu0 0.0
    %4943 = vmatprep.subr.mxu0 0.0
    %4944 = vmatpush1.msra.mxu0 0.0
    %4945 = vmatprep.subr.mxu0 0.0
    %4946 = vmatpush1.msra.mxu0 0.0
    %4947 = vmatprep.subr.mxu0 0.0
    %4948 = vmatpush1.msra.mxu0 0.0
    %4949 = vmatprep.subr.mxu0 0.0
    %4950 = vmatpush1.msra.mxu0 0.0
    %4951 = vmatprep.subr.mxu0 0.0
    %4952 = vmatpush1.msra.mxu0 0.0
    %4953 = vmatprep.subr.mxu0 0.0
    %4954 = vmatpush1.msra.mxu0 0.0
    %4955 = vmatprep.subr.mxu0 0.0
    %4956 = vmatpush1.msra.mxu0 0.0
    %4957 = vmatprep.subr.mxu0 0.0
    %4958 = vmatpush1.msra.mxu0 0.0
    %4959 = vmatprep.subr.mxu0 0.0
    %4960 = vmatpush1.msra.mxu0 0.0
    %4961 = vmatprep.subr.mxu0 0.0
    %4962 = vmatpush1.msra.mxu0 0.0
    %4963 = vmatprep.subr.mxu0 0.0
    %4964 = vmatpush1.msra.mxu0 0.0
    %4965 = vmatprep.subr.mxu0 0.0
    %4966 = vmatpush1.msra.mxu0 0.0
    %4967 = vmatprep.subr.mxu0 0.0
    %4968 = vmatpush1.msra.mxu0 0.0
    %4969 = vmatprep.subr.mxu0 0.0
    %4970 = vmatpush1.msra.mxu0 0.0
    %4971 = vmatprep.subr.mxu0 0.0
    %4972 = vmatpush1.msra.mxu0 0.0
    %4973 = vmatprep.subr.mxu0 0.0
    %4974 = vmatpush1.msra.mxu0 0.0
    %4975 = vmatprep.subr.mxu0 0.0
    %4976 = vmatpush1.msra.mxu0 0.0
    %4977 = vmatprep.subr.mxu0 0.0
    %4978 = vmatpush1.msra.mxu0 0.0
    %4979 = vmatprep.subr.mxu0 0.0
    %4980 = vmatpush1.msra.mxu0 0.0
    %4981 = vmatprep.subr.mxu0 0.0
    %4982 = vmatpush1.msra.mxu0 0.0
    %4983 = vmatprep.subr.mxu0 0.0
    %4984 = vmatpush1.msra.mxu0 0.0
    %4985 = vmatprep.subr.mxu0 0.0
    %4986 = vmatpush1.msra.mxu0 0.0
    %4987 = vmatprep.mubr.f32.mxu0 0.0
    %4988 = vmatmul.mubr.f32.gmra.mrb[0].mxu0 %v4921
    %v4989 = vpop.f32.mrb[0].mxu0
    %v4990 = vadd.f32 0.0, %v4989
    %v4991 = vpop.f32.mrb[0].mxu0
    %4992 = vdwg.mxu0
    %4995 = vrot.lane.b32.xlu0 %v4610, 8
    %v4996 = vpop.permute.xlu0 %4995
    %4997 = vrot.lane.b32.xlu0 %v4686, 8
    %v4998 = vpop.permute.xlu0 %4997
    %5003 = vrot.lane.b32.xlu0 %v4762, 16
    %v5004 = vpop.permute.xlu0 %5003
    %5005 = vrot.lane.b32.xlu0 %v4838, 16
    %v5006 = vpop.permute.xlu0 %5005
    %5011 = vrot.lane.b32.xlu0 %v4914, 24
    %v5012 = vpop.permute.xlu0 %5011
    %5013 = vrot.lane.b32.xlu0 %v4990, 24
    %v5014 = vpop.permute.xlu0 %5013
    %v5017 = vsel %vm203, %v4458, %v4996
    %v5018 = vsel %vm203, %v4534, %v4998
    %v5019 = vsel %vm1532, %v5017, %v5004
    %v5020 = vsel %vm1532, %v5018, %v5006
    %v5021 = vsel %vm1535, %v5019, %v5012
    %v5022 = vsel %vm1535, %v5020, %v5014
    %5023 = vrot.lane.b32.xlu0 %v4379, 8
    %v5024 = vpop.permute.xlu0 %5023
    %5025 = vrot.lane.b32.xlu0 %v4380, 8
    %v5026 = vpop.permute.xlu0 %5025
    %5029 = vrot.lane.b32.xlu0 %v4381, 16
    %v5030 = vpop.permute.xlu0 %5029
    %5031 = vrot.lane.b32.xlu0 %v4382, 16
    %v5032 = vpop.permute.xlu0 %5031
    %5035 = vrot.lane.b32.xlu0 %v4383, 24
    %v5036 = vpop.permute.xlu0 %5035
    %5037 = vrot.lane.b32.xlu0 %v4384, 24
    %v5038 = vpop.permute.xlu0 %5037
    %v5041 = vsel %vm203, %v4377, %v5024
    %v5042 = vsel %vm203, %v4378, %v5026
    %v5043 = vsel %vm1532, %v5041, %v5030
    %v5044 = vsel %vm1532, %v5042, %v5032
    %v5045 = vsel %vm1535, %v5043, %v5036
    %v5046 = vsel %vm1535, %v5044, %v5038
    %s5047 = scalar_lea.vmem %s6, 32
    %v5048 = vld [vmem:[%s5047] sm:$0xff]
    %v5049 = vld [vmem:[%s5047 + $0x8] sm:$0xff]
    %v5050 = vld [vmem:[%s5047 + $0x10] sm:$0xff]
    %v5051 = vld [vmem:[%s5047 + $0x18] sm:$0xff]
    %s5052 = scalar_lea.vmem %s7, 1
    %v5053 = vld [vmem:[%s5052] sm:$0x1]
    %v5055 = vlaneseq
    %v5056 = vshrl.u32 %v5055, 7
    %v5057 = vsub.s32 0, %v5056
    %v5058 = vrot.slane %v5053, %v5057
    %v5061 = vsel %vm105, %v5021, 0
    %v5064 = vsel %vm105, %v5022, 0
    %5066 = vmatprep.subr.mxu0 0.0
    %5067 = vmatpush1.msra.mxu0 %v5048
    %5068 = vmatprep.subr.mxu0 0.0
    %5069 = vmatpush1.msra.mxu0 %v5049
    %5070 = vmatprep.subr.mxu0 0.0
    %5071 = vmatpush1.msra.mxu0 %v5050
    %5072 = vmatprep.subr.mxu0 0.0
    %5073 = vmatpush1.msra.mxu0 %v5051
    %5074 = vmatprep.subr.mxu0 0.0
    %5075 = vmatpush1.msra.mxu0 0.0
    %5076 = vmatprep.subr.mxu0 0.0
    %5077 = vmatpush1.msra.mxu0 0.0
    %5078 = vmatprep.subr.mxu0 0.0
    %5079 = vmatpush1.msra.mxu0 0.0
    %5080 = vmatprep.subr.mxu0 0.0
    %5081 = vmatpush1.msra.mxu0 0.0
    %5082 = vmatprep.subr.mxu0 0.0
    %5083 = vmatpush1.msra.mxu0 0.0
    %5084 = vmatprep.subr.mxu0 0.0
    %5085 = vmatpush1.msra.mxu0 0.0
    %5086 = vmatprep.subr.mxu0 0.0
    %5087 = vmatpush1.msra.mxu0 0.0
    %5088 = vmatprep.subr.mxu0 0.0
    %5089 = vmatpush1.msra.mxu0 0.0
    %5090 = vmatprep.subr.mxu0 0.0
    %5091 = vmatpush1.msra.mxu0 0.0
    %5092 = vmatprep.subr.mxu0 0.0
    %5093 = vmatpush1.msra.mxu0 0.0
    %5094 = vmatprep.subr.mxu0 0.0
    %5095 = vmatpush1.msra.mxu0 0.0
    %5096 = vmatprep.subr.mxu0 0.0
    %5097 = vmatpush1.msra.mxu0 0.0
    %5098 = vmatprep.subr.mxu0 0.0
    %5099 = vmatpush1.msra.mxu0 0.0
    %5100 = vmatprep.subr.mxu0 0.0
    %5101 = vmatpush1.msra.mxu0 0.0
    %5102 = vmatprep.subr.mxu0 0.0
    %5103 = vmatpush1.msra.mxu0 0.0
    %5104 = vmatprep.subr.mxu0 0.0
    %5105 = vmatpush1.msra.mxu0 0.0
    %5106 = vmatprep.subr.mxu0 0.0
    %5107 = vmatpush1.msra.mxu0 0.0
    %5108 = vmatprep.subr.mxu0 0.0
    %5109 = vmatpush1.msra.mxu0 0.0
    %5110 = vmatprep.subr.mxu0 0.0
    %5111 = vmatpush1.msra.mxu0 0.0
    %5112 = vmatprep.subr.mxu0 0.0
    %5113 = vmatpush1.msra.mxu0 0.0
    %5114 = vmatprep.subr.mxu0 0.0
    %5115 = vmatpush1.msra.mxu0 0.0
    %5116 = vmatprep.subr.mxu0 0.0
    %5117 = vmatpush1.msra.mxu0 0.0
    %5118 = vmatprep.subr.mxu0 0.0
    %5119 = vmatpush1.msra.mxu0 0.0
    %5120 = vmatprep.subr.mxu0 0.0
    %5121 = vmatpush1.msra.mxu0 0.0
    %5122 = vmatprep.subr.mxu0 0.0
    %5123 = vmatpush1.msra.mxu0 0.0
    %5124 = vmatprep.subr.mxu0 0.0
    %5125 = vmatpush1.msra.mxu0 0.0
    %5126 = vmatprep.subr.mxu0 0.0
    %5127 = vmatpush1.msra.mxu0 0.0
    %5128 = vmatprep.subr.mxu0 0.0
    %5129 = vmatpush1.msra.mxu0 0.0
    %5130 = vmatprep.mubr.f32.mxu0 0.0
    %5131 = vmatmul.mubr.f32.gmra.mrb[0].mxu0 %v5061
    %v5132 = vpop.f32.mrb[0].mxu0
    %v5133 = vadd.f32 %v5058, %v5132
    %v5134 = vpop.f32.mrb[0].mxu0
    %5135 = vmatprep.mubr.f32.mxu0 0.0
    %5136 = vmatmul.mubr.f32.gmra.mrb[0].mxu0 %v5064
    %v5137 = vpop.f32.mrb[0].mxu0
    %v5138 = vadd.f32 %v5058, %v5137
    %v5139 = vpop.f32.mrb[0].mxu0
    %5140 = vdwg.mxu0
    %v5141 = vadd.f32 %v5133, %v3579
    %v5142 = vadd.f32 %v5138, %v3580
    %s5143 = scalar_lea.vmem %s8, 1
    %v5144 = vld [vmem:[%s5143] sm:$0x1]
    %s5145 = scalar_lea.vmem %s9, 1
    %v5146 = vld [vmem:[%s5145] sm:$0x1]
    %v5147 = vsel %vm105, %v5141, 0.0
    %5148 = vadd.xlane.f32.xlu0 %v5147
    %v5149 = vpop.xlane.xlu0 %5148
    %v5150 = vsel %vm105, %v5142, 0.0
    %5151 = vadd.xlane.f32.xlu0 %v5150
    %v5152 = vpop.xlane.xlu0 %5151
    %v5153 = vmul.f32 %v5149, 0.03125
    %v5154 = vmul.f32 %v5152, 0.03125
    %v5155 = vmul.f32 %v5141, %v5141
    %v5156 = vmul.f32 %v5142, %v5142
    %v5157 = vsel %vm105, %v5155, 0.0
    %5158 = vadd.xlane.f32.xlu0 %v5157
    %v5159 = vpop.xlane.xlu0 %5158
    %v5160 = vsel %vm105, %v5156, 0.0
    %5161 = vadd.xlane.f32.xlu0 %v5160
    %v5162 = vpop.xlane.xlu0 %5161
    %v5163 = vmul.f32 %v5159, 0.03125
    %v5164 = vmul.f32 %v5162, 0.03125
    %v5165 = vmul.f32 %v5153, %v5153
    %v5166 = vmul.f32 %v5154, %v5154
    %v5167 = vsub.f32 %v5163, %v5165
    %v5168 = vsub.f32 %v5164, %v5166
    %v5169 = vsub.f32 %v5141, %v5153
    %v5170 = vsub.f32 %v5142, %v5154
    %v5171 = vadd.f32 %v5167, 1e-05
    %v5172 = vadd.f32 %v5168, 1e-05
    %v5173 = vrsqrt.pop %v5171
    %v5174 = vrsqrt.pop %v5172
    %v5175 = vmul.f32 %v5169, %v5173
    %v5176 = vmul.f32 %v5170, %v5174
    %v5178 = vlaneseq
    %v5179 = vshrl.u32 %v5178, 7
    %v5180 = vsub.s32 0, %v5179
    %v5181 = vrot.slane %v5144, %v5180
    %v5183 = vmul.f32 %v5175, %v5181
    %v5184 = vmul.f32 %v5176, %v5181
    %v5186 = vlaneseq
    %v5187 = vshrl.u32 %v5186, 7
    %v5188 = vsub.s32 0, %v5187
    %v5189 = vrot.slane %v5146, %v5188
    %v5191 = vadd.f32 %v5183, %v5189
    %v5192 = vadd.f32 %v5184, %v5189
    %s5193 = scalar_lea.vmem %s10, 32
    %v5194 = vld [vmem:[%s5193] sm:$0xff]
    %v5195 = vld [vmem:[%s5193 + $0x8] sm:$0xff]
    %v5196 = vld [vmem:[%s5193 + $0x10] sm:$0xff]
    %v5197 = vld [vmem:[%s5193 + $0x18] sm:$0xff]
    %s5198 = scalar_lea.vmem %s11, 1
    %v5199 = vld [vmem:[%s5198] sm:$0x1]
    %v5201 = vlaneseq
    %v5202 = vshrl.u32 %v5201, 7
    %v5203 = vsub.s32 0, %v5202
    %v5204 = vrot.slane %v5199, %v5203
    %v5207 = vsel %vm105, %v5191, 0
    %v5210 = vsel %vm105, %v5192, 0
    %5212 = vmatprep.subr.mxu0 0.0
    %5213 = vmatpush1.msra.mxu0 %v5194
    %5214 = vmatprep.subr.mxu0 0.0
    %5215 = vmatpush1.msra.mxu0 %v5195
    %5216 = vmatprep.subr.mxu0 0.0
    %5217 = vmatpush1.msra.mxu0 %v5196
    %5218 = vmatprep.subr.mxu0 0.0
    %5219 = vmatpush1.msra.mxu0 %v5197
    %5220 = vmatprep.subr.mxu0 0.0
    %5221 = vmatpush1.msra.mxu0 0.0
    %5222 = vmatprep.subr.mxu0 0.0
    %5223 = vmatpush1.msra.mxu0 0.0
    %5224 = vmatprep.subr.mxu0 0.0
    %5225 = vmatpush1.msra.mxu0 0.0
    %5226 = vmatprep.subr.mxu0 0.0
    %5227 = vmatpush1.msra.mxu0 0.0
    %5228 = vmatprep.subr.mxu0 0.0
    %5229 = vmatpush1.msra.mxu0 0.0
    %5230 = vmatprep.subr.mxu0 0.0
    %5231 = vmatpush1.msra.mxu0 0.0
    %5232 = vmatprep.subr.mxu0 0.0
    %5233 = vmatpush1.msra.mxu0 0.0
    %5234 = vmatprep.subr.mxu0 0.0
    %5235 = vmatpush1.msra.mxu0 0.0
    %5236 = vmatprep.subr.mxu0 0.0
    %5237 = vmatpush1.msra.mxu0 0.0
    %5238 = vmatprep.subr.mxu0 0.0
    %5239 = vmatpush1.msra.mxu0 0.0
    %5240 = vmatprep.subr.mxu0 0.0
    %5241 = vmatpush1.msra.mxu0 0.0
    %5242 = vmatprep.subr.mxu0 0.0
    %5243 = vmatpush1.msra.mxu0 0.0
    %5244 = vmatprep.subr.mxu0 0.0
    %5245 = vmatpush1.msra.mxu0 0.0
    %5246 = vmatprep.subr.mxu0 0.0
    %5247 = vmatpush1.msra.mxu0 0.0
    %5248 = vmatprep.subr.mxu0 0.0
    %5249 = vmatpush1.msra.mxu0 0.0
    %5250 = vmatprep.subr.mxu0 0.0
    %5251 = vmatpush1.msra.mxu0 0.0
    %5252 = vmatprep.subr.mxu0 0.0
    %5253 = vmatpush1.msra.mxu0 0.0
    %5254 = vmatprep.subr.mxu0 0.0
    %5255 = vmatpush1.msra.mxu0 0.0
    %5256 = vmatprep.subr.mxu0 0.0
    %5257 = vmatpush1.msra.mxu0 0.0
    %5258 = vmatprep.subr.mxu0 0.0
    %5259 = vmatpush1.msra.mxu0 0.0
    %5260 = vmatprep.subr.mxu0 0.0
    %5261 = vmatpush1.msra.mxu0 0.0
    %5262 = vmatprep.subr.mxu0 0.0
    %5263 = vmatpush1.msra.mxu0 0.0
    %5264 = vmatprep.subr.mxu0 0.0
    %5265 = vmatpush1.msra.mxu0 0.0
    %5266 = vmatprep.subr.mxu0 0.0
    %5267 = vmatpush1.msra.mxu0 0.0
    %5268 = vmatprep.subr.mxu0 0.0
    %5269 = vmatpush1.msra.mxu0 0.0
    %5270 = vmatprep.subr.mxu0 0.0
    %5271 = vmatpush1.msra.mxu0 0.0
    %5272 = vmatprep.subr.mxu0 0.0
    %5273 = vmatpush1.msra.mxu0 0.0
    %5274 = vmatprep.subr.mxu0 0.0
    %5275 = vmatpush1.msra.mxu0 0.0
    %5276 = vmatprep.mubr.f32.mxu0 0.0
    %5277 = vmatmul.mubr.f32.gmra.mrb[0].mxu0 %v5207
    %v5278 = vpop.f32.mrb[0].mxu0
    %v5279 = vadd.f32 %v5204, %v5278
    %v5280 = vpop.f32.mrb[0].mxu0
    %5281 = vmatprep.mubr.f32.mxu0 0.0
    %5282 = vmatmul.mubr.f32.gmra.mrb[0].mxu0 %v5210
    %v5283 = vpop.f32.mrb[0].mxu0
    %v5284 = vadd.f32 %v5204, %v5283
    %v5285 = vpop.f32.mrb[0].mxu0
    %5286 = vmatprep.mubr.f32.mxu0 0.0
    %5287 = vmatmul.mubr.f32.gmra.mrb[0].mxu0 %v1722
    %v5288 = vpop.f32.mrb[0].mxu0
    %v5289 = vadd.f32 %v5204, %v5288
    %v5290 = vpop.f32.mrb[0].mxu0
    %5291 = vmatprep.mubr.f32.mxu0 0.0
    %5292 = vmatmul.mubr.f32.gmra.mrb[0].mxu0 %v1725
    %v5293 = vpop.f32.mrb[0].mxu0
    %v5294 = vadd.f32 %v5204, %v5293
    %v5295 = vpop.f32.mrb[0].mxu0
    %5296 = vdwg.mxu0
    %5299 = vrot.lane.b32.xlu0 %v5279, 120
    %v5300 = vpop.permute.xlu0 %5299
    %5301 = vrot.lane.b32.xlu0 %v5284, 120
    %v5302 = vpop.permute.xlu0 %5301
    %5303 = vrot.lane.b32.xlu0 %v5279, 112
    %v5304 = vpop.permute.xlu0 %5303
    %5305 = vrot.lane.b32.xlu0 %v5284, 112
    %v5306 = vpop.permute.xlu0 %5305
    %5307 = vrot.lane.b32.xlu0 %v5279, 104
    %v5308 = vpop.permute.xlu0 %5307
    %5309 = vrot.lane.b32.xlu0 %v5284, 104
    %v5310 = vpop.permute.xlu0 %5309
    %5313 = vrot.lane.b32.xlu0 %v5289, 120
    %v5314 = vpop.permute.xlu0 %5313
    %5315 = vrot.lane.b32.xlu0 %v5294, 120
    %v5316 = vpop.permute.xlu0 %5315
    %5317 = vrot.lane.b32.xlu0 %v5289, 112
    %v5318 = vpop.permute.xlu0 %5317
    %5319 = vrot.lane.b32.xlu0 %v5294, 112
    %v5320 = vpop.permute.xlu0 %5319
    %5321 = vrot.lane.b32.xlu0 %v5289, 104
    %v5322 = vpop.permute.xlu0 %5321
    %5323 = vrot.lane.b32.xlu0 %v5294, 104
    %v5324 = vpop.permute.xlu0 %5323
    %5325 = vrot.lane.b32.xlu0 %v5289, 96
    %v5326 = vpop.permute.xlu0 %5325
    %v5327 = vsel %vm203, %v5279, 0
    %v5329 = vsel %vm203, %v5326, 0
    %5331 = vmatprep.subr.mxu0 0.0
    %5332 = vmatpush1.xpose.msra.mxu0 %v5329
    %5333 = vmatprep.subr.mxu0 0.0
    %5334 = vmatpush1.xpose.msra.mxu0 0.0
    %5335 = vmatprep.subr.mxu0 0.0
    %5336 = vmatpush1.xpose.msra.mxu0 0.0
    %5337 = vmatprep.subr.mxu0 0.0
    %5338 = vmatpush1.xpose.msra.mxu0 0.0
    %5339 = vmatprep.subr.mxu0 0.0
    %5340 = vmatpush1.xpose.msra.mxu0 0.0
    %5341 = vmatprep.subr.mxu0 0.0
    %5342 = vmatpush1.xpose.msra.mxu0 0.0
    %5343 = vmatprep.subr.mxu0 0.0
    %5344 = vmatpush1.xpose.msra.mxu0 0.0
    %5345 = vmatprep.subr.mxu0 0.0
    %5346 = vmatpush1.xpose.msra.mxu0 0.0
    %5347 = vmatprep.subr.mxu0 0.0
    %5348 = vmatpush1.xpose.msra.mxu0 0.0
    %5349 = vmatprep.subr.mxu0 0.0
    %5350 = vmatpush1.xpose.msra.mxu0 0.0
    %5351 = vmatprep.subr.mxu0 0.0
    %5352 = vmatpush1.xpose.msra.mxu0 0.0
    %5353 = vmatprep.subr.mxu0 0.0
    %5354 = vmatpush1.xpose.msra.mxu0 0.0
    %5355 = vmatprep.subr.mxu0 0.0
    %5356 = vmatpush1.xpose.msra.mxu0 0.0
    %5357 = vmatprep.subr.mxu0 0.0
    %5358 = vmatpush1.xpose.msra.mxu0 0.0
    %5359 = vmatprep.subr.mxu0 0.0
    %5360 = vmatpush1.xpose.msra.mxu0 0.0
    %5361 = vmatprep.subr.mxu0 0.0
    %5362 = vmatpush1.xpose.msra.mxu0 0.0
    %5363 = vmatprep.subr.mxu0 0.0
    %5364 = vmatpush1.xpose.msra.mxu0 0.0
    %5365 = vmatprep.subr.mxu0 0.0
    %5366 = vmatpush1.xpose.msra.mxu0 0.0
    %5367 = vmatprep.subr.mxu0 0.0
    %5368 = vmatpush1.xpose.msra.mxu0 0.0
    %5369 = vmatprep.subr.mxu0 0.0
    %5370 = vmatpush1.xpose.msra.mxu0 0.0
    %5371 = vmatprep.subr.mxu0 0.0
    %5372 = vmatpush1.xpose.msra.mxu0 0.0
    %5373 = vmatprep.subr.mxu0 0.0
    %5374 = vmatpush1.xpose.msra.mxu0 0.0
    %5375 = vmatprep.subr.mxu0 0.0
    %5376 = vmatpush1.xpose.msra.mxu0 0.0
    %5377 = vmatprep.subr.mxu0 0.0
    %5378 = vmatpush1.xpose.msra.mxu0 0.0
    %5379 = vmatprep.subr.mxu0 0.0
    %5380 = vmatpush1.xpose.msra.mxu0 0.0
    %5381 = vmatprep.subr.mxu0 0.0
    %5382 = vmatpush1.xpose.msra.mxu0 0.0
    %5383 = vmatprep.subr.mxu0 0.0
    %5384 = vmatpush1.xpose.msra.mxu0 0.0
    %5385 = vmatprep.subr.mxu0 0.0
    %5386 = vmatpush1.xpose.msra.mxu0 0.0
    %5387 = vmatprep.subr.mxu0 0.0
    %5388 = vmatpush1.xpose.msra.mxu0 0.0
    %5389 = vmatprep.subr.mxu0 0.0
    %5390 = vmatpush1.xpose.msra.mxu0 0.0
    %5391 = vmatprep.subr.mxu0 0.0
    %5392 = vmatpush1.xpose.msra.mxu0 0.0
    %5393 = vmatprep.subr.mxu0 0.0
    %5394 = vmatpush1.xpose.msra.mxu0 0.0
    %5395 = vmatprep.mubr.f32.mxu0 0.0
    %5396 = vmatmul.mubr.f32.gmra.mrb[0].mxu0 %v5327
    %v5397 = vpop.f32.mrb[0].mxu0
    %v5398 = vadd.f32 %v86, %v5397
    %v5399 = vpop.f32.mrb[0].mxu0
    %5400 = vdwg.mxu0
    %5401 = vrot.lane.b32.xlu0 %v5294, 96
    %v5402 = vpop.permute.xlu0 %5401
    %v5403 = vsel %vm203, %v5284, 0
    %v5405 = vsel %vm203, %v5402, 0
    %5407 = vmatprep.subr.mxu0 0.0
    %5408 = vmatpush1.xpose.msra.mxu0 %v5405
    %5409 = vmatprep.subr.mxu0 0.0
    %5410 = vmatpush1.xpose.msra.mxu0 0.0
    %5411 = vmatprep.subr.mxu0 0.0
    %5412 = vmatpush1.xpose.msra.mxu0 0.0
    %5413 = vmatprep.subr.mxu0 0.0
    %5414 = vmatpush1.xpose.msra.mxu0 0.0
    %5415 = vmatprep.subr.mxu0 0.0
    %5416 = vmatpush1.xpose.msra.mxu0 0.0
    %5417 = vmatprep.subr.mxu0 0.0
    %5418 = vmatpush1.xpose.msra.mxu0 0.0
    %5419 = vmatprep.subr.mxu0 0.0
    %5420 = vmatpush1.xpose.msra.mxu0 0.0
    %5421 = vmatprep.subr.mxu0 0.0
    %5422 = vmatpush1.xpose.msra.mxu0 0.0
    %5423 = vmatprep.subr.mxu0 0.0
    %5424 = vmatpush1.xpose.msra.mxu0 0.0
    %5425 = vmatprep.subr.mxu0 0.0
    %5426 = vmatpush1.xpose.msra.mxu0 0.0
    %5427 = vmatprep.subr.mxu0 0.0
    %5428 = vmatpush1.xpose.msra.mxu0 0.0
    %5429 = vmatprep.subr.mxu0 0.0
    %5430 = vmatpush1.xpose.msra.mxu0 0.0
    %5431 = vmatprep.subr.mxu0 0.0
    %5432 = vmatpush1.xpose.msra.mxu0 0.0
    %5433 = vmatprep.subr.mxu0 0.0
    %5434 = vmatpush1.xpose.msra.mxu0 0.0
    %5435 = vmatprep.subr.mxu0 0.0
    %5436 = vmatpush1.xpose.msra.mxu0 0.0
    %5437 = vmatprep.subr.mxu0 0.0
    %5438 = vmatpush1.xpose.msra.mxu0 0.0
    %5439 = vmatprep.subr.mxu0 0.0
    %5440 = vmatpush1.xpose.msra.mxu0 0.0
    %5441 = vmatprep.subr.mxu0 0.0
    %5442 = vmatpush1.xpose.msra.mxu0 0.0
    %5443 = vmatprep.subr.mxu0 0.0
    %5444 = vmatpush1.xpose.msra.mxu0 0.0
    %5445 = vmatprep.subr.mxu0 0.0
    %5446 = vmatpush1.xpose.msra.mxu0 0.0
    %5447 = vmatprep.subr.mxu0 0.0
    %5448 = vmatpush1.xpose.msra.mxu0 0.0
    %5449 = vmatprep.subr.mxu0 0.0
    %5450 = vmatpush1.xpose.msra.mxu0 0.0
    %5451 = vmatprep.subr.mxu0 0.0
    %5452 = vmatpush1.xpose.msra.mxu0 0.0
    %5453 = vmatprep.subr.mxu0 0.0
    %5454 = vmatpush1.xpose.msra.mxu0 0.0
    %5455 = vmatprep.subr.mxu0 0.0
    %5456 = vmatpush1.xpose.msra.mxu0 0.0
    %5457 = vmatprep.subr.mxu0 0.0
    %5458 = vmatpush1.xpose.msra.mxu0 0.0
    %5459 = vmatprep.subr.mxu0 0.0
    %5460 = vmatpush1.xpose.msra.mxu0 0.0
    %5461 = vmatprep.subr.mxu0 0.0
    %5462 = vmatpush1.xpose.msra.mxu0 0.0
    %5463 = vmatprep.subr.mxu0 0.0
    %5464 = vmatpush1.xpose.msra.mxu0 0.0
    %5465 = vmatprep.subr.mxu0 0.0
    %5466 = vmatpush1.xpose.msra.mxu0 0.0
    %5467 = vmatprep.subr.mxu0 0.0
    %5468 = vmatpush1.xpose.msra.mxu0 0.0
    %5469 = vmatprep.subr.mxu0 0.0
    %5470 = vmatpush1.xpose.msra.mxu0 0.0
    %5471 = vmatprep.mubr.f32.mxu0 0.0
    %5472 = vmatmul.mubr.f32.gmra.mrb[0].mxu0 %v5403
    %v5473 = vpop.f32.mrb[0].mxu0
    %v5474 = vadd.f32 %v87, %v5473
    %v5475 = vpop.f32.mrb[0].mxu0
    %5476 = vdwg.mxu0
    %5477 = vrot.lane.b32.xlu0 %v5314, 96
    %v5478 = vpop.permute.xlu0 %5477
    %v5479 = vsel %vm203, %v5300, 0
    %v5481 = vsel %vm203, %v5478, 0
    %5483 = vmatprep.subr.mxu0 0.0
    %5484 = vmatpush1.xpose.msra.mxu0 %v5481
    %5485 = vmatprep.subr.mxu0 0.0
    %5486 = vmatpush1.xpose.msra.mxu0 0.0
    %5487 = vmatprep.subr.mxu0 0.0
    %5488 = vmatpush1.xpose.msra.mxu0 0.0
    %5489 = vmatprep.subr.mxu0 0.0
    %5490 = vmatpush1.xpose.msra.mxu0 0.0
    %5491 = vmatprep.subr.mxu0 0.0
    %5492 = vmatpush1.xpose.msra.mxu0 0.0
    %5493 = vmatprep.subr.mxu0 0.0
    %5494 = vmatpush1.xpose.msra.mxu0 0.0
    %5495 = vmatprep.subr.mxu0 0.0
    %5496 = vmatpush1.xpose.msra.mxu0 0.0
    %5497 = vmatprep.subr.mxu0 0.0
    %5498 = vmatpush1.xpose.msra.mxu0 0.0
    %5499 = vmatprep.subr.mxu0 0.0
    %5500 = vmatpush1.xpose.msra.mxu0 0.0
    %5501 = vmatprep.subr.mxu0 0.0
    %5502 = vmatpush1.xpose.msra.mxu0 0.0
    %5503 = vmatprep.subr.mxu0 0.0
    %5504 = vmatpush1.xpose.msra.mxu0 0.0
    %5505 = vmatprep.subr.mxu0 0.0
    %5506 = vmatpush1.xpose.msra.mxu0 0.0
    %5507 = vmatprep.subr.mxu0 0.0
    %5508 = vmatpush1.xpose.msra.mxu0 0.0
    %5509 = vmatprep.subr.mxu0 0.0
    %5510 = vmatpush1.xpose.msra.mxu0 0.0
    %5511 = vmatprep.subr.mxu0 0.0
    %5512 = vmatpush1.xpose.msra.mxu0 0.0
    %5513 = vmatprep.subr.mxu0 0.0
    %5514 = vmatpush1.xpose.msra.mxu0 0.0
    %5515 = vmatprep.subr.mxu0 0.0
    %5516 = vmatpush1.xpose.msra.mxu0 0.0
    %5517 = vmatprep.subr.mxu0 0.0
    %5518 = vmatpush1.xpose.msra.mxu0 0.0
    %5519 = vmatprep.subr.mxu0 0.0
    %5520 = vmatpush1.xpose.msra.mxu0 0.0
    %5521 = vmatprep.subr.mxu0 0.0
    %5522 = vmatpush1.xpose.msra.mxu0 0.0
    %5523 = vmatprep.subr.mxu0 0.0
    %5524 = vmatpush1.xpose.msra.mxu0 0.0
    %5525 = vmatprep.subr.mxu0 0.0
    %5526 = vmatpush1.xpose.msra.mxu0 0.0
    %5527 = vmatprep.subr.mxu0 0.0
    %5528 = vmatpush1.xpose.msra.mxu0 0.0
    %5529 = vmatprep.subr.mxu0 0.0
    %5530 = vmatpush1.xpose.msra.mxu0 0.0
    %5531 = vmatprep.subr.mxu0 0.0
    %5532 = vmatpush1.xpose.msra.mxu0 0.0
    %5533 = vmatprep.subr.mxu0 0.0
    %5534 = vmatpush1.xpose.msra.mxu0 0.0
    %5535 = vmatprep.subr.mxu0 0.0
    %5536 = vmatpush1.xpose.msra.mxu0 0.0
    %5537 = vmatprep.subr.mxu0 0.0
    %5538 = vmatpush1.xpose.msra.mxu0 0.0
    %5539 = vmatprep.subr.mxu0 0.0
    %5540 = vmatpush1.xpose.msra.mxu0 0.0
    %5541 = vmatprep.subr.mxu0 0.0
    %5542 = vmatpush1.xpose.msra.mxu0 0.0
    %5543 = vmatprep.subr.mxu0 0.0
    %5544 = vmatpush1.xpose.msra.mxu0 0.0
    %5545 = vmatprep.subr.mxu0 0.0
    %5546 = vmatpush1.xpose.msra.mxu0 0.0
    %5547 = vmatprep.mubr.f32.mxu0 0.0
    %5548 = vmatmul.mubr.f32.gmra.mrb[0].mxu0 %v5479
    %v5549 = vpop.f32.mrb[0].mxu0
    %v5550 = vadd.f32 %v88, %v5549
    %v5551 = vpop.f32.mrb[0].mxu0
    %5552 = vdwg.mxu0
    %5553 = vrot.lane.b32.xlu0 %v5316, 96
    %v5554 = vpop.permute.xlu0 %5553
    %v5555 = vsel %vm203, %v5302, 0
    %v5557 = vsel %vm203, %v5554, 0
    %5559 = vmatprep.subr.mxu0 0.0
    %5560 = vmatpush1.xpose.msra.mxu0 %v5557
    %5561 = vmatprep.subr.mxu0 0.0
    %5562 = vmatpush1.xpose.msra.mxu0 0.0
    %5563 = vmatprep.subr.mxu0 0.0
    %5564 = vmatpush1.xpose.msra.mxu0 0.0
    %5565 = vmatprep.subr.mxu0 0.0
    %5566 = vmatpush1.xpose.msra.mxu0 0.0
    %5567 = vmatprep.subr.mxu0 0.0
    %5568 = vmatpush1.xpose.msra.mxu0 0.0
    %5569 = vmatprep.subr.mxu0 0.0
    %5570 = vmatpush1.xpose.msra.mxu0 0.0
    %5571 = vmatprep.subr.mxu0 0.0
    %5572 = vmatpush1.xpose.msra.mxu0 0.0
    %5573 = vmatprep.subr.mxu0 0.0
    %5574 = vmatpush1.xpose.msra.mxu0 0.0
    %5575 = vmatprep.subr.mxu0 0.0
    %5576 = vmatpush1.xpose.msra.mxu0 0.0
    %5577 = vmatprep.subr.mxu0 0.0
    %5578 = vmatpush1.xpose.msra.mxu0 0.0
    %5579 = vmatprep.subr.mxu0 0.0
    %5580 = vmatpush1.xpose.msra.mxu0 0.0
    %5581 = vmatprep.subr.mxu0 0.0
    %5582 = vmatpush1.xpose.msra.mxu0 0.0
    %5583 = vmatprep.subr.mxu0 0.0
    %5584 = vmatpush1.xpose.msra.mxu0 0.0
    %5585 = vmatprep.subr.mxu0 0.0
    %5586 = vmatpush1.xpose.msra.mxu0 0.0
    %5587 = vmatprep.subr.mxu0 0.0
    %5588 = vmatpush1.xpose.msra.mxu0 0.0
    %5589 = vmatprep.subr.mxu0 0.0
    %5590 = vmatpush1.xpose.msra.mxu0 0.0
    %5591 = vmatprep.subr.mxu0 0.0
    %5592 = vmatpush1.xpose.msra.mxu0 0.0
    %5593 = vmatprep.subr.mxu0 0.0
    %5594 = vmatpush1.xpose.msra.mxu0 0.0
    %5595 = vmatprep.subr.mxu0 0.0
    %5596 = vmatpush1.xpose.msra.mxu0 0.0
    %5597 = vmatprep.subr.mxu0 0.0
    %5598 = vmatpush1.xpose.msra.mxu0 0.0
    %5599 = vmatprep.subr.mxu0 0.0
    %5600 = vmatpush1.xpose.msra.mxu0 0.0
    %5601 = vmatprep.subr.mxu0 0.0
    %5602 = vmatpush1.xpose.msra.mxu0 0.0
    %5603 = vmatprep.subr.mxu0 0.0
    %5604 = vmatpush1.xpose.msra.mxu0 0.0
    %5605 = vmatprep.subr.mxu0 0.0
    %5606 = vmatpush1.xpose.msra.mxu0 0.0
    %5607 = vmatprep.subr.mxu0 0.0
    %5608 = vmatpush1.xpose.msra.mxu0 0.0
    %5609 = vmatprep.subr.mxu0 0.0
    %5610 = vmatpush1.xpose.msra.mxu0 0.0
    %5611 = vmatprep.subr.mxu0 0.0
    %5612 = vmatpush1.xpose.msra.mxu0 0.0
    %5613 = vmatprep.subr.mxu0 0.0
    %5614 = vmatpush1.xpose.msra.mxu0 0.0
    %5615 = vmatprep.subr.mxu0 0.0
    %5616 = vmatpush1.xpose.msra.mxu0 0.0
    %5617 = vmatprep.subr.mxu0 0.0
    %5618 = vmatpush1.xpose.msra.mxu0 0.0
    %5619 = vmatprep.subr.mxu0 0.0
    %5620 = vmatpush1.xpose.msra.mxu0 0.0
    %5621 = vmatprep.subr.mxu0 0.0
    %5622 = vmatpush1.xpose.msra.mxu0 0.0
    %5623 = vmatprep.mubr.f32.mxu0 0.0
    %5624 = vmatmul.mubr.f32.gmra.mrb[0].mxu0 %v5555
    %v5625 = vpop.f32.mrb[0].mxu0
    %v5626 = vadd.f32 %v89, %v5625
    %v5627 = vpop.f32.mrb[0].mxu0
    %5628 = vdwg.mxu0
    %5629 = vrot.lane.b32.xlu0 %v5318, 96
    %v5630 = vpop.permute.xlu0 %5629
    %v5631 = vsel %vm203, %v5304, 0
    %v5633 = vsel %vm203, %v5630, 0
    %5635 = vmatprep.subr.mxu0 0.0
    %5636 = vmatpush1.xpose.msra.mxu0 %v5633
    %5637 = vmatprep.subr.mxu0 0.0
    %5638 = vmatpush1.xpose.msra.mxu0 0.0
    %5639 = vmatprep.subr.mxu0 0.0
    %5640 = vmatpush1.xpose.msra.mxu0 0.0
    %5641 = vmatprep.subr.mxu0 0.0
    %5642 = vmatpush1.xpose.msra.mxu0 0.0
    %5643 = vmatprep.subr.mxu0 0.0
    %5644 = vmatpush1.xpose.msra.mxu0 0.0
    %5645 = vmatprep.subr.mxu0 0.0
    %5646 = vmatpush1.xpose.msra.mxu0 0.0
    %5647 = vmatprep.subr.mxu0 0.0
    %5648 = vmatpush1.xpose.msra.mxu0 0.0
    %5649 = vmatprep.subr.mxu0 0.0
    %5650 = vmatpush1.xpose.msra.mxu0 0.0
    %5651 = vmatprep.subr.mxu0 0.0
    %5652 = vmatpush1.xpose.msra.mxu0 0.0
    %5653 = vmatprep.subr.mxu0 0.0
    %5654 = vmatpush1.xpose.msra.mxu0 0.0
    %5655 = vmatprep.subr.mxu0 0.0
    %5656 = vmatpush1.xpose.msra.mxu0 0.0
    %5657 = vmatprep.subr.mxu0 0.0
    %5658 = vmatpush1.xpose.msra.mxu0 0.0
    %5659 = vmatprep.subr.mxu0 0.0
    %5660 = vmatpush1.xpose.msra.mxu0 0.0
    %5661 = vmatprep.subr.mxu0 0.0
    %5662 = vmatpush1.xpose.msra.mxu0 0.0
    %5663 = vmatprep.subr.mxu0 0.0
    %5664 = vmatpush1.xpose.msra.mxu0 0.0
    %5665 = vmatprep.subr.mxu0 0.0
    %5666 = vmatpush1.xpose.msra.mxu0 0.0
    %5667 = vmatprep.subr.mxu0 0.0
    %5668 = vmatpush1.xpose.msra.mxu0 0.0
    %5669 = vmatprep.subr.mxu0 0.0
    %5670 = vmatpush1.xpose.msra.mxu0 0.0
    %5671 = vmatprep.subr.mxu0 0.0
    %5672 = vmatpush1.xpose.msra.mxu0 0.0
    %5673 = vmatprep.subr.mxu0 0.0
    %5674 = vmatpush1.xpose.msra.mxu0 0.0
    %5675 = vmatprep.subr.mxu0 0.0
    %5676 = vmatpush1.xpose.msra.mxu0 0.0
    %5677 = vmatprep.subr.mxu0 0.0
    %5678 = vmatpush1.xpose.msra.mxu0 0.0
    %5679 = vmatprep.subr.mxu0 0.0
    %5680 = vmatpush1.xpose.msra.mxu0 0.0
    %5681 = vmatprep.subr.mxu0 0.0
    %5682 = vmatpush1.xpose.msra.mxu0 0.0
    %5683 = vmatprep.subr.mxu0 0.0
    %5684 = vmatpush1.xpose.msra.mxu0 0.0
    %5685 = vmatprep.subr.mxu0 0.0
    %5686 = vmatpush1.xpose.msra.mxu0 0.0
    %5687 = vmatprep.subr.mxu0 0.0
    %5688 = vmatpush1.xpose.msra.mxu0 0.0
    %5689 = vmatprep.subr.mxu0 0.0
    %5690 = vmatpush1.xpose.msra.mxu0 0.0
    %5691 = vmatprep.subr.mxu0 0.0
    %5692 = vmatpush1.xpose.msra.mxu0 0.0
    %5693 = vmatprep.subr.mxu0 0.0
    %5694 = vmatpush1.xpose.msra.mxu0 0.0
    %5695 = vmatprep.subr.mxu0 0.0
    %5696 = vmatpush1.xpose.msra.mxu0 0.0
    %5697 = vmatprep.subr.mxu0 0.0
    %5698 = vmatpush1.xpose.msra.mxu0 0.0
    %5699 = vmatprep.mubr.f32.mxu0 0.0
    %5700 = vmatmul.mubr.f32.gmra.mrb[0].mxu0 %v5631
    %v5701 = vpop.f32.mrb[0].mxu0
    %v5702 = vadd.f32 %v90, %v5701
    %v5703 = vpop.f32.mrb[0].mxu0
    %5704 = vdwg.mxu0
    %5705 = vrot.lane.b32.xlu0 %v5320, 96
    %v5706 = vpop.permute.xlu0 %5705
    %v5707 = vsel %vm203, %v5306, 0
    %v5709 = vsel %vm203, %v5706, 0
    %5711 = vmatprep.subr.mxu0 0.0
    %5712 = vmatpush1.xpose.msra.mxu0 %v5709
    %5713 = vmatprep.subr.mxu0 0.0
    %5714 = vmatpush1.xpose.msra.mxu0 0.0
    %5715 = vmatprep.subr.mxu0 0.0
    %5716 = vmatpush1.xpose.msra.mxu0 0.0
    %5717 = vmatprep.subr.mxu0 0.0
    %5718 = vmatpush1.xpose.msra.mxu0 0.0
    %5719 = vmatprep.subr.mxu0 0.0
    %5720 = vmatpush1.xpose.msra.mxu0 0.0
    %5721 = vmatprep.subr.mxu0 0.0
    %5722 = vmatpush1.xpose.msra.mxu0 0.0
    %5723 = vmatprep.subr.mxu0 0.0
    %5724 = vmatpush1.xpose.msra.mxu0 0.0
    %5725 = vmatprep.subr.mxu0 0.0
    %5726 = vmatpush1.xpose.msra.mxu0 0.0
    %5727 = vmatprep.subr.mxu0 0.0
    %5728 = vmatpush1.xpose.msra.mxu0 0.0
    %5729 = vmatprep.subr.mxu0 0.0
    %5730 = vmatpush1.xpose.msra.mxu0 0.0
    %5731 = vmatprep.subr.mxu0 0.0
    %5732 = vmatpush1.xpose.msra.mxu0 0.0
    %5733 = vmatprep.subr.mxu0 0.0
    %5734 = vmatpush1.xpose.msra.mxu0 0.0
    %5735 = vmatprep.subr.mxu0 0.0
    %5736 = vmatpush1.xpose.msra.mxu0 0.0
    %5737 = vmatprep.subr.mxu0 0.0
    %5738 = vmatpush1.xpose.msra.mxu0 0.0
    %5739 = vmatprep.subr.mxu0 0.0
    %5740 = vmatpush1.xpose.msra.mxu0 0.0
    %5741 = vmatprep.subr.mxu0 0.0
    %5742 = vmatpush1.xpose.msra.mxu0 0.0
    %5743 = vmatprep.subr.mxu0 0.0
    %5744 = vmatpush1.xpose.msra.mxu0 0.0
    %5745 = vmatprep.subr.mxu0 0.0
    %5746 = vmatpush1.xpose.msra.mxu0 0.0
    %5747 = vmatprep.subr.mxu0 0.0
    %5748 = vmatpush1.xpose.msra.mxu0 0.0
    %5749 = vmatprep.subr.mxu0 0.0
    %5750 = vmatpush1.xpose.msra.mxu0 0.0
    %5751 = vmatprep.subr.mxu0 0.0
    %5752 = vmatpush1.xpose.msra.mxu0 0.0
    %5753 = vmatprep.subr.mxu0 0.0
    %5754 = vmatpush1.xpose.msra.mxu0 0.0
    %5755 = vmatprep.subr.mxu0 0.0
    %5756 = vmatpush1.xpose.msra.mxu0 0.0
    %5757 = vmatprep.subr.mxu0 0.0
    %5758 = vmatpush1.xpose.msra.mxu0 0.0
    %5759 = vmatprep.subr.mxu0 0.0
    %5760 = vmatpush1.xpose.msra.mxu0 0.0
    %5761 = vmatprep.subr.mxu0 0.0
    %5762 = vmatpush1.xpose.msra.mxu0 0.0
    %5763 = vmatprep.subr.mxu0 0.0
    %5764 = vmatpush1.xpose.msra.mxu0 0.0
    %5765 = vmatprep.subr.mxu0 0.0
    %5766 = vmatpush1.xpose.msra.mxu0 0.0
    %5767 = vmatprep.subr.mxu0 0.0
    %5768 = vmatpush1.xpose.msra.mxu0 0.0
    %5769 = vmatprep.subr.mxu0 0.0
    %5770 = vmatpush1.xpose.msra.mxu0 0.0
    %5771 = vmatprep.subr.mxu0 0.0
    %5772 = vmatpush1.xpose.msra.mxu0 0.0
    %5773 = vmatprep.subr.mxu0 0.0
    %5774 = vmatpush1.xpose.msra.mxu0 0.0
    %5775 = vmatprep.mubr.f32.mxu0 0.0
    %5776 = vmatmul.mubr.f32.gmra.mrb[0].mxu0 %v5707
    %v5777 = vpop.f32.mrb[0].mxu0
    %v5778 = vadd.f32 %v91, %v5777
    %v5779 = vpop.f32.mrb[0].mxu0
    %5780 = vdwg.mxu0
    %5781 = vrot.lane.b32.xlu0 %v5322, 96
    %v5782 = vpop.permute.xlu0 %5781
    %v5783 = vsel %vm203, %v5308, 0
    %v5785 = vsel %vm203, %v5782, 0
    %5787 = vmatprep.subr.mxu0 0.0
    %5788 = vmatpush1.xpose.msra.mxu0 %v5785
    %5789 = vmatprep.subr.mxu0 0.0
    %5790 = vmatpush1.xpose.msra.mxu0 0.0
    %5791 = vmatprep.subr.mxu0 0.0
    %5792 = vmatpush1.xpose.msra.mxu0 0.0
    %5793 = vmatprep.subr.mxu0 0.0
    %5794 = vmatpush1.xpose.msra.mxu0 0.0
    %5795 = vmatprep.subr.mxu0 0.0
    %5796 = vmatpush1.xpose.msra.mxu0 0.0
    %5797 = vmatprep.subr.mxu0 0.0
    %5798 = vmatpush1.xpose.msra.mxu0 0.0
    %5799 = vmatprep.subr.mxu0 0.0
    %5800 = vmatpush1.xpose.msra.mxu0 0.0
    %5801 = vmatprep.subr.mxu0 0.0
    %5802 = vmatpush1.xpose.msra.mxu0 0.0
    %5803 = vmatprep.subr.mxu0 0.0
    %5804 = vmatpush1.xpose.msra.mxu0 0.0
    %5805 = vmatprep.subr.mxu0 0.0
    %5806 = vmatpush1.xpose.msra.mxu0 0.0
    %5807 = vmatprep.subr.mxu0 0.0
    %5808 = vmatpush1.xpose.msra.mxu0 0.0
    %5809 = vmatprep.subr.mxu0 0.0
    %5810 = vmatpush1.xpose.msra.mxu0 0.0
    %5811 = vmatprep.subr.mxu0 0.0
    %5812 = vmatpush1.xpose.msra.mxu0 0.0
    %5813 = vmatprep.subr.mxu0 0.0
    %5814 = vmatpush1.xpose.msra.mxu0 0.0
    %5815 = vmatprep.subr.mxu0 0.0
    %5816 = vmatpush1.xpose.msra.mxu0 0.0
    %5817 = vmatprep.subr.mxu0 0.0
    %5818 = vmatpush1.xpose.msra.mxu0 0.0
    %5819 = vmatprep.subr.mxu0 0.0
    %5820 = vmatpush1.xpose.msra.mxu0 0.0
    %5821 = vmatprep.subr.mxu0 0.0
    %5822 = vmatpush1.xpose.msra.mxu0 0.0
    %5823 = vmatprep.subr.mxu0 0.0
    %5824 = vmatpush1.xpose.msra.mxu0 0.0
    %5825 = vmatprep.subr.mxu0 0.0
    %5826 = vmatpush1.xpose.msra.mxu0 0.0
    %5827 = vmatprep.subr.mxu0 0.0
    %5828 = vmatpush1.xpose.msra.mxu0 0.0
    %5829 = vmatprep.subr.mxu0 0.0
    %5830 = vmatpush1.xpose.msra.mxu0 0.0
    %5831 = vmatprep.subr.mxu0 0.0
    %5832 = vmatpush1.xpose.msra.mxu0 0.0
    %5833 = vmatprep.subr.mxu0 0.0
    %5834 = vmatpush1.xpose.msra.mxu0 0.0
    %5835 = vmatprep.subr.mxu0 0.0
    %5836 = vmatpush1.xpose.msra.mxu0 0.0
    %5837 = vmatprep.subr.mxu0 0.0
    %5838 = vmatpush1.xpose.msra.mxu0 0.0
    %5839 = vmatprep.subr.mxu0 0.0
    %5840 = vmatpush1.xpose.msra.mxu0 0.0
    %5841 = vmatprep.subr.mxu0 0.0
    %5842 = vmatpush1.xpose.msra.mxu0 0.0
    %5843 = vmatprep.subr.mxu0 0.0
    %5844 = vmatpush1.xpose.msra.mxu0 0.0
    %5845 = vmatprep.subr.mxu0 0.0
    %5846 = vmatpush1.xpose.msra.mxu0 0.0
    %5847 = vmatprep.subr.mxu0 0.0
    %5848 = vmatpush1.xpose.msra.mxu0 0.0
    %5849 = vmatprep.subr.mxu0 0.0
    %5850 = vmatpush1.xpose.msra.mxu0 0.0
    %5851 = vmatprep.mubr.f32.mxu0 0.0
    %5852 = vmatmul.mubr.f32.gmra.mrb[0].mxu0 %v5783
    %v5853 = vpop.f32.mrb[0].mxu0
    %v5854 = vadd.f32 %v92, %v5853
    %v5855 = vpop.f32.mrb[0].mxu0
    %5856 = vdwg.mxu0
    %5857 = vrot.lane.b32.xlu0 %v5324, 96
    %v5858 = vpop.permute.xlu0 %5857
    %v5859 = vsel %vm203, %v5310, 0
    %v5861 = vsel %vm203, %v5858, 0
    %5863 = vmatprep.subr.mxu0 0.0
    %5864 = vmatpush1.xpose.msra.mxu0 %v5861
    %5865 = vmatprep.subr.mxu0 0.0
    %5866 = vmatpush1.xpose.msra.mxu0 0.0
    %5867 = vmatprep.subr.mxu0 0.0
    %5868 = vmatpush1.xpose.msra.mxu0 0.0
    %5869 = vmatprep.subr.mxu0 0.0
    %5870 = vmatpush1.xpose.msra.mxu0 0.0
    %5871 = vmatprep.subr.mxu0 0.0
    %5872 = vmatpush1.xpose.msra.mxu0 0.0
    %5873 = vmatprep.subr.mxu0 0.0
    %5874 = vmatpush1.xpose.msra.mxu0 0.0
    %5875 = vmatprep.subr.mxu0 0.0
    %5876 = vmatpush1.xpose.msra.mxu0 0.0
    %5877 = vmatprep.subr.mxu0 0.0
    %5878 = vmatpush1.xpose.msra.mxu0 0.0
    %5879 = vmatprep.subr.mxu0 0.0
    %5880 = vmatpush1.xpose.msra.mxu0 0.0
    %5881 = vmatprep.subr.mxu0 0.0
    %5882 = vmatpush1.xpose.msra.mxu0 0.0
    %5883 = vmatprep.subr.mxu0 0.0
    %5884 = vmatpush1.xpose.msra.mxu0 0.0
    %5885 = vmatprep.subr.mxu0 0.0
    %5886 = vmatpush1.xpose.msra.mxu0 0.0
    %5887 = vmatprep.subr.mxu0 0.0
    %5888 = vmatpush1.xpose.msra.mxu0 0.0
    %5889 = vmatprep.subr.mxu0 0.0
    %5890 = vmatpush1.xpose.msra.mxu0 0.0
    %5891 = vmatprep.subr.mxu0 0.0
    %5892 = vmatpush1.xpose.msra.mxu0 0.0
    %5893 = vmatprep.subr.mxu0 0.0
    %5894 = vmatpush1.xpose.msra.mxu0 0.0
    %5895 = vmatprep.subr.mxu0 0.0
    %5896 = vmatpush1.xpose.msra.mxu0 0.0
    %5897 = vmatprep.subr.mxu0 0.0
    %5898 = vmatpush1.xpose.msra.mxu0 0.0
    %5899 = vmatprep.subr.mxu0 0.0
    %5900 = vmatpush1.xpose.msra.mxu0 0.0
    %5901 = vmatprep.subr.mxu0 0.0
    %5902 = vmatpush1.xpose.msra.mxu0 0.0
    %5903 = vmatprep.subr.mxu0 0.0
    %5904 = vmatpush1.xpose.msra.mxu0 0.0
    %5905 = vmatprep.subr.mxu0 0.0
    %5906 = vmatpush1.xpose.msra.mxu0 0.0
    %5907 = vmatprep.subr.mxu0 0.0
    %5908 = vmatpush1.xpose.msra.mxu0 0.0
    %5909 = vmatprep.subr.mxu0 0.0
    %5910 = vmatpush1.xpose.msra.mxu0 0.0
    %5911 = vmatprep.subr.mxu0 0.0
    %5912 = vmatpush1.xpose.msra.mxu0 0.0
    %5913 = vmatprep.subr.mxu0 0.0
    %5914 = vmatpush1.xpose.msra.mxu0 0.0
    %5915 = vmatprep.subr.mxu0 0.0
    %5916 = vmatpush1.xpose.msra.mxu0 0.0
    %5917 = vmatprep.subr.mxu0 0.0
    %5918 = vmatpush1.xpose.msra.mxu0 0.0
    %5919 = vmatprep.subr.mxu0 0.0
    %5920 = vmatpush1.xpose.msra.mxu0 0.0
    %5921 = vmatprep.subr.mxu0 0.0
    %5922 = vmatpush1.xpose.msra.mxu0 0.0
    %5923 = vmatprep.subr.mxu0 0.0
    %5924 = vmatpush1.xpose.msra.mxu0 0.0
    %5925 = vmatprep.subr.mxu0 0.0
    %5926 = vmatpush1.xpose.msra.mxu0 0.0
    %5927 = vmatprep.mubr.f32.mxu0 0.0
    %5928 = vmatmul.mubr.f32.gmra.mrb[0].mxu0 %v5859
    %v5929 = vpop.f32.mrb[0].mxu0
    %v5930 = vadd.f32 %v93, %v5929
    %v5931 = vpop.f32.mrb[0].mxu0
    %5932 = vdwg.mxu0
    %v5933 = vsel %vm203, %v5398, -inf
    %5934 = vmax.xlane.f32.xlu0 %v5933
    %v5935 = vpop.xlane.xlu0 %5934
    %v5936 = vsel %vm203, %v5474, -inf
    %5937 = vmax.xlane.f32.xlu0 %v5936
    %v5938 = vpop.xlane.xlu0 %5937
    %v5939 = vsel %vm203, %v5550, -inf
    %5940 = vmax.xlane.f32.xlu0 %v5939
    %v5941 = vpop.xlane.xlu0 %5940
    %v5942 = vsel %vm203, %v5626, -inf
    %5943 = vmax.xlane.f32.xlu0 %v5942
    %v5944 = vpop.xlane.xlu0 %5943
    %v5945 = vsel %vm203, %v5702, -inf
    %5946 = vmax.xlane.f32.xlu0 %v5945
    %v5947 = vpop.xlane.xlu0 %5946
    %v5948 = vsel %vm203, %v5778, -inf
    %5949 = vmax.xlane.f32.xlu0 %v5948
    %v5950 = vpop.xlane.xlu0 %5949
    %v5951 = vsel %vm203, %v5854, -inf
    %5952 = vmax.xlane.f32.xlu0 %v5951
    %v5953 = vpop.xlane.xlu0 %5952
    %v5954 = vsel %vm203, %v5930, -inf
    %5955 = vmax.xlane.f32.xlu0 %v5954
    %v5956 = vpop.xlane.xlu0 %5955
    %v5957 = vsub.f32 %v5398, %v5935
    %v5958 = vsub.f32 %v5474, %v5938
    %v5959 = vsub.f32 %v5550, %v5941
    %v5960 = vsub.f32 %v5626, %v5944
    %v5961 = vsub.f32 %v5702, %v5947
    %v5962 = vsub.f32 %v5778, %v5950
    %v5963 = vsub.f32 %v5854, %v5953
    %v5964 = vsub.f32 %v5930, %v5956
    %v5965 = vmul.f32 %v5957, 1.442695
    %v5966 = vpow.pop %v5965
    %v5967 = vmul.f32 %v5958, 1.442695
    %v5968 = vpow.pop %v5967
    %v5969 = vmul.f32 %v5959, 1.442695
    %v5970 = vpow.pop %v5969
    %v5971 = vmul.f32 %v5960, 1.442695
    %v5972 = vpow.pop %v5971
    %v5973 = vmul.f32 %v5961, 1.442695
    %v5974 = vpow.pop %v5973
    %v5975 = vmul.f32 %v5962, 1.442695
    %v5976 = vpow.pop %v5975
    %v5977 = vmul.f32 %v5963, 1.442695
    %v5978 = vpow.pop %v5977
    %v5979 = vmul.f32 %v5964, 1.442695
    %v5980 = vpow.pop %v5979
    %v5981 = vsel %vm203, %v5966, 0.0
    %5982 = vadd.xlane.f32.xlu0 %v5981
    %v5983 = vpop.xlane.xlu0 %5982
    %v5984 = vsel %vm203, %v5968, 0.0
    %5985 = vadd.xlane.f32.xlu0 %v5984
    %v5986 = vpop.xlane.xlu0 %5985
    %v5987 = vsel %vm203, %v5970, 0.0
    %5988 = vadd.xlane.f32.xlu0 %v5987
    %v5989 = vpop.xlane.xlu0 %5988
    %v5990 = vsel %vm203, %v5972, 0.0
    %5991 = vadd.xlane.f32.xlu0 %v5990
    %v5992 = vpop.xlane.xlu0 %5991
    %v5993 = vsel %vm203, %v5974, 0.0
    %5994 = vadd.xlane.f32.xlu0 %v5993
    %v5995 = vpop.xlane.xlu0 %5994
    %v5996 = vsel %vm203, %v5976, 0.0
    %5997 = vadd.xlane.f32.xlu0 %v5996
    %v5998 = vpop.xlane.xlu0 %5997
    %v5999 = vsel %vm203, %v5978, 0.0
    %6000 = vadd.xlane.f32.xlu0 %v5999
    %v6001 = vpop.xlane.xlu0 %6000
    %v6002 = vsel %vm203, %v5980, 0.0
    %6003 = vadd.xlane.f32.xlu0 %v6002
    %v6004 = vpop.xlane.xlu0 %6003
    %v6005 = vrcp.pop %v5983
    %v6006 = vrcp.pop %v5986
    %v6007 = vrcp.pop %v5989
    %v6008 = vrcp.pop %v5992
    %v6009 = vrcp.pop %v5995
    %v6010 = vrcp.pop %v5998
    %v6011 = vrcp.pop %v6001
    %v6012 = vrcp.pop %v6004
    %v6013 = vmul.f32 %v5966, %v6005
    %v6014 = vmul.f32 %v5968, %v6006
    %v6015 = vmul.f32 %v5970, %v6007
    %v6016 = vmul.f32 %v5972, %v6008
    %v6017 = vmul.f32 %v5974, %v6009
    %v6018 = vmul.f32 %v5976, %v6010
    %v6019 = vmul.f32 %v5978, %v6011
    %v6020 = vmul.f32 %v5980, %v6012
    %6021 = vrot.lane.b32.xlu0 %v5289, 64
    %v6022 = vpop.permute.xlu0 %6021
    %v6025 = vsel %vm203, %v6013, 0
    %6027 = vmatprep.subr.mxu0 0.0
    %6028 = vmatpush1.msra.mxu0 %v6022
    %6029 = vmatprep.subr.mxu0 0.0
    %6030 = vmatpush1.msra.mxu0 0.0
    %6031 = vmatprep.subr.mxu0 0.0
    %6032 = vmatpush1.msra.mxu0 0.0
    %6033 = vmatprep.subr.mxu0 0.0
    %6034 = vmatpush1.msra.mxu0 0.0
    %6035 = vmatprep.subr.mxu0 0.0
    %6036 = vmatpush1.msra.mxu0 0.0
    %6037 = vmatprep.subr.mxu0 0.0
    %6038 = vmatpush1.msra.mxu0 0.0
    %6039 = vmatprep.subr.mxu0 0.0
    %6040 = vmatpush1.msra.mxu0 0.0
    %6041 = vmatprep.subr.mxu0 0.0
    %6042 = vmatpush1.msra.mxu0 0.0
    %6043 = vmatprep.subr.mxu0 0.0
    %6044 = vmatpush1.msra.mxu0 0.0
    %6045 = vmatprep.subr.mxu0 0.0
    %6046 = vmatpush1.msra.mxu0 0.0
    %6047 = vmatprep.subr.mxu0 0.0
    %6048 = vmatpush1.msra.mxu0 0.0
    %6049 = vmatprep.subr.mxu0 0.0
    %6050 = vmatpush1.msra.mxu0 0.0
    %6051 = vmatprep.subr.mxu0 0.0
    %6052 = vmatpush1.msra.mxu0 0.0
    %6053 = vmatprep.subr.mxu0 0.0
    %6054 = vmatpush1.msra.mxu0 0.0
    %6055 = vmatprep.subr.mxu0 0.0
    %6056 = vmatpush1.msra.mxu0 0.0
    %6057 = vmatprep.subr.mxu0 0.0
    %6058 = vmatpush1.msra.mxu0 0.0
    %6059 = vmatprep.subr.mxu0 0.0
    %6060 = vmatpush1.msra.mxu0 0.0
    %6061 = vmatprep.subr.mxu0 0.0
    %6062 = vmatpush1.msra.mxu0 0.0
    %6063 = vmatprep.subr.mxu0 0.0
    %6064 = vmatpush1.msra.mxu0 0.0
    %6065 = vmatprep.subr.mxu0 0.0
    %6066 = vmatpush1.msra.mxu0 0.0
    %6067 = vmatprep.subr.mxu0 0.0
    %6068 = vmatpush1.msra.mxu0 0.0
    %6069 = vmatprep.subr.mxu0 0.0
    %6070 = vmatpush1.msra.mxu0 0.0
    %6071 = vmatprep.subr.mxu0 0.0
    %6072 = vmatpush1.msra.mxu0 0.0
    %6073 = vmatprep.subr.mxu0 0.0
    %6074 = vmatpush1.msra.mxu0 0.0
    %6075 = vmatprep.subr.mxu0 0.0
    %6076 = vmatpush1.msra.mxu0 0.0
    %6077 = vmatprep.subr.mxu0 0.0
    %6078 = vmatpush1.msra.mxu0 0.0
    %6079 = vmatprep.subr.mxu0 0.0
    %6080 = vmatpush1.msra.mxu0 0.0
    %6081 = vmatprep.subr.mxu0 0.0
    %6082 = vmatpush1.msra.mxu0 0.0
    %6083 = vmatprep.subr.mxu0 0.0
    %6084 = vmatpush1.msra.mxu0 0.0
    %6085 = vmatprep.subr.mxu0 0.0
    %6086 = vmatpush1.msra.mxu0 0.0
    %6087 = vmatprep.subr.mxu0 0.0
    %6088 = vmatpush1.msra.mxu0 0.0
    %6089 = vmatprep.subr.mxu0 0.0
    %6090 = vmatpush1.msra.mxu0 0.0
    %6091 = vmatprep.mubr.f32.mxu0 0.0
    %6092 = vmatmul.mubr.f32.gmra.mrb[0].mxu0 %v6025
    %v6093 = vpop.f32.mrb[0].mxu0
    %v6094 = vadd.f32 0.0, %v6093
    %v6095 = vpop.f32.mrb[0].mxu0
    %6096 = vdwg.mxu0
    %6097 = vrot.lane.b32.xlu0 %v5294, 64
    %v6098 = vpop.permute.xlu0 %6097
    %v6101 = vsel %vm203, %v6014, 0
    %6103 = vmatprep.subr.mxu0 0.0
    %6104 = vmatpush1.msra.mxu0 %v6098
    %6105 = vmatprep.subr.mxu0 0.0
    %6106 = vmatpush1.msra.mxu0 0.0
    %6107 = vmatprep.subr.mxu0 0.0
    %6108 = vmatpush1.msra.mxu0 0.0
    %6109 = vmatprep.subr.mxu0 0.0
    %6110 = vmatpush1.msra.mxu0 0.0
    %6111 = vmatprep.subr.mxu0 0.0
    %6112 = vmatpush1.msra.mxu0 0.0
    %6113 = vmatprep.subr.mxu0 0.0
    %6114 = vmatpush1.msra.mxu0 0.0
    %6115 = vmatprep.subr.mxu0 0.0
    %6116 = vmatpush1.msra.mxu0 0.0
    %6117 = vmatprep.subr.mxu0 0.0
    %6118 = vmatpush1.msra.mxu0 0.0
    %6119 = vmatprep.subr.mxu0 0.0
    %6120 = vmatpush1.msra.mxu0 0.0
    %6121 = vmatprep.subr.mxu0 0.0
    %6122 = vmatpush1.msra.mxu0 0.0
    %6123 = vmatprep.subr.mxu0 0.0
    %6124 = vmatpush1.msra.mxu0 0.0
    %6125 = vmatprep.subr.mxu0 0.0
    %6126 = vmatpush1.msra.mxu0 0.0
    %6127 = vmatprep.subr.mxu0 0.0
    %6128 = vmatpush1.msra.mxu0 0.0
    %6129 = vmatprep.subr.mxu0 0.0
    %6130 = vmatpush1.msra.mxu0 0.0
    %6131 = vmatprep.subr.mxu0 0.0
    %6132 = vmatpush1.msra.mxu0 0.0
    %6133 = vmatprep.subr.mxu0 0.0
    %6134 = vmatpush1.msra.mxu0 0.0
    %6135 = vmatprep.subr.mxu0 0.0
    %6136 = vmatpush1.msra.mxu0 0.0
    %6137 = vmatprep.subr.mxu0 0.0
    %6138 = vmatpush1.msra.mxu0 0.0
    %6139 = vmatprep.subr.mxu0 0.0
    %6140 = vmatpush1.msra.mxu0 0.0
    %6141 = vmatprep.subr.mxu0 0.0
    %6142 = vmatpush1.msra.mxu0 0.0
    %6143 = vmatprep.subr.mxu0 0.0
    %6144 = vmatpush1.msra.mxu0 0.0
    %6145 = vmatprep.subr.mxu0 0.0
    %6146 = vmatpush1.msra.mxu0 0.0
    %6147 = vmatprep.subr.mxu0 0.0
    %6148 = vmatpush1.msra.mxu0 0.0
    %6149 = vmatprep.subr.mxu0 0.0
    %6150 = vmatpush1.msra.mxu0 0.0
    %6151 = vmatprep.subr.mxu0 0.0
    %6152 = vmatpush1.msra.mxu0 0.0
    %6153 = vmatprep.subr.mxu0 0.0
    %6154 = vmatpush1.msra.mxu0 0.0
    %6155 = vmatprep.subr.mxu0 0.0
    %6156 = vmatpush1.msra.mxu0 0.0
    %6157 = vmatprep.subr.mxu0 0.0
    %6158 = vmatpush1.msra.mxu0 0.0
    %6159 = vmatprep.subr.mxu0 0.0
    %6160 = vmatpush1.msra.mxu0 0.0
    %6161 = vmatprep.subr.mxu0 0.0
    %6162 = vmatpush1.msra.mxu0 0.0
    %6163 = vmatprep.subr.mxu0 0.0
    %6164 = vmatpush1.msra.mxu0 0.0
    %6165 = vmatprep.subr.mxu0 0.0
    %6166 = vmatpush1.msra.mxu0 0.0
    %6167 = vmatprep.mubr.f32.mxu0 0.0
    %6168 = vmatmul.mubr.f32.gmra.mrb[0].mxu0 %v6101
    %v6169 = vpop.f32.mrb[0].mxu0
    %v6170 = vadd.f32 0.0, %v6169
    %v6171 = vpop.f32.mrb[0].mxu0
    %6172 = vdwg.mxu0
    %6173 = vrot.lane.b32.xlu0 %v5314, 64
    %v6174 = vpop.permute.xlu0 %6173
    %v6177 = vsel %vm203, %v6015, 0
    %6179 = vmatprep.subr.mxu0 0.0
    %6180 = vmatpush1.msra.mxu0 %v6174
    %6181 = vmatprep.subr.mxu0 0.0
    %6182 = vmatpush1.msra.mxu0 0.0
    %6183 = vmatprep.subr.mxu0 0.0
    %6184 = vmatpush1.msra.mxu0 0.0
    %6185 = vmatprep.subr.mxu0 0.0
    %6186 = vmatpush1.msra.mxu0 0.0
    %6187 = vmatprep.subr.mxu0 0.0
    %6188 = vmatpush1.msra.mxu0 0.0
    %6189 = vmatprep.subr.mxu0 0.0
    %6190 = vmatpush1.msra.mxu0 0.0
    %6191 = vmatprep.subr.mxu0 0.0
    %6192 = vmatpush1.msra.mxu0 0.0
    %6193 = vmatprep.subr.mxu0 0.0
    %6194 = vmatpush1.msra.mxu0 0.0
    %6195 = vmatprep.subr.mxu0 0.0
    %6196 = vmatpush1.msra.mxu0 0.0
    %6197 = vmatprep.subr.mxu0 0.0
    %6198 = vmatpush1.msra.mxu0 0.0
    %6199 = vmatprep.subr.mxu0 0.0
    %6200 = vmatpush1.msra.mxu0 0.0
    %6201 = vmatprep.subr.mxu0 0.0
    %6202 = vmatpush1.msra.mxu0 0.0
    %6203 = vmatprep.subr.mxu0 0.0
    %6204 = vmatpush1.msra.mxu0 0.0
    %6205 = vmatprep.subr.mxu0 0.0
    %6206 = vmatpush1.msra.mxu0 0.0
    %6207 = vmatprep.subr.mxu0 0.0
    %6208 = vmatpush1.msra.mxu0 0.0
    %6209 = vmatprep.subr.mxu0 0.0
    %6210 = vmatpush1.msra.mxu0 0.0
    %6211 = vmatprep.subr.mxu0 0.0
    %6212 = vmatpush1.msra.mxu0 0.0
    %6213 = vmatprep.subr.mxu0 0.0
    %6214 = vmatpush1.msra.mxu0 0.0
    %6215 = vmatprep.subr.mxu0 0.0
    %6216 = vmatpush1.msra.mxu0 0.0
    %6217 = vmatprep.subr.mxu0 0.0
    %6218 = vmatpush1.msra.mxu0 0.0
    %6219 = vmatprep.subr.mxu0 0.0
    %6220 = vmatpush1.msra.mxu0 0.0
    %6221 = vmatprep.subr.mxu0 0.0
    %6222 = vmatpush1.msra.mxu0 0.0
    %6223 = vmatprep.subr.mxu0 0.0
    %6224 = vmatpush1.msra.mxu0 0.0
    %6225 = vmatprep.subr.mxu0 0.0
    %6226 = vmatpush1.msra.mxu0 0.0
    %6227 = vmatprep.subr.mxu0 0.0
    %6228 = vmatpush1.msra.mxu0 0.0
    %6229 = vmatprep.subr.mxu0 0.0
    %6230 = vmatpush1.msra.mxu0 0.0
    %6231 = vmatprep.subr.mxu0 0.0
    %6232 = vmatpush1.msra.mxu0 0.0
    %6233 = vmatprep.subr.mxu0 0.0
    %6234 = vmatpush1.msra.mxu0 0.0
    %6235 = vmatprep.subr.mxu0 0.0
    %6236 = vmatpush1.msra.mxu0 0.0
    %6237 = vmatprep.subr.mxu0 0.0
    %6238 = vmatpush1.msra.mxu0 0.0
    %6239 = vmatprep.subr.mxu0 0.0
    %6240 = vmatpush1.msra.mxu0 0.0
    %6241 = vmatprep.subr.mxu0 0.0
    %6242 = vmatpush1.msra.mxu0 0.0
    %6243 = vmatprep.mubr.f32.mxu0 0.0
    %6244 = vmatmul.mubr.f32.gmra.mrb[0].mxu0 %v6177
    %v6245 = vpop.f32.mrb[0].mxu0
    %v6246 = vadd.f32 0.0, %v6245
    %v6247 = vpop.f32.mrb[0].mxu0
    %6248 = vdwg.mxu0
    %6249 = vrot.lane.b32.xlu0 %v5316, 64
    %v6250 = vpop.permute.xlu0 %6249
    %v6253 = vsel %vm203, %v6016, 0
    %6255 = vmatprep.subr.mxu0 0.0
    %6256 = vmatpush1.msra.mxu0 %v6250
    %6257 = vmatprep.subr.mxu0 0.0
    %6258 = vmatpush1.msra.mxu0 0.0
    %6259 = vmatprep.subr.mxu0 0.0
    %6260 = vmatpush1.msra.mxu0 0.0
    %6261 = vmatprep.subr.mxu0 0.0
    %6262 = vmatpush1.msra.mxu0 0.0
    %6263 = vmatprep.subr.mxu0 0.0
    %6264 = vmatpush1.msra.mxu0 0.0
    %6265 = vmatprep.subr.mxu0 0.0
    %6266 = vmatpush1.msra.mxu0 0.0
    %6267 = vmatprep.subr.mxu0 0.0
    %6268 = vmatpush1.msra.mxu0 0.0
    %6269 = vmatprep.subr.mxu0 0.0
    %6270 = vmatpush1.msra.mxu0 0.0
    %6271 = vmatprep.subr.mxu0 0.0
    %6272 = vmatpush1.msra.mxu0 0.0
    %6273 = vmatprep.subr.mxu0 0.0
    %6274 = vmatpush1.msra.mxu0 0.0
    %6275 = vmatprep.subr.mxu0 0.0
    %6276 = vmatpush1.msra.mxu0 0.0
    %6277 = vmatprep.subr.mxu0 0.0
    %6278 = vmatpush1.msra.mxu0 0.0
    %6279 = vmatprep.subr.mxu0 0.0
    %6280 = vmatpush1.msra.mxu0 0.0
    %6281 = vmatprep.subr.mxu0 0.0
    %6282 = vmatpush1.msra.mxu0 0.0
    %6283 = vmatprep.subr.mxu0 0.0
    %6284 = vmatpush1.msra.mxu0 0.0
    %6285 = vmatprep.subr.mxu0 0.0
    %6286 = vmatpush1.msra.mxu0 0.0
    %6287 = vmatprep.subr.mxu0 0.0
    %6288 = vmatpush1.msra.mxu0 0.0
    %6289 = vmatprep.subr.mxu0 0.0
    %6290 = vmatpush1.msra.mxu0 0.0
    %6291 = vmatprep.subr.mxu0 0.0
    %6292 = vmatpush1.msra.mxu0 0.0
    %6293 = vmatprep.subr.mxu0 0.0
    %6294 = vmatpush1.msra.mxu0 0.0
    %6295 = vmatprep.subr.mxu0 0.0
    %6296 = vmatpush1.msra.mxu0 0.0
    %6297 = vmatprep.subr.mxu0 0.0
    %6298 = vmatpush1.msra.mxu0 0.0
    %6299 = vmatprep.subr.mxu0 0.0
    %6300 = vmatpush1.msra.mxu0 0.0
    %6301 = vmatprep.subr.mxu0 0.0
    %6302 = vmatpush1.msra.mxu0 0.0
    %6303 = vmatprep.subr.mxu0 0.0
    %6304 = vmatpush1.msra.mxu0 0.0
    %6305 = vmatprep.subr.mxu0 0.0
    %6306 = vmatpush1.msra.mxu0 0.0
    %6307 = vmatprep.subr.mxu0 0.0
    %6308 = vmatpush1.msra.mxu0 0.0
    %6309 = vmatprep.subr.mxu0 0.0
    %6310 = vmatpush1.msra.mxu0 0.0
    %6311 = vmatprep.subr.mxu0 0.0
    %6312 = vmatpush1.msra.mxu0 0.0
    %6313 = vmatprep.subr.mxu0 0.0
    %6314 = vmatpush1.msra.mxu0 0.0
    %6315 = vmatprep.subr.mxu0 0.0
    %6316 = vmatpush1.msra.mxu0 0.0
    %6317 = vmatprep.subr.mxu0 0.0
    %6318 = vmatpush1.msra.mxu0 0.0
    %6319 = vmatprep.mubr.f32.mxu0 0.0
    %6320 = vmatmul.mubr.f32.gmra.mrb[0].mxu0 %v6253
    %v6321 = vpop.f32.mrb[0].mxu0
    %v6322 = vadd.f32 0.0, %v6321
    %v6323 = vpop.f32.mrb[0].mxu0
    %6324 = vdwg.mxu0
    %6325 = vrot.lane.b32.xlu0 %v5318, 64
    %v6326 = vpop.permute.xlu0 %6325
    %v6329 = vsel %vm203, %v6017, 0
    %6331 = vmatprep.subr.mxu0 0.0
    %6332 = vmatpush1.msra.mxu0 %v6326
    %6333 = vmatprep.subr.mxu0 0.0
    %6334 = vmatpush1.msra.mxu0 0.0
    %6335 = vmatprep.subr.mxu0 0.0
    %6336 = vmatpush1.msra.mxu0 0.0
    %6337 = vmatprep.subr.mxu0 0.0
    %6338 = vmatpush1.msra.mxu0 0.0
    %6339 = vmatprep.subr.mxu0 0.0
    %6340 = vmatpush1.msra.mxu0 0.0
    %6341 = vmatprep.subr.mxu0 0.0
    %6342 = vmatpush1.msra.mxu0 0.0
    %6343 = vmatprep.subr.mxu0 0.0
    %6344 = vmatpush1.msra.mxu0 0.0
    %6345 = vmatprep.subr.mxu0 0.0
    %6346 = vmatpush1.msra.mxu0 0.0
    %6347 = vmatprep.subr.mxu0 0.0
    %6348 = vmatpush1.msra.mxu0 0.0
    %6349 = vmatprep.subr.mxu0 0.0
    %6350 = vmatpush1.msra.mxu0 0.0
    %6351 = vmatprep.subr.mxu0 0.0
    %6352 = vmatpush1.msra.mxu0 0.0
    %6353 = vmatprep.subr.mxu0 0.0
    %6354 = vmatpush1.msra.mxu0 0.0
    %6355 = vmatprep.subr.mxu0 0.0
    %6356 = vmatpush1.msra.mxu0 0.0
    %6357 = vmatprep.subr.mxu0 0.0
    %6358 = vmatpush1.msra.mxu0 0.0
    %6359 = vmatprep.subr.mxu0 0.0
    %6360 = vmatpush1.msra.mxu0 0.0
    %6361 = vmatprep.subr.mxu0 0.0
    %6362 = vmatpush1.msra.mxu0 0.0
    %6363 = vmatprep.subr.mxu0 0.0
    %6364 = vmatpush1.msra.mxu0 0.0
    %6365 = vmatprep.subr.mxu0 0.0
    %6366 = vmatpush1.msra.mxu0 0.0
    %6367 = vmatprep.subr.mxu0 0.0
    %6368 = vmatpush1.msra.mxu0 0.0
    %6369 = vmatprep.subr.mxu0 0.0
    %6370 = vmatpush1.msra.mxu0 0.0
    %6371 = vmatprep.subr.mxu0 0.0
    %6372 = vmatpush1.msra.mxu0 0.0
    %6373 = vmatprep.subr.mxu0 0.0
    %6374 = vmatpush1.msra.mxu0 0.0
    %6375 = vmatprep.subr.mxu0 0.0
    %6376 = vmatpush1.msra.mxu0 0.0
    %6377 = vmatprep.subr.mxu0 0.0
    %6378 = vmatpush1.msra.mxu0 0.0
    %6379 = vmatprep.subr.mxu0 0.0
    %6380 = vmatpush1.msra.mxu0 0.0
    %6381 = vmatprep.subr.mxu0 0.0
    %6382 = vmatpush1.msra.mxu0 0.0
    %6383 = vmatprep.subr.mxu0 0.0
    %6384 = vmatpush1.msra.mxu0 0.0
    %6385 = vmatprep.subr.mxu0 0.0
    %6386 = vmatpush1.msra.mxu0 0.0
    %6387 = vmatprep.subr.mxu0 0.0
    %6388 = vmatpush1.msra.mxu0 0.0
    %6389 = vmatprep.subr.mxu0 0.0
    %6390 = vmatpush1.msra.mxu0 0.0
    %6391 = vmatprep.subr.mxu0 0.0
    %6392 = vmatpush1.msra.mxu0 0.0
    %6393 = vmatprep.subr.mxu0 0.0
    %6394 = vmatpush1.msra.mxu0 0.0
    %6395 = vmatprep.mubr.f32.mxu0 0.0
    %6396 = vmatmul.mubr.f32.gmra.mrb[0].mxu0 %v6329
    %v6397 = vpop.f32.mrb[0].mxu0
    %v6398 = vadd.f32 0.0, %v6397
    %v6399 = vpop.f32.mrb[0].mxu0
    %6400 = vdwg.mxu0
    %6401 = vrot.lane.b32.xlu0 %v5320, 64
    %v6402 = vpop.permute.xlu0 %6401
    %v6405 = vsel %vm203, %v6018, 0
    %6407 = vmatprep.subr.mxu0 0.0
    %6408 = vmatpush1.msra.mxu0 %v6402
    %6409 = vmatprep.subr.mxu0 0.0
    %6410 = vmatpush1.msra.mxu0 0.0
    %6411 = vmatprep.subr.mxu0 0.0
    %6412 = vmatpush1.msra.mxu0 0.0
    %6413 = vmatprep.subr.mxu0 0.0
    %6414 = vmatpush1.msra.mxu0 0.0
    %6415 = vmatprep.subr.mxu0 0.0
    %6416 = vmatpush1.msra.mxu0 0.0
    %6417 = vmatprep.subr.mxu0 0.0
    %6418 = vmatpush1.msra.mxu0 0.0
    %6419 = vmatprep.subr.mxu0 0.0
    %6420 = vmatpush1.msra.mxu0 0.0
    %6421 = vmatprep.subr.mxu0 0.0
    %6422 = vmatpush1.msra.mxu0 0.0
    %6423 = vmatprep.subr.mxu0 0.0
    %6424 = vmatpush1.msra.mxu0 0.0
    %6425 = vmatprep.subr.mxu0 0.0
    %6426 = vmatpush1.msra.mxu0 0.0
    %6427 = vmatprep.subr.mxu0 0.0
    %6428 = vmatpush1.msra.mxu0 0.0
    %6429 = vmatprep.subr.mxu0 0.0
    %6430 = vmatpush1.msra.mxu0 0.0
    %6431 = vmatprep.subr.mxu0 0.0
    %6432 = vmatpush1.msra.mxu0 0.0
    %6433 = vmatprep.subr.mxu0 0.0
    %6434 = vmatpush1.msra.mxu0 0.0
    %6435 = vmatprep.subr.mxu0 0.0
    %6436 = vmatpush1.msra.mxu0 0.0
    %6437 = vmatprep.subr.mxu0 0.0
    %6438 = vmatpush1.msra.mxu0 0.0
    %6439 = vmatprep.subr.mxu0 0.0
    %6440 = vmatpush1.msra.mxu0 0.0
    %6441 = vmatprep.subr.mxu0 0.0
    %6442 = vmatpush1.msra.mxu0 0.0
    %6443 = vmatprep.subr.mxu0 0.0
    %6444 = vmatpush1.msra.mxu0 0.0
    %6445 = vmatprep.subr.mxu0 0.0
    %6446 = vmatpush1.msra.mxu0 0.0
    %6447 = vmatprep.subr.mxu0 0.0
    %6448 = vmatpush1.msra.mxu0 0.0
    %6449 = vmatprep.subr.mxu0 0.0
    %6450 = vmatpush1.msra.mxu0 0.0
    %6451 = vmatprep.subr.mxu0 0.0
    %6452 = vmatpush1.msra.mxu0 0.0
    %6453 = vmatprep.subr.mxu0 0.0
    %6454 = vmatpush1.msra.mxu0 0.0
    %6455 = vmatprep.subr.mxu0 0.0
    %6456 = vmatpush1.msra.mxu0 0.0
    %6457 = vmatprep.subr.mxu0 0.0
    %6458 = vmatpush1.msra.mxu0 0.0
    %6459 = vmatprep.subr.mxu0 0.0
    %6460 = vmatpush1.msra.mxu0 0.0
    %6461 = vmatprep.subr.mxu0 0.0
    %6462 = vmatpush1.msra.mxu0 0.0
    %6463 = vmatprep.subr.mxu0 0.0
    %6464 = vmatpush1.msra.mxu0 0.0
    %6465 = vmatprep.subr.mxu0 0.0
    %6466 = vmatpush1.msra.mxu0 0.0
    %6467 = vmatprep.subr.mxu0 0.0
    %6468 = vmatpush1.msra.mxu0 0.0
    %6469 = vmatprep.subr.mxu0 0.0
    %6470 = vmatpush1.msra.mxu0 0.0
    %6471 = vmatprep.mubr.f32.mxu0 0.0
    %6472 = vmatmul.mubr.f32.gmra.mrb[0].mxu0 %v6405
    %v6473 = vpop.f32.mrb[0].mxu0
    %v6474 = vadd.f32 0.0, %v6473
    %v6475 = vpop.f32.mrb[0].mxu0
    %6476 = vdwg.mxu0
    %6477 = vrot.lane.b32.xlu0 %v5322, 64
    %v6478 = vpop.permute.xlu0 %6477
    %v6481 = vsel %vm203, %v6019, 0
    %6483 = vmatprep.subr.mxu0 0.0
    %6484 = vmatpush1.msra.mxu0 %v6478
    %6485 = vmatprep.subr.mxu0 0.0
    %6486 = vmatpush1.msra.mxu0 0.0
    %6487 = vmatprep.subr.mxu0 0.0
    %6488 = vmatpush1.msra.mxu0 0.0
    %6489 = vmatprep.subr.mxu0 0.0
    %6490 = vmatpush1.msra.mxu0 0.0
    %6491 = vmatprep.subr.mxu0 0.0
    %6492 = vmatpush1.msra.mxu0 0.0
    %6493 = vmatprep.subr.mxu0 0.0
    %6494 = vmatpush1.msra.mxu0 0.0
    %6495 = vmatprep.subr.mxu0 0.0
    %6496 = vmatpush1.msra.mxu0 0.0
    %6497 = vmatprep.subr.mxu0 0.0
    %6498 = vmatpush1.msra.mxu0 0.0
    %6499 = vmatprep.subr.mxu0 0.0
    %6500 = vmatpush1.msra.mxu0 0.0
    %6501 = vmatprep.subr.mxu0 0.0
    %6502 = vmatpush1.msra.mxu0 0.0
    %6503 = vmatprep.subr.mxu0 0.0
    %6504 = vmatpush1.msra.mxu0 0.0
    %6505 = vmatprep.subr.mxu0 0.0
    %6506 = vmatpush1.msra.mxu0 0.0
    %6507 = vmatprep.subr.mxu0 0.0
    %6508 = vmatpush1.msra.mxu0 0.0
    %6509 = vmatprep.subr.mxu0 0.0
    %6510 = vmatpush1.msra.mxu0 0.0
    %6511 = vmatprep.subr.mxu0 0.0
    %6512 = vmatpush1.msra.mxu0 0.0
    %6513 = vmatprep.subr.mxu0 0.0
    %6514 = vmatpush1.msra.mxu0 0.0
    %6515 = vmatprep.subr.mxu0 0.0
    %6516 = vmatpush1.msra.mxu0 0.0
    %6517 = vmatprep.subr.mxu0 0.0
    %6518 = vmatpush1.msra.mxu0 0.0
    %6519 = vmatprep.subr.mxu0 0.0
    %6520 = vmatpush1.msra.mxu0 0.0
    %6521 = vmatprep.subr.mxu0 0.0
    %6522 = vmatpush1.msra.mxu0 0.0
    %6523 = vmatprep.subr.mxu0 0.0
    %6524 = vmatpush1.msra.mxu0 0.0
    %6525 = vmatprep.subr.mxu0 0.0
    %6526 = vmatpush1.msra.mxu0 0.0
    %6527 = vmatprep.subr.mxu0 0.0
    %6528 = vmatpush1.msra.mxu0 0.0
    %6529 = vmatprep.subr.mxu0 0.0
    %6530 = vmatpush1.msra.mxu0 0.0
    %6531 = vmatprep.subr.mxu0 0.0
    %6532 = vmatpush1.msra.mxu0 0.0
    %6533 = vmatprep.subr.mxu0 0.0
    %6534 = vmatpush1.msra.mxu0 0.0
    %6535 = vmatprep.subr.mxu0 0.0
    %6536 = vmatpush1.msra.mxu0 0.0
    %6537 = vmatprep.subr.mxu0 0.0
    %6538 = vmatpush1.msra.mxu0 0.0
    %6539 = vmatprep.subr.mxu0 0.0
    %6540 = vmatpush1.msra.mxu0 0.0
    %6541 = vmatprep.subr.mxu0 0.0
    %6542 = vmatpush1.msra.mxu0 0.0
    %6543 = vmatprep.subr.mxu0 0.0
    %6544 = vmatpush1.msra.mxu0 0.0
    %6545 = vmatprep.subr.mxu0 0.0
    %6546 = vmatpush1.msra.mxu0 0.0
    %6547 = vmatprep.mubr.f32.mxu0 0.0
    %6548 = vmatmul.mubr.f32.gmra.mrb[0].mxu0 %v6481
    %v6549 = vpop.f32.mrb[0].mxu0
    %v6550 = vadd.f32 0.0, %v6549
    %v6551 = vpop.f32.mrb[0].mxu0
    %6552 = vdwg.mxu0
    %6553 = vrot.lane.b32.xlu0 %v5324, 64
    %v6554 = vpop.permute.xlu0 %6553
    %v6557 = vsel %vm203, %v6020, 0
    %6559 = vmatprep.subr.mxu0 0.0
    %6560 = vmatpush1.msra.mxu0 %v6554
    %6561 = vmatprep.subr.mxu0 0.0
    %6562 = vmatpush1.msra.mxu0 0.0
    %6563 = vmatprep.subr.mxu0 0.0
    %6564 = vmatpush1.msra.mxu0 0.0
    %6565 = vmatprep.subr.mxu0 0.0
    %6566 = vmatpush1.msra.mxu0 0.0
    %6567 = vmatprep.subr.mxu0 0.0
    %6568 = vmatpush1.msra.mxu0 0.0
    %6569 = vmatprep.subr.mxu0 0.0
    %6570 = vmatpush1.msra.mxu0 0.0
    %6571 = vmatprep.subr.mxu0 0.0
    %6572 = vmatpush1.msra.mxu0 0.0
    %6573 = vmatprep.subr.mxu0 0.0
    %6574 = vmatpush1.msra.mxu0 0.0
    %6575 = vmatprep.subr.mxu0 0.0
    %6576 = vmatpush1.msra.mxu0 0.0
    %6577 = vmatprep.subr.mxu0 0.0
    %6578 = vmatpush1.msra.mxu0 0.0
    %6579 = vmatprep.subr.mxu0 0.0
    %6580 = vmatpush1.msra.mxu0 0.0
    %6581 = vmatprep.subr.mxu0 0.0
    %6582 = vmatpush1.msra.mxu0 0.0
    %6583 = vmatprep.subr.mxu0 0.0
    %6584 = vmatpush1.msra.mxu0 0.0
    %6585 = vmatprep.subr.mxu0 0.0
    %6586 = vmatpush1.msra.mxu0 0.0
    %6587 = vmatprep.subr.mxu0 0.0
    %6588 = vmatpush1.msra.mxu0 0.0
    %6589 = vmatprep.subr.mxu0 0.0
    %6590 = vmatpush1.msra.mxu0 0.0
    %6591 = vmatprep.subr.mxu0 0.0
    %6592 = vmatpush1.msra.mxu0 0.0
    %6593 = vmatprep.subr.mxu0 0.0
    %6594 = vmatpush1.msra.mxu0 0.0
    %6595 = vmatprep.subr.mxu0 0.0
    %6596 = vmatpush1.msra.mxu0 0.0
    %6597 = vmatprep.subr.mxu0 0.0
    %6598 = vmatpush1.msra.mxu0 0.0
    %6599 = vmatprep.subr.mxu0 0.0
    %6600 = vmatpush1.msra.mxu0 0.0
    %6601 = vmatprep.subr.mxu0 0.0
    %6602 = vmatpush1.msra.mxu0 0.0
    %6603 = vmatprep.subr.mxu0 0.0
    %6604 = vmatpush1.msra.mxu0 0.0
    %6605 = vmatprep.subr.mxu0 0.0
    %6606 = vmatpush1.msra.mxu0 0.0
    %6607 = vmatprep.subr.mxu0 0.0
    %6608 = vmatpush1.msra.mxu0 0.0
    %6609 = vmatprep.subr.mxu0 0.0
    %6610 = vmatpush1.msra.mxu0 0.0
    %6611 = vmatprep.subr.mxu0 0.0
    %6612 = vmatpush1.msra.mxu0 0.0
    %6613 = vmatprep.subr.mxu0 0.0
    %6614 = vmatpush1.msra.mxu0 0.0
    %6615 = vmatprep.subr.mxu0 0.0
    %6616 = vmatpush1.msra.mxu0 0.0
    %6617 = vmatprep.subr.mxu0 0.0
    %6618 = vmatpush1.msra.mxu0 0.0
    %6619 = vmatprep.subr.mxu0 0.0
    %6620 = vmatpush1.msra.mxu0 0.0
    %6621 = vmatprep.subr.mxu0 0.0
    %6622 = vmatpush1.msra.mxu0 0.0
    %6623 = vmatprep.mubr.f32.mxu0 0.0
    %6624 = vmatmul.mubr.f32.gmra.mrb[0].mxu0 %v6557
    %v6625 = vpop.f32.mrb[0].mxu0
    %v6626 = vadd.f32 0.0, %v6625
    %v6627 = vpop.f32.mrb[0].mxu0
    %6628 = vdwg.mxu0
    %6631 = vrot.lane.b32.xlu0 %v6246, 8
    %v6632 = vpop.permute.xlu0 %6631
    %6633 = vrot.lane.b32.xlu0 %v6322, 8
    %v6634 = vpop.permute.xlu0 %6633
    %6639 = vrot.lane.b32.xlu0 %v6398, 16
    %v6640 = vpop.permute.xlu0 %6639
    %6641 = vrot.lane.b32.xlu0 %v6474, 16
    %v6642 = vpop.permute.xlu0 %6641
    %6647 = vrot.lane.b32.xlu0 %v6550, 24
    %v6648 = vpop.permute.xlu0 %6647
    %6649 = vrot.lane.b32.xlu0 %v6626, 24
    %v6650 = vpop.permute.xlu0 %6649
    %v6653 = vsel %vm203, %v6094, %v6632
    %v6654 = vsel %vm203, %v6170, %v6634
    %v6655 = vsel %vm1532, %v6653, %v6640
    %v6656 = vsel %vm1532, %v6654, %v6642
    %v6657 = vsel %vm1535, %v6655, %v6648
    %v6658 = vsel %vm1535, %v6656, %v6650
    %6659 = vrot.lane.b32.xlu0 %v6015, 8
    %v6660 = vpop.permute.xlu0 %6659
    %6661 = vrot.lane.b32.xlu0 %v6016, 8
    %v6662 = vpop.permute.xlu0 %6661
    %6665 = vrot.lane.b32.xlu0 %v6017, 16
    %v6666 = vpop.permute.xlu0 %6665
    %6667 = vrot.lane.b32.xlu0 %v6018, 16
    %v6668 = vpop.permute.xlu0 %6667
    %6671 = vrot.lane.b32.xlu0 %v6019, 24
    %v6672 = vpop.permute.xlu0 %6671
    %6673 = vrot.lane.b32.xlu0 %v6020, 24
    %v6674 = vpop.permute.xlu0 %6673
    %v6677 = vsel %vm203, %v6013, %v6660
    %v6678 = vsel %vm203, %v6014, %v6662
    %v6679 = vsel %vm1532, %v6677, %v6666
    %v6680 = vsel %vm1532, %v6678, %v6668
    %v6681 = vsel %vm1535, %v6679, %v6672
    %v6682 = vsel %vm1535, %v6680, %v6674
    %s6683 = scalar_lea.vmem %s12, 32
    %v6684 = vld [vmem:[%s6683] sm:$0xff]
    %v6685 = vld [vmem:[%s6683 + $0x8] sm:$0xff]
    %v6686 = vld [vmem:[%s6683 + $0x10] sm:$0xff]
    %v6687 = vld [vmem:[%s6683 + $0x18] sm:$0xff]
    %s6688 = scalar_lea.vmem %s13, 1
    %v6689 = vld [vmem:[%s6688] sm:$0x1]
    %v6691 = vlaneseq
    %v6692 = vshrl.u32 %v6691, 7
    %v6693 = vsub.s32 0, %v6692
    %v6694 = vrot.slane %v6689, %v6693
    %v6697 = vsel %vm105, %v6657, 0
    %v6700 = vsel %vm105, %v6658, 0
    %6702 = vmatprep.subr.mxu0 0.0
    %6703 = vmatpush1.msra.mxu0 %v6684
    %6704 = vmatprep.subr.mxu0 0.0
    %6705 = vmatpush1.msra.mxu0 %v6685
    %6706 = vmatprep.subr.mxu0 0.0
    %6707 = vmatpush1.msra.mxu0 %v6686
    %6708 = vmatprep.subr.mxu0 0.0
    %6709 = vmatpush1.msra.mxu0 %v6687
    %6710 = vmatprep.subr.mxu0 0.0
    %6711 = vmatpush1.msra.mxu0 0.0
    %6712 = vmatprep.subr.mxu0 0.0
    %6713 = vmatpush1.msra.mxu0 0.0
    %6714 = vmatprep.subr.mxu0 0.0
    %6715 = vmatpush1.msra.mxu0 0.0
    %6716 = vmatprep.subr.mxu0 0.0
    %6717 = vmatpush1.msra.mxu0 0.0
    %6718 = vmatprep.subr.mxu0 0.0
    %6719 = vmatpush1.msra.mxu0 0.0
    %6720 = vmatprep.subr.mxu0 0.0
    %6721 = vmatpush1.msra.mxu0 0.0
    %6722 = vmatprep.subr.mxu0 0.0
    %6723 = vmatpush1.msra.mxu0 0.0
    %6724 = vmatprep.subr.mxu0 0.0
    %6725 = vmatpush1.msra.mxu0 0.0
    %6726 = vmatprep.subr.mxu0 0.0
    %6727 = vmatpush1.msra.mxu0 0.0
    %6728 = vmatprep.subr.mxu0 0.0
    %6729 = vmatpush1.msra.mxu0 0.0
    %6730 = vmatprep.subr.mxu0 0.0
    %6731 = vmatpush1.msra.mxu0 0.0
    %6732 = vmatprep.subr.mxu0 0.0
    %6733 = vmatpush1.msra.mxu0 0.0
    %6734 = vmatprep.subr.mxu0 0.0
    %6735 = vmatpush1.msra.mxu0 0.0
    %6736 = vmatprep.subr.mxu0 0.0
    %6737 = vmatpush1.msra.mxu0 0.0
    %6738 = vmatprep.subr.mxu0 0.0
    %6739 = vmatpush1.msra.mxu0 0.0
    %6740 = vmatprep.subr.mxu0 0.0
    %6741 = vmatpush1.msra.mxu0 0.0
    %6742 = vmatprep.subr.mxu0 0.0
    %6743 = vmatpush1.msra.mxu0 0.0
    %6744 = vmatprep.subr.mxu0 0.0
    %6745 = vmatpush1.msra.mxu0 0.0
    %6746 = vmatprep.subr.mxu0 0.0
    %6747 = vmatpush1.msra.mxu0 0.0
    %6748 = vmatprep.subr.mxu0 0.0
    %6749 = vmatpush1.msra.mxu0 0.0
    %6750 = vmatprep.subr.mxu0 0.0
    %6751 = vmatpush1.msra.mxu0 0.0
    %6752 = vmatprep.subr.mxu0 0.0
    %6753 = vmatpush1.msra.mxu0 0.0
    %6754 = vmatprep.subr.mxu0 0.0
    %6755 = vmatpush1.msra.mxu0 0.0
    %6756 = vmatprep.subr.mxu0 0.0
    %6757 = vmatpush1.msra.mxu0 0.0
    %6758 = vmatprep.subr.mxu0 0.0
    %6759 = vmatpush1.msra.mxu0 0.0
    %6760 = vmatprep.subr.mxu0 0.0
    %6761 = vmatpush1.msra.mxu0 0.0
    %6762 = vmatprep.subr.mxu0 0.0
    %6763 = vmatpush1.msra.mxu0 0.0
    %6764 = vmatprep.subr.mxu0 0.0
    %6765 = vmatpush1.msra.mxu0 0.0
    %6766 = vmatprep.mubr.f32.mxu0 0.0
    %6767 = vmatmul.mubr.f32.gmra.mrb[0].mxu0 %v6697
    %v6768 = vpop.f32.mrb[0].mxu0
    %v6769 = vadd.f32 %v6694, %v6768
    %v6770 = vpop.f32.mrb[0].mxu0
    %6771 = vmatprep.mubr.f32.mxu0 0.0
    %6772 = vmatmul.mubr.f32.gmra.mrb[0].mxu0 %v6700
    %v6773 = vpop.f32.mrb[0].mxu0
    %v6774 = vadd.f32 %v6694, %v6773
    %v6775 = vpop.f32.mrb[0].mxu0
    %6776 = vdwg.mxu0
    %v6777 = vadd.f32 %v6769, %v5191
    %v6778 = vadd.f32 %v6774, %v5192
    %s6779 = scalar_lea.vmem %s14, 1
    %v6780 = vld [vmem:[%s6779] sm:$0x1]
    %s6781 = scalar_lea.vmem %s15, 1
    %v6782 = vld [vmem:[%s6781] sm:$0x1]
    %v6783 = vsel %vm105, %v6777, 0.0
    %6784 = vadd.xlane.f32.xlu0 %v6783
    %v6785 = vpop.xlane.xlu0 %6784
    %v6786 = vsel %vm105, %v6778, 0.0
    %6787 = vadd.xlane.f32.xlu0 %v6786
    %v6788 = vpop.xlane.xlu0 %6787
    %v6789 = vmul.f32 %v6785, 0.03125
    %v6790 = vmul.f32 %v6788, 0.03125
    %v6791 = vmul.f32 %v6777, %v6777
    %v6792 = vmul.f32 %v6778, %v6778
    %v6793 = vsel %vm105, %v6791, 0.0
    %6794 = vadd.xlane.f32.xlu0 %v6793
    %v6795 = vpop.xlane.xlu0 %6794
    %v6796 = vsel %vm105, %v6792, 0.0
    %6797 = vadd.xlane.f32.xlu0 %v6796
    %v6798 = vpop.xlane.xlu0 %6797
    %v6799 = vmul.f32 %v6795, 0.03125
    %v6800 = vmul.f32 %v6798, 0.03125
    %v6801 = vmul.f32 %v6789, %v6789
    %v6802 = vmul.f32 %v6790, %v6790
    %v6803 = vsub.f32 %v6799, %v6801
    %v6804 = vsub.f32 %v6800, %v6802
    %v6805 = vsub.f32 %v6777, %v6789
    %v6806 = vsub.f32 %v6778, %v6790
    %v6807 = vadd.f32 %v6803, 1e-05
    %v6808 = vadd.f32 %v6804, 1e-05
    %v6809 = vrsqrt.pop %v6807
    %v6810 = vrsqrt.pop %v6808
    %v6811 = vmul.f32 %v6805, %v6809
    %v6812 = vmul.f32 %v6806, %v6810
    %v6814 = vlaneseq
    %v6815 = vshrl.u32 %v6814, 7
    %v6816 = vsub.s32 0, %v6815
    %v6817 = vrot.slane %v6780, %v6816
    %v6819 = vmul.f32 %v6811, %v6817
    %v6820 = vmul.f32 %v6812, %v6817
    %v6822 = vlaneseq
    %v6823 = vshrl.u32 %v6822, 7
    %v6824 = vsub.s32 0, %v6823
    %v6825 = vrot.slane %v6782, %v6824
    %v6827 = vadd.f32 %v6819, %v6825
    %v6828 = vadd.f32 %v6820, %v6825
    %s6829 = scalar_lea.vmem %s16, 32
    %v6830 = vld [vmem:[%s6829] sm:$0xff]
    %v6831 = vld [vmem:[%s6829 + $0x8] sm:$0xff]
    %v6832 = vld [vmem:[%s6829 + $0x10] sm:$0xff]
    %v6833 = vld [vmem:[%s6829 + $0x18] sm:$0xff]
    %s6834 = scalar_lea.vmem %s17, 1
    %v6835 = vld [vmem:[%s6834] sm:$0x1]
    %v6837 = vlaneseq
    %v6838 = vshrl.u32 %v6837, 7
    %v6839 = vsub.s32 0, %v6838
    %v6840 = vrot.slane %v6835, %v6839
    %v6843 = vsel %vm105, %v6827, 0
    %v6846 = vsel %vm105, %v6828, 0
    %6848 = vmatprep.subr.mxu0 0.0
    %6849 = vmatpush1.msra.mxu0 %v6830
    %6850 = vmatprep.subr.mxu0 0.0
    %6851 = vmatpush1.msra.mxu0 %v6831
    %6852 = vmatprep.subr.mxu0 0.0
    %6853 = vmatpush1.msra.mxu0 %v6832
    %6854 = vmatprep.subr.mxu0 0.0
    %6855 = vmatpush1.msra.mxu0 %v6833
    %6856 = vmatprep.subr.mxu0 0.0
    %6857 = vmatpush1.msra.mxu0 0.0
    %6858 = vmatprep.subr.mxu0 0.0
    %6859 = vmatpush1.msra.mxu0 0.0
    %6860 = vmatprep.subr.mxu0 0.0
    %6861 = vmatpush1.msra.mxu0 0.0
    %6862 = vmatprep.subr.mxu0 0.0
    %6863 = vmatpush1.msra.mxu0 0.0
    %6864 = vmatprep.subr.mxu0 0.0
    %6865 = vmatpush1.msra.mxu0 0.0
    %6866 = vmatprep.subr.mxu0 0.0
    %6867 = vmatpush1.msra.mxu0 0.0
    %6868 = vmatprep.subr.mxu0 0.0
    %6869 = vmatpush1.msra.mxu0 0.0
    %6870 = vmatprep.subr.mxu0 0.0
    %6871 = vmatpush1.msra.mxu0 0.0
    %6872 = vmatprep.subr.mxu0 0.0
    %6873 = vmatpush1.msra.mxu0 0.0
    %6874 = vmatprep.subr.mxu0 0.0
    %6875 = vmatpush1.msra.mxu0 0.0
    %6876 = vmatprep.subr.mxu0 0.0
    %6877 = vmatpush1.msra.mxu0 0.0
    %6878 = vmatprep.subr.mxu0 0.0
    %6879 = vmatpush1.msra.mxu0 0.0
    %6880 = vmatprep.subr.mxu0 0.0
    %6881 = vmatpush1.msra.mxu0 0.0
    %6882 = vmatprep.subr.mxu0 0.0
    %6883 = vmatpush1.msra.mxu0 0.0
    %6884 = vmatprep.subr.mxu0 0.0
    %6885 = vmatpush1.msra.mxu0 0.0
    %6886 = vmatprep.subr.mxu0 0.0
    %6887 = vmatpush1.msra.mxu0 0.0
    %6888 = vmatprep.subr.mxu0 0.0
    %6889 = vmatpush1.msra.mxu0 0.0
    %6890 = vmatprep.subr.mxu0 0.0
    %6891 = vmatpush1.msra.mxu0 0.0
    %6892 = vmatprep.subr.mxu0 0.0
    %6893 = vmatpush1.msra.mxu0 0.0
    %6894 = vmatprep.subr.mxu0 0.0
    %6895 = vmatpush1.msra.mxu0 0.0
    %6896 = vmatprep.subr.mxu0 0.0
    %6897 = vmatpush1.msra.mxu0 0.0
    %6898 = vmatprep.subr.mxu0 0.0
    %6899 = vmatpush1.msra.mxu0 0.0
    %6900 = vmatprep.subr.mxu0 0.0
    %6901 = vmatpush1.msra.mxu0 0.0
    %6902 = vmatprep.subr.mxu0 0.0
    %6903 = vmatpush1.msra.mxu0 0.0
    %6904 = vmatprep.subr.mxu0 0.0
    %6905 = vmatpush1.msra.mxu0 0.0
    %6906 = vmatprep.subr.mxu0 0.0
    %6907 = vmatpush1.msra.mxu0 0.0
    %6908 = vmatprep.subr.mxu0 0.0
    %6909 = vmatpush1.msra.mxu0 0.0
    %6910 = vmatprep.subr.mxu0 0.0
    %6911 = vmatpush1.msra.mxu0 0.0
    %6912 = vmatprep.mubr.f32.mxu0 0.0
    %6913 = vmatmul.mubr.f32.gmra.mrb[0].mxu0 %v6843
    %v6914 = vpop.f32.mrb[0].mxu0
    %v6915 = vadd.f32 %v6840, %v6914
    %v6916 = vpop.f32.mrb[0].mxu0
    %6917 = vmatprep.mubr.f32.mxu0 0.0
    %6918 = vmatmul.mubr.f32.gmra.mrb[0].mxu0 %v6846
    %v6919 = vpop.f32.mrb[0].mxu0
    %v6920 = vadd.f32 %v6840, %v6919
    %v6921 = vpop.f32.mrb[0].mxu0
    %6922 = vdwg.mxu0
    %v6923 = vmax.f32 %v6915, 0.0
    %v6924 = vmax.f32 %v6920, 0.0
    %s6925 = scalar_lea.vmem %s18, 64
    %v6926 = vld [vmem:[%s6925] sm:$0xff]
    %v6927 = vld [vmem:[%s6925 + $0x8] sm:$0xff]
    %v6928 = vld [vmem:[%s6925 + $0x10] sm:$0xff]
    %v6929 = vld [vmem:[%s6925 + $0x18] sm:$0xff]
    %v6930 = vld [vmem:[%s6925 + $0x20] sm:$0xff]
    %v6931 = vld [vmem:[%s6925 + $0x28] sm:$0xff]
    %v6932 = vld [vmem:[%s6925 + $0x30] sm:$0xff]
    %v6933 = vld [vmem:[%s6925 + $0x38] sm:$0xff]
    %s6934 = scalar_lea.vmem %s19, 1
    %v6935 = vld [vmem:[%s6934] sm:$0x1]
    %v6937 = vlaneseq
    %v6938 = vshrl.u32 %v6937, 7
    %v6939 = vsub.s32 0, %v6938
    %v6940 = vrot.slane %v6935, %v6939
    %v6943 = vsel %vm3449, %v6923, 0
    %v6946 = vsel %vm3449, %v6924, 0
    %6948 = vmatprep.subr.mxu0 0.0
    %6949 = vmatpush1.msra.mxu0 %v6926
    %6950 = vmatprep.subr.mxu0 0.0
    %6951 = vmatpush1.msra.mxu0 %v6927
    %6952 = vmatprep.subr.mxu0 0.0
    %6953 = vmatpush1.msra.mxu0 %v6928
    %6954 = vmatprep.subr.mxu0 0.0
    %6955 = vmatpush1.msra.mxu0 %v6929
    %6956 = vmatprep.subr.mxu0 0.0
    %6957 = vmatpush1.msra.mxu0 %v6930
    %6958 = vmatprep.subr.mxu0 0.0
    %6959 = vmatpush1.msra.mxu0 %v6931
    %6960 = vmatprep.subr.mxu0 0.0
    %6961 = vmatpush1.msra.mxu0 %v6932
    %6962 = vmatprep.subr.mxu0 0.0
    %6963 = vmatpush1.msra.mxu0 %v6933
    %6964 = vmatprep.subr.mxu0 0.0
    %6965 = vmatpush1.msra.mxu0 0.0
    %6966 = vmatprep.subr.mxu0 0.0
    %6967 = vmatpush1.msra.mxu0 0.0
    %6968 = vmatprep.subr.mxu0 0.0
    %6969 = vmatpush1.msra.mxu0 0.0
    %6970 = vmatprep.subr.mxu0 0.0
    %6971 = vmatpush1.msra.mxu0 0.0
    %6972 = vmatprep.subr.mxu0 0.0
    %6973 = vmatpush1.msra.mxu0 0.0
    %6974 = vmatprep.subr.mxu0 0.0
    %6975 = vmatpush1.msra.mxu0 0.0
    %6976 = vmatprep.subr.mxu0 0.0
    %6977 = vmatpush1.msra.mxu0 0.0
    %6978 = vmatprep.subr.mxu0 0.0
    %6979 = vmatpush1.msra.mxu0 0.0
    %6980 = vmatprep.subr.mxu0 0.0
    %6981 = vmatpush1.msra.mxu0 0.0
    %6982 = vmatprep.subr.mxu0 0.0
    %6983 = vmatpush1.msra.mxu0 0.0
    %6984 = vmatprep.subr.mxu0 0.0
    %6985 = vmatpush1.msra.mxu0 0.0
    %6986 = vmatprep.subr.mxu0 0.0
    %6987 = vmatpush1.msra.mxu0 0.0
    %6988 = vmatprep.subr.mxu0 0.0
    %6989 = vmatpush1.msra.mxu0 0.0
    %6990 = vmatprep.subr.mxu0 0.0
    %6991 = vmatpush1.msra.mxu0 0.0
    %6992 = vmatprep.subr.mxu0 0.0
    %6993 = vmatpush1.msra.mxu0 0.0
    %6994 = vmatprep.subr.mxu0 0.0
    %6995 = vmatpush1.msra.mxu0 0.0
    %6996 = vmatprep.subr.mxu0 0.0
    %6997 = vmatpush1.msra.mxu0 0.0
    %6998 = vmatprep.subr.mxu0 0.0
    %6999 = vmatpush1.msra.mxu0 0.0
    %7000 = vmatprep.subr.mxu0 0.0
    %7001 = vmatpush1.msra.mxu0 0.0
    %7002 = vmatprep.subr.mxu0 0.0
    %7003 = vmatpush1.msra.mxu0 0.0
    %7004 = vmatprep.subr.mxu0 0.0
    %7005 = vmatpush1.msra.mxu0 0.0
    %7006 = vmatprep.subr.mxu0 0.0
    %7007 = vmatpush1.msra.mxu0 0.0
    %7008 = vmatprep.subr.mxu0 0.0
    %7009 = vmatpush1.msra.mxu0 0.0
    %7010 = vmatprep.subr.mxu0 0.0
    %7011 = vmatpush1.msra.mxu0 0.0
    %7012 = vmatprep.mubr.f32.mxu0 0.0
    %7013 = vmatmul.mubr.f32.gmra.mrb[0].mxu0 %v6943
    %v7014 = vpop.f32.mrb[0].mxu0
    %v7015 = vadd.f32 %v6940, %v7014
    %v7016 = vpop.f32.mrb[0].mxu0
    %7017 = vmatprep.mubr.f32.mxu0 0.0
    %7018 = vmatmul.mubr.f32.gmra.mrb[0].mxu0 %v6946
    %v7019 = vpop.f32.mrb[0].mxu0
    %v7020 = vadd.f32 %v6940, %v7019
    %v7021 = vpop.f32.mrb[0].mxu0
    %7022 = vdwg.mxu0
    %v7023 = vadd.f32 %v7015, %v6827
    %v7024 = vadd.f32 %v7020, %v6828
    %s7025 = scalar_lea.vmem %s20, 1
    %v7026 = vld [vmem:[%s7025] sm:$0x1]
    %s7027 = scalar_lea.vmem %s21, 1
    %v7028 = vld [vmem:[%s7027] sm:$0x1]
    %v7029 = vsel %vm105, %v7023, 0.0
    %7030 = vadd.xlane.f32.xlu0 %v7029
    %v7031 = vpop.xlane.xlu0 %7030
    %v7032 = vsel %vm105, %v7024, 0.0
    %7033 = vadd.xlane.f32.xlu0 %v7032
    %v7034 = vpop.xlane.xlu0 %7033
    %v7035 = vmul.f32 %v7031, 0.03125
    %v7036 = vmul.f32 %v7034, 0.03125
    %v7037 = vmul.f32 %v7023, %v7023
    %v7038 = vmul.f32 %v7024, %v7024
    %v7039 = vsel %vm105, %v7037, 0.0
    %7040 = vadd.xlane.f32.xlu0 %v7039
    %v7041 = vpop.xlane.xlu0 %7040
    %v7042 = vsel %vm105, %v7038, 0.0
    %7043 = vadd.xlane.f32.xlu0 %v7042
    %v7044 = vpop.xlane.xlu0 %7043
    %v7045 = vmul.f32 %v7041, 0.03125
    %v7046 = vmul.f32 %v7044, 0.03125
    %v7047 = vmul.f32 %v7035, %v7035
    %v7048 = vmul.f32 %v7036, %v7036
    %v7049 = vsub.f32 %v7045, %v7047
    %v7050 = vsub.f32 %v7046, %v7048
    %v7051 = vsub.f32 %v7023, %v7035
    %v7052 = vsub.f32 %v7024, %v7036
    %v7053 = vadd.f32 %v7049, 1e-05
    %v7054 = vadd.f32 %v7050, 1e-05
    %v7055 = vrsqrt.pop %v7053
    %v7056 = vrsqrt.pop %v7054
    %v7057 = vmul.f32 %v7051, %v7055
    %v7058 = vmul.f32 %v7052, %v7056
    %v7060 = vlaneseq
    %v7061 = vshrl.u32 %v7060, 7
    %v7062 = vsub.s32 0, %v7061
    %v7063 = vrot.slane %v7026, %v7062
    %v7065 = vmul.f32 %v7057, %v7063
    %v7066 = vmul.f32 %v7058, %v7063
    %v7068 = vlaneseq
    %v7069 = vshrl.u32 %v7068, 7
    %v7070 = vsub.s32 0, %v7069
    %v7071 = vrot.slane %v7028, %v7070
    %v7073 = vadd.f32 %v7065, %v7071
    %v7074 = vadd.f32 %v7066, %v7071
    %7075 = vst.msk [vmem:[#allocation2] sm:$0xff] %vm105, %v7073
    %7076 = vst.msk [vmem:[#allocation2 + $0x8] sm:$0xff] %vm105, %v7074
    %7079 = vrot.lane.b32.xlu0 %v3196, 32
    %v7080 = vpop.permute.xlu0 %7079
    %7081 = vrot.lane.b32.xlu0 %v3197, 32
    %v7082 = vpop.permute.xlu0 %7081
    %7087 = vrot.lane.b32.xlu0 %v5045, 64
    %v7088 = vpop.permute.xlu0 %7087
    %7089 = vrot.lane.b32.xlu0 %v5046, 64
    %v7090 = vpop.permute.xlu0 %7089
    %7095 = vrot.lane.b32.xlu0 %v6681, 96
    %v7096 = vpop.permute.xlu0 %7095
    %7097 = vrot.lane.b32.xlu0 %v6682, 96
    %v7098 = vpop.permute.xlu0 %7097
    %v7101 = vsel %vm105, %v1560, %v7080
    %v7102 = vsel %vm105, %v1561, %v7082
    %v7103 = vsel %vm3449, %v7101, %v7088
    %v7104 = vsel %vm3449, %v7102, %v7090
    %vm7105 = vcmask 785408
    %v7106 = vsel %vm7105, %v7103, %v7096
    %v7107 = vsel %vm7105, %v7104, %v7098
    %7108 = vst [vmem:[%s23] sm:$0xff] %v7106
    %7109 = vst [vmem:[%s23 + $0x8] sm:$0xff] %v7107
    // Predicated region
    $region90: #{decoder_forward.1} parent=1 // pred_check
      _
    $region91: #{decoder_forward.1} parent=1 // pred_check_branch
      %7111 = sbr.rel (0) target = $region93
    $region92: #{decoder_forward.1} parent=1 // pred_region
      %s7113 = ssub.s32 256, 256
      %7114 = vsyncadd [#allocation3], %s7113
      %s7115 = sshll.u32 [#allocation2], 4
      %s7116 = int_to_ptr.vmem [resolvable:$true] %s7115
      %7121 = dma.vmem_to_hbm [thread:$0]  %s7116, 256, %s22, [#allocation3], 128, 128, 8
    $region93: #{decoder_forward.1} parent=1 // pred_fallthru
      _
    // Predicated region
    $region94: #{decoder_forward.1} parent=1 // pred_check
      _
    $region95: #{decoder_forward.1} parent=1 // pred_check_branch
      %7123 = sbr.rel (0) target = $region97
    $region96: #{decoder_forward.1} parent=1 // pred_region
      _
    $region97: #{decoder_forward.1} parent=1 // pred_fallthru
      _
    // Predicated region
    $region98: #{decoder_forward.1} parent=1 // pred_check
      _
    $region99: #{decoder_forward.1} parent=1 // pred_check_branch
      %7125 = sbr.rel (0) target = $region101
    $region100: #{decoder_forward.1} parent=1 // pred_region
      %7126 = dma.done [#allocation3], 256
    $region101: #{decoder_forward.1} parent=1 // pred_fallthru
      _
    // Predicated region
    $region102: #{decoder_forward.1} parent=1 // pred_check
      _
    $region103: #{decoder_forward.1} parent=1 // pred_check_branch
      %7128 = sbr.rel (0) target = $region105
    $region104: #{decoder_forward.1} parent=1 // pred_region
      _
    $region105: #{decoder_forward.1} parent=1 // pred_fallthru
      _
    %7129 = vsyncpa [#allocation3], 1

</llo_original>
